<compile_context>
chip_gen: v7x
topology: tpu7x:2x2x1
jax: 0.10.0
libtpu: 0.0.40
codegen_flags: <defaults>
</compile_context>

<pallas_src>
import functools

import jax
import jax.numpy as jnp
from jax.experimental import pallas as pl
from jax.experimental.pallas import tpu as pltpu


# ----------------------------- fused Pallas kernel -----------------------------

def _superres_kernel(cols_ref, mask_ref, w1_ref, b1_ref, w2_ref, b2_ref,
                     w3_ref, b3_ref, w4_ref, b4_ref, o_ref,
                     pad_a_ref, pad_b_ref, slab_ref, *, H, W, GUARD):
    """One grid step = one image of the batch, entirely in VMEM.

    Padded activation layout: pixel (h, w) lives at scratch row
        GUARD + (h+1)*(W+2) + (w+1)
    so every 3x3 tap is a plain +/-(W+2), +/-1 row shift of that scratch and
    all "same"-padding zeros are physically present (top/bottom pad rows +
    guards zeroed here, pad-column rows zeroed by the store mask).

    cols_ref : (1, M, 25) bf16  conv1 5x5 patches at the padded-grid rows
    mask_ref : (M, 1)     f32   1 on real pixels, 0 on pad-column rows
    wX/bX    : bf16 (taps*Cin, Cout) weights / f32 (1, Cout) biases
    o_ref    : (1, M, r*r) bf16 conv4 output (pad-col rows dropped outside)
    pad_*_ref: (PTOT, C)  bf16  padded activations;  slab_ref: (M, 576) bf16
    """
    Wp = W + 2                      # padded row stride
    M = H * Wp                      # rows computed per conv (incl. 2H pad-col rows)
    OFF = GUARD + Wp                # sublane-aligned start row of the interior

    mask = mask_ref[...]            # (M, 1) f32

    def zero_halos(pad_ref):
        # Halo strips are never written by the conv stores; the interior is
        # fully overwritten every conv, so this is all the zeroing needed.
        ptot, c = pad_ref.shape
        pad_ref[0:OFF, :] = jnp.zeros((OFF, c), pad_ref.dtype)
        pad_ref[OFF + M:ptot, :] = jnp.zeros((ptot - OFF - M, c), pad_ref.dtype)

    zero_halos(pad_a_ref)
    zero_halos(pad_b_ref)

    def conv3x3(pad_ref, w_ref, b_ref):
        # im2col-in-K: tap t = dy*3+dx occupies slab columns [t*cin,(t+1)*cin)
        # and is the activation shifted by (dy-1) image rows, (dx-1) columns.
        cin = pad_ref.shape[1]
        for dy in range(3):
            for dx in range(3):
                t = dy * 3 + dx
                s = GUARD + dy * Wp + dx - 1          # static, in-bounds (GUARD>=1)
                slab_ref[:, t * cin:(t + 1) * cin] = pad_ref[s:s + M, :]
        k = 9 * cin
        lhs = slab_ref[...] if k == slab_ref.shape[1] else slab_ref[:, 0:k]
        # Single full-depth MXU contraction (K = 576 or 288), f32 accumulation.
        return jnp.dot(lhs, w_ref[...],
                       preferred_element_type=jnp.float32) + b_ref[...]

    def store_act(y, pad_ref):
        # ReLU, zero the pad-column rows (so they remain valid zero padding
        # for the next conv), downcast to bf16, store into the padded scratch.
        pad_ref[OFF:OFF + M, :] = (jnp.maximum(y, 0.0) * mask).astype(pad_ref.dtype)

    # conv1 (5x5, Cin=1): 25 taps folded into K=25 by the wrapper.
    y = jnp.dot(cols_ref[0], w1_ref[...],
                preferred_element_type=jnp.float32) + b1_ref[...]
    store_act(y, pad_a_ref)                                   # -> 64 ch

    y = conv3x3(pad_a_ref, w2_ref, b2_ref)                    # 64 -> 64, K=576
    store_act(y, pad_a_ref)

    y = conv3x3(pad_a_ref, w3_ref, b3_ref)                    # 64 -> 32, K=576
    store_act(y, pad_b_ref)

    y = conv3x3(pad_b_ref, w4_ref, b4_ref)                    # 32 -> r*r, K=288
    o_ref[0] = y.astype(o_ref.dtype)                          # no relu / no mask


# ----------------------------- model wrapper -----------------------------

def superres_forward(x_nchw, params, upscale):
    """Forward pass matching SuperResolutionNet.forward. x: NCHW float32."""
    r = upscale
    N, Cin, H, W = x_nchw.shape
    assert Cin == 1 and H >= 1 and W >= 3
    c1, c2, c3, c4 = 64, 64, 32, r * r
    K1 = 5
    bf16 = jnp.bfloat16

    Wp = W + 2                              # padded row stride
    M = H * Wp                              # rows per image in padded layout
    GUARD = (-Wp) % 16 or 16                # guard so interior start is 16-aligned
    assert GUARD >= 1 and (GUARD + Wp) % 16 == 0
    PTOT = 2 * GUARD + (H + 2) * Wp         # padded-scratch rows (covers all taps)

    x = jnp.transpose(x_nchw, (0, 2, 3, 1)).astype(bf16)       # NHWC, bf16
    # conv1 patch extraction (layout glue): 5x5 taps folded into K=25, sampled
    # on the (W+2)-stride padded grid so conv1's output drops straight into the
    # padded layout used by the 3x3 convs.  Pad-column rows are masked in-kernel.
    xp = jnp.pad(x, ((0, 0), (2, 2), (3, 3), (0, 0)))          # (N, H+4, W+6, 1)
    cols = jnp.concatenate(
        [xp[:, dy:dy + H, dx:dx + Wp, :] for dy in range(K1) for dx in range(K1)],
        axis=-1).reshape(N, M, K1 * K1)

    # 0/1 mask over padded-layout rows: 0 on the 2H pad-column rows.
    pw = jnp.arange(M, dtype=jnp.int32) % Wp
    mask = ((pw >= 1) & (pw <= W)).astype(jnp.float32).reshape(M, 1)

    # Weights: (KH, KW, Cin, Cout) -> (KH*KW*Cin, Cout), tap-major / cin-minor,
    # matching the im2col slab column order.
    w1 = params["w1"].reshape(K1 * K1, c1).astype(bf16)        # (25, 64)
    w2 = params["w2"].reshape(9 * c1, c2).astype(bf16)         # (576, 64)
    w3 = params["w3"].reshape(9 * c2, c3).astype(bf16)         # (576, 32)
    w4 = params["w4"].reshape(9 * c3, c4).astype(bf16)         # (288, r*r)
    b1 = params["b1"].reshape(1, c1).astype(jnp.float32)
    b2 = params["b2"].reshape(1, c2).astype(jnp.float32)
    b3 = params["b3"].reshape(1, c3).astype(jnp.float32)
    b4 = params["b4"].reshape(1, c4).astype(jnp.float32)

    rep = lambda shape: pl.BlockSpec(shape, lambda n: (0,) * len(shape))

    out = pl.pallas_call(
        functools.partial(_superres_kernel, H=H, W=W, GUARD=GUARD),
        grid=(N,),
        in_specs=[
            pl.BlockSpec((1, M, K1 * K1), lambda n: (n, 0, 0)),   # conv1 patches
            rep((M, 1)),                                          # pad-col mask
            rep((K1 * K1, c1)), rep((1, c1)),                     # w1, b1
            rep((9 * c1, c2)), rep((1, c2)),                      # w2, b2
            rep((9 * c2, c3)), rep((1, c3)),                      # w3, b3
            rep((9 * c3, c4)), rep((1, c4)),                      # w4, b4
        ],
        out_specs=pl.BlockSpec((1, M, c4), lambda n: (n, 0, 0)),
        out_shape=jax.ShapeDtypeStruct((N, M, c4), bf16),         # bf16 writeback
        scratch_shapes=[
            pltpu.VMEM((PTOT, c1), bf16),      # padded activation (conv2/3 input)
            pltpu.VMEM((PTOT, c3), bf16),      # padded activation (conv4 input)
            pltpu.VMEM((M, 9 * c1), bf16),     # shared im2col slab (K <= 576)
        ],
        compiler_params=pltpu.CompilerParams(
            dimension_semantics=("parallel",),
            vmem_limit_bytes=32 * 1024 * 1024,
        ),
    )(cols, mask, w1, b1, w2, b2, w3, b3, w4, b4)

    # Drop the pad-column rows, then PixelShuffle (layout glue):
    # out[n, h, w, i*r+j] -> y[n, 0, h*r+i, w*r+j]
    y = out.reshape(N, H, Wp, c4)[:, :, 1:W + 1, :].astype(jnp.float32)
    y = y.reshape(N, H, W, r, r)
    y = jnp.transpose(y, (0, 1, 3, 2, 4))
    return y.reshape(N, 1, H * r, W * r)


# -------------------------- deterministic params --------------------------

def _orthogonal(key, shape, gain):
    """Orthogonal init a la torch.nn.init.orthogonal_, shape = (Cout,Cin,KH,KW)."""
    rows = shape[0]
    cols = shape[1] * shape[2] * shape[3]
    big, small = max(rows, cols), min(rows, cols)
    a = jax.random.normal(key, (big, small), jnp.float32)
    q, r = jnp.linalg.qr(a)
    q = q * jnp.sign(jnp.diagonal(r))
    if rows < cols:
        q = q.T
    return (gain * q).reshape(shape)


def init_params(key, upscale):
    gain_relu = float(jnp.sqrt(2.0))          # nn.init.calculate_gain('relu')
    cfg = [
        ("1", 1, 64, 5, gain_relu),
        ("2", 64, 64, 3, gain_relu),
        ("3", 64, 32, 3, gain_relu),
        ("4", 32, upscale ** 2, 3, 1.0),
    ]
    params = {}
    keys = jax.random.split(key, 2 * len(cfg))
    for i, (name, cin, cout, k, gain) in enumerate(cfg):
        w_oihw = _orthogonal(keys[2 * i], (cout, cin, k, k), gain)
        params["w" + name] = jnp.transpose(w_oihw, (2, 3, 1, 0))  # (KH,KW,Cin,Cout)
        bound = 1.0 / float(jnp.sqrt(float(cin * k * k)))
        params["b" + name] = jax.random.uniform(
            keys[2 * i + 1], (cout,), jnp.float32, -bound, bound)
    return params


# ------------------------------ JAX reference ------------------------------
# Mirrors the kernel's precision policy (bf16 matmul operands, f32 accumulation)
# so the structural correctness (taps, padding, bias, relu, shuffle) is checked
# tightly; summation order and the final bf16 writeback are the only remaining
# differences.

def reference_forward(x_nchw, params, r):
    def conv(x, w, b):
        kh, kw = w.shape[0], w.shape[1]
        w_oihw = jnp.transpose(w, (3, 2, 0, 1)).astype(jnp.bfloat16)
        y = jax.lax.conv_general_dilated(
            x.astype(jnp.bfloat16), w_oihw, window_strides=(1, 1),
            padding=((kh // 2, kh // 2), (kw // 2, kw // 2)),
            dimension_numbers=("NCHW", "OIHW", "NCHW"),
            preferred_element_type=jnp.float32)
        return y + b.reshape(1, -1, 1, 1)

    x = jax.nn.relu(conv(x_nchw, params["w1"], params["b1"]))
    x = jax.nn.relu(conv(x, params["w2"], params["b2"]))
    x = jax.nn.relu(conv(x, params["w3"], params["b3"]))
    x = conv(x, params["w4"], params["b4"])
    N, C, H, W = x.shape
    x = x.reshape(N, 1, r, r, H, W)
    x = jnp.transpose(x, (0, 1, 4, 2, 5, 3))
    return x.reshape(N, 1, H * r, W * r)


# ---------------------------------- main ----------------------------------

if __name__ == "__main__":
    upscale = 3
    key = jax.random.PRNGKey(0)
    k_x, k_p = jax.random.split(key)

    x = jax.random.normal(k_x, (2, 1, 16, 16), jnp.float32)   # NCHW, like PyTorch
    params = init_params(k_p, upscale)

    fwd = jax.jit(superres_forward, static_argnums=2)
    y = jax.block_until_ready(fwd(x, params, upscale))
    assert y.shape == (2, 1, 16 * upscale, 16 * upscale), y.shape

    y_ref = reference_forward(x, params, upscale)
    err = float(jnp.max(jnp.abs(y - y_ref)))
    assert jnp.allclose(y, y_ref, atol=2e-2, rtol=2e-2), err

    print("KERNEL_OK")
</pallas_src>

<mosaic_0001>
module attributes {stable_mosaic.version = 11 : i64} {
  func.func @_superres_kernel(%arg0: i32, %arg1: memref<1x288x25xbf16, #tpu.memory_space<vmem>>, %arg2: memref<288x1xf32, #tpu.memory_space<vmem>>, %arg3: memref<25x64xbf16, #tpu.memory_space<vmem>>, %arg4: memref<1x64xf32, #tpu.memory_space<vmem>>, %arg5: memref<576x64xbf16, #tpu.memory_space<vmem>>, %arg6: memref<1x64xf32, #tpu.memory_space<vmem>>, %arg7: memref<576x32xbf16, #tpu.memory_space<vmem>>, %arg8: memref<1x32xf32, #tpu.memory_space<vmem>>, %arg9: memref<288x9xbf16, #tpu.memory_space<vmem>>, %arg10: memref<1x9xf32, #tpu.memory_space<vmem>>, %arg11: memref<1x288x9xbf16, #tpu.memory_space<vmem>>, %arg12: memref<352x64xbf16, #tpu.memory_space<vmem>>, %arg13: memref<352x32xbf16, #tpu.memory_space<vmem>>, %arg14: memref<288x576xbf16, #tpu.memory_space<vmem>>) attributes {dimension_semantics = [#tpu.dimension_semantics<parallel>], iteration_bounds = array<i64: 2>, scalar_prefetch = 0 : i64, scratch_operands = 3 : i64, tpu.core_type = #tpu.core_type<tc>, window_params = [{transform_indices = @transform_0, window_bounds = array<i64: 1, 288, 25>}, {pipeline_mode = #tpu.pipeline_mode<synchronous>, transform_indices = @transform_1, window_bounds = array<i64: 288, 1>}, {pipeline_mode = #tpu.pipeline_mode<synchronous>, transform_indices = @transform_2, window_bounds = array<i64: 25, 64>}, {pipeline_mode = #tpu.pipeline_mode<synchronous>, transform_indices = @transform_3, window_bounds = array<i64: 1, 64>}, {pipeline_mode = #tpu.pipeline_mode<synchronous>, transform_indices = @transform_4, window_bounds = array<i64: 576, 64>}, {pipeline_mode = #tpu.pipeline_mode<synchronous>, transform_indices = @transform_5, window_bounds = array<i64: 1, 64>}, {pipeline_mode = #tpu.pipeline_mode<synchronous>, transform_indices = @transform_6, window_bounds = array<i64: 576, 32>}, {pipeline_mode = #tpu.pipeline_mode<synchronous>, transform_indices = @transform_7, window_bounds = array<i64: 1, 32>}, {pipeline_mode = #tpu.pipeline_mode<synchronous>, transform_indices = @transform_8, window_bounds = array<i64: 288, 9>}, {pipeline_mode = #tpu.pipeline_mode<synchronous>, transform_indices = @transform_9, window_bounds = array<i64: 1, 9>}, {transform_indices = @transform_10, window_bounds = array<i64: 1, 288, 9>}]} {
    %c0 = arith.constant 0 : index
    %c0_0 = arith.constant 0 : index
    %0 = vector.load %arg2[%c0, %c0_0] : memref<288x1xf32, #tpu.memory_space<vmem>>, vector<288x1xf32>
    %cst = arith.constant 0.000000e+00 : bf16
    %1 = vector.broadcast %cst : bf16 to vector<32x64xbf16>
    %c0_1 = arith.constant 0 : index
    %c0_2 = arith.constant 0 : index
    %2 = vector.load %arg12[%c0_1, %c0_2] : memref<352x64xbf16, #tpu.memory_space<vmem>>, vector<32x64xbf16>
    tpu.vector_store %arg12[%c0_1, %c0_2], %1 {strides = array<i32>} : memref<352x64xbf16, #tpu.memory_space<vmem>>, vector<32x64xbf16>,
    %cst_3 = arith.constant 0.000000e+00 : bf16
    %3 = vector.broadcast %cst_3 : bf16 to vector<32x64xbf16>
    %c320 = arith.constant 320 : index
    %c0_4 = arith.constant 0 : index
    %4 = vector.load %arg12[%c320, %c0_4] : memref<352x64xbf16, #tpu.memory_space<vmem>>, vector<32x64xbf16>
    tpu.vector_store %arg12[%c320, %c0_4], %3 {strides = array<i32>} : memref<352x64xbf16, #tpu.memory_space<vmem>>, vector<32x64xbf16>,
    %cst_5 = arith.constant 0.000000e+00 : bf16
    %5 = vector.broadcast %cst_5 : bf16 to vector<32x32xbf16>
    %c0_6 = arith.constant 0 : index
    %c0_7 = arith.constant 0 : index
    %6 = vector.load %arg13[%c0_6, %c0_7] : memref<352x32xbf16, #tpu.memory_space<vmem>>, vector<32x32xbf16>
    tpu.vector_store %arg13[%c0_6, %c0_7], %5 {strides = array<i32>} : memref<352x32xbf16, #tpu.memory_space<vmem>>, vector<32x32xbf16>,
    %cst_8 = arith.constant 0.000000e+00 : bf16
    %7 = vector.broadcast %cst_8 : bf16 to vector<32x32xbf16>
    %c320_9 = arith.constant 320 : index
    %c0_10 = arith.constant 0 : index
    %8 = vector.load %arg13[%c320_9, %c0_10] : memref<352x32xbf16, #tpu.memory_space<vmem>>, vector<32x32xbf16>
    tpu.vector_store %arg13[%c320_9, %c0_10], %7 {strides = array<i32>} : memref<352x32xbf16, #tpu.memory_space<vmem>>, vector<32x32xbf16>,
    %c0_11 = arith.constant 0 : index
    %c0_12 = arith.constant 0 : index
    %c0_13 = arith.constant 0 : index
    %9 = vector.load %arg1[%c0_11, %c0_12, %c0_13] : memref<1x288x25xbf16, #tpu.memory_space<vmem>>, vector<1x288x25xbf16>
    %10 = vector.shape_cast %9 : vector<1x288x25xbf16> to vector<288x25xbf16>
    %c0_14 = arith.constant 0 : index
    %c0_15 = arith.constant 0 : index
    %11 = vector.load %arg3[%c0_14, %c0_15] : memref<25x64xbf16, #tpu.memory_space<vmem>>, vector<25x64xbf16>
    %cst_16 = arith.constant dense<0.000000e+00> : vector<288x64xf32>
    %12 = tpu.matmul %10, %11, %cst_16 {dimension_numbers = #tpu.dot_dimension_numbers<[1], [0], [0], [1], [0, 0, 1, 1], [], []>} : vector<288x25xbf16>, vector<25x64xbf16>, vector<288x64xf32> -> vector<288x64xf32>
    %c0_17 = arith.constant 0 : index
    %c0_18 = arith.constant 0 : index
    %13 = vector.load %arg4[%c0_17, %c0_18] : memref<1x64xf32, #tpu.memory_space<vmem>>, vector<1x64xf32>
    %14 = vector.broadcast %13 : vector<1x64xf32> to vector<288x64xf32>
    %15 = arith.addf %12, %14 : vector<288x64xf32>
    %cst_19 = arith.constant 0.000000e+00 : f32
    %16 = vector.broadcast %cst_19 : f32 to vector<288x64xf32>
    %17 = arith.maximumf %15, %16 : vector<288x64xf32>
    %18 = vector.broadcast %0 : vector<288x1xf32> to vector<288x64xf32>
    %19 = arith.mulf %17, %18 : vector<288x64xf32>
    %20 = arith.truncf %19 : vector<288x64xf32> to vector<288x64xbf16>
    %c32 = arith.constant 32 : index
    %c0_20 = arith.constant 0 : index
    %21 = vector.load %arg12[%c32, %c0_20] : memref<352x64xbf16, #tpu.memory_space<vmem>>, vector<288x64xbf16>
    tpu.vector_store %arg12[%c32, %c0_20], %20 {strides = array<i32>} : memref<352x64xbf16, #tpu.memory_space<vmem>>, vector<288x64xbf16>,
    %c13 = arith.constant 13 : index
    %c0_21 = arith.constant 0 : index
    %22 = vector.load %arg12[%c13, %c0_21] : memref<352x64xbf16, #tpu.memory_space<vmem>>, vector<288x64xbf16>
    %c0_22 = arith.constant 0 : index
    %c0_23 = arith.constant 0 : index
    %23 = vector.load %arg14[%c0_22, %c0_23] : memref<288x576xbf16, #tpu.memory_space<vmem>>, vector<288x64xbf16>
    tpu.vector_store %arg14[%c0_22, %c0_23], %22 {strides = array<i32>} : memref<288x576xbf16, #tpu.memory_space<vmem>>, vector<288x64xbf16>,
    %c14 = arith.constant 14 : index
    %c0_24 = arith.constant 0 : index
    %24 = vector.load %arg12[%c14, %c0_24] : memref<352x64xbf16, #tpu.memory_space<vmem>>, vector<288x64xbf16>
    %c0_25 = arith.constant 0 : index
    %c64 = arith.constant 64 : index
    %25 = vector.load %arg14[%c0_25, %c64] : memref<288x576xbf16, #tpu.memory_space<vmem>>, vector<288x64xbf16>
    tpu.vector_store %arg14[%c0_25, %c64], %24 {strides = array<i32>} : memref<288x576xbf16, #tpu.memory_space<vmem>>, vector<288x64xbf16>,
    %c15 = arith.constant 15 : index
    %c0_26 = arith.constant 0 : index
    %26 = vector.load %arg12[%c15, %c0_26] : memref<352x64xbf16, #tpu.memory_space<vmem>>, vector<288x64xbf16>
    %c0_27 = arith.constant 0 : index
    %c128 = arith.constant 128 : index
    %27 = vector.load %arg14[%c0_27, %c128] : memref<288x576xbf16, #tpu.memory_space<vmem>>, vector<288x64xbf16>
    tpu.vector_store %arg14[%c0_27, %c128], %26 {strides = array<i32>} : memref<288x576xbf16, #tpu.memory_space<vmem>>, vector<288x64xbf16>,
    %c31 = arith.constant 31 : index
    %c0_28 = arith.constant 0 : index
    %28 = vector.load %arg12[%c31, %c0_28] : memref<352x64xbf16, #tpu.memory_space<vmem>>, vector<288x64xbf16>
    %c0_29 = arith.constant 0 : index
    %c192 = arith.constant 192 : index
    %29 = vector.load %arg14[%c0_29, %c192] : memref<288x576xbf16, #tpu.memory_space<vmem>>, vector<288x64xbf16>
    tpu.vector_store %arg14[%c0_29, %c192], %28 {strides = array<i32>} : memref<288x576xbf16, #tpu.memory_space<vmem>>, vector<288x64xbf16>,
    %c32_30 = arith.constant 32 : index
    %c0_31 = arith.constant 0 : index
    %30 = vector.load %arg12[%c32_30, %c0_31] : memref<352x64xbf16, #tpu.memory_space<vmem>>, vector<288x64xbf16>
    %c0_32 = arith.constant 0 : index
    %c256 = arith.constant 256 : index
    %31 = vector.load %arg14[%c0_32, %c256] : memref<288x576xbf16, #tpu.memory_space<vmem>>, vector<288x64xbf16>
    tpu.vector_store %arg14[%c0_32, %c256], %30 {strides = array<i32>} : memref<288x576xbf16, #tpu.memory_space<vmem>>, vector<288x64xbf16>,
    %c33 = arith.constant 33 : index
    %c0_33 = arith.constant 0 : index
    %32 = vector.load %arg12[%c33, %c0_33] : memref<352x64xbf16, #tpu.memory_space<vmem>>, vector<288x64xbf16>
    %c0_34 = arith.constant 0 : index
    %c320_35 = arith.constant 320 : index
    %33 = vector.load %arg14[%c0_34, %c320_35] : memref<288x576xbf16, #tpu.memory_space<vmem>>, vector<288x64xbf16>
    tpu.vector_store %arg14[%c0_34, %c320_35], %32 {strides = array<i32>} : memref<288x576xbf16, #tpu.memory_space<vmem>>, vector<288x64xbf16>,
    %c49 = arith.constant 49 : index
    %c0_36 = arith.constant 0 : index
    %34 = vector.load %arg12[%c49, %c0_36] : memref<352x64xbf16, #tpu.memory_space<vmem>>, vector<288x64xbf16>
    %c0_37 = arith.constant 0 : index
    %c384 = arith.constant 384 : index
    %35 = vector.load %arg14[%c0_37, %c384] : memref<288x576xbf16, #tpu.memory_space<vmem>>, vector<288x64xbf16>
    tpu.vector_store %arg14[%c0_37, %c384], %34 {strides = array<i32>} : memref<288x576xbf16, #tpu.memory_space<vmem>>, vector<288x64xbf16>,
    %c50 = arith.constant 50 : index
    %c0_38 = arith.constant 0 : index
    %36 = vector.load %arg12[%c50, %c0_38] : memref<352x64xbf16, #tpu.memory_space<vmem>>, vector<288x64xbf16>
    %c0_39 = arith.constant 0 : index
    %c448 = arith.constant 448 : index
    %37 = vector.load %arg14[%c0_39, %c448] : memref<288x576xbf16, #tpu.memory_space<vmem>>, vector<288x64xbf16>
    tpu.vector_store %arg14[%c0_39, %c448], %36 {strides = array<i32>} : memref<288x576xbf16, #tpu.memory_space<vmem>>, vector<288x64xbf16>,
    %c51 = arith.constant 51 : index
    %c0_40 = arith.constant 0 : index
    %38 = vector.load %arg12[%c51, %c0_40] : memref<352x64xbf16, #tpu.memory_space<vmem>>, vector<288x64xbf16>
    %c0_41 = arith.constant 0 : index
    %c512 = arith.constant 512 : index
    %39 = vector.load %arg14[%c0_41, %c512] : memref<288x576xbf16, #tpu.memory_space<vmem>>, vector<288x64xbf16>
    tpu.vector_store %arg14[%c0_41, %c512], %38 {strides = array<i32>} : memref<288x576xbf16, #tpu.memory_space<vmem>>, vector<288x64xbf16>,
    %c0_42 = arith.constant 0 : index
    %c0_43 = arith.constant 0 : index
    %40 = vector.load %arg14[%c0_42, %c0_43] : memref<288x576xbf16, #tpu.memory_space<vmem>>, vector<288x576xbf16>
    %c0_44 = arith.constant 0 : index
    %c0_45 = arith.constant 0 : index
    %41 = vector.load %arg5[%c0_44, %c0_45] : memref<576x64xbf16, #tpu.memory_space<vmem>>, vector<576x64xbf16>
    %cst_46 = arith.constant dense<0.000000e+00> : vector<288x64xf32>
    %42 = tpu.matmul %40, %41, %cst_46 {dimension_numbers = #tpu.dot_dimension_numbers<[1], [0], [0], [1], [0, 0, 1, 1], [], []>} : vector<288x576xbf16>, vector<576x64xbf16>, vector<288x64xf32> -> vector<288x64xf32>
    %c0_47 = arith.constant 0 : index
    %c0_48 = arith.constant 0 : index
    %43 = vector.load %arg6[%c0_47, %c0_48] : memref<1x64xf32, #tpu.memory_space<vmem>>, vector<1x64xf32>
    %44 = vector.broadcast %43 : vector<1x64xf32> to vector<288x64xf32>
    %45 = arith.addf %42, %44 : vector<288x64xf32>
    %cst_49 = arith.constant 0.000000e+00 : f32
    %46 = vector.broadcast %cst_49 : f32 to vector<288x64xf32>
    %47 = arith.maximumf %45, %46 : vector<288x64xf32>
    %48 = vector.broadcast %0 : vector<288x1xf32> to vector<288x64xf32>
    %49 = arith.mulf %47, %48 : vector<288x64xf32>
    %50 = arith.truncf %49 : vector<288x64xf32> to vector<288x64xbf16>
    %c32_50 = arith.constant 32 : index
    %c0_51 = arith.constant 0 : index
    %51 = vector.load %arg12[%c32_50, %c0_51] : memref<352x64xbf16, #tpu.memory_space<vmem>>, vector<288x64xbf16>
    tpu.vector_store %arg12[%c32_50, %c0_51], %50 {strides = array<i32>} : memref<352x64xbf16, #tpu.memory_space<vmem>>, vector<288x64xbf16>,
    %c13_52 = arith.constant 13 : index
    %c0_53 = arith.constant 0 : index
    %52 = vector.load %arg12[%c13_52, %c0_53] : memref<352x64xbf16, #tpu.memory_space<vmem>>, vector<288x64xbf16>
    %c0_54 = arith.constant 0 : index
    %c0_55 = arith.constant 0 : index
    %53 = vector.load %arg14[%c0_54, %c0_55] : memref<288x576xbf16, #tpu.memory_space<vmem>>, vector<288x64xbf16>
    tpu.vector_store %arg14[%c0_54, %c0_55], %52 {strides = array<i32>} : memref<288x576xbf16, #tpu.memory_space<vmem>>, vector<288x64xbf16>,
    %c14_56 = arith.constant 14 : index
    %c0_57 = arith.constant 0 : index
    %54 = vector.load %arg12[%c14_56, %c0_57] : memref<352x64xbf16, #tpu.memory_space<vmem>>, vector<288x64xbf16>
    %c0_58 = arith.constant 0 : index
    %c64_59 = arith.constant 64 : index
    %55 = vector.load %arg14[%c0_58, %c64_59] : memref<288x576xbf16, #tpu.memory_space<vmem>>, vector<288x64xbf16>
    tpu.vector_store %arg14[%c0_58, %c64_59], %54 {strides = array<i32>} : memref<288x576xbf16, #tpu.memory_space<vmem>>, vector<288x64xbf16>,
    %c15_60 = arith.constant 15 : index
    %c0_61 = arith.constant 0 : index
    %56 = vector.load %arg12[%c15_60, %c0_61] : memref<352x64xbf16, #tpu.memory_space<vmem>>, vector<288x64xbf16>
    %c0_62 = arith.constant 0 : index
    %c128_63 = arith.constant 128 : index
    %57 = vector.load %arg14[%c0_62, %c128_63] : memref<288x576xbf16, #tpu.memory_space<vmem>>, vector<288x64xbf16>
    tpu.vector_store %arg14[%c0_62, %c128_63], %56 {strides = array<i32>} : memref<288x576xbf16, #tpu.memory_space<vmem>>, vector<288x64xbf16>,
    %c31_64 = arith.constant 31 : index
    %c0_65 = arith.constant 0 : index
    %58 = vector.load %arg12[%c31_64, %c0_65] : memref<352x64xbf16, #tpu.memory_space<vmem>>, vector<288x64xbf16>
    %c0_66 = arith.constant 0 : index
    %c192_67 = arith.constant 192 : index
    %59 = vector.load %arg14[%c0_66, %c192_67] : memref<288x576xbf16, #tpu.memory_space<vmem>>, vector<288x64xbf16>
    tpu.vector_store %arg14[%c0_66, %c192_67], %58 {strides = array<i32>} : memref<288x576xbf16, #tpu.memory_space<vmem>>, vector<288x64xbf16>,
    %c32_68 = arith.constant 32 : index
    %c0_69 = arith.constant 0 : index
    %60 = vector.load %arg12[%c32_68, %c0_69] : memref<352x64xbf16, #tpu.memory_space<vmem>>, vector<288x64xbf16>
    %c0_70 = arith.constant 0 : index
    %c256_71 = arith.constant 256 : index
    %61 = vector.load %arg14[%c0_70, %c256_71] : memref<288x576xbf16, #tpu.memory_space<vmem>>, vector<288x64xbf16>
    tpu.vector_store %arg14[%c0_70, %c256_71], %60 {strides = array<i32>} : memref<288x576xbf16, #tpu.memory_space<vmem>>, vector<288x64xbf16>,
    %c33_72 = arith.constant 33 : index
    %c0_73 = arith.constant 0 : index
    %62 = vector.load %arg12[%c33_72, %c0_73] : memref<352x64xbf16, #tpu.memory_space<vmem>>, vector<288x64xbf16>
    %c0_74 = arith.constant 0 : index
    %c320_75 = arith.constant 320 : index
    %63 = vector.load %arg14[%c0_74, %c320_75] : memref<288x576xbf16, #tpu.memory_space<vmem>>, vector<288x64xbf16>
    tpu.vector_store %arg14[%c0_74, %c320_75], %62 {strides = array<i32>} : memref<288x576xbf16, #tpu.memory_space<vmem>>, vector<288x64xbf16>,
    %c49_76 = arith.constant 49 : index
    %c0_77 = arith.constant 0 : index
    %64 = vector.load %arg12[%c49_76, %c0_77] : memref<352x64xbf16, #tpu.memory_space<vmem>>, vector<288x64xbf16>
    %c0_78 = arith.constant 0 : index
    %c384_79 = arith.constant 384 : index
    %65 = vector.load %arg14[%c0_78, %c384_79] : memref<288x576xbf16, #tpu.memory_space<vmem>>, vector<288x64xbf16>
    tpu.vector_store %arg14[%c0_78, %c384_79], %64 {strides = array<i32>} : memref<288x576xbf16, #tpu.memory_space<vmem>>, vector<288x64xbf16>,
    %c50_80 = arith.constant 50 : index
    %c0_81 = arith.constant 0 : index
    %66 = vector.load %arg12[%c50_80, %c0_81] : memref<352x64xbf16, #tpu.memory_space<vmem>>, vector<288x64xbf16>
    %c0_82 = arith.constant 0 : index
    %c448_83 = arith.constant 448 : index
    %67 = vector.load %arg14[%c0_82, %c448_83] : memref<288x576xbf16, #tpu.memory_space<vmem>>, vector<288x64xbf16>
    tpu.vector_store %arg14[%c0_82, %c448_83], %66 {strides = array<i32>} : memref<288x576xbf16, #tpu.memory_space<vmem>>, vector<288x64xbf16>,
    %c51_84 = arith.constant 51 : index
    %c0_85 = arith.constant 0 : index
    %68 = vector.load %arg12[%c51_84, %c0_85] : memref<352x64xbf16, #tpu.memory_space<vmem>>, vector<288x64xbf16>
    %c0_86 = arith.constant 0 : index
    %c512_87 = arith.constant 512 : index
    %69 = vector.load %arg14[%c0_86, %c512_87] : memref<288x576xbf16, #tpu.memory_space<vmem>>, vector<288x64xbf16>
    tpu.vector_store %arg14[%c0_86, %c512_87], %68 {strides = array<i32>} : memref<288x576xbf16, #tpu.memory_space<vmem>>, vector<288x64xbf16>,
    %c0_88 = arith.constant 0 : index
    %c0_89 = arith.constant 0 : index
    %70 = vector.load %arg14[%c0_88, %c0_89] : memref<288x576xbf16, #tpu.memory_space<vmem>>, vector<288x576xbf16>
    %c0_90 = arith.constant 0 : index
    %c0_91 = arith.constant 0 : index
    %71 = vector.load %arg7[%c0_90, %c0_91] : memref<576x32xbf16, #tpu.memory_space<vmem>>, vector<576x32xbf16>
    %cst_92 = arith.constant dense<0.000000e+00> : vector<288x32xf32>
    %72 = tpu.matmul %70, %71, %cst_92 {dimension_numbers = #tpu.dot_dimension_numbers<[1], [0], [0], [1], [0, 0, 1, 1], [], []>} : vector<288x576xbf16>, vector<576x32xbf16>, vector<288x32xf32> -> vector<288x32xf32>
    %c0_93 = arith.constant 0 : index
    %c0_94 = arith.constant 0 : index
    %73 = vector.load %arg8[%c0_93, %c0_94] : memref<1x32xf32, #tpu.memory_space<vmem>>, vector<1x32xf32>
    %74 = vector.broadcast %73 : vector<1x32xf32> to vector<288x32xf32>
    %75 = arith.addf %72, %74 : vector<288x32xf32>
    %cst_95 = arith.constant 0.000000e+00 : f32
    %76 = vector.broadcast %cst_95 : f32 to vector<288x32xf32>
    %77 = arith.maximumf %75, %76 : vector<288x32xf32>
    %78 = vector.broadcast %0 : vector<288x1xf32> to vector<288x32xf32>
    %79 = arith.mulf %77, %78 : vector<288x32xf32>
    %80 = arith.truncf %79 : vector<288x32xf32> to vector<288x32xbf16>
    %c32_96 = arith.constant 32 : index
    %c0_97 = arith.constant 0 : index
    %81 = vector.load %arg13[%c32_96, %c0_97] : memref<352x32xbf16, #tpu.memory_space<vmem>>, vector<288x32xbf16>
    tpu.vector_store %arg13[%c32_96, %c0_97], %80 {strides = array<i32>} : memref<352x32xbf16, #tpu.memory_space<vmem>>, vector<288x32xbf16>,
    %c13_98 = arith.constant 13 : index
    %c0_99 = arith.constant 0 : index
    %82 = vector.load %arg13[%c13_98, %c0_99] : memref<352x32xbf16, #tpu.memory_space<vmem>>, vector<288x32xbf16>
    %c0_100 = arith.constant 0 : index
    %c0_101 = arith.constant 0 : index
    %83 = vector.load %arg14[%c0_100, %c0_101] : memref<288x576xbf16, #tpu.memory_space<vmem>>, vector<288x32xbf16>
    tpu.vector_store %arg14[%c0_100, %c0_101], %82 {strides = array<i32>} : memref<288x576xbf16, #tpu.memory_space<vmem>>, vector<288x32xbf16>,
    %c14_102 = arith.constant 14 : index
    %c0_103 = arith.constant 0 : index
    %84 = vector.load %arg13[%c14_102, %c0_103] : memref<352x32xbf16, #tpu.memory_space<vmem>>, vector<288x32xbf16>
    %c0_104 = arith.constant 0 : index
    %c32_105 = arith.constant 32 : index
    %85 = vector.load %arg14[%c0_104, %c32_105] : memref<288x576xbf16, #tpu.memory_space<vmem>>, vector<288x32xbf16>
    tpu.vector_store %arg14[%c0_104, %c32_105], %84 {strides = array<i32>} : memref<288x576xbf16, #tpu.memory_space<vmem>>, vector<288x32xbf16>,
    %c15_106 = arith.constant 15 : index
    %c0_107 = arith.constant 0 : index
    %86 = vector.load %arg13[%c15_106, %c0_107] : memref<352x32xbf16, #tpu.memory_space<vmem>>, vector<288x32xbf16>
    %c0_108 = arith.constant 0 : index
    %c64_109 = arith.constant 64 : index
    %87 = vector.load %arg14[%c0_108, %c64_109] : memref<288x576xbf16, #tpu.memory_space<vmem>>, vector<288x32xbf16>
    tpu.vector_store %arg14[%c0_108, %c64_109], %86 {strides = array<i32>} : memref<288x576xbf16, #tpu.memory_space<vmem>>, vector<288x32xbf16>,
    %c31_110 = arith.constant 31 : index
    %c0_111 = arith.constant 0 : index
    %88 = vector.load %arg13[%c31_110, %c0_111] : memref<352x32xbf16, #tpu.memory_space<vmem>>, vector<288x32xbf16>
    %c0_112 = arith.constant 0 : index
    %c96 = arith.constant 96 : index
    %89 = vector.load %arg14[%c0_112, %c96] : memref<288x576xbf16, #tpu.memory_space<vmem>>, vector<288x32xbf16>
    tpu.vector_store %arg14[%c0_112, %c96], %88 {strides = array<i32>} : memref<288x576xbf16, #tpu.memory_space<vmem>>, vector<288x32xbf16>,
    %c32_113 = arith.constant 32 : index
    %c0_114 = arith.constant 0 : index
    %90 = vector.load %arg13[%c32_113, %c0_114] : memref<352x32xbf16, #tpu.memory_space<vmem>>, vector<288x32xbf16>
    %c0_115 = arith.constant 0 : index
    %c128_116 = arith.constant 128 : index
    %91 = vector.load %arg14[%c0_115, %c128_116] : memref<288x576xbf16, #tpu.memory_space<vmem>>, vector<288x32xbf16>
    tpu.vector_store %arg14[%c0_115, %c128_116], %90 {strides = array<i32>} : memref<288x576xbf16, #tpu.memory_space<vmem>>, vector<288x32xbf16>,
    %c33_117 = arith.constant 33 : index
    %c0_118 = arith.constant 0 : index
    %92 = vector.load %arg13[%c33_117, %c0_118] : memref<352x32xbf16, #tpu.memory_space<vmem>>, vector<288x32xbf16>
    %c0_119 = arith.constant 0 : index
    %c160 = arith.constant 160 : index
    %93 = vector.load %arg14[%c0_119, %c160] : memref<288x576xbf16, #tpu.memory_space<vmem>>, vector<288x32xbf16>
    tpu.vector_store %arg14[%c0_119, %c160], %92 {strides = array<i32>} : memref<288x576xbf16, #tpu.memory_space<vmem>>, vector<288x32xbf16>,
    %c49_120 = arith.constant 49 : index
    %c0_121 = arith.constant 0 : index
    %94 = vector.load %arg13[%c49_120, %c0_121] : memref<352x32xbf16, #tpu.memory_space<vmem>>, vector<288x32xbf16>
    %c0_122 = arith.constant 0 : index
    %c192_123 = arith.constant 192 : index
    %95 = vector.load %arg14[%c0_122, %c192_123] : memref<288x576xbf16, #tpu.memory_space<vmem>>, vector<288x32xbf16>
    tpu.vector_store %arg14[%c0_122, %c192_123], %94 {strides = array<i32>} : memref<288x576xbf16, #tpu.memory_space<vmem>>, vector<288x32xbf16>,
    %c50_124 = arith.constant 50 : index
    %c0_125 = arith.constant 0 : index
    %96 = vector.load %arg13[%c50_124, %c0_125] : memref<352x32xbf16, #tpu.memory_space<vmem>>, vector<288x32xbf16>
    %c0_126 = arith.constant 0 : index
    %c224 = arith.constant 224 : index
    %97 = vector.load %arg14[%c0_126, %c224] : memref<288x576xbf16, #tpu.memory_space<vmem>>, vector<288x32xbf16>
    tpu.vector_store %arg14[%c0_126, %c224], %96 {strides = array<i32>} : memref<288x576xbf16, #tpu.memory_space<vmem>>, vector<288x32xbf16>,
    %c51_127 = arith.constant 51 : index
    %c0_128 = arith.constant 0 : index
    %98 = vector.load %arg13[%c51_127, %c0_128] : memref<352x32xbf16, #tpu.memory_space<vmem>>, vector<288x32xbf16>
    %c0_129 = arith.constant 0 : index
    %c256_130 = arith.constant 256 : index
    %99 = vector.load %arg14[%c0_129, %c256_130] : memref<288x576xbf16, #tpu.memory_space<vmem>>, vector<288x32xbf16>
    tpu.vector_store %arg14[%c0_129, %c256_130], %98 {strides = array<i32>} : memref<288x576xbf16, #tpu.memory_space<vmem>>, vector<288x32xbf16>,
    %c0_131 = arith.constant 0 : index
    %c0_132 = arith.constant 0 : index
    %100 = vector.load %arg14[%c0_131, %c0_132] : memref<288x576xbf16, #tpu.memory_space<vmem>>, vector<288x288xbf16>
    %c0_133 = arith.constant 0 : index
    %c0_134 = arith.constant 0 : index
    %101 = vector.load %arg9[%c0_133, %c0_134] : memref<288x9xbf16, #tpu.memory_space<vmem>>, vector<288x9xbf16>
    %cst_135 = arith.constant dense<0.000000e+00> : vector<288x9xf32>
    %102 = tpu.matmul %100, %101, %cst_135 {dimension_numbers = #tpu.dot_dimension_numbers<[1], [0], [0], [1], [0, 0, 1, 1], [], []>} : vector<288x288xbf16>, vector<288x9xbf16>, vector<288x9xf32> -> vector<288x9xf32>
    %c0_136 = arith.constant 0 : index
    %c0_137 = arith.constant 0 : index
    %103 = vector.load %arg10[%c0_136, %c0_137] : memref<1x9xf32, #tpu.memory_space<vmem>>, vector<1x9xf32>
    %104 = vector.broadcast %103 : vector<1x9xf32> to vector<288x9xf32>
    %105 = arith.addf %102, %104 : vector<288x9xf32>
    %106 = arith.truncf %105 : vector<288x9xf32> to vector<288x9xbf16>
    %c0_138 = arith.constant 0 : index
    %c0_139 = arith.constant 0 : index
    %c0_140 = arith.constant 0 : index
    %107 = vector.load %arg11[%c0_138, %c0_139, %c0_140] : memref<1x288x9xbf16, #tpu.memory_space<vmem>>, vector<1x288x9xbf16>
    %108 = vector.shape_cast %107 : vector<1x288x9xbf16> to vector<288x9xbf16>
    %109 = vector.shape_cast %106 : vector<288x9xbf16> to vector<1x288x9xbf16>
    tpu.vector_store %arg11[%c0_138, %c0_139, %c0_140], %109 {strides = array<i32>} : memref<1x288x9xbf16, #tpu.memory_space<vmem>>, vector<1x288x9xbf16>,
    return
  }
  func.func @transform_0(%arg0: i32) -> (i32, i32, i32) {
    %c0_i32 = arith.constant 0 : i32
    %c0_i32_0 = arith.constant 0 : i32
    %c0_i32_1 = arith.constant 0 : i32
    return %arg0, %c0_i32, %c0_i32_0 : i32, i32, i32
  }
  func.func @transform_1(%arg0: i32) -> (i32, i32) {
    %c0_i32 = arith.constant 0 : i32
    %c0_i32_0 = arith.constant 0 : i32
    %c0_i32_1 = arith.constant 0 : i32
    return %c0_i32, %c0_i32_0 : i32, i32
  }
  func.func @transform_2(%arg0: i32) -> (i32, i32) {
    %c0_i32 = arith.constant 0 : i32
    %c0_i32_0 = arith.constant 0 : i32
    %c0_i32_1 = arith.constant 0 : i32
    return %c0_i32, %c0_i32_0 : i32, i32
  }
  func.func @transform_3(%arg0: i32) -> (i32, i32) {
    %c0_i32 = arith.constant 0 : i32
    %c0_i32_0 = arith.constant 0 : i32
    %c0_i32_1 = arith.constant 0 : i32
    return %c0_i32, %c0_i32_0 : i32, i32
  }
  func.func @transform_4(%arg0: i32) -> (i32, i32) {
    %c0_i32 = arith.constant 0 : i32
    %c0_i32_0 = arith.constant 0 : i32
    %c0_i32_1 = arith.constant 0 : i32
    return %c0_i32, %c0_i32_0 : i32, i32
  }
  func.func @transform_5(%arg0: i32) -> (i32, i32) {
    %c0_i32 = arith.constant 0 : i32
    %c0_i32_0 = arith.constant 0 : i32
    %c0_i32_1 = arith.constant 0 : i32
    return %c0_i32, %c0_i32_0 : i32, i32
  }
  func.func @transform_6(%arg0: i32) -> (i32, i32) {
    %c0_i32 = arith.constant 0 : i32
    %c0_i32_0 = arith.constant 0 : i32
    %c0_i32_1 = arith.constant 0 : i32
    return %c0_i32, %c0_i32_0 : i32, i32
  }
  func.func @transform_7(%arg0: i32) -> (i32, i32) {
    %c0_i32 = arith.constant 0 : i32
    %c0_i32_0 = arith.constant 0 : i32
    %c0_i32_1 = arith.constant 0 : i32
    return %c0_i32, %c0_i32_0 : i32, i32
  }
  func.func @transform_8(%arg0: i32) -> (i32, i32) {
    %c0_i32 = arith.constant 0 : i32
    %c0_i32_0 = arith.constant 0 : i32
    %c0_i32_1 = arith.constant 0 : i32
    return %c0_i32, %c0_i32_0 : i32, i32
  }
  func.func @transform_9(%arg0: i32) -> (i32, i32) {
    %c0_i32 = arith.constant 0 : i32
    %c0_i32_0 = arith.constant 0 : i32
    %c0_i32_1 = arith.constant 0 : i32
    return %c0_i32, %c0_i32_0 : i32, i32
  }
  func.func @transform_10(%arg0: i32) -> (i32, i32, i32) {
    %c0_i32 = arith.constant 0 : i32
    %c0_i32_0 = arith.constant 0 : i32
    %c0_i32_1 = arith.constant 0 : i32
    return %arg0, %c0_i32, %c0_i32_0 : i32, i32, i32
  }
}

</mosaic_0001>

<llo_original>
// kernel: superres_forward.1
$region0: #{superres_forward.1}
  #allocation0 [shape = 'u32[]', space=smem, size = 0x4, offset = 0x4, fixed_abs, tag = 'smem constant byte address 0x4 - core index']
  #allocation1 [shape = 'u32[144,128]{1,0:T(1,128)}', space=vmem, size = 0x12000, scoped, tag = 'internal scratch']
  #allocation2 [shape = 'bf16[352,64]{1,0:T(16,128)(2,1)}', space=vmem, size = 0x16000, scoped, tag = 'scratch operand']
  #allocation3 [shape = 'bf16[352,32]{1,0:T(16,128)(2,1)}', space=vmem, size = 0x16000, scoped, tag = 'scratch operand']
  #allocation4 [shape = 'bf16[288,576]{1,0:T(16,128)(2,1)}', space=vmem, size = 0x5a000, scoped, tag = 'scratch operand']
  %s0 = inlined_call_operand.vmem [shape: bf16[2,288,25], index: 0, kind: input, shape index: {}]
  %s1 = inlined_call_operand.vmem [shape: f32[288,1], index: 1, kind: input, shape index: {}]
  %s2 = inlined_call_operand.vmem [shape: bf16[25,64], index: 2, kind: input, shape index: {}]
  %s3 = inlined_call_operand.vmem [shape: f32[1,64], index: 3, kind: input, shape index: {}]
  %s4 = inlined_call_operand.vmem [shape: bf16[576,64], index: 4, kind: input, shape index: {}]
  %s5 = inlined_call_operand.vmem [shape: f32[1,64], index: 5, kind: input, shape index: {}]
  %s6 = inlined_call_operand.vmem [shape: bf16[576,32], index: 6, kind: input, shape index: {}]
  %s7 = inlined_call_operand.vmem [shape: f32[1,32], index: 7, kind: input, shape index: {}]
  %s8 = inlined_call_operand.vmem [shape: bf16[288,9], index: 8, kind: input, shape index: {}]
  %s9 = inlined_call_operand.vmem [shape: f32[1,9], index: 9, kind: input, shape index: {}]
  %s10 = inlined_call_operand.vmem [shape: bf16[2,288,9], index: 10, kind: output, shape index: {}]
  %s11 = sld [smem:[#allocation0]]
  $region73: #{superres_forward.1} parent=0
    _
  %s13 = ssub.s32 1, %s11
  %s14 = scalar_select 0, %s13, %s11
  loop: start=0, step=1, limit=4
  $region2: #{superres_forward.1} parent=0 // loop_pre_header
    _
  $region3: #{superres_forward.1} parent=0 // loop_header
    %s16 = sphi 0, %s20
    %p17 = scmp.ge.s32.totalorder %s16, 4
    %s26 = sphi 0, %s28
    %s29 = sphi 0, %s26
    %s30 = sphi 0, %s29
    %s46 = sphi 0, %s30
    %s50 = sphi 0, %s50
    %s52 = sphi 0, %s50
    %s53 = sphi 0, %s52
    %s67 = sphi 0, %s53
    %s71 = sphi 0, %s71
    %s73 = sphi 0, %s71
    %s74 = sphi 0, %s73
    %s88 = sphi 0, %s74
    %s92 = sphi 0, %s92
    %s94 = sphi 0, %s92
    %s95 = sphi 0, %s94
    %s109 = sphi 0, %s95
    %s113 = sphi 0, %s113
    %s115 = sphi 0, %s113
    %s116 = sphi 0, %s115
    %s130 = sphi 0, %s116
    %s134 = sphi 0, %s134
    %s136 = sphi 0, %s134
    %s137 = sphi 0, %s136
    %s151 = sphi 0, %s137
    %s155 = sphi 0, %s155
    %s157 = sphi 0, %s155
    %s158 = sphi 0, %s157
    %s172 = sphi 0, %s158
    %s176 = sphi 0, %s176
    %s178 = sphi 0, %s176
    %s179 = sphi 0, %s178
    %s193 = sphi 0, %s179
    %s197 = sphi 0, %s197
    %s199 = sphi 0, %s197
    %s200 = sphi 0, %s199
    %s214 = sphi 0, %s200
    %s218 = sphi 0, %s218
    %s220 = sphi 0, %s218
    %s221 = sphi 0, %s220
    %s235 = sphi 0, %s221
    %s241 = sphi 0, %s243
    %s244 = sphi 0, %s241
    %s245 = sphi 0, %s244
    %s261 = sphi 0, %s245
  $region4: #{superres_forward.1} parent=0 // loop_header_branch
    %19 = sbr.rel (%p17) target = $region8
  $region5: #{superres_forward.1} parent=0 // loop_body
    %s21 = ssub.s32 %s16, 1
    %s22 = ssub.s32 %s16, 2
    %s23 = sadd.s32 %s16, 1
    %s24 = ssub.s32 %s16, %s23
    %p25 = scmp.eq.s32.totalorder %s24, 0
    %s27 = sadd.s32 %s26, 1
    %s28 = scalar_select %p25, %s26, %s27
    %p31 = pneg %p25
    %p32 = scmp.eq.s32.totalorder %s16, 1
    %p33 = por %p31, %p32
    %p34 = scmp.ne.s32.totalorder %s26, %s29
    %p35 = scmp.eq.s32.totalorder %s16, 0
    %p36 = por %p34, %p35
    %p37 = scmp.ne.s32.totalorder %s26, %s29
    %p38 = scmp.eq.s32.totalorder %s21, 1
    %p39 = por %p37, %p38
    %p40 = scmp.ne.s32.totalorder %s29, %s30
    %p41 = scmp.eq.s32.totalorder %s21, 0
    %p42 = por %p40, %p41
    %p43 = scmp.ne.s32.totalorder %s29, %s30
    %p44 = scmp.eq.s32.totalorder %s22, 1
    %p45 = por %p43, %p44
    %p47 = scmp.ne.s32.totalorder %s30, %s46
    %p48 = scmp.eq.s32.totalorder %s22, 0
    %p49 = por %p47, %p48
    %s51 = sadd.s32 %s50, 1
    %p54 = scmp.eq.s32.totalorder %s16, 1
    %p55 = scmp.ne.s32.totalorder %s50, %s52
    %p56 = scmp.eq.s32.totalorder %s16, 0
    %p57 = por %p55, %p56
    %p58 = scmp.ne.s32.totalorder %s50, %s52
    %p59 = scmp.eq.s32.totalorder %s21, 1
    %p60 = por %p58, %p59
    %p61 = scmp.ne.s32.totalorder %s52, %s53
    %p62 = scmp.eq.s32.totalorder %s21, 0
    %p63 = por %p61, %p62
    %p64 = scmp.ne.s32.totalorder %s52, %s53
    %p65 = scmp.eq.s32.totalorder %s22, 1
    %p66 = por %p64, %p65
    %p68 = scmp.ne.s32.totalorder %s53, %s67
    %p69 = scmp.eq.s32.totalorder %s22, 0
    %p70 = por %p68, %p69
    %s72 = sadd.s32 %s71, 1
    %p75 = scmp.eq.s32.totalorder %s16, 1
    %p76 = scmp.ne.s32.totalorder %s71, %s73
    %p77 = scmp.eq.s32.totalorder %s16, 0
    %p78 = por %p76, %p77
    %p79 = scmp.ne.s32.totalorder %s71, %s73
    %p80 = scmp.eq.s32.totalorder %s21, 1
    %p81 = por %p79, %p80
    %p82 = scmp.ne.s32.totalorder %s73, %s74
    %p83 = scmp.eq.s32.totalorder %s21, 0
    %p84 = por %p82, %p83
    %p85 = scmp.ne.s32.totalorder %s73, %s74
    %p86 = scmp.eq.s32.totalorder %s22, 1
    %p87 = por %p85, %p86
    %p89 = scmp.ne.s32.totalorder %s74, %s88
    %p90 = scmp.eq.s32.totalorder %s22, 0
    %p91 = por %p89, %p90
    %s93 = sadd.s32 %s92, 1
    %p96 = scmp.eq.s32.totalorder %s16, 1
    %p97 = scmp.ne.s32.totalorder %s92, %s94
    %p98 = scmp.eq.s32.totalorder %s16, 0
    %p99 = por %p97, %p98
    %p100 = scmp.ne.s32.totalorder %s92, %s94
    %p101 = scmp.eq.s32.totalorder %s21, 1
    %p102 = por %p100, %p101
    %p103 = scmp.ne.s32.totalorder %s94, %s95
    %p104 = scmp.eq.s32.totalorder %s21, 0
    %p105 = por %p103, %p104
    %p106 = scmp.ne.s32.totalorder %s94, %s95
    %p107 = scmp.eq.s32.totalorder %s22, 1
    %p108 = por %p106, %p107
    %p110 = scmp.ne.s32.totalorder %s95, %s109
    %p111 = scmp.eq.s32.totalorder %s22, 0
    %p112 = por %p110, %p111
    %s114 = sadd.s32 %s113, 1
    %p117 = scmp.eq.s32.totalorder %s16, 1
    %p118 = scmp.ne.s32.totalorder %s113, %s115
    %p119 = scmp.eq.s32.totalorder %s16, 0
    %p120 = por %p118, %p119
    %p121 = scmp.ne.s32.totalorder %s113, %s115
    %p122 = scmp.eq.s32.totalorder %s21, 1
    %p123 = por %p121, %p122
    %p124 = scmp.ne.s32.totalorder %s115, %s116
    %p125 = scmp.eq.s32.totalorder %s21, 0
    %p126 = por %p124, %p125
    %p127 = scmp.ne.s32.totalorder %s115, %s116
    %p128 = scmp.eq.s32.totalorder %s22, 1
    %p129 = por %p127, %p128
    %p131 = scmp.ne.s32.totalorder %s116, %s130
    %p132 = scmp.eq.s32.totalorder %s22, 0
    %p133 = por %p131, %p132
    %s135 = sadd.s32 %s134, 1
    %p138 = scmp.eq.s32.totalorder %s16, 1
    %p139 = scmp.ne.s32.totalorder %s134, %s136
    %p140 = scmp.eq.s32.totalorder %s16, 0
    %p141 = por %p139, %p140
    %p142 = scmp.ne.s32.totalorder %s134, %s136
    %p143 = scmp.eq.s32.totalorder %s21, 1
    %p144 = por %p142, %p143
    %p145 = scmp.ne.s32.totalorder %s136, %s137
    %p146 = scmp.eq.s32.totalorder %s21, 0
    %p147 = por %p145, %p146
    %p148 = scmp.ne.s32.totalorder %s136, %s137
    %p149 = scmp.eq.s32.totalorder %s22, 1
    %p150 = por %p148, %p149
    %p152 = scmp.ne.s32.totalorder %s137, %s151
    %p153 = scmp.eq.s32.totalorder %s22, 0
    %p154 = por %p152, %p153
    %s156 = sadd.s32 %s155, 1
    %p159 = scmp.eq.s32.totalorder %s16, 1
    %p160 = scmp.ne.s32.totalorder %s155, %s157
    %p161 = scmp.eq.s32.totalorder %s16, 0
    %p162 = por %p160, %p161
    %p163 = scmp.ne.s32.totalorder %s155, %s157
    %p164 = scmp.eq.s32.totalorder %s21, 1
    %p165 = por %p163, %p164
    %p166 = scmp.ne.s32.totalorder %s157, %s158
    %p167 = scmp.eq.s32.totalorder %s21, 0
    %p168 = por %p166, %p167
    %p169 = scmp.ne.s32.totalorder %s157, %s158
    %p170 = scmp.eq.s32.totalorder %s22, 1
    %p171 = por %p169, %p170
    %p173 = scmp.ne.s32.totalorder %s158, %s172
    %p174 = scmp.eq.s32.totalorder %s22, 0
    %p175 = por %p173, %p174
    %s177 = sadd.s32 %s176, 1
    %p180 = scmp.eq.s32.totalorder %s16, 1
    %p181 = scmp.ne.s32.totalorder %s176, %s178
    %p182 = scmp.eq.s32.totalorder %s16, 0
    %p183 = por %p181, %p182
    %p184 = scmp.ne.s32.totalorder %s176, %s178
    %p185 = scmp.eq.s32.totalorder %s21, 1
    %p186 = por %p184, %p185
    %p187 = scmp.ne.s32.totalorder %s178, %s179
    %p188 = scmp.eq.s32.totalorder %s21, 0
    %p189 = por %p187, %p188
    %p190 = scmp.ne.s32.totalorder %s178, %s179
    %p191 = scmp.eq.s32.totalorder %s22, 1
    %p192 = por %p190, %p191
    %p194 = scmp.ne.s32.totalorder %s179, %s193
    %p195 = scmp.eq.s32.totalorder %s22, 0
    %p196 = por %p194, %p195
    %s198 = sadd.s32 %s197, 1
    %p201 = scmp.eq.s32.totalorder %s16, 1
    %p202 = scmp.ne.s32.totalorder %s197, %s199
    %p203 = scmp.eq.s32.totalorder %s16, 0
    %p204 = por %p202, %p203
    %p205 = scmp.ne.s32.totalorder %s197, %s199
    %p206 = scmp.eq.s32.totalorder %s21, 1
    %p207 = por %p205, %p206
    %p208 = scmp.ne.s32.totalorder %s199, %s200
    %p209 = scmp.eq.s32.totalorder %s21, 0
    %p210 = por %p208, %p209
    %p211 = scmp.ne.s32.totalorder %s199, %s200
    %p212 = scmp.eq.s32.totalorder %s22, 1
    %p213 = por %p211, %p212
    %p215 = scmp.ne.s32.totalorder %s200, %s214
    %p216 = scmp.eq.s32.totalorder %s22, 0
    %p217 = por %p215, %p216
    %s219 = sadd.s32 %s218, 1
    %p222 = scmp.eq.s32.totalorder %s16, 1
    %p223 = scmp.ne.s32.totalorder %s218, %s220
    %p224 = scmp.eq.s32.totalorder %s16, 0
    %p225 = por %p223, %p224
    %p226 = scmp.ne.s32.totalorder %s218, %s220
    %p227 = scmp.eq.s32.totalorder %s21, 1
    %p228 = por %p226, %p227
    %p229 = scmp.ne.s32.totalorder %s220, %s221
    %p230 = scmp.eq.s32.totalorder %s21, 0
    %p231 = por %p229, %p230
    %p232 = scmp.ne.s32.totalorder %s220, %s221
    %p233 = scmp.eq.s32.totalorder %s22, 1
    %p234 = por %p232, %p233
    %p236 = scmp.ne.s32.totalorder %s221, %s235
    %p237 = scmp.eq.s32.totalorder %s22, 0
    %p238 = por %p236, %p237
    %s239 = ssub.s32 %s16, %s23
    %p240 = scmp.eq.s32.totalorder %s239, 0
    %s242 = sadd.s32 %s241, 1
    %s243 = scalar_select %p240, %s241, %s242
    %p246 = pneg %p240
    %p247 = scmp.eq.s32.totalorder %s16, 1
    %p248 = por %p246, %p247
    %p249 = scmp.ne.s32.totalorder %s241, %s244
    %p250 = scmp.eq.s32.totalorder %s16, 0
    %p251 = por %p249, %p250
    %p252 = scmp.ne.s32.totalorder %s241, %s244
    %p253 = scmp.eq.s32.totalorder %s21, 1
    %p254 = por %p252, %p253
    %p255 = scmp.ne.s32.totalorder %s244, %s245
    %p256 = scmp.eq.s32.totalorder %s21, 0
    %p257 = por %p255, %p256
    %p258 = scmp.ne.s32.totalorder %s244, %s245
    %p259 = scmp.eq.s32.totalorder %s22, 1
    %p260 = por %p258, %p259
    %p262 = scmp.ne.s32.totalorder %s245, %s261
    %p263 = scmp.eq.s32.totalorder %s22, 0
    %p264 = por %p262, %p263
    %p265 = scmp.le.s32.totalorder 1, %s16
    %p266 = scmp.lt.s32.totalorder %s16, 3
    %p267 = pnand %p265, %p266
    %p268 = pneg %p267
    // Predicated region
    $region9: #{superres_forward.1} parent=5 // pred_check
      _
    $region10: #{superres_forward.1} parent=5 // pred_check_branch
      %270 = sbr.rel (%p267) target = $region12
    $region11: #{superres_forward.1} parent=5 // pred_region
      %s271 = ssub.s32 %s16, 1
      // Predicated region
      $region13: #{superres_forward.1} parent=11 // pred_check
        %p272 = pneg %p63
      $region14: #{superres_forward.1} parent=11 // pred_check_branch
        %274 = sbr.rel (%p272) target = $region16
      $region15: #{superres_forward.1} parent=11 // pred_region
        _
      $region16: #{superres_forward.1} parent=11 // pred_fallthru
        _
      // Predicated region
      $region17: #{superres_forward.1} parent=11 // pred_check
        %p275 = pneg %p84
      $region18: #{superres_forward.1} parent=11 // pred_check_branch
        %277 = sbr.rel (%p275) target = $region20
      $region19: #{superres_forward.1} parent=11 // pred_region
        _
      $region20: #{superres_forward.1} parent=11 // pred_fallthru
        _
      // Predicated region
      $region21: #{superres_forward.1} parent=11 // pred_check
        %p278 = pneg %p105
      $region22: #{superres_forward.1} parent=11 // pred_check_branch
        %280 = sbr.rel (%p278) target = $region24
      $region23: #{superres_forward.1} parent=11 // pred_region
        _
      $region24: #{superres_forward.1} parent=11 // pred_fallthru
        _
      // Predicated region
      $region25: #{superres_forward.1} parent=11 // pred_check
        %p281 = pneg %p126
      $region26: #{superres_forward.1} parent=11 // pred_check_branch
        %283 = sbr.rel (%p281) target = $region28
      $region27: #{superres_forward.1} parent=11 // pred_region
        _
      $region28: #{superres_forward.1} parent=11 // pred_fallthru
        _
      // Predicated region
      $region29: #{superres_forward.1} parent=11 // pred_check
        %p284 = pneg %p147
      $region30: #{superres_forward.1} parent=11 // pred_check_branch
        %286 = sbr.rel (%p284) target = $region32
      $region31: #{superres_forward.1} parent=11 // pred_region
        _
      $region32: #{superres_forward.1} parent=11 // pred_fallthru
        _
      // Predicated region
      $region33: #{superres_forward.1} parent=11 // pred_check
        %p287 = pneg %p168
      $region34: #{superres_forward.1} parent=11 // pred_check_branch
        %289 = sbr.rel (%p287) target = $region36
      $region35: #{superres_forward.1} parent=11 // pred_region
        _
      $region36: #{superres_forward.1} parent=11 // pred_fallthru
        _
      // Predicated region
      $region37: #{superres_forward.1} parent=11 // pred_check
        %p290 = pneg %p189
      $region38: #{superres_forward.1} parent=11 // pred_check_branch
        %292 = sbr.rel (%p290) target = $region40
      $region39: #{superres_forward.1} parent=11 // pred_region
        _
      $region40: #{superres_forward.1} parent=11 // pred_fallthru
        _
      // Predicated region
      $region41: #{superres_forward.1} parent=11 // pred_check
        %p293 = pneg %p210
      $region42: #{superres_forward.1} parent=11 // pred_check_branch
        %295 = sbr.rel (%p293) target = $region44
      $region43: #{superres_forward.1} parent=11 // pred_region
        _
      $region44: #{superres_forward.1} parent=11 // pred_fallthru
        _
      // Predicated region
      $region45: #{superres_forward.1} parent=11 // pred_check
        %p296 = pneg %p231
      $region46: #{superres_forward.1} parent=11 // pred_check_branch
        %298 = sbr.rel (%p296) target = $region48
      $region47: #{superres_forward.1} parent=11 // pred_region
        _
      $region48: #{superres_forward.1} parent=11 // pred_fallthru
        _
    $region12: #{superres_forward.1} parent=5 // pred_fallthru
      _
    %p299 = scmp.lt.s32.totalorder %s16, 2
    // Predicated region
    $region49: #{superres_forward.1} parent=5 // pred_check
      %p300 = pneg %p299
    $region50: #{superres_forward.1} parent=5 // pred_check_branch
      %302 = sbr.rel (%p300) target = $region52
    $region51: #{superres_forward.1} parent=5 // pred_region
      // Predicated region
      $region53: #{superres_forward.1} parent=51 // pred_check
        %p303 = pneg %p36
      $region54: #{superres_forward.1} parent=51 // pred_check_branch
        %305 = sbr.rel (%p303) target = $region56
      $region55: #{superres_forward.1} parent=51 // pred_region
        %p306 = scmp.lt.s32.totalorder %s16, 1
        %s307 = scalar_select %p306, %s16, 1
        %s308 = smul.addr %s307, 36
        %s309 = smul.addr %s308, 4
        %s310 = scalar_lea.vmem %s0, %s309
      $region56: #{superres_forward.1} parent=51 // pred_fallthru
        _
    $region52: #{superres_forward.1} parent=5 // pred_fallthru
      _
    %p311 = scmp.le.s32.totalorder 1, %s16
    %p312 = scmp.lt.s32.totalorder %s16, 3
    %p313 = pnand %p311, %p312
    %p314 = pneg %p313
    // Predicated region
    $region57: #{superres_forward.1} parent=5 // pred_check
      _
    $region58: #{superres_forward.1} parent=5 // pred_check_branch
      %316 = sbr.rel (%p313) target = $region60
    $region59: #{superres_forward.1} parent=5 // pred_region
      %s317 = ssub.s32 %s16, 1
      %p318 = scmp.lt.s32.totalorder %s21, 1
      %s319 = scalar_select %p318, %s21, 1
      %s320 = smul.addr %s319, 36
      %s321 = smul.addr %s320, 4
      %s322 = scalar_lea.vmem %s0, %s321
      %p323 = pneg %p42
      %p324 = pneg %p39
      %p325 = pneg %p63
      %p326 = pneg %p60
      %p327 = pneg %p84
      %p328 = pneg %p81
      %p329 = pneg %p105
      %p330 = pneg %p102
      %p331 = pneg %p126
      %p332 = pneg %p123
      %p333 = pneg %p147
      %p334 = pneg %p144
      %p335 = pneg %p168
      %p336 = pneg %p165
      %p337 = pneg %p189
      %p338 = pneg %p186
      %p339 = pneg %p210
      %p340 = pneg %p207
      %p341 = pneg %p231
      %p342 = pneg %p228
      %p343 = pneg %p257
      %p344 = pneg %p254
      %p345 = scmp.lt.s32.totalorder %s21, 1
      %s346 = scalar_select %p345, %s21, 1
      %s347 = smul.addr %s346, 36
      %s348 = smul.addr %s347, 4
      %s349 = scalar_lea.vmem %s10, %s348
      %p350 = scmp.lt.s32.totalorder %s21, 1
      %s351 = scalar_select %p350, %s21, 1
      %s352 = smul.addr %s351, 36
      %s353 = smul.addr %s352, 4
      %s354 = scalar_lea.vmem %s0, %s353
      %p355 = scmp.lt.s32.totalorder %s21, 1
      %s356 = scalar_select %p355, %s21, 1
      %s357 = smul.addr %s356, 36
      %s358 = smul.addr %s357, 4
      %s359 = scalar_lea.vmem %s10, %s358
      %v361 = vld [vmem:[%s1] sm:$0xff]
      %v362 = vld [vmem:[%s1 + $0x8] sm:$0xff]
      %v363 = vld [vmem:[%s1 + $0x10] sm:$0xff]
      %v364 = vld [vmem:[%s1 + $0x18] sm:$0xff]
      %v365 = vld [vmem:[%s1 + $0x20] sm:$0xff]
      %v366 = vld [vmem:[%s1 + $0x28] sm:$0xff]
      %v367 = vld [vmem:[%s1 + $0x30] sm:$0xff]
      %v368 = vld [vmem:[%s1 + $0x38] sm:$0xff]
      %v369 = vld [vmem:[%s1 + $0x40] sm:$0xff]
      %v370 = vld [vmem:[%s1 + $0x48] sm:$0xff]
      %v371 = vld [vmem:[%s1 + $0x50] sm:$0xff]
      %v372 = vld [vmem:[%s1 + $0x58] sm:$0xff]
      %v373 = vld [vmem:[%s1 + $0x60] sm:$0xff]
      %v374 = vld [vmem:[%s1 + $0x68] sm:$0xff]
      %v375 = vld [vmem:[%s1 + $0x70] sm:$0xff]
      %v376 = vld [vmem:[%s1 + $0x78] sm:$0xff]
      %v377 = vld [vmem:[%s1 + $0x80] sm:$0xff]
      %v378 = vld [vmem:[%s1 + $0x88] sm:$0xff]
      %v379 = vld [vmem:[%s1 + $0x90] sm:$0xff]
      %v380 = vld [vmem:[%s1 + $0x98] sm:$0xff]
      %v381 = vld [vmem:[%s1 + $0xa0] sm:$0xff]
      %v382 = vld [vmem:[%s1 + $0xa8] sm:$0xff]
      %v383 = vld [vmem:[%s1 + $0xb0] sm:$0xff]
      %v384 = vld [vmem:[%s1 + $0xb8] sm:$0xff]
      %v385 = vld [vmem:[%s1 + $0xc0] sm:$0xff]
      %v386 = vld [vmem:[%s1 + $0xc8] sm:$0xff]
      %v387 = vld [vmem:[%s1 + $0xd0] sm:$0xff]
      %v388 = vld [vmem:[%s1 + $0xd8] sm:$0xff]
      %v389 = vld [vmem:[%s1 + $0xe0] sm:$0xff]
      %v390 = vld [vmem:[%s1 + $0xe8] sm:$0xff]
      %v391 = vld [vmem:[%s1 + $0xf0] sm:$0xff]
      %v392 = vld [vmem:[%s1 + $0xf8] sm:$0xff]
      %v393 = vld [vmem:[%s1 + $0x100] sm:$0xff]
      %v394 = vld [vmem:[%s1 + $0x108] sm:$0xff]
      %v395 = vld [vmem:[%s1 + $0x110] sm:$0xff]
      %v396 = vld [vmem:[%s1 + $0x118] sm:$0xff]
      %vm397 = vcmask 523264
      %398 = vst.msk [vmem:[#allocation2] sm:$0xff] %vm397, 0
      %399 = vst.msk [vmem:[#allocation2 + $0x8] sm:$0xff] %vm397, 0
      %400 = vst.msk [vmem:[#allocation2 + $0xa0] sm:$0xff] %vm397, 0
      %401 = vst.msk [vmem:[#allocation2 + $0xa8] sm:$0xff] %vm397, 0
      %vm402 = vcmask 261120
      %403 = vst.msk [vmem:[#allocation3] sm:$0xff] %vm402, 0
      %404 = vst.msk [vmem:[#allocation3 + $0x8] sm:$0xff] %vm402, 0
      %405 = vst.msk [vmem:[#allocation3 + $0xa0] sm:$0xff] %vm402, 0
      %406 = vst.msk [vmem:[#allocation3 + $0xa8] sm:$0xff] %vm402, 0
      %v407 = vld [vmem:[%s354] sm:$0xf]
      %v408 = vld [vmem:[%s354 + $0x4] sm:$0xf]
      %v409 = vld [vmem:[%s354 + $0x8] sm:$0xf]
      %v410 = vld [vmem:[%s354 + $0xc] sm:$0xf]
      %v411 = vld [vmem:[%s354 + $0x10] sm:$0xf]
      %v412 = vld [vmem:[%s354 + $0x14] sm:$0xf]
      %v413 = vld [vmem:[%s354 + $0x18] sm:$0xf]
      %v414 = vld [vmem:[%s354 + $0x1c] sm:$0xf]
      %v415 = vld [vmem:[%s354 + $0x20] sm:$0xf]
      %v416 = vld [vmem:[%s354 + $0x24] sm:$0xf]
      %v417 = vld [vmem:[%s354 + $0x28] sm:$0xf]
      %v418 = vld [vmem:[%s354 + $0x2c] sm:$0xf]
      %v419 = vld [vmem:[%s354 + $0x30] sm:$0xf]
      %v420 = vld [vmem:[%s354 + $0x34] sm:$0xf]
      %v421 = vld [vmem:[%s354 + $0x38] sm:$0xf]
      %v422 = vld [vmem:[%s354 + $0x3c] sm:$0xf]
      %v423 = vld [vmem:[%s354 + $0x40] sm:$0xf]
      %v424 = vld [vmem:[%s354 + $0x44] sm:$0xf]
      %v425 = vld [vmem:[%s354 + $0x48] sm:$0xf]
      %v426 = vld [vmem:[%s354 + $0x4c] sm:$0xf]
      %v427 = vld [vmem:[%s354 + $0x50] sm:$0xf]
      %v428 = vld [vmem:[%s354 + $0x54] sm:$0xf]
      %v429 = vld [vmem:[%s354 + $0x58] sm:$0xf]
      %v430 = vld [vmem:[%s354 + $0x5c] sm:$0xf]
      %v431 = vld [vmem:[%s354 + $0x60] sm:$0xf]
      %v432 = vld [vmem:[%s354 + $0x64] sm:$0xf]
      %v433 = vld [vmem:[%s354 + $0x68] sm:$0xf]
      %v434 = vld [vmem:[%s354 + $0x6c] sm:$0xf]
      %v435 = vld [vmem:[%s354 + $0x70] sm:$0xf]
      %v436 = vld [vmem:[%s354 + $0x74] sm:$0xf]
      %v437 = vld [vmem:[%s354 + $0x78] sm:$0xf]
      %v438 = vld [vmem:[%s354 + $0x7c] sm:$0xf]
      %v439 = vld [vmem:[%s354 + $0x80] sm:$0xf]
      %v440 = vld [vmem:[%s354 + $0x84] sm:$0xf]
      %v441 = vld [vmem:[%s354 + $0x88] sm:$0xf]
      %v442 = vld [vmem:[%s354 + $0x8c] sm:$0xf]
      %v443 = vld [vmem:[%s2] sm:$0xf]
      %v444 = vld [vmem:[%s2 + $0x4] sm:$0xf]
      %v445 = vld [vmem:[%s2 + $0x8] sm:$0xf]
      %v446 = vld [vmem:[%s2 + $0xc] sm:$0x1]
      %v447 = vld [vmem:[%s3] sm:$0x1]
      %v449 = vlaneseq
      %v450 = vshrl.u32 %v449, 7
      %v451 = vsub.s32 0, %v450
      %v452 = vrot.slane %v447, %v451
      %v490 = vunpack.c.l.b16 %v407
      %v491 = vunpack.c.l.b16 %v408
      %v492 = vunpack.c.l.b16 %v409
      %v493 = vunpack.c.l.b16 %v410
      %v494 = vunpack.c.l.b16 %v411
      %v495 = vunpack.c.l.b16 %v412
      %v496 = vunpack.c.l.b16 %v413
      %v497 = vunpack.c.l.b16 %v414
      %v498 = vunpack.c.l.b16 %v415
      %v499 = vunpack.c.l.b16 %v416
      %v500 = vunpack.c.l.b16 %v417
      %v501 = vunpack.c.l.b16 %v418
      %v502 = vunpack.c.l.b16 %v419
      %v503 = vunpack.c.l.b16 %v420
      %v504 = vunpack.c.l.b16 %v421
      %v505 = vunpack.c.l.b16 %v422
      %v506 = vunpack.c.l.b16 %v423
      %v507 = vunpack.c.l.b16 %v424
      %v508 = vunpack.c.l.b16 %v425
      %v509 = vunpack.c.l.b16 %v426
      %v510 = vunpack.c.l.b16 %v427
      %v511 = vunpack.c.l.b16 %v428
      %v512 = vunpack.c.l.b16 %v429
      %v513 = vunpack.c.l.b16 %v430
      %v514 = vunpack.c.l.b16 %v431
      %v515 = vunpack.c.l.b16 %v432
      %v516 = vunpack.c.l.b16 %v433
      %v517 = vunpack.c.l.b16 %v434
      %v518 = vunpack.c.l.b16 %v435
      %v519 = vunpack.c.l.b16 %v436
      %v520 = vunpack.c.l.b16 %v437
      %v521 = vunpack.c.l.b16 %v438
      %v522 = vunpack.c.l.b16 %v439
      %v523 = vunpack.c.l.b16 %v440
      %v524 = vunpack.c.l.b16 %v441
      %v525 = vunpack.c.l.b16 %v442
      %v526 = vpack.c.b16 %v491, %v490
      %v527 = vpack.c.b16 %v493, %v492
      %v528 = vpack.c.b16 %v495, %v494
      %v529 = vpack.c.b16 %v497, %v496
      %v530 = vpack.c.b16 %v499, %v498
      %v531 = vpack.c.b16 %v501, %v500
      %v532 = vpack.c.b16 %v503, %v502
      %v533 = vpack.c.b16 %v505, %v504
      %v534 = vpack.c.b16 %v507, %v506
      %v535 = vpack.c.b16 %v509, %v508
      %v536 = vpack.c.b16 %v511, %v510
      %v537 = vpack.c.b16 %v513, %v512
      %v538 = vpack.c.b16 %v515, %v514
      %v539 = vpack.c.b16 %v517, %v516
      %v540 = vpack.c.b16 %v519, %v518
      %v541 = vpack.c.b16 %v521, %v520
      %v542 = vpack.c.b16 %v523, %v522
      %v543 = vpack.c.b16 %v525, %v524
      %v548 = vunpack.c.l.b16 %v443
      %v549 = vunpack.c.l.b16 %v444
      %v550 = vunpack.c.l.b16 %v445
      %v551 = vunpack.c.l.b16 %v446
      %v552 = vpack.c.b16 %v549, %v548
      %v553 = vpack.c.b16 %v551, %v550
      %vm555 = vcmask 203776
      %v557 = vsel %vm555, %v526, 0
      %v560 = vsel %vm555, %v527, 0
      %v563 = vsel %vm555, %v528, 0
      %v566 = vsel %vm555, %v529, 0
      %v569 = vsel %vm555, %v530, 0
      %v572 = vsel %vm555, %v531, 0
      %v575 = vsel %vm555, %v532, 0
      %v578 = vsel %vm555, %v533, 0
      %v581 = vsel %vm555, %v534, 0
      %v584 = vsel %vm555, %v535, 0
      %v587 = vsel %vm555, %v536, 0
      %v590 = vsel %vm555, %v537, 0
      %v593 = vsel %vm555, %v538, 0
      %v596 = vsel %vm555, %v539, 0
      %v599 = vsel %vm555, %v540, 0
      %v602 = vsel %vm555, %v541, 0
      %v605 = vsel %vm555, %v542, 0
      %v608 = vsel %vm555, %v543, 0
      %vm610 = vcmask 1043456
      %vm611 = vcmask 1044480
      %v612 = vsel %vm610, 4294967295, 65535
      %v613 = vsel %vm611, %v612, 0
      %v615 = vand.u32 %v553, %v613
      %617 = vmatprep.subr.bf16.mxu0 0
      %618 = vmatpush1.bf16.msra.mxu0 %v552
      %619 = vmatprep.subr.bf16.mxu0 0
      %620 = vmatpush1.bf16.msra.mxu0 %v615
      %621 = vmatprep.subr.bf16.mxu0 0
      %622 = vmatpush1.bf16.msra.mxu0 0
      %623 = vmatprep.subr.bf16.mxu0 0
      %624 = vmatpush1.bf16.msra.mxu0 0
      %625 = vmatprep.subr.bf16.mxu0 0
      %626 = vmatpush1.bf16.msra.mxu0 0
      %627 = vmatprep.subr.bf16.mxu0 0
      %628 = vmatpush1.bf16.msra.mxu0 0
      %629 = vmatprep.subr.bf16.mxu0 0
      %630 = vmatpush1.bf16.msra.mxu0 0
      %631 = vmatprep.subr.bf16.mxu0 0
      %632 = vmatpush1.bf16.msra.mxu0 0
      %633 = vmatprep.subr.bf16.mxu0 0
      %634 = vmatpush1.bf16.msra.mxu0 0
      %635 = vmatprep.subr.bf16.mxu0 0
      %636 = vmatpush1.bf16.msra.mxu0 0
      %637 = vmatprep.subr.bf16.mxu0 0
      %638 = vmatpush1.bf16.msra.mxu0 0
      %639 = vmatprep.subr.bf16.mxu0 0
      %640 = vmatpush1.bf16.msra.mxu0 0
      %641 = vmatprep.subr.bf16.mxu0 0
      %642 = vmatpush1.bf16.msra.mxu0 0
      %643 = vmatprep.subr.bf16.mxu0 0
      %644 = vmatpush1.bf16.msra.mxu0 0
      %645 = vmatprep.subr.bf16.mxu0 0
      %646 = vmatpush1.bf16.msra.mxu0 0
      %647 = vmatprep.subr.bf16.mxu0 0
      %648 = vmatpush1.bf16.msra.mxu0 0
      %649 = vmatprep.mubr.bf16.mxu0 0
      %650 = vmatmul.mubr.bf16.gmra.mrb[0].mxu0 %v557
      %v651 = vpop.f32.mrb[0].mxu0
      %v652 = vadd.f32 %v452, %v651
      %v653 = vpop.f32.mrb[0].mxu0
      %v654 = vpop.f32.mrb[0].mxu0
      %v655 = vadd.f32 %v452, %v654
      %v656 = vpop.f32.mrb[0].mxu0
      %657 = vmatprep.mubr.bf16.mxu0 0
      %658 = vmatmul.mubr.bf16.gmra.mrb[0].mxu0 %v560
      %v659 = vpop.f32.mrb[0].mxu0
      %v660 = vadd.f32 %v452, %v659
      %v661 = vpop.f32.mrb[0].mxu0
      %v662 = vpop.f32.mrb[0].mxu0
      %v663 = vadd.f32 %v452, %v662
      %v664 = vpop.f32.mrb[0].mxu0
      %665 = vmatprep.mubr.bf16.mxu0 0
      %666 = vmatmul.mubr.bf16.gmra.mrb[0].mxu0 %v563
      %v667 = vpop.f32.mrb[0].mxu0
      %v668 = vadd.f32 %v452, %v667
      %v669 = vpop.f32.mrb[0].mxu0
      %v670 = vpop.f32.mrb[0].mxu0
      %v671 = vadd.f32 %v452, %v670
      %v672 = vpop.f32.mrb[0].mxu0
      %673 = vmatprep.mubr.bf16.mxu0 0
      %674 = vmatmul.mubr.bf16.gmra.mrb[0].mxu0 %v566
      %v675 = vpop.f32.mrb[0].mxu0
      %v676 = vadd.f32 %v452, %v675
      %v677 = vpop.f32.mrb[0].mxu0
      %v678 = vpop.f32.mrb[0].mxu0
      %v679 = vadd.f32 %v452, %v678
      %v680 = vpop.f32.mrb[0].mxu0
      %681 = vmatprep.mubr.bf16.mxu0 0
      %682 = vmatmul.mubr.bf16.gmra.mrb[0].mxu0 %v569
      %v683 = vpop.f32.mrb[0].mxu0
      %v684 = vadd.f32 %v452, %v683
      %v685 = vpop.f32.mrb[0].mxu0
      %v686 = vpop.f32.mrb[0].mxu0
      %v687 = vadd.f32 %v452, %v686
      %v688 = vpop.f32.mrb[0].mxu0
      %689 = vmatprep.mubr.bf16.mxu0 0
      %690 = vmatmul.mubr.bf16.gmra.mrb[0].mxu0 %v572
      %v691 = vpop.f32.mrb[0].mxu0
      %v692 = vadd.f32 %v452, %v691
      %v693 = vpop.f32.mrb[0].mxu0
      %v694 = vpop.f32.mrb[0].mxu0
      %v695 = vadd.f32 %v452, %v694
      %v696 = vpop.f32.mrb[0].mxu0
      %697 = vmatprep.mubr.bf16.mxu0 0
      %698 = vmatmul.mubr.bf16.gmra.mrb[0].mxu0 %v575
      %v699 = vpop.f32.mrb[0].mxu0
      %v700 = vadd.f32 %v452, %v699
      %v701 = vpop.f32.mrb[0].mxu0
      %v702 = vpop.f32.mrb[0].mxu0
      %v703 = vadd.f32 %v452, %v702
      %v704 = vpop.f32.mrb[0].mxu0
      %705 = vmatprep.mubr.bf16.mxu0 0
      %706 = vmatmul.mubr.bf16.gmra.mrb[0].mxu0 %v578
      %v707 = vpop.f32.mrb[0].mxu0
      %v708 = vadd.f32 %v452, %v707
      %v709 = vpop.f32.mrb[0].mxu0
      %v710 = vpop.f32.mrb[0].mxu0
      %v711 = vadd.f32 %v452, %v710
      %v712 = vpop.f32.mrb[0].mxu0
      %713 = vmatprep.mubr.bf16.mxu0 0
      %714 = vmatmul.mubr.bf16.gmra.mrb[0].mxu0 %v581
      %v715 = vpop.f32.mrb[0].mxu0
      %v716 = vadd.f32 %v452, %v715
      %v717 = vpop.f32.mrb[0].mxu0
      %v718 = vpop.f32.mrb[0].mxu0
      %v719 = vadd.f32 %v452, %v718
      %v720 = vpop.f32.mrb[0].mxu0
      %721 = vmatprep.mubr.bf16.mxu0 0
      %722 = vmatmul.mubr.bf16.gmra.mrb[0].mxu0 %v584
      %v723 = vpop.f32.mrb[0].mxu0
      %v724 = vadd.f32 %v452, %v723
      %v725 = vpop.f32.mrb[0].mxu0
      %v726 = vpop.f32.mrb[0].mxu0
      %v727 = vadd.f32 %v452, %v726
      %v728 = vpop.f32.mrb[0].mxu0
      %729 = vmatprep.mubr.bf16.mxu0 0
      %730 = vmatmul.mubr.bf16.gmra.mrb[0].mxu0 %v587
      %v731 = vpop.f32.mrb[0].mxu0
      %v732 = vadd.f32 %v452, %v731
      %v733 = vpop.f32.mrb[0].mxu0
      %v734 = vpop.f32.mrb[0].mxu0
      %v735 = vadd.f32 %v452, %v734
      %v736 = vpop.f32.mrb[0].mxu0
      %737 = vmatprep.mubr.bf16.mxu0 0
      %738 = vmatmul.mubr.bf16.gmra.mrb[0].mxu0 %v590
      %v739 = vpop.f32.mrb[0].mxu0
      %v740 = vadd.f32 %v452, %v739
      %v741 = vpop.f32.mrb[0].mxu0
      %v742 = vpop.f32.mrb[0].mxu0
      %v743 = vadd.f32 %v452, %v742
      %v744 = vpop.f32.mrb[0].mxu0
      %745 = vmatprep.mubr.bf16.mxu0 0
      %746 = vmatmul.mubr.bf16.gmra.mrb[0].mxu0 %v593
      %v747 = vpop.f32.mrb[0].mxu0
      %v748 = vadd.f32 %v452, %v747
      %v749 = vpop.f32.mrb[0].mxu0
      %v750 = vpop.f32.mrb[0].mxu0
      %v751 = vadd.f32 %v452, %v750
      %v752 = vpop.f32.mrb[0].mxu0
      %753 = vmatprep.mubr.bf16.mxu0 0
      %754 = vmatmul.mubr.bf16.gmra.mrb[0].mxu0 %v596
      %v755 = vpop.f32.mrb[0].mxu0
      %v756 = vadd.f32 %v452, %v755
      %v757 = vpop.f32.mrb[0].mxu0
      %v758 = vpop.f32.mrb[0].mxu0
      %v759 = vadd.f32 %v452, %v758
      %v760 = vpop.f32.mrb[0].mxu0
      %761 = vmatprep.mubr.bf16.mxu0 0
      %762 = vmatmul.mubr.bf16.gmra.mrb[0].mxu0 %v599
      %v763 = vpop.f32.mrb[0].mxu0
      %v764 = vadd.f32 %v452, %v763
      %v765 = vpop.f32.mrb[0].mxu0
      %v766 = vpop.f32.mrb[0].mxu0
      %v767 = vadd.f32 %v452, %v766
      %v768 = vpop.f32.mrb[0].mxu0
      %769 = vmatprep.mubr.bf16.mxu0 0
      %770 = vmatmul.mubr.bf16.gmra.mrb[0].mxu0 %v602
      %v771 = vpop.f32.mrb[0].mxu0
      %v772 = vadd.f32 %v452, %v771
      %v773 = vpop.f32.mrb[0].mxu0
      %v774 = vpop.f32.mrb[0].mxu0
      %v775 = vadd.f32 %v452, %v774
      %v776 = vpop.f32.mrb[0].mxu0
      %777 = vmatprep.mubr.bf16.mxu0 0
      %778 = vmatmul.mubr.bf16.gmra.mrb[0].mxu0 %v605
      %v779 = vpop.f32.mrb[0].mxu0
      %v780 = vadd.f32 %v452, %v779
      %v781 = vpop.f32.mrb[0].mxu0
      %v782 = vpop.f32.mrb[0].mxu0
      %v783 = vadd.f32 %v452, %v782
      %v784 = vpop.f32.mrb[0].mxu0
      %785 = vmatprep.mubr.bf16.mxu0 0
      %786 = vmatmul.mubr.bf16.gmra.mrb[0].mxu0 %v608
      %v787 = vpop.f32.mrb[0].mxu0
      %v788 = vadd.f32 %v452, %v787
      %v789 = vpop.f32.mrb[0].mxu0
      %v790 = vpop.f32.mrb[0].mxu0
      %v791 = vadd.f32 %v452, %v790
      %v792 = vpop.f32.mrb[0].mxu0
      %793 = vdwg.mxu0
      %v794 = vmax.f32 %v652, 0.0
      %v795 = vmax.f32 %v655, 0.0
      %v796 = vmax.f32 %v660, 0.0
      %v797 = vmax.f32 %v663, 0.0
      %v798 = vmax.f32 %v668, 0.0
      %v799 = vmax.f32 %v671, 0.0
      %v800 = vmax.f32 %v676, 0.0
      %v801 = vmax.f32 %v679, 0.0
      %v802 = vmax.f32 %v684, 0.0
      %v803 = vmax.f32 %v687, 0.0
      %v804 = vmax.f32 %v692, 0.0
      %v805 = vmax.f32 %v695, 0.0
      %v806 = vmax.f32 %v700, 0.0
      %v807 = vmax.f32 %v703, 0.0
      %v808 = vmax.f32 %v708, 0.0
      %v809 = vmax.f32 %v711, 0.0
      %v810 = vmax.f32 %v716, 0.0
      %v811 = vmax.f32 %v719, 0.0
      %v812 = vmax.f32 %v724, 0.0
      %v813 = vmax.f32 %v727, 0.0
      %v814 = vmax.f32 %v732, 0.0
      %v815 = vmax.f32 %v735, 0.0
      %v816 = vmax.f32 %v740, 0.0
      %v817 = vmax.f32 %v743, 0.0
      %v818 = vmax.f32 %v748, 0.0
      %v819 = vmax.f32 %v751, 0.0
      %v820 = vmax.f32 %v756, 0.0
      %v821 = vmax.f32 %v759, 0.0
      %v822 = vmax.f32 %v764, 0.0
      %v823 = vmax.f32 %v767, 0.0
      %v824 = vmax.f32 %v772, 0.0
      %v825 = vmax.f32 %v775, 0.0
      %v826 = vmax.f32 %v780, 0.0
      %v827 = vmax.f32 %v783, 0.0
      %v828 = vmax.f32 %v788, 0.0
      %v829 = vmax.f32 %v791, 0.0
      %831 = vset.pattern.permute.xlu0 0
      %832 = vperm.xlu0 %831, %v361
      %v833 = vpop.permute.xlu0 %832
      %836 = vset.pattern.permute.xlu0 0
      %837 = vperm.xlu0 %836, %v362
      %v838 = vpop.permute.xlu0 %837
      %841 = vset.pattern.permute.xlu0 0
      %842 = vperm.xlu0 %841, %v363
      %v843 = vpop.permute.xlu0 %842
      %846 = vset.pattern.permute.xlu0 0
      %847 = vperm.xlu0 %846, %v364
      %v848 = vpop.permute.xlu0 %847
      %851 = vset.pattern.permute.xlu0 0
      %852 = vperm.xlu0 %851, %v365
      %v853 = vpop.permute.xlu0 %852
      %856 = vset.pattern.permute.xlu0 0
      %857 = vperm.xlu0 %856, %v366
      %v858 = vpop.permute.xlu0 %857
      %861 = vset.pattern.permute.xlu0 0
      %862 = vperm.xlu0 %861, %v367
      %v863 = vpop.permute.xlu0 %862
      %866 = vset.pattern.permute.xlu0 0
      %867 = vperm.xlu0 %866, %v368
      %v868 = vpop.permute.xlu0 %867
      %871 = vset.pattern.permute.xlu0 0
      %872 = vperm.xlu0 %871, %v369
      %v873 = vpop.permute.xlu0 %872
      %876 = vset.pattern.permute.xlu0 0
      %877 = vperm.xlu0 %876, %v370
      %v878 = vpop.permute.xlu0 %877
      %881 = vset.pattern.permute.xlu0 0
      %882 = vperm.xlu0 %881, %v371
      %v883 = vpop.permute.xlu0 %882
      %886 = vset.pattern.permute.xlu0 0
      %887 = vperm.xlu0 %886, %v372
      %v888 = vpop.permute.xlu0 %887
      %891 = vset.pattern.permute.xlu0 0
      %892 = vperm.xlu0 %891, %v373
      %v893 = vpop.permute.xlu0 %892
      %896 = vset.pattern.permute.xlu0 0
      %897 = vperm.xlu0 %896, %v374
      %v898 = vpop.permute.xlu0 %897
      %901 = vset.pattern.permute.xlu0 0
      %902 = vperm.xlu0 %901, %v375
      %v903 = vpop.permute.xlu0 %902
      %906 = vset.pattern.permute.xlu0 0
      %907 = vperm.xlu0 %906, %v376
      %v908 = vpop.permute.xlu0 %907
      %911 = vset.pattern.permute.xlu0 0
      %912 = vperm.xlu0 %911, %v377
      %v913 = vpop.permute.xlu0 %912
      %916 = vset.pattern.permute.xlu0 0
      %917 = vperm.xlu0 %916, %v378
      %v918 = vpop.permute.xlu0 %917
      %921 = vset.pattern.permute.xlu0 0
      %922 = vperm.xlu0 %921, %v379
      %v923 = vpop.permute.xlu0 %922
      %926 = vset.pattern.permute.xlu0 0
      %927 = vperm.xlu0 %926, %v380
      %v928 = vpop.permute.xlu0 %927
      %931 = vset.pattern.permute.xlu0 0
      %932 = vperm.xlu0 %931, %v381
      %v933 = vpop.permute.xlu0 %932
      %936 = vset.pattern.permute.xlu0 0
      %937 = vperm.xlu0 %936, %v382
      %v938 = vpop.permute.xlu0 %937
      %941 = vset.pattern.permute.xlu0 0
      %942 = vperm.xlu0 %941, %v383
      %v943 = vpop.permute.xlu0 %942
      %946 = vset.pattern.permute.xlu0 0
      %947 = vperm.xlu0 %946, %v384
      %v948 = vpop.permute.xlu0 %947
      %951 = vset.pattern.permute.xlu0 0
      %952 = vperm.xlu0 %951, %v385
      %v953 = vpop.permute.xlu0 %952
      %956 = vset.pattern.permute.xlu0 0
      %957 = vperm.xlu0 %956, %v386
      %v958 = vpop.permute.xlu0 %957
      %961 = vset.pattern.permute.xlu0 0
      %962 = vperm.xlu0 %961, %v387
      %v963 = vpop.permute.xlu0 %962
      %966 = vset.pattern.permute.xlu0 0
      %967 = vperm.xlu0 %966, %v388
      %v968 = vpop.permute.xlu0 %967
      %971 = vset.pattern.permute.xlu0 0
      %972 = vperm.xlu0 %971, %v389
      %v973 = vpop.permute.xlu0 %972
      %976 = vset.pattern.permute.xlu0 0
      %977 = vperm.xlu0 %976, %v390
      %v978 = vpop.permute.xlu0 %977
      %981 = vset.pattern.permute.xlu0 0
      %982 = vperm.xlu0 %981, %v391
      %v983 = vpop.permute.xlu0 %982
      %986 = vset.pattern.permute.xlu0 0
      %987 = vperm.xlu0 %986, %v392
      %v988 = vpop.permute.xlu0 %987
      %991 = vset.pattern.permute.xlu0 0
      %992 = vperm.xlu0 %991, %v393
      %v993 = vpop.permute.xlu0 %992
      %996 = vset.pattern.permute.xlu0 0
      %997 = vperm.xlu0 %996, %v394
      %v998 = vpop.permute.xlu0 %997
      %1001 = vset.pattern.permute.xlu0 0
      %1002 = vperm.xlu0 %1001, %v395
      %v1003 = vpop.permute.xlu0 %1002
      %1006 = vset.pattern.permute.xlu0 0
      %1007 = vperm.xlu0 %1006, %v396
      %v1008 = vpop.permute.xlu0 %1007
      %v1010 = vmul.f32 %v794, %v833
      %v1011 = vmul.f32 %v795, %v838
      %v1012 = vmul.f32 %v796, %v843
      %v1013 = vmul.f32 %v797, %v848
      %v1014 = vmul.f32 %v798, %v853
      %v1015 = vmul.f32 %v799, %v858
      %v1016 = vmul.f32 %v800, %v863
      %v1017 = vmul.f32 %v801, %v868
      %v1018 = vmul.f32 %v802, %v873
      %v1019 = vmul.f32 %v803, %v878
      %v1020 = vmul.f32 %v804, %v883
      %v1021 = vmul.f32 %v805, %v888
      %v1022 = vmul.f32 %v806, %v893
      %v1023 = vmul.f32 %v807, %v898
      %v1024 = vmul.f32 %v808, %v903
      %v1025 = vmul.f32 %v809, %v908
      %v1026 = vmul.f32 %v810, %v913
      %v1027 = vmul.f32 %v811, %v918
      %v1028 = vmul.f32 %v812, %v923
      %v1029 = vmul.f32 %v813, %v928
      %v1030 = vmul.f32 %v814, %v933
      %v1031 = vmul.f32 %v815, %v938
      %v1032 = vmul.f32 %v816, %v943
      %v1033 = vmul.f32 %v817, %v948
      %v1034 = vmul.f32 %v818, %v953
      %v1035 = vmul.f32 %v819, %v958
      %v1036 = vmul.f32 %v820, %v963
      %v1037 = vmul.f32 %v821, %v968
      %v1038 = vmul.f32 %v822, %v973
      %v1039 = vmul.f32 %v823, %v978
      %v1040 = vmul.f32 %v824, %v983
      %v1041 = vmul.f32 %v825, %v988
      %v1042 = vmul.f32 %v826, %v993
      %v1043 = vmul.f32 %v827, %v998
      %v1044 = vmul.f32 %v828, %v1003
      %v1045 = vmul.f32 %v829, %v1008
      %v1046 = vpack.c.bf16 %v1011, %v1010
      %v1047 = vpack.c.bf16 %v1013, %v1012
      %v1048 = vpack.c.bf16 %v1015, %v1014
      %v1049 = vpack.c.bf16 %v1017, %v1016
      %v1050 = vpack.c.bf16 %v1019, %v1018
      %v1051 = vpack.c.bf16 %v1021, %v1020
      %v1052 = vpack.c.bf16 %v1023, %v1022
      %v1053 = vpack.c.bf16 %v1025, %v1024
      %v1054 = vpack.c.bf16 %v1027, %v1026
      %v1055 = vpack.c.bf16 %v1029, %v1028
      %v1056 = vpack.c.bf16 %v1031, %v1030
      %v1057 = vpack.c.bf16 %v1033, %v1032
      %v1058 = vpack.c.bf16 %v1035, %v1034
      %v1059 = vpack.c.bf16 %v1037, %v1036
      %v1060 = vpack.c.bf16 %v1039, %v1038
      %v1061 = vpack.c.bf16 %v1041, %v1040
      %v1062 = vpack.c.bf16 %v1043, %v1042
      %v1063 = vpack.c.bf16 %v1045, %v1044
      %1064 = vst.msk [vmem:[#allocation2 + $0x10] sm:$0xff] %vm397, %v1046
      %1065 = vst.msk [vmem:[#allocation2 + $0x18] sm:$0xff] %vm397, %v1047
      %1066 = vst.msk [vmem:[#allocation2 + $0x20] sm:$0xff] %vm397, %v1048
      %1067 = vst.msk [vmem:[#allocation2 + $0x28] sm:$0xff] %vm397, %v1049
      %1068 = vst.msk [vmem:[#allocation2 + $0x30] sm:$0xff] %vm397, %v1050
      %1069 = vst.msk [vmem:[#allocation2 + $0x38] sm:$0xff] %vm397, %v1051
      %1070 = vst.msk [vmem:[#allocation2 + $0x40] sm:$0xff] %vm397, %v1052
      %1071 = vst.msk [vmem:[#allocation2 + $0x48] sm:$0xff] %vm397, %v1053
      %1072 = vst.msk [vmem:[#allocation2 + $0x50] sm:$0xff] %vm397, %v1054
      %1073 = vst.msk [vmem:[#allocation2 + $0x58] sm:$0xff] %vm397, %v1055
      %1074 = vst.msk [vmem:[#allocation2 + $0x60] sm:$0xff] %vm397, %v1056
      %1075 = vst.msk [vmem:[#allocation2 + $0x68] sm:$0xff] %vm397, %v1057
      %1076 = vst.msk [vmem:[#allocation2 + $0x70] sm:$0xff] %vm397, %v1058
      %1077 = vst.msk [vmem:[#allocation2 + $0x78] sm:$0xff] %vm397, %v1059
      %1078 = vst.msk [vmem:[#allocation2 + $0x80] sm:$0xff] %vm397, %v1060
      %1079 = vst.msk [vmem:[#allocation2 + $0x88] sm:$0xff] %vm397, %v1061
      %1080 = vst.msk [vmem:[#allocation2 + $0x90] sm:$0xff] %vm397, %v1062
      %1081 = vst.msk [vmem:[#allocation2 + $0x98] sm:$0xff] %vm397, %v1063
      %v1082 = vld [vmem:[#allocation2] sm:$0xc0]
      %v1083 = vld [vmem:[#allocation2 + $0x8] sm:$0xff]
      %v1084 = vld [vmem:[#allocation2 + $0x10] sm:$0xff]
      %v1085 = vld [vmem:[#allocation2 + $0x18] sm:$0xff]
      %v1086 = vld [vmem:[#allocation2 + $0x20] sm:$0xff]
      %v1087 = vld [vmem:[#allocation2 + $0x28] sm:$0xff]
      %v1088 = vld [vmem:[#allocation2 + $0x30] sm:$0xff]
      %v1089 = vld [vmem:[#allocation2 + $0x38] sm:$0xff]
      %v1090 = vld [vmem:[#allocation2 + $0x40] sm:$0xff]
      %v1091 = vld [vmem:[#allocation2 + $0x48] sm:$0xff]
      %v1092 = vld [vmem:[#allocation2 + $0x50] sm:$0xff]
      %v1093 = vld [vmem:[#allocation2 + $0x58] sm:$0xff]
      %v1094 = vld [vmem:[#allocation2 + $0x60] sm:$0xff]
      %v1095 = vld [vmem:[#allocation2 + $0x68] sm:$0xff]
      %v1096 = vld [vmem:[#allocation2 + $0x70] sm:$0xff]
      %v1097 = vld [vmem:[#allocation2 + $0x78] sm:$0xff]
      %v1098 = vld [vmem:[#allocation2 + $0x80] sm:$0xff]
      %v1099 = vld [vmem:[#allocation2 + $0x88] sm:$0xff]
      %v1100 = vld [vmem:[#allocation2 + $0x90] sm:$0x7f]
      %vm1101 = vsmask.f32 1280
      %v1103 = vshrl.u32 %v1082, 16
      %v1105 = vrot.slane %v1103, 6
      %v1106 = vshll.u32 %v1082, 16
      %v1108 = vrot.slane %v1106, 7
      %v1109 = vor.u32 %v1105, %v1108
      %v1111 = vshrl.u32 %v1083, 16
      %v1113 = vrot.slane %v1111, 6
      %v1114 = vshll.u32 %v1083, 16
      %v1116 = vrot.slane %v1114, 7
      %v1117 = vor.u32 %v1113, %v1116
      %v1118 = vsel %vm1101, %v1109, %v1117
      %v1120 = vshrl.u32 %v1084, 16
      %v1122 = vrot.slane %v1120, 6
      %v1123 = vshll.u32 %v1084, 16
      %v1125 = vrot.slane %v1123, 7
      %v1126 = vor.u32 %v1122, %v1125
      %v1127 = vsel %vm1101, %v1117, %v1126
      %v1129 = vshrl.u32 %v1085, 16
      %v1131 = vrot.slane %v1129, 6
      %v1132 = vshll.u32 %v1085, 16
      %v1134 = vrot.slane %v1132, 7
      %v1135 = vor.u32 %v1131, %v1134
      %v1136 = vsel %vm1101, %v1126, %v1135
      %v1138 = vshrl.u32 %v1086, 16
      %v1140 = vrot.slane %v1138, 6
      %v1141 = vshll.u32 %v1086, 16
      %v1143 = vrot.slane %v1141, 7
      %v1144 = vor.u32 %v1140, %v1143
      %v1145 = vsel %vm1101, %v1135, %v1144
      %v1147 = vshrl.u32 %v1087, 16
      %v1149 = vrot.slane %v1147, 6
      %v1150 = vshll.u32 %v1087, 16
      %v1152 = vrot.slane %v1150, 7
      %v1153 = vor.u32 %v1149, %v1152
      %v1154 = vsel %vm1101, %v1144, %v1153
      %v1156 = vshrl.u32 %v1088, 16
      %v1158 = vrot.slane %v1156, 6
      %v1159 = vshll.u32 %v1088, 16
      %v1161 = vrot.slane %v1159, 7
      %v1162 = vor.u32 %v1158, %v1161
      %v1163 = vsel %vm1101, %v1153, %v1162
      %v1165 = vshrl.u32 %v1089, 16
      %v1167 = vrot.slane %v1165, 6
      %v1168 = vshll.u32 %v1089, 16
      %v1170 = vrot.slane %v1168, 7
      %v1171 = vor.u32 %v1167, %v1170
      %v1172 = vsel %vm1101, %v1162, %v1171
      %v1174 = vshrl.u32 %v1090, 16
      %v1176 = vrot.slane %v1174, 6
      %v1177 = vshll.u32 %v1090, 16
      %v1179 = vrot.slane %v1177, 7
      %v1180 = vor.u32 %v1176, %v1179
      %v1181 = vsel %vm1101, %v1171, %v1180
      %v1183 = vshrl.u32 %v1091, 16
      %v1185 = vrot.slane %v1183, 6
      %v1186 = vshll.u32 %v1091, 16
      %v1188 = vrot.slane %v1186, 7
      %v1189 = vor.u32 %v1185, %v1188
      %v1190 = vsel %vm1101, %v1180, %v1189
      %v1192 = vshrl.u32 %v1092, 16
      %v1194 = vrot.slane %v1192, 6
      %v1195 = vshll.u32 %v1092, 16
      %v1197 = vrot.slane %v1195, 7
      %v1198 = vor.u32 %v1194, %v1197
      %v1199 = vsel %vm1101, %v1189, %v1198
      %v1201 = vshrl.u32 %v1093, 16
      %v1203 = vrot.slane %v1201, 6
      %v1204 = vshll.u32 %v1093, 16
      %v1206 = vrot.slane %v1204, 7
      %v1207 = vor.u32 %v1203, %v1206
      %v1208 = vsel %vm1101, %v1198, %v1207
      %v1210 = vshrl.u32 %v1094, 16
      %v1212 = vrot.slane %v1210, 6
      %v1213 = vshll.u32 %v1094, 16
      %v1215 = vrot.slane %v1213, 7
      %v1216 = vor.u32 %v1212, %v1215
      %v1217 = vsel %vm1101, %v1207, %v1216
      %v1219 = vshrl.u32 %v1095, 16
      %v1221 = vrot.slane %v1219, 6
      %v1222 = vshll.u32 %v1095, 16
      %v1224 = vrot.slane %v1222, 7
      %v1225 = vor.u32 %v1221, %v1224
      %v1226 = vsel %vm1101, %v1216, %v1225
      %v1228 = vshrl.u32 %v1096, 16
      %v1230 = vrot.slane %v1228, 6
      %v1231 = vshll.u32 %v1096, 16
      %v1233 = vrot.slane %v1231, 7
      %v1234 = vor.u32 %v1230, %v1233
      %v1235 = vsel %vm1101, %v1225, %v1234
      %v1237 = vshrl.u32 %v1097, 16
      %v1239 = vrot.slane %v1237, 6
      %v1240 = vshll.u32 %v1097, 16
      %v1242 = vrot.slane %v1240, 7
      %v1243 = vor.u32 %v1239, %v1242
      %v1244 = vsel %vm1101, %v1234, %v1243
      %v1246 = vshrl.u32 %v1098, 16
      %v1248 = vrot.slane %v1246, 6
      %v1249 = vshll.u32 %v1098, 16
      %v1251 = vrot.slane %v1249, 7
      %v1252 = vor.u32 %v1248, %v1251
      %v1253 = vsel %vm1101, %v1243, %v1252
      %v1255 = vshrl.u32 %v1099, 16
      %v1257 = vrot.slane %v1255, 6
      %v1258 = vshll.u32 %v1099, 16
      %v1260 = vrot.slane %v1258, 7
      %v1261 = vor.u32 %v1257, %v1260
      %v1262 = vsel %vm1101, %v1252, %v1261
      %v1264 = vshrl.u32 %v1100, 16
      %v1266 = vrot.slane %v1264, 6
      %v1267 = vshll.u32 %v1100, 16
      %v1269 = vrot.slane %v1267, 7
      %v1270 = vor.u32 %v1266, %v1269
      %v1271 = vsel %vm1101, %v1261, %v1270
      %1290 = vst.msk [vmem:[#allocation4] sm:$0xff] %vm397, %v1118
      %1291 = vst.msk [vmem:[#allocation4 + $0x28] sm:$0xff] %vm397, %v1127
      %1292 = vst.msk [vmem:[#allocation4 + $0x50] sm:$0xff] %vm397, %v1136
      %1293 = vst.msk [vmem:[#allocation4 + $0x78] sm:$0xff] %vm397, %v1145
      %1294 = vst.msk [vmem:[#allocation4 + $0xa0] sm:$0xff] %vm397, %v1154
      %1295 = vst.msk [vmem:[#allocation4 + $0xc8] sm:$0xff] %vm397, %v1163
      %1296 = vst.msk [vmem:[#allocation4 + $0xf0] sm:$0xff] %vm397, %v1172
      %1297 = vst.msk [vmem:[#allocation4 + $0x118] sm:$0xff] %vm397, %v1181
      %1298 = vst.msk [vmem:[#allocation4 + $0x140] sm:$0xff] %vm397, %v1190
      %1299 = vst.msk [vmem:[#allocation4 + $0x168] sm:$0xff] %vm397, %v1199
      %1300 = vst.msk [vmem:[#allocation4 + $0x190] sm:$0xff] %vm397, %v1208
      %1301 = vst.msk [vmem:[#allocation4 + $0x1b8] sm:$0xff] %vm397, %v1217
      %1302 = vst.msk [vmem:[#allocation4 + $0x1e0] sm:$0xff] %vm397, %v1226
      %1303 = vst.msk [vmem:[#allocation4 + $0x208] sm:$0xff] %vm397, %v1235
      %1304 = vst.msk [vmem:[#allocation4 + $0x230] sm:$0xff] %vm397, %v1244
      %1305 = vst.msk [vmem:[#allocation4 + $0x258] sm:$0xff] %vm397, %v1253
      %1306 = vst.msk [vmem:[#allocation4 + $0x280] sm:$0xff] %vm397, %v1262
      %1307 = vst.msk [vmem:[#allocation4 + $0x2a8] sm:$0xff] %vm397, %v1271
      %v1308 = vld [vmem:[#allocation2] sm:$0x80]
      %v1309 = vld [vmem:[#allocation2 + $0x8] sm:$0xff]
      %v1310 = vld [vmem:[#allocation2 + $0x10] sm:$0xff]
      %v1311 = vld [vmem:[#allocation2 + $0x18] sm:$0xff]
      %v1312 = vld [vmem:[#allocation2 + $0x20] sm:$0xff]
      %v1313 = vld [vmem:[#allocation2 + $0x28] sm:$0xff]
      %v1314 = vld [vmem:[#allocation2 + $0x30] sm:$0xff]
      %v1315 = vld [vmem:[#allocation2 + $0x38] sm:$0xff]
      %v1316 = vld [vmem:[#allocation2 + $0x40] sm:$0xff]
      %v1317 = vld [vmem:[#allocation2 + $0x48] sm:$0xff]
      %v1318 = vld [vmem:[#allocation2 + $0x50] sm:$0xff]
      %v1319 = vld [vmem:[#allocation2 + $0x58] sm:$0xff]
      %v1320 = vld [vmem:[#allocation2 + $0x60] sm:$0xff]
      %v1321 = vld [vmem:[#allocation2 + $0x68] sm:$0xff]
      %v1322 = vld [vmem:[#allocation2 + $0x70] sm:$0xff]
      %v1323 = vld [vmem:[#allocation2 + $0x78] sm:$0xff]
      %v1324 = vld [vmem:[#allocation2 + $0x80] sm:$0xff]
      %v1325 = vld [vmem:[#allocation2 + $0x88] sm:$0xff]
      %v1326 = vld [vmem:[#allocation2 + $0x90] sm:$0x7f]
      %vm1346 = vcmask 1040384
      %v1347 = vrot.slane %v1308, 7
      %v1348 = vrot.slane %v1309, 7
      %v1349 = vsel %vm1346, %v1347, %v1348
      %v1350 = vrot.slane %v1310, 7
      %v1351 = vsel %vm1346, %v1348, %v1350
      %v1352 = vrot.slane %v1311, 7
      %v1353 = vsel %vm1346, %v1350, %v1352
      %v1354 = vrot.slane %v1312, 7
      %v1355 = vsel %vm1346, %v1352, %v1354
      %v1356 = vrot.slane %v1313, 7
      %v1357 = vsel %vm1346, %v1354, %v1356
      %v1358 = vrot.slane %v1314, 7
      %v1359 = vsel %vm1346, %v1356, %v1358
      %v1360 = vrot.slane %v1315, 7
      %v1361 = vsel %vm1346, %v1358, %v1360
      %v1362 = vrot.slane %v1316, 7
      %v1363 = vsel %vm1346, %v1360, %v1362
      %v1364 = vrot.slane %v1317, 7
      %v1365 = vsel %vm1346, %v1362, %v1364
      %v1366 = vrot.slane %v1318, 7
      %v1367 = vsel %vm1346, %v1364, %v1366
      %v1368 = vrot.slane %v1319, 7
      %v1369 = vsel %vm1346, %v1366, %v1368
      %v1370 = vrot.slane %v1320, 7
      %v1371 = vsel %vm1346, %v1368, %v1370
      %v1372 = vrot.slane %v1321, 7
      %v1373 = vsel %vm1346, %v1370, %v1372
      %v1374 = vrot.slane %v1322, 7
      %v1375 = vsel %vm1346, %v1372, %v1374
      %v1376 = vrot.slane %v1323, 7
      %v1377 = vsel %vm1346, %v1374, %v1376
      %v1378 = vrot.slane %v1324, 7
      %v1379 = vsel %vm1346, %v1376, %v1378
      %v1380 = vrot.slane %v1325, 7
      %v1381 = vsel %vm1346, %v1378, %v1380
      %v1382 = vrot.slane %v1326, 7
      %v1383 = vsel %vm1346, %v1380, %v1382
      %1384 = vrot.lane.b32.xlu0 %v1349, 64
      %v1385 = vpop.permute.xlu0 %1384
      %1386 = vrot.lane.b32.xlu0 %v1351, 64
      %v1387 = vpop.permute.xlu0 %1386
      %1388 = vrot.lane.b32.xlu0 %v1353, 64
      %v1389 = vpop.permute.xlu0 %1388
      %1390 = vrot.lane.b32.xlu0 %v1355, 64
      %v1391 = vpop.permute.xlu0 %1390
      %1392 = vrot.lane.b32.xlu0 %v1357, 64
      %v1393 = vpop.permute.xlu0 %1392
      %1394 = vrot.lane.b32.xlu0 %v1359, 64
      %v1395 = vpop.permute.xlu0 %1394
      %1396 = vrot.lane.b32.xlu0 %v1361, 64
      %v1397 = vpop.permute.xlu0 %1396
      %1398 = vrot.lane.b32.xlu0 %v1363, 64
      %v1399 = vpop.permute.xlu0 %1398
      %1400 = vrot.lane.b32.xlu0 %v1365, 64
      %v1401 = vpop.permute.xlu0 %1400
      %1402 = vrot.lane.b32.xlu0 %v1367, 64
      %v1403 = vpop.permute.xlu0 %1402
      %1404 = vrot.lane.b32.xlu0 %v1369, 64
      %v1405 = vpop.permute.xlu0 %1404
      %1406 = vrot.lane.b32.xlu0 %v1371, 64
      %v1407 = vpop.permute.xlu0 %1406
      %1408 = vrot.lane.b32.xlu0 %v1373, 64
      %v1409 = vpop.permute.xlu0 %1408
      %1410 = vrot.lane.b32.xlu0 %v1375, 64
      %v1411 = vpop.permute.xlu0 %1410
      %1412 = vrot.lane.b32.xlu0 %v1377, 64
      %v1413 = vpop.permute.xlu0 %1412
      %1414 = vrot.lane.b32.xlu0 %v1379, 64
      %v1415 = vpop.permute.xlu0 %1414
      %1416 = vrot.lane.b32.xlu0 %v1381, 64
      %v1417 = vpop.permute.xlu0 %1416
      %1418 = vrot.lane.b32.xlu0 %v1383, 64
      %v1419 = vpop.permute.xlu0 %1418
      %vm1438 = vcmask 1048064
      %1439 = vst.msk [vmem:[#allocation4] sm:$0xff] %vm1438, %v1385
      %1440 = vst.msk [vmem:[#allocation4 + $0x28] sm:$0xff] %vm1438, %v1387
      %1441 = vst.msk [vmem:[#allocation4 + $0x50] sm:$0xff] %vm1438, %v1389
      %1442 = vst.msk [vmem:[#allocation4 + $0x78] sm:$0xff] %vm1438, %v1391
      %1443 = vst.msk [vmem:[#allocation4 + $0xa0] sm:$0xff] %vm1438, %v1393
      %1444 = vst.msk [vmem:[#allocation4 + $0xc8] sm:$0xff] %vm1438, %v1395
      %1445 = vst.msk [vmem:[#allocation4 + $0xf0] sm:$0xff] %vm1438, %v1397
      %1446 = vst.msk [vmem:[#allocation4 + $0x118] sm:$0xff] %vm1438, %v1399
      %1447 = vst.msk [vmem:[#allocation4 + $0x140] sm:$0xff] %vm1438, %v1401
      %1448 = vst.msk [vmem:[#allocation4 + $0x168] sm:$0xff] %vm1438, %v1403
      %1449 = vst.msk [vmem:[#allocation4 + $0x190] sm:$0xff] %vm1438, %v1405
      %1450 = vst.msk [vmem:[#allocation4 + $0x1b8] sm:$0xff] %vm1438, %v1407
      %1451 = vst.msk [vmem:[#allocation4 + $0x1e0] sm:$0xff] %vm1438, %v1409
      %1452 = vst.msk [vmem:[#allocation4 + $0x208] sm:$0xff] %vm1438, %v1411
      %1453 = vst.msk [vmem:[#allocation4 + $0x230] sm:$0xff] %vm1438, %v1413
      %1454 = vst.msk [vmem:[#allocation4 + $0x258] sm:$0xff] %vm1438, %v1415
      %1455 = vst.msk [vmem:[#allocation4 + $0x280] sm:$0xff] %vm1438, %v1417
      %1456 = vst.msk [vmem:[#allocation4 + $0x2a8] sm:$0xff] %vm1438, %v1419
      %v1457 = vld [vmem:[#allocation2] sm:$0x80]
      %v1458 = vld [vmem:[#allocation2 + $0x8] sm:$0xff]
      %v1459 = vld [vmem:[#allocation2 + $0x10] sm:$0xff]
      %v1460 = vld [vmem:[#allocation2 + $0x18] sm:$0xff]
      %v1461 = vld [vmem:[#allocation2 + $0x20] sm:$0xff]
      %v1462 = vld [vmem:[#allocation2 + $0x28] sm:$0xff]
      %v1463 = vld [vmem:[#allocation2 + $0x30] sm:$0xff]
      %v1464 = vld [vmem:[#allocation2 + $0x38] sm:$0xff]
      %v1465 = vld [vmem:[#allocation2 + $0x40] sm:$0xff]
      %v1466 = vld [vmem:[#allocation2 + $0x48] sm:$0xff]
      %v1467 = vld [vmem:[#allocation2 + $0x50] sm:$0xff]
      %v1468 = vld [vmem:[#allocation2 + $0x58] sm:$0xff]
      %v1469 = vld [vmem:[#allocation2 + $0x60] sm:$0xff]
      %v1470 = vld [vmem:[#allocation2 + $0x68] sm:$0xff]
      %v1471 = vld [vmem:[#allocation2 + $0x70] sm:$0xff]
      %v1472 = vld [vmem:[#allocation2 + $0x78] sm:$0xff]
      %v1473 = vld [vmem:[#allocation2 + $0x80] sm:$0xff]
      %v1474 = vld [vmem:[#allocation2 + $0x88] sm:$0xff]
      %v1475 = vld [vmem:[#allocation2 + $0x90] sm:$0xff]
      %vm1476 = vsmask.f32 256
      %v1478 = vshrl.u32 %v1457, 16
      %v1480 = vrot.slane %v1478, 7
      %v1482 = vshrl.u32 %v1458, 16
      %v1484 = vrot.slane %v1482, 7
      %v1485 = vshll.u32 %v1458, 16
      %v1487 = vor.u32 %v1484, %v1485
      %v1488 = vsel %vm1476, %v1480, %v1487
      %v1490 = vshrl.u32 %v1459, 16
      %v1492 = vrot.slane %v1490, 7
      %v1493 = vshll.u32 %v1459, 16
      %v1495 = vor.u32 %v1492, %v1493
      %v1496 = vsel %vm1476, %v1484, %v1495
      %v1498 = vshrl.u32 %v1460, 16
      %v1500 = vrot.slane %v1498, 7
      %v1501 = vshll.u32 %v1460, 16
      %v1503 = vor.u32 %v1500, %v1501
      %v1504 = vsel %vm1476, %v1492, %v1503
      %v1506 = vshrl.u32 %v1461, 16
      %v1508 = vrot.slane %v1506, 7
      %v1509 = vshll.u32 %v1461, 16
      %v1511 = vor.u32 %v1508, %v1509
      %v1512 = vsel %vm1476, %v1500, %v1511
      %v1514 = vshrl.u32 %v1462, 16
      %v1516 = vrot.slane %v1514, 7
      %v1517 = vshll.u32 %v1462, 16
      %v1519 = vor.u32 %v1516, %v1517
      %v1520 = vsel %vm1476, %v1508, %v1519
      %v1522 = vshrl.u32 %v1463, 16
      %v1524 = vrot.slane %v1522, 7
      %v1525 = vshll.u32 %v1463, 16
      %v1527 = vor.u32 %v1524, %v1525
      %v1528 = vsel %vm1476, %v1516, %v1527
      %v1530 = vshrl.u32 %v1464, 16
      %v1532 = vrot.slane %v1530, 7
      %v1533 = vshll.u32 %v1464, 16
      %v1535 = vor.u32 %v1532, %v1533
      %v1536 = vsel %vm1476, %v1524, %v1535
      %v1538 = vshrl.u32 %v1465, 16
      %v1540 = vrot.slane %v1538, 7
      %v1541 = vshll.u32 %v1465, 16
      %v1543 = vor.u32 %v1540, %v1541
      %v1544 = vsel %vm1476, %v1532, %v1543
      %v1546 = vshrl.u32 %v1466, 16
      %v1548 = vrot.slane %v1546, 7
      %v1549 = vshll.u32 %v1466, 16
      %v1551 = vor.u32 %v1548, %v1549
      %v1552 = vsel %vm1476, %v1540, %v1551
      %v1554 = vshrl.u32 %v1467, 16
      %v1556 = vrot.slane %v1554, 7
      %v1557 = vshll.u32 %v1467, 16
      %v1559 = vor.u32 %v1556, %v1557
      %v1560 = vsel %vm1476, %v1548, %v1559
      %v1562 = vshrl.u32 %v1468, 16
      %v1564 = vrot.slane %v1562, 7
      %v1565 = vshll.u32 %v1468, 16
      %v1567 = vor.u32 %v1564, %v1565
      %v1568 = vsel %vm1476, %v1556, %v1567
      %v1570 = vshrl.u32 %v1469, 16
      %v1572 = vrot.slane %v1570, 7
      %v1573 = vshll.u32 %v1469, 16
      %v1575 = vor.u32 %v1572, %v1573
      %v1576 = vsel %vm1476, %v1564, %v1575
      %v1578 = vshrl.u32 %v1470, 16
      %v1580 = vrot.slane %v1578, 7
      %v1581 = vshll.u32 %v1470, 16
      %v1583 = vor.u32 %v1580, %v1581
      %v1584 = vsel %vm1476, %v1572, %v1583
      %v1586 = vshrl.u32 %v1471, 16
      %v1588 = vrot.slane %v1586, 7
      %v1589 = vshll.u32 %v1471, 16
      %v1591 = vor.u32 %v1588, %v1589
      %v1592 = vsel %vm1476, %v1580, %v1591
      %v1594 = vshrl.u32 %v1472, 16
      %v1596 = vrot.slane %v1594, 7
      %v1597 = vshll.u32 %v1472, 16
      %v1599 = vor.u32 %v1596, %v1597
      %v1600 = vsel %vm1476, %v1588, %v1599
      %v1602 = vshrl.u32 %v1473, 16
      %v1604 = vrot.slane %v1602, 7
      %v1605 = vshll.u32 %v1473, 16
      %v1607 = vor.u32 %v1604, %v1605
      %v1608 = vsel %vm1476, %v1596, %v1607
      %v1610 = vshrl.u32 %v1474, 16
      %v1612 = vrot.slane %v1610, 7
      %v1613 = vshll.u32 %v1474, 16
      %v1615 = vor.u32 %v1612, %v1613
      %v1616 = vsel %vm1476, %v1604, %v1615
      %v1618 = vshrl.u32 %v1475, 16
      %v1620 = vrot.slane %v1618, 7
      %v1621 = vshll.u32 %v1475, 16
      %v1623 = vor.u32 %v1620, %v1621
      %v1624 = vsel %vm1476, %v1612, %v1623
      %1643 = vst.msk [vmem:[#allocation4 + $0x8] sm:$0xff] %vm397, %v1488
      %1644 = vst.msk [vmem:[#allocation4 + $0x30] sm:$0xff] %vm397, %v1496
      %1645 = vst.msk [vmem:[#allocation4 + $0x58] sm:$0xff] %vm397, %v1504
      %1646 = vst.msk [vmem:[#allocation4 + $0x80] sm:$0xff] %vm397, %v1512
      %1647 = vst.msk [vmem:[#allocation4 + $0xa8] sm:$0xff] %vm397, %v1520
      %1648 = vst.msk [vmem:[#allocation4 + $0xd0] sm:$0xff] %vm397, %v1528
      %1649 = vst.msk [vmem:[#allocation4 + $0xf8] sm:$0xff] %vm397, %v1536
      %1650 = vst.msk [vmem:[#allocation4 + $0x120] sm:$0xff] %vm397, %v1544
      %1651 = vst.msk [vmem:[#allocation4 + $0x148] sm:$0xff] %vm397, %v1552
      %1652 = vst.msk [vmem:[#allocation4 + $0x170] sm:$0xff] %vm397, %v1560
      %1653 = vst.msk [vmem:[#allocation4 + $0x198] sm:$0xff] %vm397, %v1568
      %1654 = vst.msk [vmem:[#allocation4 + $0x1c0] sm:$0xff] %vm397, %v1576
      %1655 = vst.msk [vmem:[#allocation4 + $0x1e8] sm:$0xff] %vm397, %v1584
      %1656 = vst.msk [vmem:[#allocation4 + $0x210] sm:$0xff] %vm397, %v1592
      %1657 = vst.msk [vmem:[#allocation4 + $0x238] sm:$0xff] %vm397, %v1600
      %1658 = vst.msk [vmem:[#allocation4 + $0x260] sm:$0xff] %vm397, %v1608
      %1659 = vst.msk [vmem:[#allocation4 + $0x288] sm:$0xff] %vm397, %v1616
      %1660 = vst.msk [vmem:[#allocation4 + $0x2b0] sm:$0xff] %vm397, %v1624
      %v1661 = vld [vmem:[#allocation2 + $0x8] sm:$0x80]
      %v1662 = vld [vmem:[#allocation2 + $0x10] sm:$0xff]
      %v1663 = vld [vmem:[#allocation2 + $0x18] sm:$0xff]
      %v1664 = vld [vmem:[#allocation2 + $0x20] sm:$0xff]
      %v1665 = vld [vmem:[#allocation2 + $0x28] sm:$0xff]
      %v1666 = vld [vmem:[#allocation2 + $0x30] sm:$0xff]
      %v1667 = vld [vmem:[#allocation2 + $0x38] sm:$0xff]
      %v1668 = vld [vmem:[#allocation2 + $0x40] sm:$0xff]
      %v1669 = vld [vmem:[#allocation2 + $0x48] sm:$0xff]
      %v1670 = vld [vmem:[#allocation2 + $0x50] sm:$0xff]
      %v1671 = vld [vmem:[#allocation2 + $0x58] sm:$0xff]
      %v1672 = vld [vmem:[#allocation2 + $0x60] sm:$0xff]
      %v1673 = vld [vmem:[#allocation2 + $0x68] sm:$0xff]
      %v1674 = vld [vmem:[#allocation2 + $0x70] sm:$0xff]
      %v1675 = vld [vmem:[#allocation2 + $0x78] sm:$0xff]
      %v1676 = vld [vmem:[#allocation2 + $0x80] sm:$0xff]
      %v1677 = vld [vmem:[#allocation2 + $0x88] sm:$0xff]
      %v1678 = vld [vmem:[#allocation2 + $0x90] sm:$0xff]
      %v1679 = vld [vmem:[#allocation2 + $0x98] sm:$0xff]
      %v1681 = vshrl.u32 %v1661, 16
      %v1683 = vrot.slane %v1681, 7
      %v1685 = vshrl.u32 %v1662, 16
      %v1687 = vrot.slane %v1685, 7
      %v1688 = vshll.u32 %v1662, 16
      %v1690 = vor.u32 %v1687, %v1688
      %v1691 = vsel %vm1476, %v1683, %v1690
      %v1693 = vshrl.u32 %v1663, 16
      %v1695 = vrot.slane %v1693, 7
      %v1696 = vshll.u32 %v1663, 16
      %v1698 = vor.u32 %v1695, %v1696
      %v1699 = vsel %vm1476, %v1687, %v1698
      %v1701 = vshrl.u32 %v1664, 16
      %v1703 = vrot.slane %v1701, 7
      %v1704 = vshll.u32 %v1664, 16
      %v1706 = vor.u32 %v1703, %v1704
      %v1707 = vsel %vm1476, %v1695, %v1706
      %v1709 = vshrl.u32 %v1665, 16
      %v1711 = vrot.slane %v1709, 7
      %v1712 = vshll.u32 %v1665, 16
      %v1714 = vor.u32 %v1711, %v1712
      %v1715 = vsel %vm1476, %v1703, %v1714
      %v1717 = vshrl.u32 %v1666, 16
      %v1719 = vrot.slane %v1717, 7
      %v1720 = vshll.u32 %v1666, 16
      %v1722 = vor.u32 %v1719, %v1720
      %v1723 = vsel %vm1476, %v1711, %v1722
      %v1725 = vshrl.u32 %v1667, 16
      %v1727 = vrot.slane %v1725, 7
      %v1728 = vshll.u32 %v1667, 16
      %v1730 = vor.u32 %v1727, %v1728
      %v1731 = vsel %vm1476, %v1719, %v1730
      %v1733 = vshrl.u32 %v1668, 16
      %v1735 = vrot.slane %v1733, 7
      %v1736 = vshll.u32 %v1668, 16
      %v1738 = vor.u32 %v1735, %v1736
      %v1739 = vsel %vm1476, %v1727, %v1738
      %v1741 = vshrl.u32 %v1669, 16
      %v1743 = vrot.slane %v1741, 7
      %v1744 = vshll.u32 %v1669, 16
      %v1746 = vor.u32 %v1743, %v1744
      %v1747 = vsel %vm1476, %v1735, %v1746
      %v1749 = vshrl.u32 %v1670, 16
      %v1751 = vrot.slane %v1749, 7
      %v1752 = vshll.u32 %v1670, 16
      %v1754 = vor.u32 %v1751, %v1752
      %v1755 = vsel %vm1476, %v1743, %v1754
      %v1757 = vshrl.u32 %v1671, 16
      %v1759 = vrot.slane %v1757, 7
      %v1760 = vshll.u32 %v1671, 16
      %v1762 = vor.u32 %v1759, %v1760
      %v1763 = vsel %vm1476, %v1751, %v1762
      %v1765 = vshrl.u32 %v1672, 16
      %v1767 = vrot.slane %v1765, 7
      %v1768 = vshll.u32 %v1672, 16
      %v1770 = vor.u32 %v1767, %v1768
      %v1771 = vsel %vm1476, %v1759, %v1770
      %v1773 = vshrl.u32 %v1673, 16
      %v1775 = vrot.slane %v1773, 7
      %v1776 = vshll.u32 %v1673, 16
      %v1778 = vor.u32 %v1775, %v1776
      %v1779 = vsel %vm1476, %v1767, %v1778
      %v1781 = vshrl.u32 %v1674, 16
      %v1783 = vrot.slane %v1781, 7
      %v1784 = vshll.u32 %v1674, 16
      %v1786 = vor.u32 %v1783, %v1784
      %v1787 = vsel %vm1476, %v1775, %v1786
      %v1789 = vshrl.u32 %v1675, 16
      %v1791 = vrot.slane %v1789, 7
      %v1792 = vshll.u32 %v1675, 16
      %v1794 = vor.u32 %v1791, %v1792
      %v1795 = vsel %vm1476, %v1783, %v1794
      %v1797 = vshrl.u32 %v1676, 16
      %v1799 = vrot.slane %v1797, 7
      %v1800 = vshll.u32 %v1676, 16
      %v1802 = vor.u32 %v1799, %v1800
      %v1803 = vsel %vm1476, %v1791, %v1802
      %v1805 = vshrl.u32 %v1677, 16
      %v1807 = vrot.slane %v1805, 7
      %v1808 = vshll.u32 %v1677, 16
      %v1810 = vor.u32 %v1807, %v1808
      %v1811 = vsel %vm1476, %v1799, %v1810
      %v1813 = vshrl.u32 %v1678, 16
      %v1815 = vrot.slane %v1813, 7
      %v1816 = vshll.u32 %v1678, 16
      %v1818 = vor.u32 %v1815, %v1816
      %v1819 = vsel %vm1476, %v1807, %v1818
      %v1821 = vshrl.u32 %v1679, 16
      %v1823 = vrot.slane %v1821, 7
      %v1824 = vshll.u32 %v1679, 16
      %v1826 = vor.u32 %v1823, %v1824
      %v1827 = vsel %vm1476, %v1815, %v1826
      %1828 = vrot.lane.b32.xlu0 %v1691, 64
      %v1829 = vpop.permute.xlu0 %1828
      %1830 = vrot.lane.b32.xlu0 %v1699, 64
      %v1831 = vpop.permute.xlu0 %1830
      %1832 = vrot.lane.b32.xlu0 %v1707, 64
      %v1833 = vpop.permute.xlu0 %1832
      %1834 = vrot.lane.b32.xlu0 %v1715, 64
      %v1835 = vpop.permute.xlu0 %1834
      %1836 = vrot.lane.b32.xlu0 %v1723, 64
      %v1837 = vpop.permute.xlu0 %1836
      %1838 = vrot.lane.b32.xlu0 %v1731, 64
      %v1839 = vpop.permute.xlu0 %1838
      %1840 = vrot.lane.b32.xlu0 %v1739, 64
      %v1841 = vpop.permute.xlu0 %1840
      %1842 = vrot.lane.b32.xlu0 %v1747, 64
      %v1843 = vpop.permute.xlu0 %1842
      %1844 = vrot.lane.b32.xlu0 %v1755, 64
      %v1845 = vpop.permute.xlu0 %1844
      %1846 = vrot.lane.b32.xlu0 %v1763, 64
      %v1847 = vpop.permute.xlu0 %1846
      %1848 = vrot.lane.b32.xlu0 %v1771, 64
      %v1849 = vpop.permute.xlu0 %1848
      %1850 = vrot.lane.b32.xlu0 %v1779, 64
      %v1851 = vpop.permute.xlu0 %1850
      %1852 = vrot.lane.b32.xlu0 %v1787, 64
      %v1853 = vpop.permute.xlu0 %1852
      %1854 = vrot.lane.b32.xlu0 %v1795, 64
      %v1855 = vpop.permute.xlu0 %1854
      %1856 = vrot.lane.b32.xlu0 %v1803, 64
      %v1857 = vpop.permute.xlu0 %1856
      %1858 = vrot.lane.b32.xlu0 %v1811, 64
      %v1859 = vpop.permute.xlu0 %1858
      %1860 = vrot.lane.b32.xlu0 %v1819, 64
      %v1861 = vpop.permute.xlu0 %1860
      %1862 = vrot.lane.b32.xlu0 %v1827, 64
      %v1863 = vpop.permute.xlu0 %1862
      %1882 = vst.msk [vmem:[#allocation4 + $0x8] sm:$0xff] %vm1438, %v1829
      %1883 = vst.msk [vmem:[#allocation4 + $0x30] sm:$0xff] %vm1438, %v1831
      %1884 = vst.msk [vmem:[#allocation4 + $0x58] sm:$0xff] %vm1438, %v1833
      %1885 = vst.msk [vmem:[#allocation4 + $0x80] sm:$0xff] %vm1438, %v1835
      %1886 = vst.msk [vmem:[#allocation4 + $0xa8] sm:$0xff] %vm1438, %v1837
      %1887 = vst.msk [vmem:[#allocation4 + $0xd0] sm:$0xff] %vm1438, %v1839
      %1888 = vst.msk [vmem:[#allocation4 + $0xf8] sm:$0xff] %vm1438, %v1841
      %1889 = vst.msk [vmem:[#allocation4 + $0x120] sm:$0xff] %vm1438, %v1843
      %1890 = vst.msk [vmem:[#allocation4 + $0x148] sm:$0xff] %vm1438, %v1845
      %1891 = vst.msk [vmem:[#allocation4 + $0x170] sm:$0xff] %vm1438, %v1847
      %1892 = vst.msk [vmem:[#allocation4 + $0x198] sm:$0xff] %vm1438, %v1849
      %1893 = vst.msk [vmem:[#allocation4 + $0x1c0] sm:$0xff] %vm1438, %v1851
      %1894 = vst.msk [vmem:[#allocation4 + $0x1e8] sm:$0xff] %vm1438, %v1853
      %1895 = vst.msk [vmem:[#allocation4 + $0x210] sm:$0xff] %vm1438, %v1855
      %1896 = vst.msk [vmem:[#allocation4 + $0x238] sm:$0xff] %vm1438, %v1857
      %1897 = vst.msk [vmem:[#allocation4 + $0x260] sm:$0xff] %vm1438, %v1859
      %1898 = vst.msk [vmem:[#allocation4 + $0x288] sm:$0xff] %vm1438, %v1861
      %1899 = vst.msk [vmem:[#allocation4 + $0x2b0] sm:$0xff] %vm1438, %v1863
      %v1900 = vld [vmem:[#allocation2 + $0x10] sm:$0xff]
      %v1901 = vld [vmem:[#allocation2 + $0x18] sm:$0xff]
      %v1902 = vld [vmem:[#allocation2 + $0x20] sm:$0xff]
      %v1903 = vld [vmem:[#allocation2 + $0x28] sm:$0xff]
      %v1904 = vld [vmem:[#allocation2 + $0x30] sm:$0xff]
      %v1905 = vld [vmem:[#allocation2 + $0x38] sm:$0xff]
      %v1906 = vld [vmem:[#allocation2 + $0x40] sm:$0xff]
      %v1907 = vld [vmem:[#allocation2 + $0x48] sm:$0xff]
      %v1908 = vld [vmem:[#allocation2 + $0x50] sm:$0xff]
      %v1909 = vld [vmem:[#allocation2 + $0x58] sm:$0xff]
      %v1910 = vld [vmem:[#allocation2 + $0x60] sm:$0xff]
      %v1911 = vld [vmem:[#allocation2 + $0x68] sm:$0xff]
      %v1912 = vld [vmem:[#allocation2 + $0x70] sm:$0xff]
      %v1913 = vld [vmem:[#allocation2 + $0x78] sm:$0xff]
      %v1914 = vld [vmem:[#allocation2 + $0x80] sm:$0xff]
      %v1915 = vld [vmem:[#allocation2 + $0x88] sm:$0xff]
      %v1916 = vld [vmem:[#allocation2 + $0x90] sm:$0xff]
      %v1917 = vld [vmem:[#allocation2 + $0x98] sm:$0xff]
      %1918 = vst.msk [vmem:[#allocation4 + $0x10] sm:$0xff] %vm397, %v1900
      %1919 = vst.msk [vmem:[#allocation4 + $0x38] sm:$0xff] %vm397, %v1901
      %1920 = vst.msk [vmem:[#allocation4 + $0x60] sm:$0xff] %vm397, %v1902
      %1921 = vst.msk [vmem:[#allocation4 + $0x88] sm:$0xff] %vm397, %v1903
      %1922 = vst.msk [vmem:[#allocation4 + $0xb0] sm:$0xff] %vm397, %v1904
      %1923 = vst.msk [vmem:[#allocation4 + $0xd8] sm:$0xff] %vm397, %v1905
      %1924 = vst.msk [vmem:[#allocation4 + $0x100] sm:$0xff] %vm397, %v1906
      %1925 = vst.msk [vmem:[#allocation4 + $0x128] sm:$0xff] %vm397, %v1907
      %1926 = vst.msk [vmem:[#allocation4 + $0x150] sm:$0xff] %vm397, %v1908
      %1927 = vst.msk [vmem:[#allocation4 + $0x178] sm:$0xff] %vm397, %v1909
      %1928 = vst.msk [vmem:[#allocation4 + $0x1a0] sm:$0xff] %vm397, %v1910
      %1929 = vst.msk [vmem:[#allocation4 + $0x1c8] sm:$0xff] %vm397, %v1911
      %1930 = vst.msk [vmem:[#allocation4 + $0x1f0] sm:$0xff] %vm397, %v1912
      %1931 = vst.msk [vmem:[#allocation4 + $0x218] sm:$0xff] %vm397, %v1913
      %1932 = vst.msk [vmem:[#allocation4 + $0x240] sm:$0xff] %vm397, %v1914
      %1933 = vst.msk [vmem:[#allocation4 + $0x268] sm:$0xff] %vm397, %v1915
      %1934 = vst.msk [vmem:[#allocation4 + $0x290] sm:$0xff] %vm397, %v1916
      %1935 = vst.msk [vmem:[#allocation4 + $0x2b8] sm:$0xff] %vm397, %v1917
      %v1936 = vld [vmem:[#allocation2 + $0x10] sm:$0xff]
      %v1937 = vld [vmem:[#allocation2 + $0x18] sm:$0xff]
      %v1938 = vld [vmem:[#allocation2 + $0x20] sm:$0xff]
      %v1939 = vld [vmem:[#allocation2 + $0x28] sm:$0xff]
      %v1940 = vld [vmem:[#allocation2 + $0x30] sm:$0xff]
      %v1941 = vld [vmem:[#allocation2 + $0x38] sm:$0xff]
      %v1942 = vld [vmem:[#allocation2 + $0x40] sm:$0xff]
      %v1943 = vld [vmem:[#allocation2 + $0x48] sm:$0xff]
      %v1944 = vld [vmem:[#allocation2 + $0x50] sm:$0xff]
      %v1945 = vld [vmem:[#allocation2 + $0x58] sm:$0xff]
      %v1946 = vld [vmem:[#allocation2 + $0x60] sm:$0xff]
      %v1947 = vld [vmem:[#allocation2 + $0x68] sm:$0xff]
      %v1948 = vld [vmem:[#allocation2 + $0x70] sm:$0xff]
      %v1949 = vld [vmem:[#allocation2 + $0x78] sm:$0xff]
      %v1950 = vld [vmem:[#allocation2 + $0x80] sm:$0xff]
      %v1951 = vld [vmem:[#allocation2 + $0x88] sm:$0xff]
      %v1952 = vld [vmem:[#allocation2 + $0x90] sm:$0xff]
      %v1953 = vld [vmem:[#allocation2 + $0x98] sm:$0xff]
      %v1954 = vld [vmem:[#allocation2 + $0xa0] sm:$0x1]
      %vm1955 = vsmask.f32 7424
      %v1957 = vshrl.u32 %v1936, 16
      %v1959 = vshll.u32 %v1936, 16
      %v1961 = vrot.slane %v1959, 1
      %v1962 = vor.u32 %v1957, %v1961
      %v1964 = vshll.u32 %v1937, 16
      %v1966 = vrot.slane %v1964, 1
      %v1967 = vsel %vm1955, %v1962, %v1966
      %v1968 = vshrl.u32 %v1937, 16
      %v1970 = vor.u32 %v1968, %v1966
      %v1972 = vshll.u32 %v1938, 16
      %v1974 = vrot.slane %v1972, 1
      %v1975 = vsel %vm1955, %v1970, %v1974
      %v1976 = vshrl.u32 %v1938, 16
      %v1978 = vor.u32 %v1976, %v1974
      %v1980 = vshll.u32 %v1939, 16
      %v1982 = vrot.slane %v1980, 1
      %v1983 = vsel %vm1955, %v1978, %v1982
      %v1984 = vshrl.u32 %v1939, 16
      %v1986 = vor.u32 %v1984, %v1982
      %v1988 = vshll.u32 %v1940, 16
      %v1990 = vrot.slane %v1988, 1
      %v1991 = vsel %vm1955, %v1986, %v1990
      %v1992 = vshrl.u32 %v1940, 16
      %v1994 = vor.u32 %v1992, %v1990
      %v1996 = vshll.u32 %v1941, 16
      %v1998 = vrot.slane %v1996, 1
      %v1999 = vsel %vm1955, %v1994, %v1998
      %v2000 = vshrl.u32 %v1941, 16
      %v2002 = vor.u32 %v2000, %v1998
      %v2004 = vshll.u32 %v1942, 16
      %v2006 = vrot.slane %v2004, 1
      %v2007 = vsel %vm1955, %v2002, %v2006
      %v2008 = vshrl.u32 %v1942, 16
      %v2010 = vor.u32 %v2008, %v2006
      %v2012 = vshll.u32 %v1943, 16
      %v2014 = vrot.slane %v2012, 1
      %v2015 = vsel %vm1955, %v2010, %v2014
      %v2016 = vshrl.u32 %v1943, 16
      %v2018 = vor.u32 %v2016, %v2014
      %v2020 = vshll.u32 %v1944, 16
      %v2022 = vrot.slane %v2020, 1
      %v2023 = vsel %vm1955, %v2018, %v2022
      %v2024 = vshrl.u32 %v1944, 16
      %v2026 = vor.u32 %v2024, %v2022
      %v2028 = vshll.u32 %v1945, 16
      %v2030 = vrot.slane %v2028, 1
      %v2031 = vsel %vm1955, %v2026, %v2030
      %v2032 = vshrl.u32 %v1945, 16
      %v2034 = vor.u32 %v2032, %v2030
      %v2036 = vshll.u32 %v1946, 16
      %v2038 = vrot.slane %v2036, 1
      %v2039 = vsel %vm1955, %v2034, %v2038
      %v2040 = vshrl.u32 %v1946, 16
      %v2042 = vor.u32 %v2040, %v2038
      %v2044 = vshll.u32 %v1947, 16
      %v2046 = vrot.slane %v2044, 1
      %v2047 = vsel %vm1955, %v2042, %v2046
      %v2048 = vshrl.u32 %v1947, 16
      %v2050 = vor.u32 %v2048, %v2046
      %v2052 = vshll.u32 %v1948, 16
      %v2054 = vrot.slane %v2052, 1
      %v2055 = vsel %vm1955, %v2050, %v2054
      %v2056 = vshrl.u32 %v1948, 16
      %v2058 = vor.u32 %v2056, %v2054
      %v2060 = vshll.u32 %v1949, 16
      %v2062 = vrot.slane %v2060, 1
      %v2063 = vsel %vm1955, %v2058, %v2062
      %v2064 = vshrl.u32 %v1949, 16
      %v2066 = vor.u32 %v2064, %v2062
      %v2068 = vshll.u32 %v1950, 16
      %v2070 = vrot.slane %v2068, 1
      %v2071 = vsel %vm1955, %v2066, %v2070
      %v2072 = vshrl.u32 %v1950, 16
      %v2074 = vor.u32 %v2072, %v2070
      %v2076 = vshll.u32 %v1951, 16
      %v2078 = vrot.slane %v2076, 1
      %v2079 = vsel %vm1955, %v2074, %v2078
      %v2080 = vshrl.u32 %v1951, 16
      %v2082 = vor.u32 %v2080, %v2078
      %v2084 = vshll.u32 %v1952, 16
      %v2086 = vrot.slane %v2084, 1
      %v2087 = vsel %vm1955, %v2082, %v2086
      %v2088 = vshrl.u32 %v1952, 16
      %v2090 = vor.u32 %v2088, %v2086
      %v2092 = vshll.u32 %v1953, 16
      %v2094 = vrot.slane %v2092, 1
      %v2095 = vsel %vm1955, %v2090, %v2094
      %v2096 = vshrl.u32 %v1953, 16
      %v2098 = vor.u32 %v2096, %v2094
      %v2100 = vshll.u32 %v1954, 16
      %v2102 = vrot.slane %v2100, 1
      %v2103 = vsel %vm1955, %v2098, %v2102
      %2104 = vrot.lane.b32.xlu0 %v1967, 64
      %v2105 = vpop.permute.xlu0 %2104
      %2106 = vrot.lane.b32.xlu0 %v1975, 64
      %v2107 = vpop.permute.xlu0 %2106
      %2108 = vrot.lane.b32.xlu0 %v1983, 64
      %v2109 = vpop.permute.xlu0 %2108
      %2110 = vrot.lane.b32.xlu0 %v1991, 64
      %v2111 = vpop.permute.xlu0 %2110
      %2112 = vrot.lane.b32.xlu0 %v1999, 64
      %v2113 = vpop.permute.xlu0 %2112
      %2114 = vrot.lane.b32.xlu0 %v2007, 64
      %v2115 = vpop.permute.xlu0 %2114
      %2116 = vrot.lane.b32.xlu0 %v2015, 64
      %v2117 = vpop.permute.xlu0 %2116
      %2118 = vrot.lane.b32.xlu0 %v2023, 64
      %v2119 = vpop.permute.xlu0 %2118
      %2120 = vrot.lane.b32.xlu0 %v2031, 64
      %v2121 = vpop.permute.xlu0 %2120
      %2122 = vrot.lane.b32.xlu0 %v2039, 64
      %v2123 = vpop.permute.xlu0 %2122
      %2124 = vrot.lane.b32.xlu0 %v2047, 64
      %v2125 = vpop.permute.xlu0 %2124
      %2126 = vrot.lane.b32.xlu0 %v2055, 64
      %v2127 = vpop.permute.xlu0 %2126
      %2128 = vrot.lane.b32.xlu0 %v2063, 64
      %v2129 = vpop.permute.xlu0 %2128
      %2130 = vrot.lane.b32.xlu0 %v2071, 64
      %v2131 = vpop.permute.xlu0 %2130
      %2132 = vrot.lane.b32.xlu0 %v2079, 64
      %v2133 = vpop.permute.xlu0 %2132
      %2134 = vrot.lane.b32.xlu0 %v2087, 64
      %v2135 = vpop.permute.xlu0 %2134
      %2136 = vrot.lane.b32.xlu0 %v2095, 64
      %v2137 = vpop.permute.xlu0 %2136
      %2138 = vrot.lane.b32.xlu0 %v2103, 64
      %v2139 = vpop.permute.xlu0 %2138
      %2158 = vst.msk [vmem:[#allocation4 + $0x10] sm:$0xff] %vm1438, %v2105
      %2159 = vst.msk [vmem:[#allocation4 + $0x38] sm:$0xff] %vm1438, %v2107
      %2160 = vst.msk [vmem:[#allocation4 + $0x60] sm:$0xff] %vm1438, %v2109
      %2161 = vst.msk [vmem:[#allocation4 + $0x88] sm:$0xff] %vm1438, %v2111
      %2162 = vst.msk [vmem:[#allocation4 + $0xb0] sm:$0xff] %vm1438, %v2113
      %2163 = vst.msk [vmem:[#allocation4 + $0xd8] sm:$0xff] %vm1438, %v2115
      %2164 = vst.msk [vmem:[#allocation4 + $0x100] sm:$0xff] %vm1438, %v2117
      %2165 = vst.msk [vmem:[#allocation4 + $0x128] sm:$0xff] %vm1438, %v2119
      %2166 = vst.msk [vmem:[#allocation4 + $0x150] sm:$0xff] %vm1438, %v2121
      %2167 = vst.msk [vmem:[#allocation4 + $0x178] sm:$0xff] %vm1438, %v2123
      %2168 = vst.msk [vmem:[#allocation4 + $0x1a0] sm:$0xff] %vm1438, %v2125
      %2169 = vst.msk [vmem:[#allocation4 + $0x1c8] sm:$0xff] %vm1438, %v2127
      %2170 = vst.msk [vmem:[#allocation4 + $0x1f0] sm:$0xff] %vm1438, %v2129
      %2171 = vst.msk [vmem:[#allocation4 + $0x218] sm:$0xff] %vm1438, %v2131
      %2172 = vst.msk [vmem:[#allocation4 + $0x240] sm:$0xff] %vm1438, %v2133
      %2173 = vst.msk [vmem:[#allocation4 + $0x268] sm:$0xff] %vm1438, %v2135
      %2174 = vst.msk [vmem:[#allocation4 + $0x290] sm:$0xff] %vm1438, %v2137
      %2175 = vst.msk [vmem:[#allocation4 + $0x2b8] sm:$0xff] %vm1438, %v2139
      %v2176 = vld [vmem:[#allocation2 + $0x18] sm:$0xff]
      %v2177 = vld [vmem:[#allocation2 + $0x20] sm:$0xff]
      %v2178 = vld [vmem:[#allocation2 + $0x28] sm:$0xff]
      %v2179 = vld [vmem:[#allocation2 + $0x30] sm:$0xff]
      %v2180 = vld [vmem:[#allocation2 + $0x38] sm:$0xff]
      %v2181 = vld [vmem:[#allocation2 + $0x40] sm:$0xff]
      %v2182 = vld [vmem:[#allocation2 + $0x48] sm:$0xff]
      %v2183 = vld [vmem:[#allocation2 + $0x50] sm:$0xff]
      %v2184 = vld [vmem:[#allocation2 + $0x58] sm:$0xff]
      %v2185 = vld [vmem:[#allocation2 + $0x60] sm:$0xff]
      %v2186 = vld [vmem:[#allocation2 + $0x68] sm:$0xff]
      %v2187 = vld [vmem:[#allocation2 + $0x70] sm:$0xff]
      %v2188 = vld [vmem:[#allocation2 + $0x78] sm:$0xff]
      %v2189 = vld [vmem:[#allocation2 + $0x80] sm:$0xff]
      %v2190 = vld [vmem:[#allocation2 + $0x88] sm:$0xff]
      %v2191 = vld [vmem:[#allocation2 + $0x90] sm:$0xff]
      %v2192 = vld [vmem:[#allocation2 + $0x98] sm:$0xff]
      %v2193 = vld [vmem:[#allocation2 + $0xa0] sm:$0xff]
      %v2194 = vld [vmem:[#allocation2 + $0xa8] sm:$0x1]
      %v2196 = vshrl.u32 %v2176, 16
      %v2198 = vshll.u32 %v2176, 16
      %v2200 = vrot.slane %v2198, 1
      %v2201 = vor.u32 %v2196, %v2200
      %v2203 = vshll.u32 %v2177, 16
      %v2205 = vrot.slane %v2203, 1
      %v2206 = vsel %vm1955, %v2201, %v2205
      %v2207 = vshrl.u32 %v2177, 16
      %v2209 = vor.u32 %v2207, %v2205
      %v2211 = vshll.u32 %v2178, 16
      %v2213 = vrot.slane %v2211, 1
      %v2214 = vsel %vm1955, %v2209, %v2213
      %v2215 = vshrl.u32 %v2178, 16
      %v2217 = vor.u32 %v2215, %v2213
      %v2219 = vshll.u32 %v2179, 16
      %v2221 = vrot.slane %v2219, 1
      %v2222 = vsel %vm1955, %v2217, %v2221
      %v2223 = vshrl.u32 %v2179, 16
      %v2225 = vor.u32 %v2223, %v2221
      %v2227 = vshll.u32 %v2180, 16
      %v2229 = vrot.slane %v2227, 1
      %v2230 = vsel %vm1955, %v2225, %v2229
      %v2231 = vshrl.u32 %v2180, 16
      %v2233 = vor.u32 %v2231, %v2229
      %v2235 = vshll.u32 %v2181, 16
      %v2237 = vrot.slane %v2235, 1
      %v2238 = vsel %vm1955, %v2233, %v2237
      %v2239 = vshrl.u32 %v2181, 16
      %v2241 = vor.u32 %v2239, %v2237
      %v2243 = vshll.u32 %v2182, 16
      %v2245 = vrot.slane %v2243, 1
      %v2246 = vsel %vm1955, %v2241, %v2245
      %v2247 = vshrl.u32 %v2182, 16
      %v2249 = vor.u32 %v2247, %v2245
      %v2251 = vshll.u32 %v2183, 16
      %v2253 = vrot.slane %v2251, 1
      %v2254 = vsel %vm1955, %v2249, %v2253
      %v2255 = vshrl.u32 %v2183, 16
      %v2257 = vor.u32 %v2255, %v2253
      %v2259 = vshll.u32 %v2184, 16
      %v2261 = vrot.slane %v2259, 1
      %v2262 = vsel %vm1955, %v2257, %v2261
      %v2263 = vshrl.u32 %v2184, 16
      %v2265 = vor.u32 %v2263, %v2261
      %v2267 = vshll.u32 %v2185, 16
      %v2269 = vrot.slane %v2267, 1
      %v2270 = vsel %vm1955, %v2265, %v2269
      %v2271 = vshrl.u32 %v2185, 16
      %v2273 = vor.u32 %v2271, %v2269
      %v2275 = vshll.u32 %v2186, 16
      %v2277 = vrot.slane %v2275, 1
      %v2278 = vsel %vm1955, %v2273, %v2277
      %v2279 = vshrl.u32 %v2186, 16
      %v2281 = vor.u32 %v2279, %v2277
      %v2283 = vshll.u32 %v2187, 16
      %v2285 = vrot.slane %v2283, 1
      %v2286 = vsel %vm1955, %v2281, %v2285
      %v2287 = vshrl.u32 %v2187, 16
      %v2289 = vor.u32 %v2287, %v2285
      %v2291 = vshll.u32 %v2188, 16
      %v2293 = vrot.slane %v2291, 1
      %v2294 = vsel %vm1955, %v2289, %v2293
      %v2295 = vshrl.u32 %v2188, 16
      %v2297 = vor.u32 %v2295, %v2293
      %v2299 = vshll.u32 %v2189, 16
      %v2301 = vrot.slane %v2299, 1
      %v2302 = vsel %vm1955, %v2297, %v2301
      %v2303 = vshrl.u32 %v2189, 16
      %v2305 = vor.u32 %v2303, %v2301
      %v2307 = vshll.u32 %v2190, 16
      %v2309 = vrot.slane %v2307, 1
      %v2310 = vsel %vm1955, %v2305, %v2309
      %v2311 = vshrl.u32 %v2190, 16
      %v2313 = vor.u32 %v2311, %v2309
      %v2315 = vshll.u32 %v2191, 16
      %v2317 = vrot.slane %v2315, 1
      %v2318 = vsel %vm1955, %v2313, %v2317
      %v2319 = vshrl.u32 %v2191, 16
      %v2321 = vor.u32 %v2319, %v2317
      %v2323 = vshll.u32 %v2192, 16
      %v2325 = vrot.slane %v2323, 1
      %v2326 = vsel %vm1955, %v2321, %v2325
      %v2327 = vshrl.u32 %v2192, 16
      %v2329 = vor.u32 %v2327, %v2325
      %v2331 = vshll.u32 %v2193, 16
      %v2333 = vrot.slane %v2331, 1
      %v2334 = vsel %vm1955, %v2329, %v2333
      %v2335 = vshrl.u32 %v2193, 16
      %v2337 = vor.u32 %v2335, %v2333
      %v2339 = vshll.u32 %v2194, 16
      %v2341 = vrot.slane %v2339, 1
      %v2342 = vsel %vm1955, %v2337, %v2341
      %2361 = vst.msk [vmem:[#allocation4 + $0x18] sm:$0xff] %vm397, %v2206
      %2362 = vst.msk [vmem:[#allocation4 + $0x40] sm:$0xff] %vm397, %v2214
      %2363 = vst.msk [vmem:[#allocation4 + $0x68] sm:$0xff] %vm397, %v2222
      %2364 = vst.msk [vmem:[#allocation4 + $0x90] sm:$0xff] %vm397, %v2230
      %2365 = vst.msk [vmem:[#allocation4 + $0xb8] sm:$0xff] %vm397, %v2238
      %2366 = vst.msk [vmem:[#allocation4 + $0xe0] sm:$0xff] %vm397, %v2246
      %2367 = vst.msk [vmem:[#allocation4 + $0x108] sm:$0xff] %vm397, %v2254
      %2368 = vst.msk [vmem:[#allocation4 + $0x130] sm:$0xff] %vm397, %v2262
      %2369 = vst.msk [vmem:[#allocation4 + $0x158] sm:$0xff] %vm397, %v2270
      %2370 = vst.msk [vmem:[#allocation4 + $0x180] sm:$0xff] %vm397, %v2278
      %2371 = vst.msk [vmem:[#allocation4 + $0x1a8] sm:$0xff] %vm397, %v2286
      %2372 = vst.msk [vmem:[#allocation4 + $0x1d0] sm:$0xff] %vm397, %v2294
      %2373 = vst.msk [vmem:[#allocation4 + $0x1f8] sm:$0xff] %vm397, %v2302
      %2374 = vst.msk [vmem:[#allocation4 + $0x220] sm:$0xff] %vm397, %v2310
      %2375 = vst.msk [vmem:[#allocation4 + $0x248] sm:$0xff] %vm397, %v2318
      %2376 = vst.msk [vmem:[#allocation4 + $0x270] sm:$0xff] %vm397, %v2326
      %2377 = vst.msk [vmem:[#allocation4 + $0x298] sm:$0xff] %vm397, %v2334
      %2378 = vst.msk [vmem:[#allocation4 + $0x2c0] sm:$0xff] %vm397, %v2342
      %v2379 = vld [vmem:[#allocation2 + $0x18] sm:$0xfe]
      %v2380 = vld [vmem:[#allocation2 + $0x20] sm:$0xff]
      %v2381 = vld [vmem:[#allocation2 + $0x28] sm:$0xff]
      %v2382 = vld [vmem:[#allocation2 + $0x30] sm:$0xff]
      %v2383 = vld [vmem:[#allocation2 + $0x38] sm:$0xff]
      %v2384 = vld [vmem:[#allocation2 + $0x40] sm:$0xff]
      %v2385 = vld [vmem:[#allocation2 + $0x48] sm:$0xff]
      %v2386 = vld [vmem:[#allocation2 + $0x50] sm:$0xff]
      %v2387 = vld [vmem:[#allocation2 + $0x58] sm:$0xff]
      %v2388 = vld [vmem:[#allocation2 + $0x60] sm:$0xff]
      %v2389 = vld [vmem:[#allocation2 + $0x68] sm:$0xff]
      %v2390 = vld [vmem:[#allocation2 + $0x70] sm:$0xff]
      %v2391 = vld [vmem:[#allocation2 + $0x78] sm:$0xff]
      %v2392 = vld [vmem:[#allocation2 + $0x80] sm:$0xff]
      %v2393 = vld [vmem:[#allocation2 + $0x88] sm:$0xff]
      %v2394 = vld [vmem:[#allocation2 + $0x90] sm:$0xff]
      %v2395 = vld [vmem:[#allocation2 + $0x98] sm:$0xff]
      %v2396 = vld [vmem:[#allocation2 + $0xa0] sm:$0xff]
      %v2397 = vld [vmem:[#allocation2 + $0xa8] sm:$0x1]
      %vm2417 = vcmask 1046528
      %v2418 = vrot.slane %v2379, 1
      %v2419 = vrot.slane %v2380, 1
      %v2420 = vsel %vm2417, %v2418, %v2419
      %v2421 = vrot.slane %v2381, 1
      %v2422 = vsel %vm2417, %v2419, %v2421
      %v2423 = vrot.slane %v2382, 1
      %v2424 = vsel %vm2417, %v2421, %v2423
      %v2425 = vrot.slane %v2383, 1
      %v2426 = vsel %vm2417, %v2423, %v2425
      %v2427 = vrot.slane %v2384, 1
      %v2428 = vsel %vm2417, %v2425, %v2427
      %v2429 = vrot.slane %v2385, 1
      %v2430 = vsel %vm2417, %v2427, %v2429
      %v2431 = vrot.slane %v2386, 1
      %v2432 = vsel %vm2417, %v2429, %v2431
      %v2433 = vrot.slane %v2387, 1
      %v2434 = vsel %vm2417, %v2431, %v2433
      %v2435 = vrot.slane %v2388, 1
      %v2436 = vsel %vm2417, %v2433, %v2435
      %v2437 = vrot.slane %v2389, 1
      %v2438 = vsel %vm2417, %v2435, %v2437
      %v2439 = vrot.slane %v2390, 1
      %v2440 = vsel %vm2417, %v2437, %v2439
      %v2441 = vrot.slane %v2391, 1
      %v2442 = vsel %vm2417, %v2439, %v2441
      %v2443 = vrot.slane %v2392, 1
      %v2444 = vsel %vm2417, %v2441, %v2443
      %v2445 = vrot.slane %v2393, 1
      %v2446 = vsel %vm2417, %v2443, %v2445
      %v2447 = vrot.slane %v2394, 1
      %v2448 = vsel %vm2417, %v2445, %v2447
      %v2449 = vrot.slane %v2395, 1
      %v2450 = vsel %vm2417, %v2447, %v2449
      %v2451 = vrot.slane %v2396, 1
      %v2452 = vsel %vm2417, %v2449, %v2451
      %v2453 = vrot.slane %v2397, 1
      %v2454 = vsel %vm2417, %v2451, %v2453
      %2455 = vrot.lane.b32.xlu0 %v2420, 64
      %v2456 = vpop.permute.xlu0 %2455
      %2457 = vrot.lane.b32.xlu0 %v2422, 64
      %v2458 = vpop.permute.xlu0 %2457
      %2459 = vrot.lane.b32.xlu0 %v2424, 64
      %v2460 = vpop.permute.xlu0 %2459
      %2461 = vrot.lane.b32.xlu0 %v2426, 64
      %v2462 = vpop.permute.xlu0 %2461
      %2463 = vrot.lane.b32.xlu0 %v2428, 64
      %v2464 = vpop.permute.xlu0 %2463
      %2465 = vrot.lane.b32.xlu0 %v2430, 64
      %v2466 = vpop.permute.xlu0 %2465
      %2467 = vrot.lane.b32.xlu0 %v2432, 64
      %v2468 = vpop.permute.xlu0 %2467
      %2469 = vrot.lane.b32.xlu0 %v2434, 64
      %v2470 = vpop.permute.xlu0 %2469
      %2471 = vrot.lane.b32.xlu0 %v2436, 64
      %v2472 = vpop.permute.xlu0 %2471
      %2473 = vrot.lane.b32.xlu0 %v2438, 64
      %v2474 = vpop.permute.xlu0 %2473
      %2475 = vrot.lane.b32.xlu0 %v2440, 64
      %v2476 = vpop.permute.xlu0 %2475
      %2477 = vrot.lane.b32.xlu0 %v2442, 64
      %v2478 = vpop.permute.xlu0 %2477
      %2479 = vrot.lane.b32.xlu0 %v2444, 64
      %v2480 = vpop.permute.xlu0 %2479
      %2481 = vrot.lane.b32.xlu0 %v2446, 64
      %v2482 = vpop.permute.xlu0 %2481
      %2483 = vrot.lane.b32.xlu0 %v2448, 64
      %v2484 = vpop.permute.xlu0 %2483
      %2485 = vrot.lane.b32.xlu0 %v2450, 64
      %v2486 = vpop.permute.xlu0 %2485
      %2487 = vrot.lane.b32.xlu0 %v2452, 64
      %v2488 = vpop.permute.xlu0 %2487
      %2489 = vrot.lane.b32.xlu0 %v2454, 64
      %v2490 = vpop.permute.xlu0 %2489
      %2509 = vst.msk [vmem:[#allocation4 + $0x18] sm:$0xff] %vm1438, %v2456
      %2510 = vst.msk [vmem:[#allocation4 + $0x40] sm:$0xff] %vm1438, %v2458
      %2511 = vst.msk [vmem:[#allocation4 + $0x68] sm:$0xff] %vm1438, %v2460
      %2512 = vst.msk [vmem:[#allocation4 + $0x90] sm:$0xff] %vm1438, %v2462
      %2513 = vst.msk [vmem:[#allocation4 + $0xb8] sm:$0xff] %vm1438, %v2464
      %2514 = vst.msk [vmem:[#allocation4 + $0xe0] sm:$0xff] %vm1438, %v2466
      %2515 = vst.msk [vmem:[#allocation4 + $0x108] sm:$0xff] %vm1438, %v2468
      %2516 = vst.msk [vmem:[#allocation4 + $0x130] sm:$0xff] %vm1438, %v2470
      %2517 = vst.msk [vmem:[#allocation4 + $0x158] sm:$0xff] %vm1438, %v2472
      %2518 = vst.msk [vmem:[#allocation4 + $0x180] sm:$0xff] %vm1438, %v2474
      %2519 = vst.msk [vmem:[#allocation4 + $0x1a8] sm:$0xff] %vm1438, %v2476
      %2520 = vst.msk [vmem:[#allocation4 + $0x1d0] sm:$0xff] %vm1438, %v2478
      %2521 = vst.msk [vmem:[#allocation4 + $0x1f8] sm:$0xff] %vm1438, %v2480
      %2522 = vst.msk [vmem:[#allocation4 + $0x220] sm:$0xff] %vm1438, %v2482
      %2523 = vst.msk [vmem:[#allocation4 + $0x248] sm:$0xff] %vm1438, %v2484
      %2524 = vst.msk [vmem:[#allocation4 + $0x270] sm:$0xff] %vm1438, %v2486
      %2525 = vst.msk [vmem:[#allocation4 + $0x298] sm:$0xff] %vm1438, %v2488
      %2526 = vst.msk [vmem:[#allocation4 + $0x2c0] sm:$0xff] %vm1438, %v2490
      %v2527 = vld [vmem:[#allocation2 + $0x18] sm:$0xfe]
      %v2528 = vld [vmem:[#allocation2 + $0x20] sm:$0xff]
      %v2529 = vld [vmem:[#allocation2 + $0x28] sm:$0xff]
      %v2530 = vld [vmem:[#allocation2 + $0x30] sm:$0xff]
      %v2531 = vld [vmem:[#allocation2 + $0x38] sm:$0xff]
      %v2532 = vld [vmem:[#allocation2 + $0x40] sm:$0xff]
      %v2533 = vld [vmem:[#allocation2 + $0x48] sm:$0xff]
      %v2534 = vld [vmem:[#allocation2 + $0x50] sm:$0xff]
      %v2535 = vld [vmem:[#allocation2 + $0x58] sm:$0xff]
      %v2536 = vld [vmem:[#allocation2 + $0x60] sm:$0xff]
      %v2537 = vld [vmem:[#allocation2 + $0x68] sm:$0xff]
      %v2538 = vld [vmem:[#allocation2 + $0x70] sm:$0xff]
      %v2539 = vld [vmem:[#allocation2 + $0x78] sm:$0xff]
      %v2540 = vld [vmem:[#allocation2 + $0x80] sm:$0xff]
      %v2541 = vld [vmem:[#allocation2 + $0x88] sm:$0xff]
      %v2542 = vld [vmem:[#allocation2 + $0x90] sm:$0xff]
      %v2543 = vld [vmem:[#allocation2 + $0x98] sm:$0xff]
      %v2544 = vld [vmem:[#allocation2 + $0xa0] sm:$0xff]
      %v2545 = vld [vmem:[#allocation2 + $0xa8] sm:$0x3]
      %vm2546 = vsmask.f32 6400
      %v2548 = vshrl.u32 %v2527, 16
      %v2550 = vrot.slane %v2548, 1
      %v2551 = vshll.u32 %v2527, 16
      %v2553 = vrot.slane %v2551, 2
      %v2554 = vor.u32 %v2550, %v2553
      %v2556 = vshrl.u32 %v2528, 16
      %v2558 = vrot.slane %v2556, 1
      %v2559 = vshll.u32 %v2528, 16
      %v2561 = vrot.slane %v2559, 2
      %v2562 = vor.u32 %v2558, %v2561
      %v2563 = vsel %vm2546, %v2554, %v2562
      %v2565 = vshrl.u32 %v2529, 16
      %v2567 = vrot.slane %v2565, 1
      %v2568 = vshll.u32 %v2529, 16
      %v2570 = vrot.slane %v2568, 2
      %v2571 = vor.u32 %v2567, %v2570
      %v2572 = vsel %vm2546, %v2562, %v2571
      %v2574 = vshrl.u32 %v2530, 16
      %v2576 = vrot.slane %v2574, 1
      %v2577 = vshll.u32 %v2530, 16
      %v2579 = vrot.slane %v2577, 2
      %v2580 = vor.u32 %v2576, %v2579
      %v2581 = vsel %vm2546, %v2571, %v2580
      %v2583 = vshrl.u32 %v2531, 16
      %v2585 = vrot.slane %v2583, 1
      %v2586 = vshll.u32 %v2531, 16
      %v2588 = vrot.slane %v2586, 2
      %v2589 = vor.u32 %v2585, %v2588
      %v2590 = vsel %vm2546, %v2580, %v2589
      %v2592 = vshrl.u32 %v2532, 16
      %v2594 = vrot.slane %v2592, 1
      %v2595 = vshll.u32 %v2532, 16
      %v2597 = vrot.slane %v2595, 2
      %v2598 = vor.u32 %v2594, %v2597
      %v2599 = vsel %vm2546, %v2589, %v2598
      %v2601 = vshrl.u32 %v2533, 16
      %v2603 = vrot.slane %v2601, 1
      %v2604 = vshll.u32 %v2533, 16
      %v2606 = vrot.slane %v2604, 2
      %v2607 = vor.u32 %v2603, %v2606
      %v2608 = vsel %vm2546, %v2598, %v2607
      %v2610 = vshrl.u32 %v2534, 16
      %v2612 = vrot.slane %v2610, 1
      %v2613 = vshll.u32 %v2534, 16
      %v2615 = vrot.slane %v2613, 2
      %v2616 = vor.u32 %v2612, %v2615
      %v2617 = vsel %vm2546, %v2607, %v2616
      %v2619 = vshrl.u32 %v2535, 16
      %v2621 = vrot.slane %v2619, 1
      %v2622 = vshll.u32 %v2535, 16
      %v2624 = vrot.slane %v2622, 2
      %v2625 = vor.u32 %v2621, %v2624
      %v2626 = vsel %vm2546, %v2616, %v2625
      %v2628 = vshrl.u32 %v2536, 16
      %v2630 = vrot.slane %v2628, 1
      %v2631 = vshll.u32 %v2536, 16
      %v2633 = vrot.slane %v2631, 2
      %v2634 = vor.u32 %v2630, %v2633
      %v2635 = vsel %vm2546, %v2625, %v2634
      %v2637 = vshrl.u32 %v2537, 16
      %v2639 = vrot.slane %v2637, 1
      %v2640 = vshll.u32 %v2537, 16
      %v2642 = vrot.slane %v2640, 2
      %v2643 = vor.u32 %v2639, %v2642
      %v2644 = vsel %vm2546, %v2634, %v2643
      %v2646 = vshrl.u32 %v2538, 16
      %v2648 = vrot.slane %v2646, 1
      %v2649 = vshll.u32 %v2538, 16
      %v2651 = vrot.slane %v2649, 2
      %v2652 = vor.u32 %v2648, %v2651
      %v2653 = vsel %vm2546, %v2643, %v2652
      %v2655 = vshrl.u32 %v2539, 16
      %v2657 = vrot.slane %v2655, 1
      %v2658 = vshll.u32 %v2539, 16
      %v2660 = vrot.slane %v2658, 2
      %v2661 = vor.u32 %v2657, %v2660
      %v2662 = vsel %vm2546, %v2652, %v2661
      %v2664 = vshrl.u32 %v2540, 16
      %v2666 = vrot.slane %v2664, 1
      %v2667 = vshll.u32 %v2540, 16
      %v2669 = vrot.slane %v2667, 2
      %v2670 = vor.u32 %v2666, %v2669
      %v2671 = vsel %vm2546, %v2661, %v2670
      %v2673 = vshrl.u32 %v2541, 16
      %v2675 = vrot.slane %v2673, 1
      %v2676 = vshll.u32 %v2541, 16
      %v2678 = vrot.slane %v2676, 2
      %v2679 = vor.u32 %v2675, %v2678
      %v2680 = vsel %vm2546, %v2670, %v2679
      %v2682 = vshrl.u32 %v2542, 16
      %v2684 = vrot.slane %v2682, 1
      %v2685 = vshll.u32 %v2542, 16
      %v2687 = vrot.slane %v2685, 2
      %v2688 = vor.u32 %v2684, %v2687
      %v2689 = vsel %vm2546, %v2679, %v2688
      %v2691 = vshrl.u32 %v2543, 16
      %v2693 = vrot.slane %v2691, 1
      %v2694 = vshll.u32 %v2543, 16
      %v2696 = vrot.slane %v2694, 2
      %v2697 = vor.u32 %v2693, %v2696
      %v2698 = vsel %vm2546, %v2688, %v2697
      %v2700 = vshrl.u32 %v2544, 16
      %v2702 = vrot.slane %v2700, 1
      %v2703 = vshll.u32 %v2544, 16
      %v2705 = vrot.slane %v2703, 2
      %v2706 = vor.u32 %v2702, %v2705
      %v2707 = vsel %vm2546, %v2697, %v2706
      %v2709 = vshrl.u32 %v2545, 16
      %v2711 = vrot.slane %v2709, 1
      %v2712 = vshll.u32 %v2545, 16
      %v2714 = vrot.slane %v2712, 2
      %v2715 = vor.u32 %v2711, %v2714
      %v2716 = vsel %vm2546, %v2706, %v2715
      %2735 = vst.msk [vmem:[#allocation4 + $0x20] sm:$0xff] %vm397, %v2563
      %2736 = vst.msk [vmem:[#allocation4 + $0x48] sm:$0xff] %vm397, %v2572
      %2737 = vst.msk [vmem:[#allocation4 + $0x70] sm:$0xff] %vm397, %v2581
      %2738 = vst.msk [vmem:[#allocation4 + $0x98] sm:$0xff] %vm397, %v2590
      %2739 = vst.msk [vmem:[#allocation4 + $0xc0] sm:$0xff] %vm397, %v2599
      %2740 = vst.msk [vmem:[#allocation4 + $0xe8] sm:$0xff] %vm397, %v2608
      %2741 = vst.msk [vmem:[#allocation4 + $0x110] sm:$0xff] %vm397, %v2617
      %2742 = vst.msk [vmem:[#allocation4 + $0x138] sm:$0xff] %vm397, %v2626
      %2743 = vst.msk [vmem:[#allocation4 + $0x160] sm:$0xff] %vm397, %v2635
      %2744 = vst.msk [vmem:[#allocation4 + $0x188] sm:$0xff] %vm397, %v2644
      %2745 = vst.msk [vmem:[#allocation4 + $0x1b0] sm:$0xff] %vm397, %v2653
      %2746 = vst.msk [vmem:[#allocation4 + $0x1d8] sm:$0xff] %vm397, %v2662
      %2747 = vst.msk [vmem:[#allocation4 + $0x200] sm:$0xff] %vm397, %v2671
      %2748 = vst.msk [vmem:[#allocation4 + $0x228] sm:$0xff] %vm397, %v2680
      %2749 = vst.msk [vmem:[#allocation4 + $0x250] sm:$0xff] %vm397, %v2689
      %2750 = vst.msk [vmem:[#allocation4 + $0x278] sm:$0xff] %vm397, %v2698
      %2751 = vst.msk [vmem:[#allocation4 + $0x2a0] sm:$0xff] %vm397, %v2707
      %2752 = vst.msk [vmem:[#allocation4 + $0x2c8] sm:$0xff] %vm397, %v2716
      %v2753 = vld [vmem:[#allocation4] sm:$0xff]
      %v2754 = vld [vmem:[#allocation4 + $0x8] sm:$0xff]
      %v2755 = vld [vmem:[#allocation4 + $0x10] sm:$0xff]
      %v2756 = vld [vmem:[#allocation4 + $0x18] sm:$0xff]
      %v2757 = vld [vmem:[#allocation4 + $0x20] sm:$0xff]
      %v2758 = vld [vmem:[#allocation4 + $0x28] sm:$0xff]
      %v2759 = vld [vmem:[#allocation4 + $0x30] sm:$0xff]
      %v2760 = vld [vmem:[#allocation4 + $0x38] sm:$0xff]
      %v2761 = vld [vmem:[#allocation4 + $0x40] sm:$0xff]
      %v2762 = vld [vmem:[#allocation4 + $0x48] sm:$0xff]
      %v2763 = vld [vmem:[#allocation4 + $0x50] sm:$0xff]
      %v2764 = vld [vmem:[#allocation4 + $0x58] sm:$0xff]
      %v2765 = vld [vmem:[#allocation4 + $0x60] sm:$0xff]
      %v2766 = vld [vmem:[#allocation4 + $0x68] sm:$0xff]
      %v2767 = vld [vmem:[#allocation4 + $0x70] sm:$0xff]
      %v2768 = vld [vmem:[#allocation4 + $0x78] sm:$0xff]
      %v2769 = vld [vmem:[#allocation4 + $0x80] sm:$0xff]
      %v2770 = vld [vmem:[#allocation4 + $0x88] sm:$0xff]
      %v2771 = vld [vmem:[#allocation4 + $0x90] sm:$0xff]
      %v2772 = vld [vmem:[#allocation4 + $0x98] sm:$0xff]
      %v2773 = vld [vmem:[#allocation4 + $0xa0] sm:$0xff]
      %v2774 = vld [vmem:[#allocation4 + $0xa8] sm:$0xff]
      %v2775 = vld [vmem:[#allocation4 + $0xb0] sm:$0xff]
      %v2776 = vld [vmem:[#allocation4 + $0xb8] sm:$0xff]
      %v2777 = vld [vmem:[#allocation4 + $0xc0] sm:$0xff]
      %v2778 = vld [vmem:[#allocation4 + $0xc8] sm:$0xff]
      %v2779 = vld [vmem:[#allocation4 + $0xd0] sm:$0xff]
      %v2780 = vld [vmem:[#allocation4 + $0xd8] sm:$0xff]
      %v2781 = vld [vmem:[#allocation4 + $0xe0] sm:$0xff]
      %v2782 = vld [vmem:[#allocation4 + $0xe8] sm:$0xff]
      %v2783 = vld [vmem:[#allocation4 + $0xf0] sm:$0xff]
      %v2784 = vld [vmem:[#allocation4 + $0xf8] sm:$0xff]
      %v2785 = vld [vmem:[#allocation4 + $0x100] sm:$0xff]
      %v2786 = vld [vmem:[#allocation4 + $0x108] sm:$0xff]
      %v2787 = vld [vmem:[#allocation4 + $0x110] sm:$0xff]
      %v2788 = vld [vmem:[#allocation4 + $0x118] sm:$0xff]
      %v2789 = vld [vmem:[#allocation4 + $0x120] sm:$0xff]
      %v2790 = vld [vmem:[#allocation4 + $0x128] sm:$0xff]
      %v2791 = vld [vmem:[#allocation4 + $0x130] sm:$0xff]
      %v2792 = vld [vmem:[#allocation4 + $0x138] sm:$0xff]
      %v2793 = vld [vmem:[#allocation4 + $0x140] sm:$0xff]
      %v2794 = vld [vmem:[#allocation4 + $0x148] sm:$0xff]
      %v2795 = vld [vmem:[#allocation4 + $0x150] sm:$0xff]
      %v2796 = vld [vmem:[#allocation4 + $0x158] sm:$0xff]
      %v2797 = vld [vmem:[#allocation4 + $0x160] sm:$0xff]
      %v2798 = vld [vmem:[#allocation4 + $0x168] sm:$0xff]
      %v2799 = vld [vmem:[#allocation4 + $0x170] sm:$0xff]
      %v2800 = vld [vmem:[#allocation4 + $0x178] sm:$0xff]
      %v2801 = vld [vmem:[#allocation4 + $0x180] sm:$0xff]
      %v2802 = vld [vmem:[#allocation4 + $0x188] sm:$0xff]
      %v2803 = vld [vmem:[#allocation4 + $0x190] sm:$0xff]
      %v2804 = vld [vmem:[#allocation4 + $0x198] sm:$0xff]
      %v2805 = vld [vmem:[#allocation4 + $0x1a0] sm:$0xff]
      %v2806 = vld [vmem:[#allocation4 + $0x1a8] sm:$0xff]
      %v2807 = vld [vmem:[#allocation4 + $0x1b0] sm:$0xff]
      %v2808 = vld [vmem:[#allocation4 + $0x1b8] sm:$0xff]
      %v2809 = vld [vmem:[#allocation4 + $0x1c0] sm:$0xff]
      %v2810 = vld [vmem:[#allocation4 + $0x1c8] sm:$0xff]
      %v2811 = vld [vmem:[#allocation4 + $0x1d0] sm:$0xff]
      %v2812 = vld [vmem:[#allocation4 + $0x1d8] sm:$0xff]
      %v2813 = vld [vmem:[#allocation4 + $0x1e0] sm:$0xff]
      %v2814 = vld [vmem:[#allocation4 + $0x1e8] sm:$0xff]
      %v2815 = vld [vmem:[#allocation4 + $0x1f0] sm:$0xff]
      %v2816 = vld [vmem:[#allocation4 + $0x1f8] sm:$0xff]
      %v2817 = vld [vmem:[#allocation4 + $0x200] sm:$0xff]
      %v2818 = vld [vmem:[#allocation4 + $0x208] sm:$0xff]
      %v2819 = vld [vmem:[#allocation4 + $0x210] sm:$0xff]
      %v2820 = vld [vmem:[#allocation4 + $0x218] sm:$0xff]
      %v2821 = vld [vmem:[#allocation4 + $0x220] sm:$0xff]
      %v2822 = vld [vmem:[#allocation4 + $0x228] sm:$0xff]
      %v2823 = vld [vmem:[#allocation4 + $0x230] sm:$0xff]
      %v2824 = vld [vmem:[#allocation4 + $0x238] sm:$0xff]
      %v2825 = vld [vmem:[#allocation4 + $0x240] sm:$0xff]
      %v2826 = vld [vmem:[#allocation4 + $0x248] sm:$0xff]
      %v2827 = vld [vmem:[#allocation4 + $0x250] sm:$0xff]
      %v2828 = vld [vmem:[#allocation4 + $0x258] sm:$0xff]
      %v2829 = vld [vmem:[#allocation4 + $0x260] sm:$0xff]
      %v2830 = vld [vmem:[#allocation4 + $0x268] sm:$0xff]
      %v2831 = vld [vmem:[#allocation4 + $0x270] sm:$0xff]
      %v2832 = vld [vmem:[#allocation4 + $0x278] sm:$0xff]
      %v2833 = vld [vmem:[#allocation4 + $0x280] sm:$0xff]
      %v2834 = vld [vmem:[#allocation4 + $0x288] sm:$0xff]
      %v2835 = vld [vmem:[#allocation4 + $0x290] sm:$0xff]
      %v2836 = vld [vmem:[#allocation4 + $0x298] sm:$0xff]
      %v2837 = vld [vmem:[#allocation4 + $0x2a0] sm:$0xff]
      %v2838 = vld [vmem:[#allocation4 + $0x2a8] sm:$0xff]
      %v2839 = vld [vmem:[#allocation4 + $0x2b0] sm:$0xff]
      %v2840 = vld [vmem:[#allocation4 + $0x2b8] sm:$0xff]
      %v2841 = vld [vmem:[#allocation4 + $0x2c0] sm:$0xff]
      %v2842 = vld [vmem:[#allocation4 + $0x2c8] sm:$0xff]
      %v2843 = vld [vmem:[%s4] sm:$0xf]
      %v2844 = vld [vmem:[%s4 + $0x4] sm:$0xf]
      %v2845 = vld [vmem:[%s4 + $0x8] sm:$0xf]
      %v2846 = vld [vmem:[%s4 + $0xc] sm:$0xf]
      %v2847 = vld [vmem:[%s4 + $0x10] sm:$0xf]
      %v2848 = vld [vmem:[%s4 + $0x14] sm:$0xf]
      %v2849 = vld [vmem:[%s4 + $0x18] sm:$0xf]
      %v2850 = vld [vmem:[%s4 + $0x1c] sm:$0xf]
      %v2851 = vld [vmem:[%s4 + $0x20] sm:$0xf]
      %v2852 = vld [vmem:[%s4 + $0x24] sm:$0xf]
      %v2853 = vld [vmem:[%s4 + $0x28] sm:$0xf]
      %v2854 = vld [vmem:[%s4 + $0x2c] sm:$0xf]
      %v2855 = vld [vmem:[%s4 + $0x30] sm:$0xf]
      %v2856 = vld [vmem:[%s4 + $0x34] sm:$0xf]
      %v2857 = vld [vmem:[%s4 + $0x38] sm:$0xf]
      %v2858 = vld [vmem:[%s4 + $0x3c] sm:$0xf]
      %v2859 = vld [vmem:[%s4 + $0x40] sm:$0xf]
      %v2860 = vld [vmem:[%s4 + $0x44] sm:$0xf]
      %v2861 = vld [vmem:[%s4 + $0x48] sm:$0xf]
      %v2862 = vld [vmem:[%s4 + $0x4c] sm:$0xf]
      %v2863 = vld [vmem:[%s4 + $0x50] sm:$0xf]
      %v2864 = vld [vmem:[%s4 + $0x54] sm:$0xf]
      %v2865 = vld [vmem:[%s4 + $0x58] sm:$0xf]
      %v2866 = vld [vmem:[%s4 + $0x5c] sm:$0xf]
      %v2867 = vld [vmem:[%s4 + $0x60] sm:$0xf]
      %v2868 = vld [vmem:[%s4 + $0x64] sm:$0xf]
      %v2869 = vld [vmem:[%s4 + $0x68] sm:$0xf]
      %v2870 = vld [vmem:[%s4 + $0x6c] sm:$0xf]
      %v2871 = vld [vmem:[%s4 + $0x70] sm:$0xf]
      %v2872 = vld [vmem:[%s4 + $0x74] sm:$0xf]
      %v2873 = vld [vmem:[%s4 + $0x78] sm:$0xf]
      %v2874 = vld [vmem:[%s4 + $0x7c] sm:$0xf]
      %v2875 = vld [vmem:[%s4 + $0x80] sm:$0xf]
      %v2876 = vld [vmem:[%s4 + $0x84] sm:$0xf]
      %v2877 = vld [vmem:[%s4 + $0x88] sm:$0xf]
      %v2878 = vld [vmem:[%s4 + $0x8c] sm:$0xf]
      %v2879 = vld [vmem:[%s4 + $0x90] sm:$0xf]
      %v2880 = vld [vmem:[%s4 + $0x94] sm:$0xf]
      %v2881 = vld [vmem:[%s4 + $0x98] sm:$0xf]
      %v2882 = vld [vmem:[%s4 + $0x9c] sm:$0xf]
      %v2883 = vld [vmem:[%s4 + $0xa0] sm:$0xf]
      %v2884 = vld [vmem:[%s4 + $0xa4] sm:$0xf]
      %v2885 = vld [vmem:[%s4 + $0xa8] sm:$0xf]
      %v2886 = vld [vmem:[%s4 + $0xac] sm:$0xf]
      %v2887 = vld [vmem:[%s4 + $0xb0] sm:$0xf]
      %v2888 = vld [vmem:[%s4 + $0xb4] sm:$0xf]
      %v2889 = vld [vmem:[%s4 + $0xb8] sm:$0xf]
      %v2890 = vld [vmem:[%s4 + $0xbc] sm:$0xf]
      %v2891 = vld [vmem:[%s4 + $0xc0] sm:$0xf]
      %v2892 = vld [vmem:[%s4 + $0xc4] sm:$0xf]
      %v2893 = vld [vmem:[%s4 + $0xc8] sm:$0xf]
      %v2894 = vld [vmem:[%s4 + $0xcc] sm:$0xf]
      %v2895 = vld [vmem:[%s4 + $0xd0] sm:$0xf]
      %v2896 = vld [vmem:[%s4 + $0xd4] sm:$0xf]
      %v2897 = vld [vmem:[%s4 + $0xd8] sm:$0xf]
      %v2898 = vld [vmem:[%s4 + $0xdc] sm:$0xf]
      %v2899 = vld [vmem:[%s4 + $0xe0] sm:$0xf]
      %v2900 = vld [vmem:[%s4 + $0xe4] sm:$0xf]
      %v2901 = vld [vmem:[%s4 + $0xe8] sm:$0xf]
      %v2902 = vld [vmem:[%s4 + $0xec] sm:$0xf]
      %v2903 = vld [vmem:[%s4 + $0xf0] sm:$0xf]
      %v2904 = vld [vmem:[%s4 + $0xf4] sm:$0xf]
      %v2905 = vld [vmem:[%s4 + $0xf8] sm:$0xf]
      %v2906 = vld [vmem:[%s4 + $0xfc] sm:$0xf]
      %v2907 = vld [vmem:[%s4 + $0x100] sm:$0xf]
      %v2908 = vld [vmem:[%s4 + $0x104] sm:$0xf]
      %v2909 = vld [vmem:[%s4 + $0x108] sm:$0xf]
      %v2910 = vld [vmem:[%s4 + $0x10c] sm:$0xf]
      %v2911 = vld [vmem:[%s4 + $0x110] sm:$0xf]
      %v2912 = vld [vmem:[%s4 + $0x114] sm:$0xf]
      %v2913 = vld [vmem:[%s4 + $0x118] sm:$0xf]
      %v2914 = vld [vmem:[%s4 + $0x11c] sm:$0xf]
      %v2915 = vld [vmem:[%s5] sm:$0x1]
      %v2917 = vlaneseq
      %v2918 = vshrl.u32 %v2917, 7
      %v2919 = vsub.s32 0, %v2918
      %v2920 = vrot.slane %v2915, %v2919
      %v2994 = vunpack.c.l.b16 %v2843
      %v2995 = vunpack.c.l.b16 %v2844
      %v2996 = vunpack.c.l.b16 %v2845
      %v2997 = vunpack.c.l.b16 %v2846
      %v2998 = vunpack.c.l.b16 %v2847
      %v2999 = vunpack.c.l.b16 %v2848
      %v3000 = vunpack.c.l.b16 %v2849
      %v3001 = vunpack.c.l.b16 %v2850
      %v3002 = vunpack.c.l.b16 %v2851
      %v3003 = vunpack.c.l.b16 %v2852
      %v3004 = vunpack.c.l.b16 %v2853
      %v3005 = vunpack.c.l.b16 %v2854
      %v3006 = vunpack.c.l.b16 %v2855
      %v3007 = vunpack.c.l.b16 %v2856
      %v3008 = vunpack.c.l.b16 %v2857
      %v3009 = vunpack.c.l.b16 %v2858
      %v3010 = vunpack.c.l.b16 %v2859
      %v3011 = vunpack.c.l.b16 %v2860
      %v3012 = vunpack.c.l.b16 %v2861
      %v3013 = vunpack.c.l.b16 %v2862
      %v3014 = vunpack.c.l.b16 %v2863
      %v3015 = vunpack.c.l.b16 %v2864
      %v3016 = vunpack.c.l.b16 %v2865
      %v3017 = vunpack.c.l.b16 %v2866
      %v3018 = vunpack.c.l.b16 %v2867
      %v3019 = vunpack.c.l.b16 %v2868
      %v3020 = vunpack.c.l.b16 %v2869
      %v3021 = vunpack.c.l.b16 %v2870
      %v3022 = vunpack.c.l.b16 %v2871
      %v3023 = vunpack.c.l.b16 %v2872
      %v3024 = vunpack.c.l.b16 %v2873
      %v3025 = vunpack.c.l.b16 %v2874
      %v3026 = vunpack.c.l.b16 %v2875
      %v3027 = vunpack.c.l.b16 %v2876
      %v3028 = vunpack.c.l.b16 %v2877
      %v3029 = vunpack.c.l.b16 %v2878
      %v3030 = vunpack.c.l.b16 %v2879
      %v3031 = vunpack.c.l.b16 %v2880
      %v3032 = vunpack.c.l.b16 %v2881
      %v3033 = vunpack.c.l.b16 %v2882
      %v3034 = vunpack.c.l.b16 %v2883
      %v3035 = vunpack.c.l.b16 %v2884
      %v3036 = vunpack.c.l.b16 %v2885
      %v3037 = vunpack.c.l.b16 %v2886
      %v3038 = vunpack.c.l.b16 %v2887
      %v3039 = vunpack.c.l.b16 %v2888
      %v3040 = vunpack.c.l.b16 %v2889
      %v3041 = vunpack.c.l.b16 %v2890
      %v3042 = vunpack.c.l.b16 %v2891
      %v3043 = vunpack.c.l.b16 %v2892
      %v3044 = vunpack.c.l.b16 %v2893
      %v3045 = vunpack.c.l.b16 %v2894
      %v3046 = vunpack.c.l.b16 %v2895
      %v3047 = vunpack.c.l.b16 %v2896
      %v3048 = vunpack.c.l.b16 %v2897
      %v3049 = vunpack.c.l.b16 %v2898
      %v3050 = vunpack.c.l.b16 %v2899
      %v3051 = vunpack.c.l.b16 %v2900
      %v3052 = vunpack.c.l.b16 %v2901
      %v3053 = vunpack.c.l.b16 %v2902
      %v3054 = vunpack.c.l.b16 %v2903
      %v3055 = vunpack.c.l.b16 %v2904
      %v3056 = vunpack.c.l.b16 %v2905
      %v3057 = vunpack.c.l.b16 %v2906
      %v3058 = vunpack.c.l.b16 %v2907
      %v3059 = vunpack.c.l.b16 %v2908
      %v3060 = vunpack.c.l.b16 %v2909
      %v3061 = vunpack.c.l.b16 %v2910
      %v3062 = vunpack.c.l.b16 %v2911
      %v3063 = vunpack.c.l.b16 %v2912
      %v3064 = vunpack.c.l.b16 %v2913
      %v3065 = vunpack.c.l.b16 %v2914
      %v3066 = vpack.c.b16 %v2995, %v2994
      %v3067 = vpack.c.b16 %v2997, %v2996
      %v3068 = vpack.c.b16 %v2999, %v2998
      %v3069 = vpack.c.b16 %v3001, %v3000
      %v3070 = vpack.c.b16 %v3003, %v3002
      %v3071 = vpack.c.b16 %v3005, %v3004
      %v3072 = vpack.c.b16 %v3007, %v3006
      %v3073 = vpack.c.b16 %v3009, %v3008
      %v3074 = vpack.c.b16 %v3011, %v3010
      %v3075 = vpack.c.b16 %v3013, %v3012
      %v3076 = vpack.c.b16 %v3015, %v3014
      %v3077 = vpack.c.b16 %v3017, %v3016
      %v3078 = vpack.c.b16 %v3019, %v3018
      %v3079 = vpack.c.b16 %v3021, %v3020
      %v3080 = vpack.c.b16 %v3023, %v3022
      %v3081 = vpack.c.b16 %v3025, %v3024
      %v3082 = vpack.c.b16 %v3027, %v3026
      %v3083 = vpack.c.b16 %v3029, %v3028
      %v3084 = vpack.c.b16 %v3031, %v3030
      %v3085 = vpack.c.b16 %v3033, %v3032
      %v3086 = vpack.c.b16 %v3035, %v3034
      %v3087 = vpack.c.b16 %v3037, %v3036
      %v3088 = vpack.c.b16 %v3039, %v3038
      %v3089 = vpack.c.b16 %v3041, %v3040
      %v3090 = vpack.c.b16 %v3043, %v3042
      %v3091 = vpack.c.b16 %v3045, %v3044
      %v3092 = vpack.c.b16 %v3047, %v3046
      %v3093 = vpack.c.b16 %v3049, %v3048
      %v3094 = vpack.c.b16 %v3051, %v3050
      %v3095 = vpack.c.b16 %v3053, %v3052
      %v3096 = vpack.c.b16 %v3055, %v3054
      %v3097 = vpack.c.b16 %v3057, %v3056
      %v3098 = vpack.c.b16 %v3059, %v3058
      %v3099 = vpack.c.b16 %v3061, %v3060
      %v3100 = vpack.c.b16 %v3063, %v3062
      %v3101 = vpack.c.b16 %v3065, %v3064
      %v3139 = vsel %vm397, %v2757, 0
      %v3142 = vsel %vm397, %v2762, 0
      %v3145 = vsel %vm397, %v2767, 0
      %v3148 = vsel %vm397, %v2772, 0
      %v3151 = vsel %vm397, %v2777, 0
      %v3154 = vsel %vm397, %v2782, 0
      %v3157 = vsel %vm397, %v2787, 0
      %v3160 = vsel %vm397, %v2792, 0
      %v3163 = vsel %vm397, %v2797, 0
      %v3166 = vsel %vm397, %v2802, 0
      %v3169 = vsel %vm397, %v2807, 0
      %v3172 = vsel %vm397, %v2812, 0
      %v3175 = vsel %vm397, %v2817, 0
      %v3178 = vsel %vm397, %v2822, 0
      %v3181 = vsel %vm397, %v2827, 0
      %v3184 = vsel %vm397, %v2832, 0
      %v3187 = vsel %vm397, %v2837, 0
      %v3190 = vsel %vm397, %v2842, 0
      %3192 = vmatprep.subr.bf16.mxu0 0
      %3193 = vmatpush1.bf16.msra.mxu0 %v3066
      %3194 = vmatprep.subr.bf16.mxu0 0
      %3195 = vmatpush1.bf16.msra.mxu0 %v3067
      %3196 = vmatprep.subr.bf16.mxu0 0
      %3197 = vmatpush1.bf16.msra.mxu0 %v3068
      %3198 = vmatprep.subr.bf16.mxu0 0
      %3199 = vmatpush1.bf16.msra.mxu0 %v3069
      %3200 = vmatprep.subr.bf16.mxu0 0
      %3201 = vmatpush1.bf16.msra.mxu0 %v3070
      %3202 = vmatprep.subr.bf16.mxu0 0
      %3203 = vmatpush1.bf16.msra.mxu0 %v3071
      %3204 = vmatprep.subr.bf16.mxu0 0
      %3205 = vmatpush1.bf16.msra.mxu0 %v3072
      %3206 = vmatprep.subr.bf16.mxu0 0
      %3207 = vmatpush1.bf16.msra.mxu0 %v3073
      %3208 = vmatprep.subr.bf16.mxu0 0
      %3209 = vmatpush1.bf16.msra.mxu0 %v3074
      %3210 = vmatprep.subr.bf16.mxu0 0
      %3211 = vmatpush1.bf16.msra.mxu0 %v3075
      %3212 = vmatprep.subr.bf16.mxu0 0
      %3213 = vmatpush1.bf16.msra.mxu0 %v3076
      %3214 = vmatprep.subr.bf16.mxu0 0
      %3215 = vmatpush1.bf16.msra.mxu0 %v3077
      %3216 = vmatprep.subr.bf16.mxu0 0
      %3217 = vmatpush1.bf16.msra.mxu0 %v3078
      %3218 = vmatprep.subr.bf16.mxu0 0
      %3219 = vmatpush1.bf16.msra.mxu0 %v3079
      %3220 = vmatprep.subr.bf16.mxu0 0
      %3221 = vmatpush1.bf16.msra.mxu0 %v3080
      %3222 = vmatprep.subr.bf16.mxu0 0
      %3223 = vmatpush1.bf16.msra.mxu0 %v3081
      %3224 = vmatprep.mubr.bf16.mxu0 %v2754
      %3225 = vmatmul.mubr.bf16.gmra.mrb[0].mxu0 %v2753
      %v3226 = vpop.f32.mrb[0].mxu0
      %v3227 = vadd.f32 %v2920, %v3226
      %v3228 = vpop.f32.mrb[0].mxu0
      %v3229 = vpop.f32.mrb[0].mxu0
      %v3230 = vadd.f32 %v2920, %v3229
      %v3231 = vpop.f32.mrb[0].mxu0
      %3232 = vmatprep.mubr.bf16.mxu0 %v2759
      %3233 = vmatmul.mubr.bf16.gmra.mrb[0].mxu0 %v2758
      %v3234 = vpop.f32.mrb[0].mxu0
      %v3235 = vadd.f32 %v2920, %v3234
      %v3236 = vpop.f32.mrb[0].mxu0
      %v3237 = vpop.f32.mrb[0].mxu0
      %v3238 = vadd.f32 %v2920, %v3237
      %v3239 = vpop.f32.mrb[0].mxu0
      %3240 = vmatprep.mubr.bf16.mxu0 %v2764
      %3241 = vmatmul.mubr.bf16.gmra.mrb[0].mxu0 %v2763
      %v3242 = vpop.f32.mrb[0].mxu0
      %v3243 = vadd.f32 %v2920, %v3242
      %v3244 = vpop.f32.mrb[0].mxu0
      %v3245 = vpop.f32.mrb[0].mxu0
      %v3246 = vadd.f32 %v2920, %v3245
      %v3247 = vpop.f32.mrb[0].mxu0
      %3248 = vmatprep.mubr.bf16.mxu0 %v2769
      %3249 = vmatmul.mubr.bf16.gmra.mrb[0].mxu0 %v2768
      %v3250 = vpop.f32.mrb[0].mxu0
      %v3251 = vadd.f32 %v2920, %v3250
      %v3252 = vpop.f32.mrb[0].mxu0
      %v3253 = vpop.f32.mrb[0].mxu0
      %v3254 = vadd.f32 %v2920, %v3253
      %v3255 = vpop.f32.mrb[0].mxu0
      %3256 = vmatprep.mubr.bf16.mxu0 %v2774
      %3257 = vmatmul.mubr.bf16.gmra.mrb[0].mxu0 %v2773
      %v3258 = vpop.f32.mrb[0].mxu0
      %v3259 = vadd.f32 %v2920, %v3258
      %v3260 = vpop.f32.mrb[0].mxu0
      %v3261 = vpop.f32.mrb[0].mxu0
      %v3262 = vadd.f32 %v2920, %v3261
      %v3263 = vpop.f32.mrb[0].mxu0
      %3264 = vmatprep.mubr.bf16.mxu0 %v2779
      %3265 = vmatmul.mubr.bf16.gmra.mrb[0].mxu0 %v2778
      %v3266 = vpop.f32.mrb[0].mxu0
      %v3267 = vadd.f32 %v2920, %v3266
      %v3268 = vpop.f32.mrb[0].mxu0
      %v3269 = vpop.f32.mrb[0].mxu0
      %v3270 = vadd.f32 %v2920, %v3269
      %v3271 = vpop.f32.mrb[0].mxu0
      %3272 = vmatprep.mubr.bf16.mxu0 %v2784
      %3273 = vmatmul.mubr.bf16.gmra.mrb[0].mxu0 %v2783
      %v3274 = vpop.f32.mrb[0].mxu0
      %v3275 = vadd.f32 %v2920, %v3274
      %v3276 = vpop.f32.mrb[0].mxu0
      %v3277 = vpop.f32.mrb[0].mxu0
      %v3278 = vadd.f32 %v2920, %v3277
      %v3279 = vpop.f32.mrb[0].mxu0
      %3280 = vmatprep.mubr.bf16.mxu0 %v2789
      %3281 = vmatmul.mubr.bf16.gmra.mrb[0].mxu0 %v2788
      %v3282 = vpop.f32.mrb[0].mxu0
      %v3283 = vadd.f32 %v2920, %v3282
      %v3284 = vpop.f32.mrb[0].mxu0
      %v3285 = vpop.f32.mrb[0].mxu0
      %v3286 = vadd.f32 %v2920, %v3285
      %v3287 = vpop.f32.mrb[0].mxu0
      %3288 = vmatprep.mubr.bf16.mxu0 %v2794
      %3289 = vmatmul.mubr.bf16.gmra.mrb[0].mxu0 %v2793
      %v3290 = vpop.f32.mrb[0].mxu0
      %v3291 = vadd.f32 %v2920, %v3290
      %v3292 = vpop.f32.mrb[0].mxu0
      %v3293 = vpop.f32.mrb[0].mxu0
      %v3294 = vadd.f32 %v2920, %v3293
      %v3295 = vpop.f32.mrb[0].mxu0
      %3296 = vmatprep.mubr.bf16.mxu0 %v2799
      %3297 = vmatmul.mubr.bf16.gmra.mrb[0].mxu0 %v2798
      %v3298 = vpop.f32.mrb[0].mxu0
      %v3299 = vadd.f32 %v2920, %v3298
      %v3300 = vpop.f32.mrb[0].mxu0
      %v3301 = vpop.f32.mrb[0].mxu0
      %v3302 = vadd.f32 %v2920, %v3301
      %v3303 = vpop.f32.mrb[0].mxu0
      %3304 = vmatprep.mubr.bf16.mxu0 %v2804
      %3305 = vmatmul.mubr.bf16.gmra.mrb[0].mxu0 %v2803
      %v3306 = vpop.f32.mrb[0].mxu0
      %v3307 = vadd.f32 %v2920, %v3306
      %v3308 = vpop.f32.mrb[0].mxu0
      %v3309 = vpop.f32.mrb[0].mxu0
      %v3310 = vadd.f32 %v2920, %v3309
      %v3311 = vpop.f32.mrb[0].mxu0
      %3312 = vmatprep.mubr.bf16.mxu0 %v2809
      %3313 = vmatmul.mubr.bf16.gmra.mrb[0].mxu0 %v2808
      %v3314 = vpop.f32.mrb[0].mxu0
      %v3315 = vadd.f32 %v2920, %v3314
      %v3316 = vpop.f32.mrb[0].mxu0
      %v3317 = vpop.f32.mrb[0].mxu0
      %v3318 = vadd.f32 %v2920, %v3317
      %v3319 = vpop.f32.mrb[0].mxu0
      %3320 = vmatprep.mubr.bf16.mxu0 %v2814
      %3321 = vmatmul.mubr.bf16.gmra.mrb[0].mxu0 %v2813
      %v3322 = vpop.f32.mrb[0].mxu0
      %v3323 = vadd.f32 %v2920, %v3322
      %v3324 = vpop.f32.mrb[0].mxu0
      %v3325 = vpop.f32.mrb[0].mxu0
      %v3326 = vadd.f32 %v2920, %v3325
      %v3327 = vpop.f32.mrb[0].mxu0
      %3328 = vmatprep.mubr.bf16.mxu0 %v2819
      %3329 = vmatmul.mubr.bf16.gmra.mrb[0].mxu0 %v2818
      %v3330 = vpop.f32.mrb[0].mxu0
      %v3331 = vadd.f32 %v2920, %v3330
      %v3332 = vpop.f32.mrb[0].mxu0
      %v3333 = vpop.f32.mrb[0].mxu0
      %v3334 = vadd.f32 %v2920, %v3333
      %v3335 = vpop.f32.mrb[0].mxu0
      %3336 = vmatprep.mubr.bf16.mxu0 %v2824
      %3337 = vmatmul.mubr.bf16.gmra.mrb[0].mxu0 %v2823
      %v3338 = vpop.f32.mrb[0].mxu0
      %v3339 = vadd.f32 %v2920, %v3338
      %v3340 = vpop.f32.mrb[0].mxu0
      %v3341 = vpop.f32.mrb[0].mxu0
      %v3342 = vadd.f32 %v2920, %v3341
      %v3343 = vpop.f32.mrb[0].mxu0
      %3344 = vmatprep.mubr.bf16.mxu0 %v2829
      %3345 = vmatmul.mubr.bf16.gmra.mrb[0].mxu0 %v2828
      %v3346 = vpop.f32.mrb[0].mxu0
      %v3347 = vadd.f32 %v2920, %v3346
      %v3348 = vpop.f32.mrb[0].mxu0
      %v3349 = vpop.f32.mrb[0].mxu0
      %v3350 = vadd.f32 %v2920, %v3349
      %v3351 = vpop.f32.mrb[0].mxu0
      %3352 = vmatprep.mubr.bf16.mxu0 %v2834
      %3353 = vmatmul.mubr.bf16.gmra.mrb[0].mxu0 %v2833
      %v3354 = vpop.f32.mrb[0].mxu0
      %v3355 = vadd.f32 %v2920, %v3354
      %v3356 = vpop.f32.mrb[0].mxu0
      %v3357 = vpop.f32.mrb[0].mxu0
      %v3358 = vadd.f32 %v2920, %v3357
      %v3359 = vpop.f32.mrb[0].mxu0
      %3360 = vmatprep.mubr.bf16.mxu0 %v2839
      %3361 = vmatmul.mubr.bf16.gmra.mrb[0].mxu0 %v2838
      %v3362 = vpop.f32.mrb[0].mxu0
      %v3363 = vadd.f32 %v2920, %v3362
      %v3364 = vpop.f32.mrb[0].mxu0
      %v3365 = vpop.f32.mrb[0].mxu0
      %v3366 = vadd.f32 %v2920, %v3365
      %v3367 = vpop.f32.mrb[0].mxu0
      %3368 = vdwg.mxu0
      %3369 = vmatprep.subr.bf16.mxu0 0
      %3370 = vmatpush1.bf16.msra.mxu0 %v3082
      %3371 = vmatprep.subr.bf16.mxu0 0
      %3372 = vmatpush1.bf16.msra.mxu0 %v3083
      %3373 = vmatprep.subr.bf16.mxu0 0
      %3374 = vmatpush1.bf16.msra.mxu0 %v3084
      %3375 = vmatprep.subr.bf16.mxu0 0
      %3376 = vmatpush1.bf16.msra.mxu0 %v3085
      %3377 = vmatprep.subr.bf16.mxu0 0
      %3378 = vmatpush1.bf16.msra.mxu0 %v3086
      %3379 = vmatprep.subr.bf16.mxu0 0
      %3380 = vmatpush1.bf16.msra.mxu0 %v3087
      %3381 = vmatprep.subr.bf16.mxu0 0
      %3382 = vmatpush1.bf16.msra.mxu0 %v3088
      %3383 = vmatprep.subr.bf16.mxu0 0
      %3384 = vmatpush1.bf16.msra.mxu0 %v3089
      %3385 = vmatprep.subr.bf16.mxu0 0
      %3386 = vmatpush1.bf16.msra.mxu0 %v3090
      %3387 = vmatprep.subr.bf16.mxu0 0
      %3388 = vmatpush1.bf16.msra.mxu0 %v3091
      %3389 = vmatprep.subr.bf16.mxu0 0
      %3390 = vmatpush1.bf16.msra.mxu0 %v3092
      %3391 = vmatprep.subr.bf16.mxu0 0
      %3392 = vmatpush1.bf16.msra.mxu0 %v3093
      %3393 = vmatprep.subr.bf16.mxu0 0
      %3394 = vmatpush1.bf16.msra.mxu0 %v3094
      %3395 = vmatprep.subr.bf16.mxu0 0
      %3396 = vmatpush1.bf16.msra.mxu0 %v3095
      %3397 = vmatprep.subr.bf16.mxu0 0
      %3398 = vmatpush1.bf16.msra.mxu0 %v3096
      %3399 = vmatprep.subr.bf16.mxu0 0
      %3400 = vmatpush1.bf16.msra.mxu0 %v3097
      %3401 = vmatprep.mubr.bf16.mxu0 %v2756
      %3402 = vmatmul.mubr.bf16.gmra.mrb[0].mxu0 %v2755
      %v3403 = vpop.f32.mrb[0].mxu0
      %v3404 = vadd.f32 %v3227, %v3403
      %v3405 = vpop.f32.mrb[0].mxu0
      %v3406 = vpop.f32.mrb[0].mxu0
      %v3407 = vadd.f32 %v3230, %v3406
      %v3408 = vpop.f32.mrb[0].mxu0
      %3409 = vmatprep.mubr.bf16.mxu0 %v2761
      %3410 = vmatmul.mubr.bf16.gmra.mrb[0].mxu0 %v2760
      %v3411 = vpop.f32.mrb[0].mxu0
      %v3412 = vadd.f32 %v3235, %v3411
      %v3413 = vpop.f32.mrb[0].mxu0
      %v3414 = vpop.f32.mrb[0].mxu0
      %v3415 = vadd.f32 %v3238, %v3414
      %v3416 = vpop.f32.mrb[0].mxu0
      %3417 = vmatprep.mubr.bf16.mxu0 %v2766
      %3418 = vmatmul.mubr.bf16.gmra.mrb[0].mxu0 %v2765
      %v3419 = vpop.f32.mrb[0].mxu0
      %v3420 = vadd.f32 %v3243, %v3419
      %v3421 = vpop.f32.mrb[0].mxu0
      %v3422 = vpop.f32.mrb[0].mxu0
      %v3423 = vadd.f32 %v3246, %v3422
      %v3424 = vpop.f32.mrb[0].mxu0
      %3425 = vmatprep.mubr.bf16.mxu0 %v2771
      %3426 = vmatmul.mubr.bf16.gmra.mrb[0].mxu0 %v2770
      %v3427 = vpop.f32.mrb[0].mxu0
      %v3428 = vadd.f32 %v3251, %v3427
      %v3429 = vpop.f32.mrb[0].mxu0
      %v3430 = vpop.f32.mrb[0].mxu0
      %v3431 = vadd.f32 %v3254, %v3430
      %v3432 = vpop.f32.mrb[0].mxu0
      %3433 = vmatprep.mubr.bf16.mxu0 %v2776
      %3434 = vmatmul.mubr.bf16.gmra.mrb[0].mxu0 %v2775
      %v3435 = vpop.f32.mrb[0].mxu0
      %v3436 = vadd.f32 %v3259, %v3435
      %v3437 = vpop.f32.mrb[0].mxu0
      %v3438 = vpop.f32.mrb[0].mxu0
      %v3439 = vadd.f32 %v3262, %v3438
      %v3440 = vpop.f32.mrb[0].mxu0
      %3441 = vmatprep.mubr.bf16.mxu0 %v2781
      %3442 = vmatmul.mubr.bf16.gmra.mrb[0].mxu0 %v2780
      %v3443 = vpop.f32.mrb[0].mxu0
      %v3444 = vadd.f32 %v3267, %v3443
      %v3445 = vpop.f32.mrb[0].mxu0
      %v3446 = vpop.f32.mrb[0].mxu0
      %v3447 = vadd.f32 %v3270, %v3446
      %v3448 = vpop.f32.mrb[0].mxu0
      %3449 = vmatprep.mubr.bf16.mxu0 %v2786
      %3450 = vmatmul.mubr.bf16.gmra.mrb[0].mxu0 %v2785
      %v3451 = vpop.f32.mrb[0].mxu0
      %v3452 = vadd.f32 %v3275, %v3451
      %v3453 = vpop.f32.mrb[0].mxu0
      %v3454 = vpop.f32.mrb[0].mxu0
      %v3455 = vadd.f32 %v3278, %v3454
      %v3456 = vpop.f32.mrb[0].mxu0
      %3457 = vmatprep.mubr.bf16.mxu0 %v2791
      %3458 = vmatmul.mubr.bf16.gmra.mrb[0].mxu0 %v2790
      %v3459 = vpop.f32.mrb[0].mxu0
      %v3460 = vadd.f32 %v3283, %v3459
      %v3461 = vpop.f32.mrb[0].mxu0
      %v3462 = vpop.f32.mrb[0].mxu0
      %v3463 = vadd.f32 %v3286, %v3462
      %v3464 = vpop.f32.mrb[0].mxu0
      %3465 = vmatprep.mubr.bf16.mxu0 %v2796
      %3466 = vmatmul.mubr.bf16.gmra.mrb[0].mxu0 %v2795
      %v3467 = vpop.f32.mrb[0].mxu0
      %v3468 = vadd.f32 %v3291, %v3467
      %v3469 = vpop.f32.mrb[0].mxu0
      %v3470 = vpop.f32.mrb[0].mxu0
      %v3471 = vadd.f32 %v3294, %v3470
      %v3472 = vpop.f32.mrb[0].mxu0
      %3473 = vmatprep.mubr.bf16.mxu0 %v2801
      %3474 = vmatmul.mubr.bf16.gmra.mrb[0].mxu0 %v2800
      %v3475 = vpop.f32.mrb[0].mxu0
      %v3476 = vadd.f32 %v3299, %v3475
      %v3477 = vpop.f32.mrb[0].mxu0
      %v3478 = vpop.f32.mrb[0].mxu0
      %v3479 = vadd.f32 %v3302, %v3478
      %v3480 = vpop.f32.mrb[0].mxu0
      %3481 = vmatprep.mubr.bf16.mxu0 %v2806
      %3482 = vmatmul.mubr.bf16.gmra.mrb[0].mxu0 %v2805
      %v3483 = vpop.f32.mrb[0].mxu0
      %v3484 = vadd.f32 %v3307, %v3483
      %v3485 = vpop.f32.mrb[0].mxu0
      %v3486 = vpop.f32.mrb[0].mxu0
      %v3487 = vadd.f32 %v3310, %v3486
      %v3488 = vpop.f32.mrb[0].mxu0
      %3489 = vmatprep.mubr.bf16.mxu0 %v2811
      %3490 = vmatmul.mubr.bf16.gmra.mrb[0].mxu0 %v2810
      %v3491 = vpop.f32.mrb[0].mxu0
      %v3492 = vadd.f32 %v3315, %v3491
      %v3493 = vpop.f32.mrb[0].mxu0
      %v3494 = vpop.f32.mrb[0].mxu0
      %v3495 = vadd.f32 %v3318, %v3494
      %v3496 = vpop.f32.mrb[0].mxu0
      %3497 = vmatprep.mubr.bf16.mxu0 %v2816
      %3498 = vmatmul.mubr.bf16.gmra.mrb[0].mxu0 %v2815
      %v3499 = vpop.f32.mrb[0].mxu0
      %v3500 = vadd.f32 %v3323, %v3499
      %v3501 = vpop.f32.mrb[0].mxu0
      %v3502 = vpop.f32.mrb[0].mxu0
      %v3503 = vadd.f32 %v3326, %v3502
      %v3504 = vpop.f32.mrb[0].mxu0
      %3505 = vmatprep.mubr.bf16.mxu0 %v2821
      %3506 = vmatmul.mubr.bf16.gmra.mrb[0].mxu0 %v2820
      %v3507 = vpop.f32.mrb[0].mxu0
      %v3508 = vadd.f32 %v3331, %v3507
      %v3509 = vpop.f32.mrb[0].mxu0
      %v3510 = vpop.f32.mrb[0].mxu0
      %v3511 = vadd.f32 %v3334, %v3510
      %v3512 = vpop.f32.mrb[0].mxu0
      %3513 = vmatprep.mubr.bf16.mxu0 %v2826
      %3514 = vmatmul.mubr.bf16.gmra.mrb[0].mxu0 %v2825
      %v3515 = vpop.f32.mrb[0].mxu0
      %v3516 = vadd.f32 %v3339, %v3515
      %v3517 = vpop.f32.mrb[0].mxu0
      %v3518 = vpop.f32.mrb[0].mxu0
      %v3519 = vadd.f32 %v3342, %v3518
      %v3520 = vpop.f32.mrb[0].mxu0
      %3521 = vmatprep.mubr.bf16.mxu0 %v2831
      %3522 = vmatmul.mubr.bf16.gmra.mrb[0].mxu0 %v2830
      %v3523 = vpop.f32.mrb[0].mxu0
      %v3524 = vadd.f32 %v3347, %v3523
      %v3525 = vpop.f32.mrb[0].mxu0
      %v3526 = vpop.f32.mrb[0].mxu0
      %v3527 = vadd.f32 %v3350, %v3526
      %v3528 = vpop.f32.mrb[0].mxu0
      %3529 = vmatprep.mubr.bf16.mxu0 %v2836
      %3530 = vmatmul.mubr.bf16.gmra.mrb[0].mxu0 %v2835
      %v3531 = vpop.f32.mrb[0].mxu0
      %v3532 = vadd.f32 %v3355, %v3531
      %v3533 = vpop.f32.mrb[0].mxu0
      %v3534 = vpop.f32.mrb[0].mxu0
      %v3535 = vadd.f32 %v3358, %v3534
      %v3536 = vpop.f32.mrb[0].mxu0
      %3537 = vmatprep.mubr.bf16.mxu0 %v2841
      %3538 = vmatmul.mubr.bf16.gmra.mrb[0].mxu0 %v2840
      %v3539 = vpop.f32.mrb[0].mxu0
      %v3540 = vadd.f32 %v3363, %v3539
      %v3541 = vpop.f32.mrb[0].mxu0
      %v3542 = vpop.f32.mrb[0].mxu0
      %v3543 = vadd.f32 %v3366, %v3542
      %v3544 = vpop.f32.mrb[0].mxu0
      %3545 = vdwg.mxu0
      %3546 = vmatprep.subr.bf16.mxu0 0
      %3547 = vmatpush1.bf16.msra.mxu0 %v3098
      %3548 = vmatprep.subr.bf16.mxu0 0
      %3549 = vmatpush1.bf16.msra.mxu0 %v3099
      %3550 = vmatprep.subr.bf16.mxu0 0
      %3551 = vmatpush1.bf16.msra.mxu0 %v3100
      %3552 = vmatprep.subr.bf16.mxu0 0
      %3553 = vmatpush1.bf16.msra.mxu0 %v3101
      %3554 = vmatprep.subr.bf16.mxu0 0
      %3555 = vmatpush1.bf16.msra.mxu0 0
      %3556 = vmatprep.subr.bf16.mxu0 0
      %3557 = vmatpush1.bf16.msra.mxu0 0
      %3558 = vmatprep.subr.bf16.mxu0 0
      %3559 = vmatpush1.bf16.msra.mxu0 0
      %3560 = vmatprep.subr.bf16.mxu0 0
      %3561 = vmatpush1.bf16.msra.mxu0 0
      %3562 = vmatprep.subr.bf16.mxu0 0
      %3563 = vmatpush1.bf16.msra.mxu0 0
      %3564 = vmatprep.subr.bf16.mxu0 0
      %3565 = vmatpush1.bf16.msra.mxu0 0
      %3566 = vmatprep.subr.bf16.mxu0 0
      %3567 = vmatpush1.bf16.msra.mxu0 0
      %3568 = vmatprep.subr.bf16.mxu0 0
      %3569 = vmatpush1.bf16.msra.mxu0 0
      %3570 = vmatprep.subr.bf16.mxu0 0
      %3571 = vmatpush1.bf16.msra.mxu0 0
      %3572 = vmatprep.subr.bf16.mxu0 0
      %3573 = vmatpush1.bf16.msra.mxu0 0
      %3574 = vmatprep.subr.bf16.mxu0 0
      %3575 = vmatpush1.bf16.msra.mxu0 0
      %3576 = vmatprep.subr.bf16.mxu0 0
      %3577 = vmatpush1.bf16.msra.mxu0 0
      %3578 = vmatprep.mubr.bf16.mxu0 0
      %3579 = vmatmul.mubr.bf16.gmra.mrb[0].mxu0 %v3139
      %v3580 = vpop.f32.mrb[0].mxu0
      %v3581 = vadd.f32 %v3404, %v3580
      %v3582 = vpop.f32.mrb[0].mxu0
      %v3583 = vpop.f32.mrb[0].mxu0
      %v3584 = vadd.f32 %v3407, %v3583
      %v3585 = vpop.f32.mrb[0].mxu0
      %3586 = vmatprep.mubr.bf16.mxu0 0
      %3587 = vmatmul.mubr.bf16.gmra.mrb[0].mxu0 %v3142
      %v3588 = vpop.f32.mrb[0].mxu0
      %v3589 = vadd.f32 %v3412, %v3588
      %v3590 = vpop.f32.mrb[0].mxu0
      %v3591 = vpop.f32.mrb[0].mxu0
      %v3592 = vadd.f32 %v3415, %v3591
      %v3593 = vpop.f32.mrb[0].mxu0
      %3594 = vmatprep.mubr.bf16.mxu0 0
      %3595 = vmatmul.mubr.bf16.gmra.mrb[0].mxu0 %v3145
      %v3596 = vpop.f32.mrb[0].mxu0
      %v3597 = vadd.f32 %v3420, %v3596
      %v3598 = vpop.f32.mrb[0].mxu0
      %v3599 = vpop.f32.mrb[0].mxu0
      %v3600 = vadd.f32 %v3423, %v3599
      %v3601 = vpop.f32.mrb[0].mxu0
      %3602 = vmatprep.mubr.bf16.mxu0 0
      %3603 = vmatmul.mubr.bf16.gmra.mrb[0].mxu0 %v3148
      %v3604 = vpop.f32.mrb[0].mxu0
      %v3605 = vadd.f32 %v3428, %v3604
      %v3606 = vpop.f32.mrb[0].mxu0
      %v3607 = vpop.f32.mrb[0].mxu0
      %v3608 = vadd.f32 %v3431, %v3607
      %v3609 = vpop.f32.mrb[0].mxu0
      %3610 = vmatprep.mubr.bf16.mxu0 0
      %3611 = vmatmul.mubr.bf16.gmra.mrb[0].mxu0 %v3151
      %v3612 = vpop.f32.mrb[0].mxu0
      %v3613 = vadd.f32 %v3436, %v3612
      %v3614 = vpop.f32.mrb[0].mxu0
      %v3615 = vpop.f32.mrb[0].mxu0
      %v3616 = vadd.f32 %v3439, %v3615
      %v3617 = vpop.f32.mrb[0].mxu0
      %3618 = vmatprep.mubr.bf16.mxu0 0
      %3619 = vmatmul.mubr.bf16.gmra.mrb[0].mxu0 %v3154
      %v3620 = vpop.f32.mrb[0].mxu0
      %v3621 = vadd.f32 %v3444, %v3620
      %v3622 = vpop.f32.mrb[0].mxu0
      %v3623 = vpop.f32.mrb[0].mxu0
      %v3624 = vadd.f32 %v3447, %v3623
      %v3625 = vpop.f32.mrb[0].mxu0
      %3626 = vmatprep.mubr.bf16.mxu0 0
      %3627 = vmatmul.mubr.bf16.gmra.mrb[0].mxu0 %v3157
      %v3628 = vpop.f32.mrb[0].mxu0
      %v3629 = vadd.f32 %v3452, %v3628
      %v3630 = vpop.f32.mrb[0].mxu0
      %v3631 = vpop.f32.mrb[0].mxu0
      %v3632 = vadd.f32 %v3455, %v3631
      %v3633 = vpop.f32.mrb[0].mxu0
      %3634 = vmatprep.mubr.bf16.mxu0 0
      %3635 = vmatmul.mubr.bf16.gmra.mrb[0].mxu0 %v3160
      %v3636 = vpop.f32.mrb[0].mxu0
      %v3637 = vadd.f32 %v3460, %v3636
      %v3638 = vpop.f32.mrb[0].mxu0
      %v3639 = vpop.f32.mrb[0].mxu0
      %v3640 = vadd.f32 %v3463, %v3639
      %v3641 = vpop.f32.mrb[0].mxu0
      %3642 = vmatprep.mubr.bf16.mxu0 0
      %3643 = vmatmul.mubr.bf16.gmra.mrb[0].mxu0 %v3163
      %v3644 = vpop.f32.mrb[0].mxu0
      %v3645 = vadd.f32 %v3468, %v3644
      %v3646 = vpop.f32.mrb[0].mxu0
      %v3647 = vpop.f32.mrb[0].mxu0
      %v3648 = vadd.f32 %v3471, %v3647
      %v3649 = vpop.f32.mrb[0].mxu0
      %3650 = vmatprep.mubr.bf16.mxu0 0
      %3651 = vmatmul.mubr.bf16.gmra.mrb[0].mxu0 %v3166
      %v3652 = vpop.f32.mrb[0].mxu0
      %v3653 = vadd.f32 %v3476, %v3652
      %v3654 = vpop.f32.mrb[0].mxu0
      %v3655 = vpop.f32.mrb[0].mxu0
      %v3656 = vadd.f32 %v3479, %v3655
      %v3657 = vpop.f32.mrb[0].mxu0
      %3658 = vmatprep.mubr.bf16.mxu0 0
      %3659 = vmatmul.mubr.bf16.gmra.mrb[0].mxu0 %v3169
      %v3660 = vpop.f32.mrb[0].mxu0
      %v3661 = vadd.f32 %v3484, %v3660
      %v3662 = vpop.f32.mrb[0].mxu0
      %v3663 = vpop.f32.mrb[0].mxu0
      %v3664 = vadd.f32 %v3487, %v3663
      %v3665 = vpop.f32.mrb[0].mxu0
      %3666 = vmatprep.mubr.bf16.mxu0 0
      %3667 = vmatmul.mubr.bf16.gmra.mrb[0].mxu0 %v3172
      %v3668 = vpop.f32.mrb[0].mxu0
      %v3669 = vadd.f32 %v3492, %v3668
      %v3670 = vpop.f32.mrb[0].mxu0
      %v3671 = vpop.f32.mrb[0].mxu0
      %v3672 = vadd.f32 %v3495, %v3671
      %v3673 = vpop.f32.mrb[0].mxu0
      %3674 = vmatprep.mubr.bf16.mxu0 0
      %3675 = vmatmul.mubr.bf16.gmra.mrb[0].mxu0 %v3175
      %v3676 = vpop.f32.mrb[0].mxu0
      %v3677 = vadd.f32 %v3500, %v3676
      %v3678 = vpop.f32.mrb[0].mxu0
      %v3679 = vpop.f32.mrb[0].mxu0
      %v3680 = vadd.f32 %v3503, %v3679
      %v3681 = vpop.f32.mrb[0].mxu0
      %3682 = vmatprep.mubr.bf16.mxu0 0
      %3683 = vmatmul.mubr.bf16.gmra.mrb[0].mxu0 %v3178
      %v3684 = vpop.f32.mrb[0].mxu0
      %v3685 = vadd.f32 %v3508, %v3684
      %v3686 = vpop.f32.mrb[0].mxu0
      %v3687 = vpop.f32.mrb[0].mxu0
      %v3688 = vadd.f32 %v3511, %v3687
      %v3689 = vpop.f32.mrb[0].mxu0
      %3690 = vmatprep.mubr.bf16.mxu0 0
      %3691 = vmatmul.mubr.bf16.gmra.mrb[0].mxu0 %v3181
      %v3692 = vpop.f32.mrb[0].mxu0
      %v3693 = vadd.f32 %v3516, %v3692
      %v3694 = vpop.f32.mrb[0].mxu0
      %v3695 = vpop.f32.mrb[0].mxu0
      %v3696 = vadd.f32 %v3519, %v3695
      %v3697 = vpop.f32.mrb[0].mxu0
      %3698 = vmatprep.mubr.bf16.mxu0 0
      %3699 = vmatmul.mubr.bf16.gmra.mrb[0].mxu0 %v3184
      %v3700 = vpop.f32.mrb[0].mxu0
      %v3701 = vadd.f32 %v3524, %v3700
      %v3702 = vpop.f32.mrb[0].mxu0
      %v3703 = vpop.f32.mrb[0].mxu0
      %v3704 = vadd.f32 %v3527, %v3703
      %v3705 = vpop.f32.mrb[0].mxu0
      %3706 = vmatprep.mubr.bf16.mxu0 0
      %3707 = vmatmul.mubr.bf16.gmra.mrb[0].mxu0 %v3187
      %v3708 = vpop.f32.mrb[0].mxu0
      %v3709 = vadd.f32 %v3532, %v3708
      %v3710 = vpop.f32.mrb[0].mxu0
      %v3711 = vpop.f32.mrb[0].mxu0
      %v3712 = vadd.f32 %v3535, %v3711
      %v3713 = vpop.f32.mrb[0].mxu0
      %3714 = vmatprep.mubr.bf16.mxu0 0
      %3715 = vmatmul.mubr.bf16.gmra.mrb[0].mxu0 %v3190
      %v3716 = vpop.f32.mrb[0].mxu0
      %v3717 = vadd.f32 %v3540, %v3716
      %v3718 = vpop.f32.mrb[0].mxu0
      %v3719 = vpop.f32.mrb[0].mxu0
      %v3720 = vadd.f32 %v3543, %v3719
      %v3721 = vpop.f32.mrb[0].mxu0
      %3722 = vdwg.mxu0
      %v3723 = vmax.f32 %v3581, 0.0
      %v3724 = vmax.f32 %v3584, 0.0
      %v3725 = vmax.f32 %v3589, 0.0
      %v3726 = vmax.f32 %v3592, 0.0
      %v3727 = vmax.f32 %v3597, 0.0
      %v3728 = vmax.f32 %v3600, 0.0
      %v3729 = vmax.f32 %v3605, 0.0
      %v3730 = vmax.f32 %v3608, 0.0
      %v3731 = vmax.f32 %v3613, 0.0
      %v3732 = vmax.f32 %v3616, 0.0
      %v3733 = vmax.f32 %v3621, 0.0
      %v3734 = vmax.f32 %v3624, 0.0
      %v3735 = vmax.f32 %v3629, 0.0
      %v3736 = vmax.f32 %v3632, 0.0
      %v3737 = vmax.f32 %v3637, 0.0
      %v3738 = vmax.f32 %v3640, 0.0
      %v3739 = vmax.f32 %v3645, 0.0
      %v3740 = vmax.f32 %v3648, 0.0
      %v3741 = vmax.f32 %v3653, 0.0
      %v3742 = vmax.f32 %v3656, 0.0
      %v3743 = vmax.f32 %v3661, 0.0
      %v3744 = vmax.f32 %v3664, 0.0
      %v3745 = vmax.f32 %v3669, 0.0
      %v3746 = vmax.f32 %v3672, 0.0
      %v3747 = vmax.f32 %v3677, 0.0
      %v3748 = vmax.f32 %v3680, 0.0
      %v3749 = vmax.f32 %v3685, 0.0
      %v3750 = vmax.f32 %v3688, 0.0
      %v3751 = vmax.f32 %v3693, 0.0
      %v3752 = vmax.f32 %v3696, 0.0
      %v3753 = vmax.f32 %v3701, 0.0
      %v3754 = vmax.f32 %v3704, 0.0
      %v3755 = vmax.f32 %v3709, 0.0
      %v3756 = vmax.f32 %v3712, 0.0
      %v3757 = vmax.f32 %v3717, 0.0
      %v3758 = vmax.f32 %v3720, 0.0
      %v3759 = vmul.f32 %v3723, %v833
      %v3760 = vmul.f32 %v3724, %v838
      %v3761 = vmul.f32 %v3725, %v843
      %v3762 = vmul.f32 %v3726, %v848
      %v3763 = vmul.f32 %v3727, %v853
      %v3764 = vmul.f32 %v3728, %v858
      %v3765 = vmul.f32 %v3729, %v863
      %v3766 = vmul.f32 %v3730, %v868
      %v3767 = vmul.f32 %v3731, %v873
      %v3768 = vmul.f32 %v3732, %v878
      %v3769 = vmul.f32 %v3733, %v883
      %v3770 = vmul.f32 %v3734, %v888
      %v3771 = vmul.f32 %v3735, %v893
      %v3772 = vmul.f32 %v3736, %v898
      %v3773 = vmul.f32 %v3737, %v903
      %v3774 = vmul.f32 %v3738, %v908
      %v3775 = vmul.f32 %v3739, %v913
      %v3776 = vmul.f32 %v3740, %v918
      %v3777 = vmul.f32 %v3741, %v923
      %v3778 = vmul.f32 %v3742, %v928
      %v3779 = vmul.f32 %v3743, %v933
      %v3780 = vmul.f32 %v3744, %v938
      %v3781 = vmul.f32 %v3745, %v943
      %v3782 = vmul.f32 %v3746, %v948
      %v3783 = vmul.f32 %v3747, %v953
      %v3784 = vmul.f32 %v3748, %v958
      %v3785 = vmul.f32 %v3749, %v963
      %v3786 = vmul.f32 %v3750, %v968
      %v3787 = vmul.f32 %v3751, %v973
      %v3788 = vmul.f32 %v3752, %v978
      %v3789 = vmul.f32 %v3753, %v983
      %v3790 = vmul.f32 %v3754, %v988
      %v3791 = vmul.f32 %v3755, %v993
      %v3792 = vmul.f32 %v3756, %v998
      %v3793 = vmul.f32 %v3757, %v1003
      %v3794 = vmul.f32 %v3758, %v1008
      %v3795 = vpack.c.bf16 %v3760, %v3759
      %v3796 = vpack.c.bf16 %v3762, %v3761
      %v3797 = vpack.c.bf16 %v3764, %v3763
      %v3798 = vpack.c.bf16 %v3766, %v3765
      %v3799 = vpack.c.bf16 %v3768, %v3767
      %v3800 = vpack.c.bf16 %v3770, %v3769
      %v3801 = vpack.c.bf16 %v3772, %v3771
      %v3802 = vpack.c.bf16 %v3774, %v3773
      %v3803 = vpack.c.bf16 %v3776, %v3775
      %v3804 = vpack.c.bf16 %v3778, %v3777
      %v3805 = vpack.c.bf16 %v3780, %v3779
      %v3806 = vpack.c.bf16 %v3782, %v3781
      %v3807 = vpack.c.bf16 %v3784, %v3783
      %v3808 = vpack.c.bf16 %v3786, %v3785
      %v3809 = vpack.c.bf16 %v3788, %v3787
      %v3810 = vpack.c.bf16 %v3790, %v3789
      %v3811 = vpack.c.bf16 %v3792, %v3791
      %v3812 = vpack.c.bf16 %v3794, %v3793
      %3813 = vst.msk [vmem:[#allocation2 + $0x10] sm:$0xff] %vm397, %v3795
      %3814 = vst.msk [vmem:[#allocation2 + $0x18] sm:$0xff] %vm397, %v3796
      %3815 = vst.msk [vmem:[#allocation2 + $0x20] sm:$0xff] %vm397, %v3797
      %3816 = vst.msk [vmem:[#allocation2 + $0x28] sm:$0xff] %vm397, %v3798
      %3817 = vst.msk [vmem:[#allocation2 + $0x30] sm:$0xff] %vm397, %v3799
      %3818 = vst.msk [vmem:[#allocation2 + $0x38] sm:$0xff] %vm397, %v3800
      %3819 = vst.msk [vmem:[#allocation2 + $0x40] sm:$0xff] %vm397, %v3801
      %3820 = vst.msk [vmem:[#allocation2 + $0x48] sm:$0xff] %vm397, %v3802
      %3821 = vst.msk [vmem:[#allocation2 + $0x50] sm:$0xff] %vm397, %v3803
      %3822 = vst.msk [vmem:[#allocation2 + $0x58] sm:$0xff] %vm397, %v3804
      %3823 = vst.msk [vmem:[#allocation2 + $0x60] sm:$0xff] %vm397, %v3805
      %3824 = vst.msk [vmem:[#allocation2 + $0x68] sm:$0xff] %vm397, %v3806
      %3825 = vst.msk [vmem:[#allocation2 + $0x70] sm:$0xff] %vm397, %v3807
      %3826 = vst.msk [vmem:[#allocation2 + $0x78] sm:$0xff] %vm397, %v3808
      %3827 = vst.msk [vmem:[#allocation2 + $0x80] sm:$0xff] %vm397, %v3809
      %3828 = vst.msk [vmem:[#allocation2 + $0x88] sm:$0xff] %vm397, %v3810
      %3829 = vst.msk [vmem:[#allocation2 + $0x90] sm:$0xff] %vm397, %v3811
      %3830 = vst.msk [vmem:[#allocation2 + $0x98] sm:$0xff] %vm397, %v3812
      %v3831 = vld [vmem:[#allocation2] sm:$0xc0]
      %v3832 = vld [vmem:[#allocation2 + $0x8] sm:$0xff]
      %v3833 = vld [vmem:[#allocation2 + $0x10] sm:$0xff]
      %v3834 = vld [vmem:[#allocation2 + $0x18] sm:$0xff]
      %v3835 = vld [vmem:[#allocation2 + $0x20] sm:$0xff]
      %v3836 = vld [vmem:[#allocation2 + $0x28] sm:$0xff]
      %v3837 = vld [vmem:[#allocation2 + $0x30] sm:$0xff]
      %v3838 = vld [vmem:[#allocation2 + $0x38] sm:$0xff]
      %v3839 = vld [vmem:[#allocation2 + $0x40] sm:$0xff]
      %v3840 = vld [vmem:[#allocation2 + $0x48] sm:$0xff]
      %v3841 = vld [vmem:[#allocation2 + $0x50] sm:$0xff]
      %v3842 = vld [vmem:[#allocation2 + $0x58] sm:$0xff]
      %v3843 = vld [vmem:[#allocation2 + $0x60] sm:$0xff]
      %v3844 = vld [vmem:[#allocation2 + $0x68] sm:$0xff]
      %v3845 = vld [vmem:[#allocation2 + $0x70] sm:$0xff]
      %v3846 = vld [vmem:[#allocation2 + $0x78] sm:$0xff]
      %v3847 = vld [vmem:[#allocation2 + $0x80] sm:$0xff]
      %v3848 = vld [vmem:[#allocation2 + $0x88] sm:$0xff]
      %v3849 = vld [vmem:[#allocation2 + $0x90] sm:$0x7f]
      %v3851 = vshrl.u32 %v3831, 16
      %v3853 = vrot.slane %v3851, 6
      %v3854 = vshll.u32 %v3831, 16
      %v3856 = vrot.slane %v3854, 7
      %v3857 = vor.u32 %v3853, %v3856
      %v3859 = vshrl.u32 %v3832, 16
      %v3861 = vrot.slane %v3859, 6
      %v3862 = vshll.u32 %v3832, 16
      %v3864 = vrot.slane %v3862, 7
      %v3865 = vor.u32 %v3861, %v3864
      %v3866 = vsel %vm1101, %v3857, %v3865
      %v3868 = vshrl.u32 %v3833, 16
      %v3870 = vrot.slane %v3868, 6
      %v3871 = vshll.u32 %v3833, 16
      %v3873 = vrot.slane %v3871, 7
      %v3874 = vor.u32 %v3870, %v3873
      %v3875 = vsel %vm1101, %v3865, %v3874
      %v3877 = vshrl.u32 %v3834, 16
      %v3879 = vrot.slane %v3877, 6
      %v3880 = vshll.u32 %v3834, 16
      %v3882 = vrot.slane %v3880, 7
      %v3883 = vor.u32 %v3879, %v3882
      %v3884 = vsel %vm1101, %v3874, %v3883
      %v3886 = vshrl.u32 %v3835, 16
      %v3888 = vrot.slane %v3886, 6
      %v3889 = vshll.u32 %v3835, 16
      %v3891 = vrot.slane %v3889, 7
      %v3892 = vor.u32 %v3888, %v3891
      %v3893 = vsel %vm1101, %v3883, %v3892
      %v3895 = vshrl.u32 %v3836, 16
      %v3897 = vrot.slane %v3895, 6
      %v3898 = vshll.u32 %v3836, 16
      %v3900 = vrot.slane %v3898, 7
      %v3901 = vor.u32 %v3897, %v3900
      %v3902 = vsel %vm1101, %v3892, %v3901
      %v3904 = vshrl.u32 %v3837, 16
      %v3906 = vrot.slane %v3904, 6
      %v3907 = vshll.u32 %v3837, 16
      %v3909 = vrot.slane %v3907, 7
      %v3910 = vor.u32 %v3906, %v3909
      %v3911 = vsel %vm1101, %v3901, %v3910
      %v3913 = vshrl.u32 %v3838, 16
      %v3915 = vrot.slane %v3913, 6
      %v3916 = vshll.u32 %v3838, 16
      %v3918 = vrot.slane %v3916, 7
      %v3919 = vor.u32 %v3915, %v3918
      %v3920 = vsel %vm1101, %v3910, %v3919
      %v3922 = vshrl.u32 %v3839, 16
      %v3924 = vrot.slane %v3922, 6
      %v3925 = vshll.u32 %v3839, 16
      %v3927 = vrot.slane %v3925, 7
      %v3928 = vor.u32 %v3924, %v3927
      %v3929 = vsel %vm1101, %v3919, %v3928
      %v3931 = vshrl.u32 %v3840, 16
      %v3933 = vrot.slane %v3931, 6
      %v3934 = vshll.u32 %v3840, 16
      %v3936 = vrot.slane %v3934, 7
      %v3937 = vor.u32 %v3933, %v3936
      %v3938 = vsel %vm1101, %v3928, %v3937
      %v3940 = vshrl.u32 %v3841, 16
      %v3942 = vrot.slane %v3940, 6
      %v3943 = vshll.u32 %v3841, 16
      %v3945 = vrot.slane %v3943, 7
      %v3946 = vor.u32 %v3942, %v3945
      %v3947 = vsel %vm1101, %v3937, %v3946
      %v3949 = vshrl.u32 %v3842, 16
      %v3951 = vrot.slane %v3949, 6
      %v3952 = vshll.u32 %v3842, 16
      %v3954 = vrot.slane %v3952, 7
      %v3955 = vor.u32 %v3951, %v3954
      %v3956 = vsel %vm1101, %v3946, %v3955
      %v3958 = vshrl.u32 %v3843, 16
      %v3960 = vrot.slane %v3958, 6
      %v3961 = vshll.u32 %v3843, 16
      %v3963 = vrot.slane %v3961, 7
      %v3964 = vor.u32 %v3960, %v3963
      %v3965 = vsel %vm1101, %v3955, %v3964
      %v3967 = vshrl.u32 %v3844, 16
      %v3969 = vrot.slane %v3967, 6
      %v3970 = vshll.u32 %v3844, 16
      %v3972 = vrot.slane %v3970, 7
      %v3973 = vor.u32 %v3969, %v3972
      %v3974 = vsel %vm1101, %v3964, %v3973
      %v3976 = vshrl.u32 %v3845, 16
      %v3978 = vrot.slane %v3976, 6
      %v3979 = vshll.u32 %v3845, 16
      %v3981 = vrot.slane %v3979, 7
      %v3982 = vor.u32 %v3978, %v3981
      %v3983 = vsel %vm1101, %v3973, %v3982
      %v3985 = vshrl.u32 %v3846, 16
      %v3987 = vrot.slane %v3985, 6
      %v3988 = vshll.u32 %v3846, 16
      %v3990 = vrot.slane %v3988, 7
      %v3991 = vor.u32 %v3987, %v3990
      %v3992 = vsel %vm1101, %v3982, %v3991
      %v3994 = vshrl.u32 %v3847, 16
      %v3996 = vrot.slane %v3994, 6
      %v3997 = vshll.u32 %v3847, 16
      %v3999 = vrot.slane %v3997, 7
      %v4000 = vor.u32 %v3996, %v3999
      %v4001 = vsel %vm1101, %v3991, %v4000
      %v4003 = vshrl.u32 %v3848, 16
      %v4005 = vrot.slane %v4003, 6
      %v4006 = vshll.u32 %v3848, 16
      %v4008 = vrot.slane %v4006, 7
      %v4009 = vor.u32 %v4005, %v4008
      %v4010 = vsel %vm1101, %v4000, %v4009
      %v4012 = vshrl.u32 %v3849, 16
      %v4014 = vrot.slane %v4012, 6
      %v4015 = vshll.u32 %v3849, 16
      %v4017 = vrot.slane %v4015, 7
      %v4018 = vor.u32 %v4014, %v4017
      %v4019 = vsel %vm1101, %v4009, %v4018
      %4038 = vst.msk [vmem:[#allocation4] sm:$0xff] %vm397, %v3866
      %4039 = vst.msk [vmem:[#allocation4 + $0x28] sm:$0xff] %vm397, %v3875
      %4040 = vst.msk [vmem:[#allocation4 + $0x50] sm:$0xff] %vm397, %v3884
      %4041 = vst.msk [vmem:[#allocation4 + $0x78] sm:$0xff] %vm397, %v3893
      %4042 = vst.msk [vmem:[#allocation4 + $0xa0] sm:$0xff] %vm397, %v3902
      %4043 = vst.msk [vmem:[#allocation4 + $0xc8] sm:$0xff] %vm397, %v3911
      %4044 = vst.msk [vmem:[#allocation4 + $0xf0] sm:$0xff] %vm397, %v3920
      %4045 = vst.msk [vmem:[#allocation4 + $0x118] sm:$0xff] %vm397, %v3929
      %4046 = vst.msk [vmem:[#allocation4 + $0x140] sm:$0xff] %vm397, %v3938
      %4047 = vst.msk [vmem:[#allocation4 + $0x168] sm:$0xff] %vm397, %v3947
      %4048 = vst.msk [vmem:[#allocation4 + $0x190] sm:$0xff] %vm397, %v3956
      %4049 = vst.msk [vmem:[#allocation4 + $0x1b8] sm:$0xff] %vm397, %v3965
      %4050 = vst.msk [vmem:[#allocation4 + $0x1e0] sm:$0xff] %vm397, %v3974
      %4051 = vst.msk [vmem:[#allocation4 + $0x208] sm:$0xff] %vm397, %v3983
      %4052 = vst.msk [vmem:[#allocation4 + $0x230] sm:$0xff] %vm397, %v3992
      %4053 = vst.msk [vmem:[#allocation4 + $0x258] sm:$0xff] %vm397, %v4001
      %4054 = vst.msk [vmem:[#allocation4 + $0x280] sm:$0xff] %vm397, %v4010
      %4055 = vst.msk [vmem:[#allocation4 + $0x2a8] sm:$0xff] %vm397, %v4019
      %v4056 = vld [vmem:[#allocation2] sm:$0x80]
      %v4057 = vld [vmem:[#allocation2 + $0x8] sm:$0xff]
      %v4058 = vld [vmem:[#allocation2 + $0x10] sm:$0xff]
      %v4059 = vld [vmem:[#allocation2 + $0x18] sm:$0xff]
      %v4060 = vld [vmem:[#allocation2 + $0x20] sm:$0xff]
      %v4061 = vld [vmem:[#allocation2 + $0x28] sm:$0xff]
      %v4062 = vld [vmem:[#allocation2 + $0x30] sm:$0xff]
      %v4063 = vld [vmem:[#allocation2 + $0x38] sm:$0xff]
      %v4064 = vld [vmem:[#allocation2 + $0x40] sm:$0xff]
      %v4065 = vld [vmem:[#allocation2 + $0x48] sm:$0xff]
      %v4066 = vld [vmem:[#allocation2 + $0x50] sm:$0xff]
      %v4067 = vld [vmem:[#allocation2 + $0x58] sm:$0xff]
      %v4068 = vld [vmem:[#allocation2 + $0x60] sm:$0xff]
      %v4069 = vld [vmem:[#allocation2 + $0x68] sm:$0xff]
      %v4070 = vld [vmem:[#allocation2 + $0x70] sm:$0xff]
      %v4071 = vld [vmem:[#allocation2 + $0x78] sm:$0xff]
      %v4072 = vld [vmem:[#allocation2 + $0x80] sm:$0xff]
      %v4073 = vld [vmem:[#allocation2 + $0x88] sm:$0xff]
      %v4074 = vld [vmem:[#allocation2 + $0x90] sm:$0x7f]
      %v4094 = vrot.slane %v4056, 7
      %v4095 = vrot.slane %v4057, 7
      %v4096 = vsel %vm1346, %v4094, %v4095
      %v4097 = vrot.slane %v4058, 7
      %v4098 = vsel %vm1346, %v4095, %v4097
      %v4099 = vrot.slane %v4059, 7
      %v4100 = vsel %vm1346, %v4097, %v4099
      %v4101 = vrot.slane %v4060, 7
      %v4102 = vsel %vm1346, %v4099, %v4101
      %v4103 = vrot.slane %v4061, 7
      %v4104 = vsel %vm1346, %v4101, %v4103
      %v4105 = vrot.slane %v4062, 7
      %v4106 = vsel %vm1346, %v4103, %v4105
      %v4107 = vrot.slane %v4063, 7
      %v4108 = vsel %vm1346, %v4105, %v4107
      %v4109 = vrot.slane %v4064, 7
      %v4110 = vsel %vm1346, %v4107, %v4109
      %v4111 = vrot.slane %v4065, 7
      %v4112 = vsel %vm1346, %v4109, %v4111
      %v4113 = vrot.slane %v4066, 7
      %v4114 = vsel %vm1346, %v4111, %v4113
      %v4115 = vrot.slane %v4067, 7
      %v4116 = vsel %vm1346, %v4113, %v4115
      %v4117 = vrot.slane %v4068, 7
      %v4118 = vsel %vm1346, %v4115, %v4117
      %v4119 = vrot.slane %v4069, 7
      %v4120 = vsel %vm1346, %v4117, %v4119
      %v4121 = vrot.slane %v4070, 7
      %v4122 = vsel %vm1346, %v4119, %v4121
      %v4123 = vrot.slane %v4071, 7
      %v4124 = vsel %vm1346, %v4121, %v4123
      %v4125 = vrot.slane %v4072, 7
      %v4126 = vsel %vm1346, %v4123, %v4125
      %v4127 = vrot.slane %v4073, 7
      %v4128 = vsel %vm1346, %v4125, %v4127
      %v4129 = vrot.slane %v4074, 7
      %v4130 = vsel %vm1346, %v4127, %v4129
      %4131 = vrot.lane.b32.xlu0 %v4096, 64
      %v4132 = vpop.permute.xlu0 %4131
      %4133 = vrot.lane.b32.xlu0 %v4098, 64
      %v4134 = vpop.permute.xlu0 %4133
      %4135 = vrot.lane.b32.xlu0 %v4100, 64
      %v4136 = vpop.permute.xlu0 %4135
      %4137 = vrot.lane.b32.xlu0 %v4102, 64
      %v4138 = vpop.permute.xlu0 %4137
      %4139 = vrot.lane.b32.xlu0 %v4104, 64
      %v4140 = vpop.permute.xlu0 %4139
      %4141 = vrot.lane.b32.xlu0 %v4106, 64
      %v4142 = vpop.permute.xlu0 %4141
      %4143 = vrot.lane.b32.xlu0 %v4108, 64
      %v4144 = vpop.permute.xlu0 %4143
      %4145 = vrot.lane.b32.xlu0 %v4110, 64
      %v4146 = vpop.permute.xlu0 %4145
      %4147 = vrot.lane.b32.xlu0 %v4112, 64
      %v4148 = vpop.permute.xlu0 %4147
      %4149 = vrot.lane.b32.xlu0 %v4114, 64
      %v4150 = vpop.permute.xlu0 %4149
      %4151 = vrot.lane.b32.xlu0 %v4116, 64
      %v4152 = vpop.permute.xlu0 %4151
      %4153 = vrot.lane.b32.xlu0 %v4118, 64
      %v4154 = vpop.permute.xlu0 %4153
      %4155 = vrot.lane.b32.xlu0 %v4120, 64
      %v4156 = vpop.permute.xlu0 %4155
      %4157 = vrot.lane.b32.xlu0 %v4122, 64
      %v4158 = vpop.permute.xlu0 %4157
      %4159 = vrot.lane.b32.xlu0 %v4124, 64
      %v4160 = vpop.permute.xlu0 %4159
      %4161 = vrot.lane.b32.xlu0 %v4126, 64
      %v4162 = vpop.permute.xlu0 %4161
      %4163 = vrot.lane.b32.xlu0 %v4128, 64
      %v4164 = vpop.permute.xlu0 %4163
      %4165 = vrot.lane.b32.xlu0 %v4130, 64
      %v4166 = vpop.permute.xlu0 %4165
      %4185 = vst.msk [vmem:[#allocation4] sm:$0xff] %vm1438, %v4132
      %4186 = vst.msk [vmem:[#allocation4 + $0x28] sm:$0xff] %vm1438, %v4134
      %4187 = vst.msk [vmem:[#allocation4 + $0x50] sm:$0xff] %vm1438, %v4136
      %4188 = vst.msk [vmem:[#allocation4 + $0x78] sm:$0xff] %vm1438, %v4138
      %4189 = vst.msk [vmem:[#allocation4 + $0xa0] sm:$0xff] %vm1438, %v4140
      %4190 = vst.msk [vmem:[#allocation4 + $0xc8] sm:$0xff] %vm1438, %v4142
      %4191 = vst.msk [vmem:[#allocation4 + $0xf0] sm:$0xff] %vm1438, %v4144
      %4192 = vst.msk [vmem:[#allocation4 + $0x118] sm:$0xff] %vm1438, %v4146
      %4193 = vst.msk [vmem:[#allocation4 + $0x140] sm:$0xff] %vm1438, %v4148
      %4194 = vst.msk [vmem:[#allocation4 + $0x168] sm:$0xff] %vm1438, %v4150
      %4195 = vst.msk [vmem:[#allocation4 + $0x190] sm:$0xff] %vm1438, %v4152
      %4196 = vst.msk [vmem:[#allocation4 + $0x1b8] sm:$0xff] %vm1438, %v4154
      %4197 = vst.msk [vmem:[#allocation4 + $0x1e0] sm:$0xff] %vm1438, %v4156
      %4198 = vst.msk [vmem:[#allocation4 + $0x208] sm:$0xff] %vm1438, %v4158
      %4199 = vst.msk [vmem:[#allocation4 + $0x230] sm:$0xff] %vm1438, %v4160
      %4200 = vst.msk [vmem:[#allocation4 + $0x258] sm:$0xff] %vm1438, %v4162
      %4201 = vst.msk [vmem:[#allocation4 + $0x280] sm:$0xff] %vm1438, %v4164
      %4202 = vst.msk [vmem:[#allocation4 + $0x2a8] sm:$0xff] %vm1438, %v4166
      %v4203 = vld [vmem:[#allocation2] sm:$0x80]
      %v4204 = vld [vmem:[#allocation2 + $0x8] sm:$0xff]
      %v4205 = vld [vmem:[#allocation2 + $0x10] sm:$0xff]
      %v4206 = vld [vmem:[#allocation2 + $0x18] sm:$0xff]
      %v4207 = vld [vmem:[#allocation2 + $0x20] sm:$0xff]
      %v4208 = vld [vmem:[#allocation2 + $0x28] sm:$0xff]
      %v4209 = vld [vmem:[#allocation2 + $0x30] sm:$0xff]
      %v4210 = vld [vmem:[#allocation2 + $0x38] sm:$0xff]
      %v4211 = vld [vmem:[#allocation2 + $0x40] sm:$0xff]
      %v4212 = vld [vmem:[#allocation2 + $0x48] sm:$0xff]
      %v4213 = vld [vmem:[#allocation2 + $0x50] sm:$0xff]
      %v4214 = vld [vmem:[#allocation2 + $0x58] sm:$0xff]
      %v4215 = vld [vmem:[#allocation2 + $0x60] sm:$0xff]
      %v4216 = vld [vmem:[#allocation2 + $0x68] sm:$0xff]
      %v4217 = vld [vmem:[#allocation2 + $0x70] sm:$0xff]
      %v4218 = vld [vmem:[#allocation2 + $0x78] sm:$0xff]
      %v4219 = vld [vmem:[#allocation2 + $0x80] sm:$0xff]
      %v4220 = vld [vmem:[#allocation2 + $0x88] sm:$0xff]
      %v4221 = vld [vmem:[#allocation2 + $0x90] sm:$0xff]
      %v4223 = vshrl.u32 %v4203, 16
      %v4225 = vrot.slane %v4223, 7
      %v4227 = vshrl.u32 %v4204, 16
      %v4229 = vrot.slane %v4227, 7
      %v4230 = vshll.u32 %v4204, 16
      %v4232 = vor.u32 %v4229, %v4230
      %v4233 = vsel %vm1476, %v4225, %v4232
      %v4235 = vshrl.u32 %v4205, 16
      %v4237 = vrot.slane %v4235, 7
      %v4238 = vshll.u32 %v4205, 16
      %v4240 = vor.u32 %v4237, %v4238
      %v4241 = vsel %vm1476, %v4229, %v4240
      %v4243 = vshrl.u32 %v4206, 16
      %v4245 = vrot.slane %v4243, 7
      %v4246 = vshll.u32 %v4206, 16
      %v4248 = vor.u32 %v4245, %v4246
      %v4249 = vsel %vm1476, %v4237, %v4248
      %v4251 = vshrl.u32 %v4207, 16
      %v4253 = vrot.slane %v4251, 7
      %v4254 = vshll.u32 %v4207, 16
      %v4256 = vor.u32 %v4253, %v4254
      %v4257 = vsel %vm1476, %v4245, %v4256
      %v4259 = vshrl.u32 %v4208, 16
      %v4261 = vrot.slane %v4259, 7
      %v4262 = vshll.u32 %v4208, 16
      %v4264 = vor.u32 %v4261, %v4262
      %v4265 = vsel %vm1476, %v4253, %v4264
      %v4267 = vshrl.u32 %v4209, 16
      %v4269 = vrot.slane %v4267, 7
      %v4270 = vshll.u32 %v4209, 16
      %v4272 = vor.u32 %v4269, %v4270
      %v4273 = vsel %vm1476, %v4261, %v4272
      %v4275 = vshrl.u32 %v4210, 16
      %v4277 = vrot.slane %v4275, 7
      %v4278 = vshll.u32 %v4210, 16
      %v4280 = vor.u32 %v4277, %v4278
      %v4281 = vsel %vm1476, %v4269, %v4280
      %v4283 = vshrl.u32 %v4211, 16
      %v4285 = vrot.slane %v4283, 7
      %v4286 = vshll.u32 %v4211, 16
      %v4288 = vor.u32 %v4285, %v4286
      %v4289 = vsel %vm1476, %v4277, %v4288
      %v4291 = vshrl.u32 %v4212, 16
      %v4293 = vrot.slane %v4291, 7
      %v4294 = vshll.u32 %v4212, 16
      %v4296 = vor.u32 %v4293, %v4294
      %v4297 = vsel %vm1476, %v4285, %v4296
      %v4299 = vshrl.u32 %v4213, 16
      %v4301 = vrot.slane %v4299, 7
      %v4302 = vshll.u32 %v4213, 16
      %v4304 = vor.u32 %v4301, %v4302
      %v4305 = vsel %vm1476, %v4293, %v4304
      %v4307 = vshrl.u32 %v4214, 16
      %v4309 = vrot.slane %v4307, 7
      %v4310 = vshll.u32 %v4214, 16
      %v4312 = vor.u32 %v4309, %v4310
      %v4313 = vsel %vm1476, %v4301, %v4312
      %v4315 = vshrl.u32 %v4215, 16
      %v4317 = vrot.slane %v4315, 7
      %v4318 = vshll.u32 %v4215, 16
      %v4320 = vor.u32 %v4317, %v4318
      %v4321 = vsel %vm1476, %v4309, %v4320
      %v4323 = vshrl.u32 %v4216, 16
      %v4325 = vrot.slane %v4323, 7
      %v4326 = vshll.u32 %v4216, 16
      %v4328 = vor.u32 %v4325, %v4326
      %v4329 = vsel %vm1476, %v4317, %v4328
      %v4331 = vshrl.u32 %v4217, 16
      %v4333 = vrot.slane %v4331, 7
      %v4334 = vshll.u32 %v4217, 16
      %v4336 = vor.u32 %v4333, %v4334
      %v4337 = vsel %vm1476, %v4325, %v4336
      %v4339 = vshrl.u32 %v4218, 16
      %v4341 = vrot.slane %v4339, 7
      %v4342 = vshll.u32 %v4218, 16
      %v4344 = vor.u32 %v4341, %v4342
      %v4345 = vsel %vm1476, %v4333, %v4344
      %v4347 = vshrl.u32 %v4219, 16
      %v4349 = vrot.slane %v4347, 7
      %v4350 = vshll.u32 %v4219, 16
      %v4352 = vor.u32 %v4349, %v4350
      %v4353 = vsel %vm1476, %v4341, %v4352
      %v4355 = vshrl.u32 %v4220, 16
      %v4357 = vrot.slane %v4355, 7
      %v4358 = vshll.u32 %v4220, 16
      %v4360 = vor.u32 %v4357, %v4358
      %v4361 = vsel %vm1476, %v4349, %v4360
      %v4363 = vshrl.u32 %v4221, 16
      %v4365 = vrot.slane %v4363, 7
      %v4366 = vshll.u32 %v4221, 16
      %v4368 = vor.u32 %v4365, %v4366
      %v4369 = vsel %vm1476, %v4357, %v4368
      %4388 = vst.msk [vmem:[#allocation4 + $0x8] sm:$0xff] %vm397, %v4233
      %4389 = vst.msk [vmem:[#allocation4 + $0x30] sm:$0xff] %vm397, %v4241
      %4390 = vst.msk [vmem:[#allocation4 + $0x58] sm:$0xff] %vm397, %v4249
      %4391 = vst.msk [vmem:[#allocation4 + $0x80] sm:$0xff] %vm397, %v4257
      %4392 = vst.msk [vmem:[#allocation4 + $0xa8] sm:$0xff] %vm397, %v4265
      %4393 = vst.msk [vmem:[#allocation4 + $0xd0] sm:$0xff] %vm397, %v4273
      %4394 = vst.msk [vmem:[#allocation4 + $0xf8] sm:$0xff] %vm397, %v4281
      %4395 = vst.msk [vmem:[#allocation4 + $0x120] sm:$0xff] %vm397, %v4289
      %4396 = vst.msk [vmem:[#allocation4 + $0x148] sm:$0xff] %vm397, %v4297
      %4397 = vst.msk [vmem:[#allocation4 + $0x170] sm:$0xff] %vm397, %v4305
      %4398 = vst.msk [vmem:[#allocation4 + $0x198] sm:$0xff] %vm397, %v4313
      %4399 = vst.msk [vmem:[#allocation4 + $0x1c0] sm:$0xff] %vm397, %v4321
      %4400 = vst.msk [vmem:[#allocation4 + $0x1e8] sm:$0xff] %vm397, %v4329
      %4401 = vst.msk [vmem:[#allocation4 + $0x210] sm:$0xff] %vm397, %v4337
      %4402 = vst.msk [vmem:[#allocation4 + $0x238] sm:$0xff] %vm397, %v4345
      %4403 = vst.msk [vmem:[#allocation4 + $0x260] sm:$0xff] %vm397, %v4353
      %4404 = vst.msk [vmem:[#allocation4 + $0x288] sm:$0xff] %vm397, %v4361
      %4405 = vst.msk [vmem:[#allocation4 + $0x2b0] sm:$0xff] %vm397, %v4369
      %v4406 = vld [vmem:[#allocation2 + $0x8] sm:$0x80]
      %v4407 = vld [vmem:[#allocation2 + $0x10] sm:$0xff]
      %v4408 = vld [vmem:[#allocation2 + $0x18] sm:$0xff]
      %v4409 = vld [vmem:[#allocation2 + $0x20] sm:$0xff]
      %v4410 = vld [vmem:[#allocation2 + $0x28] sm:$0xff]
      %v4411 = vld [vmem:[#allocation2 + $0x30] sm:$0xff]
      %v4412 = vld [vmem:[#allocation2 + $0x38] sm:$0xff]
      %v4413 = vld [vmem:[#allocation2 + $0x40] sm:$0xff]
      %v4414 = vld [vmem:[#allocation2 + $0x48] sm:$0xff]
      %v4415 = vld [vmem:[#allocation2 + $0x50] sm:$0xff]
      %v4416 = vld [vmem:[#allocation2 + $0x58] sm:$0xff]
      %v4417 = vld [vmem:[#allocation2 + $0x60] sm:$0xff]
      %v4418 = vld [vmem:[#allocation2 + $0x68] sm:$0xff]
      %v4419 = vld [vmem:[#allocation2 + $0x70] sm:$0xff]
      %v4420 = vld [vmem:[#allocation2 + $0x78] sm:$0xff]
      %v4421 = vld [vmem:[#allocation2 + $0x80] sm:$0xff]
      %v4422 = vld [vmem:[#allocation2 + $0x88] sm:$0xff]
      %v4423 = vld [vmem:[#allocation2 + $0x90] sm:$0xff]
      %v4424 = vld [vmem:[#allocation2 + $0x98] sm:$0xff]
      %v4426 = vshrl.u32 %v4406, 16
      %v4428 = vrot.slane %v4426, 7
      %v4430 = vshrl.u32 %v4407, 16
      %v4432 = vrot.slane %v4430, 7
      %v4433 = vshll.u32 %v4407, 16
      %v4435 = vor.u32 %v4432, %v4433
      %v4436 = vsel %vm1476, %v4428, %v4435
      %v4438 = vshrl.u32 %v4408, 16
      %v4440 = vrot.slane %v4438, 7
      %v4441 = vshll.u32 %v4408, 16
      %v4443 = vor.u32 %v4440, %v4441
      %v4444 = vsel %vm1476, %v4432, %v4443
      %v4446 = vshrl.u32 %v4409, 16
      %v4448 = vrot.slane %v4446, 7
      %v4449 = vshll.u32 %v4409, 16
      %v4451 = vor.u32 %v4448, %v4449
      %v4452 = vsel %vm1476, %v4440, %v4451
      %v4454 = vshrl.u32 %v4410, 16
      %v4456 = vrot.slane %v4454, 7
      %v4457 = vshll.u32 %v4410, 16
      %v4459 = vor.u32 %v4456, %v4457
      %v4460 = vsel %vm1476, %v4448, %v4459
      %v4462 = vshrl.u32 %v4411, 16
      %v4464 = vrot.slane %v4462, 7
      %v4465 = vshll.u32 %v4411, 16
      %v4467 = vor.u32 %v4464, %v4465
      %v4468 = vsel %vm1476, %v4456, %v4467
      %v4470 = vshrl.u32 %v4412, 16
      %v4472 = vrot.slane %v4470, 7
      %v4473 = vshll.u32 %v4412, 16
      %v4475 = vor.u32 %v4472, %v4473
      %v4476 = vsel %vm1476, %v4464, %v4475
      %v4478 = vshrl.u32 %v4413, 16
      %v4480 = vrot.slane %v4478, 7
      %v4481 = vshll.u32 %v4413, 16
      %v4483 = vor.u32 %v4480, %v4481
      %v4484 = vsel %vm1476, %v4472, %v4483
      %v4486 = vshrl.u32 %v4414, 16
      %v4488 = vrot.slane %v4486, 7
      %v4489 = vshll.u32 %v4414, 16
      %v4491 = vor.u32 %v4488, %v4489
      %v4492 = vsel %vm1476, %v4480, %v4491
      %v4494 = vshrl.u32 %v4415, 16
      %v4496 = vrot.slane %v4494, 7
      %v4497 = vshll.u32 %v4415, 16
      %v4499 = vor.u32 %v4496, %v4497
      %v4500 = vsel %vm1476, %v4488, %v4499
      %v4502 = vshrl.u32 %v4416, 16
      %v4504 = vrot.slane %v4502, 7
      %v4505 = vshll.u32 %v4416, 16
      %v4507 = vor.u32 %v4504, %v4505
      %v4508 = vsel %vm1476, %v4496, %v4507
      %v4510 = vshrl.u32 %v4417, 16
      %v4512 = vrot.slane %v4510, 7
      %v4513 = vshll.u32 %v4417, 16
      %v4515 = vor.u32 %v4512, %v4513
      %v4516 = vsel %vm1476, %v4504, %v4515
      %v4518 = vshrl.u32 %v4418, 16
      %v4520 = vrot.slane %v4518, 7
      %v4521 = vshll.u32 %v4418, 16
      %v4523 = vor.u32 %v4520, %v4521
      %v4524 = vsel %vm1476, %v4512, %v4523
      %v4526 = vshrl.u32 %v4419, 16
      %v4528 = vrot.slane %v4526, 7
      %v4529 = vshll.u32 %v4419, 16
      %v4531 = vor.u32 %v4528, %v4529
      %v4532 = vsel %vm1476, %v4520, %v4531
      %v4534 = vshrl.u32 %v4420, 16
      %v4536 = vrot.slane %v4534, 7
      %v4537 = vshll.u32 %v4420, 16
      %v4539 = vor.u32 %v4536, %v4537
      %v4540 = vsel %vm1476, %v4528, %v4539
      %v4542 = vshrl.u32 %v4421, 16
      %v4544 = vrot.slane %v4542, 7
      %v4545 = vshll.u32 %v4421, 16
      %v4547 = vor.u32 %v4544, %v4545
      %v4548 = vsel %vm1476, %v4536, %v4547
      %v4550 = vshrl.u32 %v4422, 16
      %v4552 = vrot.slane %v4550, 7
      %v4553 = vshll.u32 %v4422, 16
      %v4555 = vor.u32 %v4552, %v4553
      %v4556 = vsel %vm1476, %v4544, %v4555
      %v4558 = vshrl.u32 %v4423, 16
      %v4560 = vrot.slane %v4558, 7
      %v4561 = vshll.u32 %v4423, 16
      %v4563 = vor.u32 %v4560, %v4561
      %v4564 = vsel %vm1476, %v4552, %v4563
      %v4566 = vshrl.u32 %v4424, 16
      %v4568 = vrot.slane %v4566, 7
      %v4569 = vshll.u32 %v4424, 16
      %v4571 = vor.u32 %v4568, %v4569
      %v4572 = vsel %vm1476, %v4560, %v4571
      %4573 = vrot.lane.b32.xlu0 %v4436, 64
      %v4574 = vpop.permute.xlu0 %4573
      %4575 = vrot.lane.b32.xlu0 %v4444, 64
      %v4576 = vpop.permute.xlu0 %4575
      %4577 = vrot.lane.b32.xlu0 %v4452, 64
      %v4578 = vpop.permute.xlu0 %4577
      %4579 = vrot.lane.b32.xlu0 %v4460, 64
      %v4580 = vpop.permute.xlu0 %4579
      %4581 = vrot.lane.b32.xlu0 %v4468, 64
      %v4582 = vpop.permute.xlu0 %4581
      %4583 = vrot.lane.b32.xlu0 %v4476, 64
      %v4584 = vpop.permute.xlu0 %4583
      %4585 = vrot.lane.b32.xlu0 %v4484, 64
      %v4586 = vpop.permute.xlu0 %4585
      %4587 = vrot.lane.b32.xlu0 %v4492, 64
      %v4588 = vpop.permute.xlu0 %4587
      %4589 = vrot.lane.b32.xlu0 %v4500, 64
      %v4590 = vpop.permute.xlu0 %4589
      %4591 = vrot.lane.b32.xlu0 %v4508, 64
      %v4592 = vpop.permute.xlu0 %4591
      %4593 = vrot.lane.b32.xlu0 %v4516, 64
      %v4594 = vpop.permute.xlu0 %4593
      %4595 = vrot.lane.b32.xlu0 %v4524, 64
      %v4596 = vpop.permute.xlu0 %4595
      %4597 = vrot.lane.b32.xlu0 %v4532, 64
      %v4598 = vpop.permute.xlu0 %4597
      %4599 = vrot.lane.b32.xlu0 %v4540, 64
      %v4600 = vpop.permute.xlu0 %4599
      %4601 = vrot.lane.b32.xlu0 %v4548, 64
      %v4602 = vpop.permute.xlu0 %4601
      %4603 = vrot.lane.b32.xlu0 %v4556, 64
      %v4604 = vpop.permute.xlu0 %4603
      %4605 = vrot.lane.b32.xlu0 %v4564, 64
      %v4606 = vpop.permute.xlu0 %4605
      %4607 = vrot.lane.b32.xlu0 %v4572, 64
      %v4608 = vpop.permute.xlu0 %4607
      %4627 = vst.msk [vmem:[#allocation4 + $0x8] sm:$0xff] %vm1438, %v4574
      %4628 = vst.msk [vmem:[#allocation4 + $0x30] sm:$0xff] %vm1438, %v4576
      %4629 = vst.msk [vmem:[#allocation4 + $0x58] sm:$0xff] %vm1438, %v4578
      %4630 = vst.msk [vmem:[#allocation4 + $0x80] sm:$0xff] %vm1438, %v4580
      %4631 = vst.msk [vmem:[#allocation4 + $0xa8] sm:$0xff] %vm1438, %v4582
      %4632 = vst.msk [vmem:[#allocation4 + $0xd0] sm:$0xff] %vm1438, %v4584
      %4633 = vst.msk [vmem:[#allocation4 + $0xf8] sm:$0xff] %vm1438, %v4586
      %4634 = vst.msk [vmem:[#allocation4 + $0x120] sm:$0xff] %vm1438, %v4588
      %4635 = vst.msk [vmem:[#allocation4 + $0x148] sm:$0xff] %vm1438, %v4590
      %4636 = vst.msk [vmem:[#allocation4 + $0x170] sm:$0xff] %vm1438, %v4592
      %4637 = vst.msk [vmem:[#allocation4 + $0x198] sm:$0xff] %vm1438, %v4594
      %4638 = vst.msk [vmem:[#allocation4 + $0x1c0] sm:$0xff] %vm1438, %v4596
      %4639 = vst.msk [vmem:[#allocation4 + $0x1e8] sm:$0xff] %vm1438, %v4598
      %4640 = vst.msk [vmem:[#allocation4 + $0x210] sm:$0xff] %vm1438, %v4600
      %4641 = vst.msk [vmem:[#allocation4 + $0x238] sm:$0xff] %vm1438, %v4602
      %4642 = vst.msk [vmem:[#allocation4 + $0x260] sm:$0xff] %vm1438, %v4604
      %4643 = vst.msk [vmem:[#allocation4 + $0x288] sm:$0xff] %vm1438, %v4606
      %4644 = vst.msk [vmem:[#allocation4 + $0x2b0] sm:$0xff] %vm1438, %v4608
      %v4645 = vld [vmem:[#allocation2 + $0x10] sm:$0xff]
      %v4646 = vld [vmem:[#allocation2 + $0x18] sm:$0xff]
      %v4647 = vld [vmem:[#allocation2 + $0x20] sm:$0xff]
      %v4648 = vld [vmem:[#allocation2 + $0x28] sm:$0xff]
      %v4649 = vld [vmem:[#allocation2 + $0x30] sm:$0xff]
      %v4650 = vld [vmem:[#allocation2 + $0x38] sm:$0xff]
      %v4651 = vld [vmem:[#allocation2 + $0x40] sm:$0xff]
      %v4652 = vld [vmem:[#allocation2 + $0x48] sm:$0xff]
      %v4653 = vld [vmem:[#allocation2 + $0x50] sm:$0xff]
      %v4654 = vld [vmem:[#allocation2 + $0x58] sm:$0xff]
      %v4655 = vld [vmem:[#allocation2 + $0x60] sm:$0xff]
      %v4656 = vld [vmem:[#allocation2 + $0x68] sm:$0xff]
      %v4657 = vld [vmem:[#allocation2 + $0x70] sm:$0xff]
      %v4658 = vld [vmem:[#allocation2 + $0x78] sm:$0xff]
      %v4659 = vld [vmem:[#allocation2 + $0x80] sm:$0xff]
      %v4660 = vld [vmem:[#allocation2 + $0x88] sm:$0xff]
      %v4661 = vld [vmem:[#allocation2 + $0x90] sm:$0xff]
      %v4662 = vld [vmem:[#allocation2 + $0x98] sm:$0xff]
      %4663 = vst.msk [vmem:[#allocation4 + $0x10] sm:$0xff] %vm397, %v4645
      %4664 = vst.msk [vmem:[#allocation4 + $0x38] sm:$0xff] %vm397, %v4646
      %4665 = vst.msk [vmem:[#allocation4 + $0x60] sm:$0xff] %vm397, %v4647
      %4666 = vst.msk [vmem:[#allocation4 + $0x88] sm:$0xff] %vm397, %v4648
      %4667 = vst.msk [vmem:[#allocation4 + $0xb0] sm:$0xff] %vm397, %v4649
      %4668 = vst.msk [vmem:[#allocation4 + $0xd8] sm:$0xff] %vm397, %v4650
      %4669 = vst.msk [vmem:[#allocation4 + $0x100] sm:$0xff] %vm397, %v4651
      %4670 = vst.msk [vmem:[#allocation4 + $0x128] sm:$0xff] %vm397, %v4652
      %4671 = vst.msk [vmem:[#allocation4 + $0x150] sm:$0xff] %vm397, %v4653
      %4672 = vst.msk [vmem:[#allocation4 + $0x178] sm:$0xff] %vm397, %v4654
      %4673 = vst.msk [vmem:[#allocation4 + $0x1a0] sm:$0xff] %vm397, %v4655
      %4674 = vst.msk [vmem:[#allocation4 + $0x1c8] sm:$0xff] %vm397, %v4656
      %4675 = vst.msk [vmem:[#allocation4 + $0x1f0] sm:$0xff] %vm397, %v4657
      %4676 = vst.msk [vmem:[#allocation4 + $0x218] sm:$0xff] %vm397, %v4658
      %4677 = vst.msk [vmem:[#allocation4 + $0x240] sm:$0xff] %vm397, %v4659
      %4678 = vst.msk [vmem:[#allocation4 + $0x268] sm:$0xff] %vm397, %v4660
      %4679 = vst.msk [vmem:[#allocation4 + $0x290] sm:$0xff] %vm397, %v4661
      %4680 = vst.msk [vmem:[#allocation4 + $0x2b8] sm:$0xff] %vm397, %v4662
      %v4681 = vld [vmem:[#allocation2 + $0x10] sm:$0xff]
      %v4682 = vld [vmem:[#allocation2 + $0x18] sm:$0xff]
      %v4683 = vld [vmem:[#allocation2 + $0x20] sm:$0xff]
      %v4684 = vld [vmem:[#allocation2 + $0x28] sm:$0xff]
      %v4685 = vld [vmem:[#allocation2 + $0x30] sm:$0xff]
      %v4686 = vld [vmem:[#allocation2 + $0x38] sm:$0xff]
      %v4687 = vld [vmem:[#allocation2 + $0x40] sm:$0xff]
      %v4688 = vld [vmem:[#allocation2 + $0x48] sm:$0xff]
      %v4689 = vld [vmem:[#allocation2 + $0x50] sm:$0xff]
      %v4690 = vld [vmem:[#allocation2 + $0x58] sm:$0xff]
      %v4691 = vld [vmem:[#allocation2 + $0x60] sm:$0xff]
      %v4692 = vld [vmem:[#allocation2 + $0x68] sm:$0xff]
      %v4693 = vld [vmem:[#allocation2 + $0x70] sm:$0xff]
      %v4694 = vld [vmem:[#allocation2 + $0x78] sm:$0xff]
      %v4695 = vld [vmem:[#allocation2 + $0x80] sm:$0xff]
      %v4696 = vld [vmem:[#allocation2 + $0x88] sm:$0xff]
      %v4697 = vld [vmem:[#allocation2 + $0x90] sm:$0xff]
      %v4698 = vld [vmem:[#allocation2 + $0x98] sm:$0xff]
      %v4699 = vld [vmem:[#allocation2 + $0xa0] sm:$0x1]
      %v4701 = vshrl.u32 %v4681, 16
      %v4703 = vshll.u32 %v4681, 16
      %v4705 = vrot.slane %v4703, 1
      %v4706 = vor.u32 %v4701, %v4705
      %v4708 = vshll.u32 %v4682, 16
      %v4710 = vrot.slane %v4708, 1
      %v4711 = vsel %vm1955, %v4706, %v4710
      %v4712 = vshrl.u32 %v4682, 16
      %v4714 = vor.u32 %v4712, %v4710
      %v4716 = vshll.u32 %v4683, 16
      %v4718 = vrot.slane %v4716, 1
      %v4719 = vsel %vm1955, %v4714, %v4718
      %v4720 = vshrl.u32 %v4683, 16
      %v4722 = vor.u32 %v4720, %v4718
      %v4724 = vshll.u32 %v4684, 16
      %v4726 = vrot.slane %v4724, 1
      %v4727 = vsel %vm1955, %v4722, %v4726
      %v4728 = vshrl.u32 %v4684, 16
      %v4730 = vor.u32 %v4728, %v4726
      %v4732 = vshll.u32 %v4685, 16
      %v4734 = vrot.slane %v4732, 1
      %v4735 = vsel %vm1955, %v4730, %v4734
      %v4736 = vshrl.u32 %v4685, 16
      %v4738 = vor.u32 %v4736, %v4734
      %v4740 = vshll.u32 %v4686, 16
      %v4742 = vrot.slane %v4740, 1
      %v4743 = vsel %vm1955, %v4738, %v4742
      %v4744 = vshrl.u32 %v4686, 16
      %v4746 = vor.u32 %v4744, %v4742
      %v4748 = vshll.u32 %v4687, 16
      %v4750 = vrot.slane %v4748, 1
      %v4751 = vsel %vm1955, %v4746, %v4750
      %v4752 = vshrl.u32 %v4687, 16
      %v4754 = vor.u32 %v4752, %v4750
      %v4756 = vshll.u32 %v4688, 16
      %v4758 = vrot.slane %v4756, 1
      %v4759 = vsel %vm1955, %v4754, %v4758
      %v4760 = vshrl.u32 %v4688, 16
      %v4762 = vor.u32 %v4760, %v4758
      %v4764 = vshll.u32 %v4689, 16
      %v4766 = vrot.slane %v4764, 1
      %v4767 = vsel %vm1955, %v4762, %v4766
      %v4768 = vshrl.u32 %v4689, 16
      %v4770 = vor.u32 %v4768, %v4766
      %v4772 = vshll.u32 %v4690, 16
      %v4774 = vrot.slane %v4772, 1
      %v4775 = vsel %vm1955, %v4770, %v4774
      %v4776 = vshrl.u32 %v4690, 16
      %v4778 = vor.u32 %v4776, %v4774
      %v4780 = vshll.u32 %v4691, 16
      %v4782 = vrot.slane %v4780, 1
      %v4783 = vsel %vm1955, %v4778, %v4782
      %v4784 = vshrl.u32 %v4691, 16
      %v4786 = vor.u32 %v4784, %v4782
      %v4788 = vshll.u32 %v4692, 16
      %v4790 = vrot.slane %v4788, 1
      %v4791 = vsel %vm1955, %v4786, %v4790
      %v4792 = vshrl.u32 %v4692, 16
      %v4794 = vor.u32 %v4792, %v4790
      %v4796 = vshll.u32 %v4693, 16
      %v4798 = vrot.slane %v4796, 1
      %v4799 = vsel %vm1955, %v4794, %v4798
      %v4800 = vshrl.u32 %v4693, 16
      %v4802 = vor.u32 %v4800, %v4798
      %v4804 = vshll.u32 %v4694, 16
      %v4806 = vrot.slane %v4804, 1
      %v4807 = vsel %vm1955, %v4802, %v4806
      %v4808 = vshrl.u32 %v4694, 16
      %v4810 = vor.u32 %v4808, %v4806
      %v4812 = vshll.u32 %v4695, 16
      %v4814 = vrot.slane %v4812, 1
      %v4815 = vsel %vm1955, %v4810, %v4814
      %v4816 = vshrl.u32 %v4695, 16
      %v4818 = vor.u32 %v4816, %v4814
      %v4820 = vshll.u32 %v4696, 16
      %v4822 = vrot.slane %v4820, 1
      %v4823 = vsel %vm1955, %v4818, %v4822
      %v4824 = vshrl.u32 %v4696, 16
      %v4826 = vor.u32 %v4824, %v4822
      %v4828 = vshll.u32 %v4697, 16
      %v4830 = vrot.slane %v4828, 1
      %v4831 = vsel %vm1955, %v4826, %v4830
      %v4832 = vshrl.u32 %v4697, 16
      %v4834 = vor.u32 %v4832, %v4830
      %v4836 = vshll.u32 %v4698, 16
      %v4838 = vrot.slane %v4836, 1
      %v4839 = vsel %vm1955, %v4834, %v4838
      %v4840 = vshrl.u32 %v4698, 16
      %v4842 = vor.u32 %v4840, %v4838
      %v4844 = vshll.u32 %v4699, 16
      %v4846 = vrot.slane %v4844, 1
      %v4847 = vsel %vm1955, %v4842, %v4846
      %4848 = vrot.lane.b32.xlu0 %v4711, 64
      %v4849 = vpop.permute.xlu0 %4848
      %4850 = vrot.lane.b32.xlu0 %v4719, 64
      %v4851 = vpop.permute.xlu0 %4850
      %4852 = vrot.lane.b32.xlu0 %v4727, 64
      %v4853 = vpop.permute.xlu0 %4852
      %4854 = vrot.lane.b32.xlu0 %v4735, 64
      %v4855 = vpop.permute.xlu0 %4854
      %4856 = vrot.lane.b32.xlu0 %v4743, 64
      %v4857 = vpop.permute.xlu0 %4856
      %4858 = vrot.lane.b32.xlu0 %v4751, 64
      %v4859 = vpop.permute.xlu0 %4858
      %4860 = vrot.lane.b32.xlu0 %v4759, 64
      %v4861 = vpop.permute.xlu0 %4860
      %4862 = vrot.lane.b32.xlu0 %v4767, 64
      %v4863 = vpop.permute.xlu0 %4862
      %4864 = vrot.lane.b32.xlu0 %v4775, 64
      %v4865 = vpop.permute.xlu0 %4864
      %4866 = vrot.lane.b32.xlu0 %v4783, 64
      %v4867 = vpop.permute.xlu0 %4866
      %4868 = vrot.lane.b32.xlu0 %v4791, 64
      %v4869 = vpop.permute.xlu0 %4868
      %4870 = vrot.lane.b32.xlu0 %v4799, 64
      %v4871 = vpop.permute.xlu0 %4870
      %4872 = vrot.lane.b32.xlu0 %v4807, 64
      %v4873 = vpop.permute.xlu0 %4872
      %4874 = vrot.lane.b32.xlu0 %v4815, 64
      %v4875 = vpop.permute.xlu0 %4874
      %4876 = vrot.lane.b32.xlu0 %v4823, 64
      %v4877 = vpop.permute.xlu0 %4876
      %4878 = vrot.lane.b32.xlu0 %v4831, 64
      %v4879 = vpop.permute.xlu0 %4878
      %4880 = vrot.lane.b32.xlu0 %v4839, 64
      %v4881 = vpop.permute.xlu0 %4880
      %4882 = vrot.lane.b32.xlu0 %v4847, 64
      %v4883 = vpop.permute.xlu0 %4882
      %4902 = vst.msk [vmem:[#allocation4 + $0x10] sm:$0xff] %vm1438, %v4849
      %4903 = vst.msk [vmem:[#allocation4 + $0x38] sm:$0xff] %vm1438, %v4851
      %4904 = vst.msk [vmem:[#allocation4 + $0x60] sm:$0xff] %vm1438, %v4853
      %4905 = vst.msk [vmem:[#allocation4 + $0x88] sm:$0xff] %vm1438, %v4855
      %4906 = vst.msk [vmem:[#allocation4 + $0xb0] sm:$0xff] %vm1438, %v4857
      %4907 = vst.msk [vmem:[#allocation4 + $0xd8] sm:$0xff] %vm1438, %v4859
      %4908 = vst.msk [vmem:[#allocation4 + $0x100] sm:$0xff] %vm1438, %v4861
      %4909 = vst.msk [vmem:[#allocation4 + $0x128] sm:$0xff] %vm1438, %v4863
      %4910 = vst.msk [vmem:[#allocation4 + $0x150] sm:$0xff] %vm1438, %v4865
      %4911 = vst.msk [vmem:[#allocation4 + $0x178] sm:$0xff] %vm1438, %v4867
      %4912 = vst.msk [vmem:[#allocation4 + $0x1a0] sm:$0xff] %vm1438, %v4869
      %4913 = vst.msk [vmem:[#allocation4 + $0x1c8] sm:$0xff] %vm1438, %v4871
      %4914 = vst.msk [vmem:[#allocation4 + $0x1f0] sm:$0xff] %vm1438, %v4873
      %4915 = vst.msk [vmem:[#allocation4 + $0x218] sm:$0xff] %vm1438, %v4875
      %4916 = vst.msk [vmem:[#allocation4 + $0x240] sm:$0xff] %vm1438, %v4877
      %4917 = vst.msk [vmem:[#allocation4 + $0x268] sm:$0xff] %vm1438, %v4879
      %4918 = vst.msk [vmem:[#allocation4 + $0x290] sm:$0xff] %vm1438, %v4881
      %4919 = vst.msk [vmem:[#allocation4 + $0x2b8] sm:$0xff] %vm1438, %v4883
      %v4920 = vld [vmem:[#allocation2 + $0x18] sm:$0xff]
      %v4921 = vld [vmem:[#allocation2 + $0x20] sm:$0xff]
      %v4922 = vld [vmem:[#allocation2 + $0x28] sm:$0xff]
      %v4923 = vld [vmem:[#allocation2 + $0x30] sm:$0xff]
      %v4924 = vld [vmem:[#allocation2 + $0x38] sm:$0xff]
      %v4925 = vld [vmem:[#allocation2 + $0x40] sm:$0xff]
      %v4926 = vld [vmem:[#allocation2 + $0x48] sm:$0xff]
      %v4927 = vld [vmem:[#allocation2 + $0x50] sm:$0xff]
      %v4928 = vld [vmem:[#allocation2 + $0x58] sm:$0xff]
      %v4929 = vld [vmem:[#allocation2 + $0x60] sm:$0xff]
      %v4930 = vld [vmem:[#allocation2 + $0x68] sm:$0xff]
      %v4931 = vld [vmem:[#allocation2 + $0x70] sm:$0xff]
      %v4932 = vld [vmem:[#allocation2 + $0x78] sm:$0xff]
      %v4933 = vld [vmem:[#allocation2 + $0x80] sm:$0xff]
      %v4934 = vld [vmem:[#allocation2 + $0x88] sm:$0xff]
      %v4935 = vld [vmem:[#allocation2 + $0x90] sm:$0xff]
      %v4936 = vld [vmem:[#allocation2 + $0x98] sm:$0xff]
      %v4937 = vld [vmem:[#allocation2 + $0xa0] sm:$0xff]
      %v4938 = vld [vmem:[#allocation2 + $0xa8] sm:$0x1]
      %v4940 = vshrl.u32 %v4920, 16
      %v4942 = vshll.u32 %v4920, 16
      %v4944 = vrot.slane %v4942, 1
      %v4945 = vor.u32 %v4940, %v4944
      %v4947 = vshll.u32 %v4921, 16
      %v4949 = vrot.slane %v4947, 1
      %v4950 = vsel %vm1955, %v4945, %v4949
      %v4951 = vshrl.u32 %v4921, 16
      %v4953 = vor.u32 %v4951, %v4949
      %v4955 = vshll.u32 %v4922, 16
      %v4957 = vrot.slane %v4955, 1
      %v4958 = vsel %vm1955, %v4953, %v4957
      %v4959 = vshrl.u32 %v4922, 16
      %v4961 = vor.u32 %v4959, %v4957
      %v4963 = vshll.u32 %v4923, 16
      %v4965 = vrot.slane %v4963, 1
      %v4966 = vsel %vm1955, %v4961, %v4965
      %v4967 = vshrl.u32 %v4923, 16
      %v4969 = vor.u32 %v4967, %v4965
      %v4971 = vshll.u32 %v4924, 16
      %v4973 = vrot.slane %v4971, 1
      %v4974 = vsel %vm1955, %v4969, %v4973
      %v4975 = vshrl.u32 %v4924, 16
      %v4977 = vor.u32 %v4975, %v4973
      %v4979 = vshll.u32 %v4925, 16
      %v4981 = vrot.slane %v4979, 1
      %v4982 = vsel %vm1955, %v4977, %v4981
      %v4983 = vshrl.u32 %v4925, 16
      %v4985 = vor.u32 %v4983, %v4981
      %v4987 = vshll.u32 %v4926, 16
      %v4989 = vrot.slane %v4987, 1
      %v4990 = vsel %vm1955, %v4985, %v4989
      %v4991 = vshrl.u32 %v4926, 16
      %v4993 = vor.u32 %v4991, %v4989
      %v4995 = vshll.u32 %v4927, 16
      %v4997 = vrot.slane %v4995, 1
      %v4998 = vsel %vm1955, %v4993, %v4997
      %v4999 = vshrl.u32 %v4927, 16
      %v5001 = vor.u32 %v4999, %v4997
      %v5003 = vshll.u32 %v4928, 16
      %v5005 = vrot.slane %v5003, 1
      %v5006 = vsel %vm1955, %v5001, %v5005
      %v5007 = vshrl.u32 %v4928, 16
      %v5009 = vor.u32 %v5007, %v5005
      %v5011 = vshll.u32 %v4929, 16
      %v5013 = vrot.slane %v5011, 1
      %v5014 = vsel %vm1955, %v5009, %v5013
      %v5015 = vshrl.u32 %v4929, 16
      %v5017 = vor.u32 %v5015, %v5013
      %v5019 = vshll.u32 %v4930, 16
      %v5021 = vrot.slane %v5019, 1
      %v5022 = vsel %vm1955, %v5017, %v5021
      %v5023 = vshrl.u32 %v4930, 16
      %v5025 = vor.u32 %v5023, %v5021
      %v5027 = vshll.u32 %v4931, 16
      %v5029 = vrot.slane %v5027, 1
      %v5030 = vsel %vm1955, %v5025, %v5029
      %v5031 = vshrl.u32 %v4931, 16
      %v5033 = vor.u32 %v5031, %v5029
      %v5035 = vshll.u32 %v4932, 16
      %v5037 = vrot.slane %v5035, 1
      %v5038 = vsel %vm1955, %v5033, %v5037
      %v5039 = vshrl.u32 %v4932, 16
      %v5041 = vor.u32 %v5039, %v5037
      %v5043 = vshll.u32 %v4933, 16
      %v5045 = vrot.slane %v5043, 1
      %v5046 = vsel %vm1955, %v5041, %v5045
      %v5047 = vshrl.u32 %v4933, 16
      %v5049 = vor.u32 %v5047, %v5045
      %v5051 = vshll.u32 %v4934, 16
      %v5053 = vrot.slane %v5051, 1
      %v5054 = vsel %vm1955, %v5049, %v5053
      %v5055 = vshrl.u32 %v4934, 16
      %v5057 = vor.u32 %v5055, %v5053
      %v5059 = vshll.u32 %v4935, 16
      %v5061 = vrot.slane %v5059, 1
      %v5062 = vsel %vm1955, %v5057, %v5061
      %v5063 = vshrl.u32 %v4935, 16
      %v5065 = vor.u32 %v5063, %v5061
      %v5067 = vshll.u32 %v4936, 16
      %v5069 = vrot.slane %v5067, 1
      %v5070 = vsel %vm1955, %v5065, %v5069
      %v5071 = vshrl.u32 %v4936, 16
      %v5073 = vor.u32 %v5071, %v5069
      %v5075 = vshll.u32 %v4937, 16
      %v5077 = vrot.slane %v5075, 1
      %v5078 = vsel %vm1955, %v5073, %v5077
      %v5079 = vshrl.u32 %v4937, 16
      %v5081 = vor.u32 %v5079, %v5077
      %v5083 = vshll.u32 %v4938, 16
      %v5085 = vrot.slane %v5083, 1
      %v5086 = vsel %vm1955, %v5081, %v5085
      %5105 = vst.msk [vmem:[#allocation4 + $0x18] sm:$0xff] %vm397, %v4950
      %5106 = vst.msk [vmem:[#allocation4 + $0x40] sm:$0xff] %vm397, %v4958
      %5107 = vst.msk [vmem:[#allocation4 + $0x68] sm:$0xff] %vm397, %v4966
      %5108 = vst.msk [vmem:[#allocation4 + $0x90] sm:$0xff] %vm397, %v4974
      %5109 = vst.msk [vmem:[#allocation4 + $0xb8] sm:$0xff] %vm397, %v4982
      %5110 = vst.msk [vmem:[#allocation4 + $0xe0] sm:$0xff] %vm397, %v4990
      %5111 = vst.msk [vmem:[#allocation4 + $0x108] sm:$0xff] %vm397, %v4998
      %5112 = vst.msk [vmem:[#allocation4 + $0x130] sm:$0xff] %vm397, %v5006
      %5113 = vst.msk [vmem:[#allocation4 + $0x158] sm:$0xff] %vm397, %v5014
      %5114 = vst.msk [vmem:[#allocation4 + $0x180] sm:$0xff] %vm397, %v5022
      %5115 = vst.msk [vmem:[#allocation4 + $0x1a8] sm:$0xff] %vm397, %v5030
      %5116 = vst.msk [vmem:[#allocation4 + $0x1d0] sm:$0xff] %vm397, %v5038
      %5117 = vst.msk [vmem:[#allocation4 + $0x1f8] sm:$0xff] %vm397, %v5046
      %5118 = vst.msk [vmem:[#allocation4 + $0x220] sm:$0xff] %vm397, %v5054
      %5119 = vst.msk [vmem:[#allocation4 + $0x248] sm:$0xff] %vm397, %v5062
      %5120 = vst.msk [vmem:[#allocation4 + $0x270] sm:$0xff] %vm397, %v5070
      %5121 = vst.msk [vmem:[#allocation4 + $0x298] sm:$0xff] %vm397, %v5078
      %5122 = vst.msk [vmem:[#allocation4 + $0x2c0] sm:$0xff] %vm397, %v5086
      %v5123 = vld [vmem:[#allocation2 + $0x18] sm:$0xfe]
      %v5124 = vld [vmem:[#allocation2 + $0x20] sm:$0xff]
      %v5125 = vld [vmem:[#allocation2 + $0x28] sm:$0xff]
      %v5126 = vld [vmem:[#allocation2 + $0x30] sm:$0xff]
      %v5127 = vld [vmem:[#allocation2 + $0x38] sm:$0xff]
      %v5128 = vld [vmem:[#allocation2 + $0x40] sm:$0xff]
      %v5129 = vld [vmem:[#allocation2 + $0x48] sm:$0xff]
      %v5130 = vld [vmem:[#allocation2 + $0x50] sm:$0xff]
      %v5131 = vld [vmem:[#allocation2 + $0x58] sm:$0xff]
      %v5132 = vld [vmem:[#allocation2 + $0x60] sm:$0xff]
      %v5133 = vld [vmem:[#allocation2 + $0x68] sm:$0xff]
      %v5134 = vld [vmem:[#allocation2 + $0x70] sm:$0xff]
      %v5135 = vld [vmem:[#allocation2 + $0x78] sm:$0xff]
      %v5136 = vld [vmem:[#allocation2 + $0x80] sm:$0xff]
      %v5137 = vld [vmem:[#allocation2 + $0x88] sm:$0xff]
      %v5138 = vld [vmem:[#allocation2 + $0x90] sm:$0xff]
      %v5139 = vld [vmem:[#allocation2 + $0x98] sm:$0xff]
      %v5140 = vld [vmem:[#allocation2 + $0xa0] sm:$0xff]
      %v5141 = vld [vmem:[#allocation2 + $0xa8] sm:$0x1]
      %v5161 = vrot.slane %v5123, 1
      %v5162 = vrot.slane %v5124, 1
      %v5163 = vsel %vm2417, %v5161, %v5162
      %v5164 = vrot.slane %v5125, 1
      %v5165 = vsel %vm2417, %v5162, %v5164
      %v5166 = vrot.slane %v5126, 1
      %v5167 = vsel %vm2417, %v5164, %v5166
      %v5168 = vrot.slane %v5127, 1
      %v5169 = vsel %vm2417, %v5166, %v5168
      %v5170 = vrot.slane %v5128, 1
      %v5171 = vsel %vm2417, %v5168, %v5170
      %v5172 = vrot.slane %v5129, 1
      %v5173 = vsel %vm2417, %v5170, %v5172
      %v5174 = vrot.slane %v5130, 1
      %v5175 = vsel %vm2417, %v5172, %v5174
      %v5176 = vrot.slane %v5131, 1
      %v5177 = vsel %vm2417, %v5174, %v5176
      %v5178 = vrot.slane %v5132, 1
      %v5179 = vsel %vm2417, %v5176, %v5178
      %v5180 = vrot.slane %v5133, 1
      %v5181 = vsel %vm2417, %v5178, %v5180
      %v5182 = vrot.slane %v5134, 1
      %v5183 = vsel %vm2417, %v5180, %v5182
      %v5184 = vrot.slane %v5135, 1
      %v5185 = vsel %vm2417, %v5182, %v5184
      %v5186 = vrot.slane %v5136, 1
      %v5187 = vsel %vm2417, %v5184, %v5186
      %v5188 = vrot.slane %v5137, 1
      %v5189 = vsel %vm2417, %v5186, %v5188
      %v5190 = vrot.slane %v5138, 1
      %v5191 = vsel %vm2417, %v5188, %v5190
      %v5192 = vrot.slane %v5139, 1
      %v5193 = vsel %vm2417, %v5190, %v5192
      %v5194 = vrot.slane %v5140, 1
      %v5195 = vsel %vm2417, %v5192, %v5194
      %v5196 = vrot.slane %v5141, 1
      %v5197 = vsel %vm2417, %v5194, %v5196
      %5198 = vrot.lane.b32.xlu0 %v5163, 64
      %v5199 = vpop.permute.xlu0 %5198
      %5200 = vrot.lane.b32.xlu0 %v5165, 64
      %v5201 = vpop.permute.xlu0 %5200
      %5202 = vrot.lane.b32.xlu0 %v5167, 64
      %v5203 = vpop.permute.xlu0 %5202
      %5204 = vrot.lane.b32.xlu0 %v5169, 64
      %v5205 = vpop.permute.xlu0 %5204
      %5206 = vrot.lane.b32.xlu0 %v5171, 64
      %v5207 = vpop.permute.xlu0 %5206
      %5208 = vrot.lane.b32.xlu0 %v5173, 64
      %v5209 = vpop.permute.xlu0 %5208
      %5210 = vrot.lane.b32.xlu0 %v5175, 64
      %v5211 = vpop.permute.xlu0 %5210
      %5212 = vrot.lane.b32.xlu0 %v5177, 64
      %v5213 = vpop.permute.xlu0 %5212
      %5214 = vrot.lane.b32.xlu0 %v5179, 64
      %v5215 = vpop.permute.xlu0 %5214
      %5216 = vrot.lane.b32.xlu0 %v5181, 64
      %v5217 = vpop.permute.xlu0 %5216
      %5218 = vrot.lane.b32.xlu0 %v5183, 64
      %v5219 = vpop.permute.xlu0 %5218
      %5220 = vrot.lane.b32.xlu0 %v5185, 64
      %v5221 = vpop.permute.xlu0 %5220
      %5222 = vrot.lane.b32.xlu0 %v5187, 64
      %v5223 = vpop.permute.xlu0 %5222
      %5224 = vrot.lane.b32.xlu0 %v5189, 64
      %v5225 = vpop.permute.xlu0 %5224
      %5226 = vrot.lane.b32.xlu0 %v5191, 64
      %v5227 = vpop.permute.xlu0 %5226
      %5228 = vrot.lane.b32.xlu0 %v5193, 64
      %v5229 = vpop.permute.xlu0 %5228
      %5230 = vrot.lane.b32.xlu0 %v5195, 64
      %v5231 = vpop.permute.xlu0 %5230
      %5232 = vrot.lane.b32.xlu0 %v5197, 64
      %v5233 = vpop.permute.xlu0 %5232
      %5252 = vst.msk [vmem:[#allocation4 + $0x18] sm:$0xff] %vm1438, %v5199
      %5253 = vst.msk [vmem:[#allocation4 + $0x40] sm:$0xff] %vm1438, %v5201
      %5254 = vst.msk [vmem:[#allocation4 + $0x68] sm:$0xff] %vm1438, %v5203
      %5255 = vst.msk [vmem:[#allocation4 + $0x90] sm:$0xff] %vm1438, %v5205
      %5256 = vst.msk [vmem:[#allocation4 + $0xb8] sm:$0xff] %vm1438, %v5207
      %5257 = vst.msk [vmem:[#allocation4 + $0xe0] sm:$0xff] %vm1438, %v5209
      %5258 = vst.msk [vmem:[#allocation4 + $0x108] sm:$0xff] %vm1438, %v5211
      %5259 = vst.msk [vmem:[#allocation4 + $0x130] sm:$0xff] %vm1438, %v5213
      %5260 = vst.msk [vmem:[#allocation4 + $0x158] sm:$0xff] %vm1438, %v5215
      %5261 = vst.msk [vmem:[#allocation4 + $0x180] sm:$0xff] %vm1438, %v5217
      %5262 = vst.msk [vmem:[#allocation4 + $0x1a8] sm:$0xff] %vm1438, %v5219
      %5263 = vst.msk [vmem:[#allocation4 + $0x1d0] sm:$0xff] %vm1438, %v5221
      %5264 = vst.msk [vmem:[#allocation4 + $0x1f8] sm:$0xff] %vm1438, %v5223
      %5265 = vst.msk [vmem:[#allocation4 + $0x220] sm:$0xff] %vm1438, %v5225
      %5266 = vst.msk [vmem:[#allocation4 + $0x248] sm:$0xff] %vm1438, %v5227
      %5267 = vst.msk [vmem:[#allocation4 + $0x270] sm:$0xff] %vm1438, %v5229
      %5268 = vst.msk [vmem:[#allocation4 + $0x298] sm:$0xff] %vm1438, %v5231
      %5269 = vst.msk [vmem:[#allocation4 + $0x2c0] sm:$0xff] %vm1438, %v5233
      %v5270 = vld [vmem:[#allocation2 + $0x18] sm:$0xfe]
      %v5271 = vld [vmem:[#allocation2 + $0x20] sm:$0xff]
      %v5272 = vld [vmem:[#allocation2 + $0x28] sm:$0xff]
      %v5273 = vld [vmem:[#allocation2 + $0x30] sm:$0xff]
      %v5274 = vld [vmem:[#allocation2 + $0x38] sm:$0xff]
      %v5275 = vld [vmem:[#allocation2 + $0x40] sm:$0xff]
      %v5276 = vld [vmem:[#allocation2 + $0x48] sm:$0xff]
      %v5277 = vld [vmem:[#allocation2 + $0x50] sm:$0xff]
      %v5278 = vld [vmem:[#allocation2 + $0x58] sm:$0xff]
      %v5279 = vld [vmem:[#allocation2 + $0x60] sm:$0xff]
      %v5280 = vld [vmem:[#allocation2 + $0x68] sm:$0xff]
      %v5281 = vld [vmem:[#allocation2 + $0x70] sm:$0xff]
      %v5282 = vld [vmem:[#allocation2 + $0x78] sm:$0xff]
      %v5283 = vld [vmem:[#allocation2 + $0x80] sm:$0xff]
      %v5284 = vld [vmem:[#allocation2 + $0x88] sm:$0xff]
      %v5285 = vld [vmem:[#allocation2 + $0x90] sm:$0xff]
      %v5286 = vld [vmem:[#allocation2 + $0x98] sm:$0xff]
      %v5287 = vld [vmem:[#allocation2 + $0xa0] sm:$0xff]
      %v5288 = vld [vmem:[#allocation2 + $0xa8] sm:$0x3]
      %v5290 = vshrl.u32 %v5270, 16
      %v5292 = vrot.slane %v5290, 1
      %v5293 = vshll.u32 %v5270, 16
      %v5295 = vrot.slane %v5293, 2
      %v5296 = vor.u32 %v5292, %v5295
      %v5298 = vshrl.u32 %v5271, 16
      %v5300 = vrot.slane %v5298, 1
      %v5301 = vshll.u32 %v5271, 16
      %v5303 = vrot.slane %v5301, 2
      %v5304 = vor.u32 %v5300, %v5303
      %v5305 = vsel %vm2546, %v5296, %v5304
      %v5307 = vshrl.u32 %v5272, 16
      %v5309 = vrot.slane %v5307, 1
      %v5310 = vshll.u32 %v5272, 16
      %v5312 = vrot.slane %v5310, 2
      %v5313 = vor.u32 %v5309, %v5312
      %v5314 = vsel %vm2546, %v5304, %v5313
      %v5316 = vshrl.u32 %v5273, 16
      %v5318 = vrot.slane %v5316, 1
      %v5319 = vshll.u32 %v5273, 16
      %v5321 = vrot.slane %v5319, 2
      %v5322 = vor.u32 %v5318, %v5321
      %v5323 = vsel %vm2546, %v5313, %v5322
      %v5325 = vshrl.u32 %v5274, 16
      %v5327 = vrot.slane %v5325, 1
      %v5328 = vshll.u32 %v5274, 16
      %v5330 = vrot.slane %v5328, 2
      %v5331 = vor.u32 %v5327, %v5330
      %v5332 = vsel %vm2546, %v5322, %v5331
      %v5334 = vshrl.u32 %v5275, 16
      %v5336 = vrot.slane %v5334, 1
      %v5337 = vshll.u32 %v5275, 16
      %v5339 = vrot.slane %v5337, 2
      %v5340 = vor.u32 %v5336, %v5339
      %v5341 = vsel %vm2546, %v5331, %v5340
      %v5343 = vshrl.u32 %v5276, 16
      %v5345 = vrot.slane %v5343, 1
      %v5346 = vshll.u32 %v5276, 16
      %v5348 = vrot.slane %v5346, 2
      %v5349 = vor.u32 %v5345, %v5348
      %v5350 = vsel %vm2546, %v5340, %v5349
      %v5352 = vshrl.u32 %v5277, 16
      %v5354 = vrot.slane %v5352, 1
      %v5355 = vshll.u32 %v5277, 16
      %v5357 = vrot.slane %v5355, 2
      %v5358 = vor.u32 %v5354, %v5357
      %v5359 = vsel %vm2546, %v5349, %v5358
      %v5361 = vshrl.u32 %v5278, 16
      %v5363 = vrot.slane %v5361, 1
      %v5364 = vshll.u32 %v5278, 16
      %v5366 = vrot.slane %v5364, 2
      %v5367 = vor.u32 %v5363, %v5366
      %v5368 = vsel %vm2546, %v5358, %v5367
      %v5370 = vshrl.u32 %v5279, 16
      %v5372 = vrot.slane %v5370, 1
      %v5373 = vshll.u32 %v5279, 16
      %v5375 = vrot.slane %v5373, 2
      %v5376 = vor.u32 %v5372, %v5375
      %v5377 = vsel %vm2546, %v5367, %v5376
      %v5379 = vshrl.u32 %v5280, 16
      %v5381 = vrot.slane %v5379, 1
      %v5382 = vshll.u32 %v5280, 16
      %v5384 = vrot.slane %v5382, 2
      %v5385 = vor.u32 %v5381, %v5384
      %v5386 = vsel %vm2546, %v5376, %v5385
      %v5388 = vshrl.u32 %v5281, 16
      %v5390 = vrot.slane %v5388, 1
      %v5391 = vshll.u32 %v5281, 16
      %v5393 = vrot.slane %v5391, 2
      %v5394 = vor.u32 %v5390, %v5393
      %v5395 = vsel %vm2546, %v5385, %v5394
      %v5397 = vshrl.u32 %v5282, 16
      %v5399 = vrot.slane %v5397, 1
      %v5400 = vshll.u32 %v5282, 16
      %v5402 = vrot.slane %v5400, 2
      %v5403 = vor.u32 %v5399, %v5402
      %v5404 = vsel %vm2546, %v5394, %v5403
      %v5406 = vshrl.u32 %v5283, 16
      %v5408 = vrot.slane %v5406, 1
      %v5409 = vshll.u32 %v5283, 16
      %v5411 = vrot.slane %v5409, 2
      %v5412 = vor.u32 %v5408, %v5411
      %v5413 = vsel %vm2546, %v5403, %v5412
      %v5415 = vshrl.u32 %v5284, 16
      %v5417 = vrot.slane %v5415, 1
      %v5418 = vshll.u32 %v5284, 16
      %v5420 = vrot.slane %v5418, 2
      %v5421 = vor.u32 %v5417, %v5420
      %v5422 = vsel %vm2546, %v5412, %v5421
      %v5424 = vshrl.u32 %v5285, 16
      %v5426 = vrot.slane %v5424, 1
      %v5427 = vshll.u32 %v5285, 16
      %v5429 = vrot.slane %v5427, 2
      %v5430 = vor.u32 %v5426, %v5429
      %v5431 = vsel %vm2546, %v5421, %v5430
      %v5433 = vshrl.u32 %v5286, 16
      %v5435 = vrot.slane %v5433, 1
      %v5436 = vshll.u32 %v5286, 16
      %v5438 = vrot.slane %v5436, 2
      %v5439 = vor.u32 %v5435, %v5438
      %v5440 = vsel %vm2546, %v5430, %v5439
      %v5442 = vshrl.u32 %v5287, 16
      %v5444 = vrot.slane %v5442, 1
      %v5445 = vshll.u32 %v5287, 16
      %v5447 = vrot.slane %v5445, 2
      %v5448 = vor.u32 %v5444, %v5447
      %v5449 = vsel %vm2546, %v5439, %v5448
      %v5451 = vshrl.u32 %v5288, 16
      %v5453 = vrot.slane %v5451, 1
      %v5454 = vshll.u32 %v5288, 16
      %v5456 = vrot.slane %v5454, 2
      %v5457 = vor.u32 %v5453, %v5456
      %v5458 = vsel %vm2546, %v5448, %v5457
      %5477 = vst.msk [vmem:[#allocation4 + $0x20] sm:$0xff] %vm397, %v5305
      %5478 = vst.msk [vmem:[#allocation4 + $0x48] sm:$0xff] %vm397, %v5314
      %5479 = vst.msk [vmem:[#allocation4 + $0x70] sm:$0xff] %vm397, %v5323
      %5480 = vst.msk [vmem:[#allocation4 + $0x98] sm:$0xff] %vm397, %v5332
      %5481 = vst.msk [vmem:[#allocation4 + $0xc0] sm:$0xff] %vm397, %v5341
      %5482 = vst.msk [vmem:[#allocation4 + $0xe8] sm:$0xff] %vm397, %v5350
      %5483 = vst.msk [vmem:[#allocation4 + $0x110] sm:$0xff] %vm397, %v5359
      %5484 = vst.msk [vmem:[#allocation4 + $0x138] sm:$0xff] %vm397, %v5368
      %5485 = vst.msk [vmem:[#allocation4 + $0x160] sm:$0xff] %vm397, %v5377
      %5486 = vst.msk [vmem:[#allocation4 + $0x188] sm:$0xff] %vm397, %v5386
      %5487 = vst.msk [vmem:[#allocation4 + $0x1b0] sm:$0xff] %vm397, %v5395
      %5488 = vst.msk [vmem:[#allocation4 + $0x1d8] sm:$0xff] %vm397, %v5404
      %5489 = vst.msk [vmem:[#allocation4 + $0x200] sm:$0xff] %vm397, %v5413
      %5490 = vst.msk [vmem:[#allocation4 + $0x228] sm:$0xff] %vm397, %v5422
      %5491 = vst.msk [vmem:[#allocation4 + $0x250] sm:$0xff] %vm397, %v5431
      %5492 = vst.msk [vmem:[#allocation4 + $0x278] sm:$0xff] %vm397, %v5440
      %5493 = vst.msk [vmem:[#allocation4 + $0x2a0] sm:$0xff] %vm397, %v5449
      %5494 = vst.msk [vmem:[#allocation4 + $0x2c8] sm:$0xff] %vm397, %v5458
      %v5495 = vld [vmem:[#allocation4] sm:$0xff]
      %v5496 = vld [vmem:[#allocation4 + $0x8] sm:$0xff]
      %v5497 = vld [vmem:[#allocation4 + $0x10] sm:$0xff]
      %v5498 = vld [vmem:[#allocation4 + $0x18] sm:$0xff]
      %v5499 = vld [vmem:[#allocation4 + $0x20] sm:$0xff]
      %v5500 = vld [vmem:[#allocation4 + $0x28] sm:$0xff]
      %v5501 = vld [vmem:[#allocation4 + $0x30] sm:$0xff]
      %v5502 = vld [vmem:[#allocation4 + $0x38] sm:$0xff]
      %v5503 = vld [vmem:[#allocation4 + $0x40] sm:$0xff]
      %v5504 = vld [vmem:[#allocation4 + $0x48] sm:$0xff]
      %v5505 = vld [vmem:[#allocation4 + $0x50] sm:$0xff]
      %v5506 = vld [vmem:[#allocation4 + $0x58] sm:$0xff]
      %v5507 = vld [vmem:[#allocation4 + $0x60] sm:$0xff]
      %v5508 = vld [vmem:[#allocation4 + $0x68] sm:$0xff]
      %v5509 = vld [vmem:[#allocation4 + $0x70] sm:$0xff]
      %v5510 = vld [vmem:[#allocation4 + $0x78] sm:$0xff]
      %v5511 = vld [vmem:[#allocation4 + $0x80] sm:$0xff]
      %v5512 = vld [vmem:[#allocation4 + $0x88] sm:$0xff]
      %v5513 = vld [vmem:[#allocation4 + $0x90] sm:$0xff]
      %v5514 = vld [vmem:[#allocation4 + $0x98] sm:$0xff]
      %v5515 = vld [vmem:[#allocation4 + $0xa0] sm:$0xff]
      %v5516 = vld [vmem:[#allocation4 + $0xa8] sm:$0xff]
      %v5517 = vld [vmem:[#allocation4 + $0xb0] sm:$0xff]
      %v5518 = vld [vmem:[#allocation4 + $0xb8] sm:$0xff]
      %v5519 = vld [vmem:[#allocation4 + $0xc0] sm:$0xff]
      %v5520 = vld [vmem:[#allocation4 + $0xc8] sm:$0xff]
      %v5521 = vld [vmem:[#allocation4 + $0xd0] sm:$0xff]
      %v5522 = vld [vmem:[#allocation4 + $0xd8] sm:$0xff]
      %v5523 = vld [vmem:[#allocation4 + $0xe0] sm:$0xff]
      %v5524 = vld [vmem:[#allocation4 + $0xe8] sm:$0xff]
      %v5525 = vld [vmem:[#allocation4 + $0xf0] sm:$0xff]
      %v5526 = vld [vmem:[#allocation4 + $0xf8] sm:$0xff]
      %v5527 = vld [vmem:[#allocation4 + $0x100] sm:$0xff]
      %v5528 = vld [vmem:[#allocation4 + $0x108] sm:$0xff]
      %v5529 = vld [vmem:[#allocation4 + $0x110] sm:$0xff]
      %v5530 = vld [vmem:[#allocation4 + $0x118] sm:$0xff]
      %v5531 = vld [vmem:[#allocation4 + $0x120] sm:$0xff]
      %v5532 = vld [vmem:[#allocation4 + $0x128] sm:$0xff]
      %v5533 = vld [vmem:[#allocation4 + $0x130] sm:$0xff]
      %v5534 = vld [vmem:[#allocation4 + $0x138] sm:$0xff]
      %v5535 = vld [vmem:[#allocation4 + $0x140] sm:$0xff]
      %v5536 = vld [vmem:[#allocation4 + $0x148] sm:$0xff]
      %v5537 = vld [vmem:[#allocation4 + $0x150] sm:$0xff]
      %v5538 = vld [vmem:[#allocation4 + $0x158] sm:$0xff]
      %v5539 = vld [vmem:[#allocation4 + $0x160] sm:$0xff]
      %v5540 = vld [vmem:[#allocation4 + $0x168] sm:$0xff]
      %v5541 = vld [vmem:[#allocation4 + $0x170] sm:$0xff]
      %v5542 = vld [vmem:[#allocation4 + $0x178] sm:$0xff]
      %v5543 = vld [vmem:[#allocation4 + $0x180] sm:$0xff]
      %v5544 = vld [vmem:[#allocation4 + $0x188] sm:$0xff]
      %v5545 = vld [vmem:[#allocation4 + $0x190] sm:$0xff]
      %v5546 = vld [vmem:[#allocation4 + $0x198] sm:$0xff]
      %v5547 = vld [vmem:[#allocation4 + $0x1a0] sm:$0xff]
      %v5548 = vld [vmem:[#allocation4 + $0x1a8] sm:$0xff]
      %v5549 = vld [vmem:[#allocation4 + $0x1b0] sm:$0xff]
      %v5550 = vld [vmem:[#allocation4 + $0x1b8] sm:$0xff]
      %v5551 = vld [vmem:[#allocation4 + $0x1c0] sm:$0xff]
      %v5552 = vld [vmem:[#allocation4 + $0x1c8] sm:$0xff]
      %v5553 = vld [vmem:[#allocation4 + $0x1d0] sm:$0xff]
      %v5554 = vld [vmem:[#allocation4 + $0x1d8] sm:$0xff]
      %v5555 = vld [vmem:[#allocation4 + $0x1e0] sm:$0xff]
      %v5556 = vld [vmem:[#allocation4 + $0x1e8] sm:$0xff]
      %v5557 = vld [vmem:[#allocation4 + $0x1f0] sm:$0xff]
      %v5558 = vld [vmem:[#allocation4 + $0x1f8] sm:$0xff]
      %v5559 = vld [vmem:[#allocation4 + $0x200] sm:$0xff]
      %v5560 = vld [vmem:[#allocation4 + $0x208] sm:$0xff]
      %v5561 = vld [vmem:[#allocation4 + $0x210] sm:$0xff]
      %v5562 = vld [vmem:[#allocation4 + $0x218] sm:$0xff]
      %v5563 = vld [vmem:[#allocation4 + $0x220] sm:$0xff]
      %v5564 = vld [vmem:[#allocation4 + $0x228] sm:$0xff]
      %v5565 = vld [vmem:[#allocation4 + $0x230] sm:$0xff]
      %v5566 = vld [vmem:[#allocation4 + $0x238] sm:$0xff]
      %v5567 = vld [vmem:[#allocation4 + $0x240] sm:$0xff]
      %v5568 = vld [vmem:[#allocation4 + $0x248] sm:$0xff]
      %v5569 = vld [vmem:[#allocation4 + $0x250] sm:$0xff]
      %v5570 = vld [vmem:[#allocation4 + $0x258] sm:$0xff]
      %v5571 = vld [vmem:[#allocation4 + $0x260] sm:$0xff]
      %v5572 = vld [vmem:[#allocation4 + $0x268] sm:$0xff]
      %v5573 = vld [vmem:[#allocation4 + $0x270] sm:$0xff]
      %v5574 = vld [vmem:[#allocation4 + $0x278] sm:$0xff]
      %v5575 = vld [vmem:[#allocation4 + $0x280] sm:$0xff]
      %v5576 = vld [vmem:[#allocation4 + $0x288] sm:$0xff]
      %v5577 = vld [vmem:[#allocation4 + $0x290] sm:$0xff]
      %v5578 = vld [vmem:[#allocation4 + $0x298] sm:$0xff]
      %v5579 = vld [vmem:[#allocation4 + $0x2a0] sm:$0xff]
      %v5580 = vld [vmem:[#allocation4 + $0x2a8] sm:$0xff]
      %v5581 = vld [vmem:[#allocation4 + $0x2b0] sm:$0xff]
      %v5582 = vld [vmem:[#allocation4 + $0x2b8] sm:$0xff]
      %v5583 = vld [vmem:[#allocation4 + $0x2c0] sm:$0xff]
      %v5584 = vld [vmem:[#allocation4 + $0x2c8] sm:$0xff]
      %v5585 = vld [vmem:[%s6] sm:$0xf]
      %v5586 = vld [vmem:[%s6 + $0x4] sm:$0xf]
      %v5587 = vld [vmem:[%s6 + $0x8] sm:$0xf]
      %v5588 = vld [vmem:[%s6 + $0xc] sm:$0xf]
      %v5589 = vld [vmem:[%s6 + $0x10] sm:$0xf]
      %v5590 = vld [vmem:[%s6 + $0x14] sm:$0xf]
      %v5591 = vld [vmem:[%s6 + $0x18] sm:$0xf]
      %v5592 = vld [vmem:[%s6 + $0x1c] sm:$0xf]
      %v5593 = vld [vmem:[%s6 + $0x20] sm:$0xf]
      %v5594 = vld [vmem:[%s6 + $0x24] sm:$0xf]
      %v5595 = vld [vmem:[%s6 + $0x28] sm:$0xf]
      %v5596 = vld [vmem:[%s6 + $0x2c] sm:$0xf]
      %v5597 = vld [vmem:[%s6 + $0x30] sm:$0xf]
      %v5598 = vld [vmem:[%s6 + $0x34] sm:$0xf]
      %v5599 = vld [vmem:[%s6 + $0x38] sm:$0xf]
      %v5600 = vld [vmem:[%s6 + $0x3c] sm:$0xf]
      %v5601 = vld [vmem:[%s6 + $0x40] sm:$0xf]
      %v5602 = vld [vmem:[%s6 + $0x44] sm:$0xf]
      %v5603 = vld [vmem:[%s6 + $0x48] sm:$0xf]
      %v5604 = vld [vmem:[%s6 + $0x4c] sm:$0xf]
      %v5605 = vld [vmem:[%s6 + $0x50] sm:$0xf]
      %v5606 = vld [vmem:[%s6 + $0x54] sm:$0xf]
      %v5607 = vld [vmem:[%s6 + $0x58] sm:$0xf]
      %v5608 = vld [vmem:[%s6 + $0x5c] sm:$0xf]
      %v5609 = vld [vmem:[%s6 + $0x60] sm:$0xf]
      %v5610 = vld [vmem:[%s6 + $0x64] sm:$0xf]
      %v5611 = vld [vmem:[%s6 + $0x68] sm:$0xf]
      %v5612 = vld [vmem:[%s6 + $0x6c] sm:$0xf]
      %v5613 = vld [vmem:[%s6 + $0x70] sm:$0xf]
      %v5614 = vld [vmem:[%s6 + $0x74] sm:$0xf]
      %v5615 = vld [vmem:[%s6 + $0x78] sm:$0xf]
      %v5616 = vld [vmem:[%s6 + $0x7c] sm:$0xf]
      %v5617 = vld [vmem:[%s6 + $0x80] sm:$0xf]
      %v5618 = vld [vmem:[%s6 + $0x84] sm:$0xf]
      %v5619 = vld [vmem:[%s6 + $0x88] sm:$0xf]
      %v5620 = vld [vmem:[%s6 + $0x8c] sm:$0xf]
      %v5621 = vld [vmem:[%s6 + $0x90] sm:$0xf]
      %v5622 = vld [vmem:[%s6 + $0x94] sm:$0xf]
      %v5623 = vld [vmem:[%s6 + $0x98] sm:$0xf]
      %v5624 = vld [vmem:[%s6 + $0x9c] sm:$0xf]
      %v5625 = vld [vmem:[%s6 + $0xa0] sm:$0xf]
      %v5626 = vld [vmem:[%s6 + $0xa4] sm:$0xf]
      %v5627 = vld [vmem:[%s6 + $0xa8] sm:$0xf]
      %v5628 = vld [vmem:[%s6 + $0xac] sm:$0xf]
      %v5629 = vld [vmem:[%s6 + $0xb0] sm:$0xf]
      %v5630 = vld [vmem:[%s6 + $0xb4] sm:$0xf]
      %v5631 = vld [vmem:[%s6 + $0xb8] sm:$0xf]
      %v5632 = vld [vmem:[%s6 + $0xbc] sm:$0xf]
      %v5633 = vld [vmem:[%s6 + $0xc0] sm:$0xf]
      %v5634 = vld [vmem:[%s6 + $0xc4] sm:$0xf]
      %v5635 = vld [vmem:[%s6 + $0xc8] sm:$0xf]
      %v5636 = vld [vmem:[%s6 + $0xcc] sm:$0xf]
      %v5637 = vld [vmem:[%s6 + $0xd0] sm:$0xf]
      %v5638 = vld [vmem:[%s6 + $0xd4] sm:$0xf]
      %v5639 = vld [vmem:[%s6 + $0xd8] sm:$0xf]
      %v5640 = vld [vmem:[%s6 + $0xdc] sm:$0xf]
      %v5641 = vld [vmem:[%s6 + $0xe0] sm:$0xf]
      %v5642 = vld [vmem:[%s6 + $0xe4] sm:$0xf]
      %v5643 = vld [vmem:[%s6 + $0xe8] sm:$0xf]
      %v5644 = vld [vmem:[%s6 + $0xec] sm:$0xf]
      %v5645 = vld [vmem:[%s6 + $0xf0] sm:$0xf]
      %v5646 = vld [vmem:[%s6 + $0xf4] sm:$0xf]
      %v5647 = vld [vmem:[%s6 + $0xf8] sm:$0xf]
      %v5648 = vld [vmem:[%s6 + $0xfc] sm:$0xf]
      %v5649 = vld [vmem:[%s6 + $0x100] sm:$0xf]
      %v5650 = vld [vmem:[%s6 + $0x104] sm:$0xf]
      %v5651 = vld [vmem:[%s6 + $0x108] sm:$0xf]
      %v5652 = vld [vmem:[%s6 + $0x10c] sm:$0xf]
      %v5653 = vld [vmem:[%s6 + $0x110] sm:$0xf]
      %v5654 = vld [vmem:[%s6 + $0x114] sm:$0xf]
      %v5655 = vld [vmem:[%s6 + $0x118] sm:$0xf]
      %v5656 = vld [vmem:[%s6 + $0x11c] sm:$0xf]
      %v5657 = vld [vmem:[%s7] sm:$0x1]
      %v5659 = vlaneseq
      %v5660 = vshrl.u32 %v5659, 7
      %v5661 = vsub.s32 0, %v5660
      %v5662 = vrot.slane %v5657, %v5661
      %v5736 = vunpack.c.l.b16 %v5585
      %v5737 = vunpack.c.l.b16 %v5586
      %v5738 = vunpack.c.l.b16 %v5587
      %v5739 = vunpack.c.l.b16 %v5588
      %v5740 = vunpack.c.l.b16 %v5589
      %v5741 = vunpack.c.l.b16 %v5590
      %v5742 = vunpack.c.l.b16 %v5591
      %v5743 = vunpack.c.l.b16 %v5592
      %v5744 = vunpack.c.l.b16 %v5593
      %v5745 = vunpack.c.l.b16 %v5594
      %v5746 = vunpack.c.l.b16 %v5595
      %v5747 = vunpack.c.l.b16 %v5596
      %v5748 = vunpack.c.l.b16 %v5597
      %v5749 = vunpack.c.l.b16 %v5598
      %v5750 = vunpack.c.l.b16 %v5599
      %v5751 = vunpack.c.l.b16 %v5600
      %v5752 = vunpack.c.l.b16 %v5601
      %v5753 = vunpack.c.l.b16 %v5602
      %v5754 = vunpack.c.l.b16 %v5603
      %v5755 = vunpack.c.l.b16 %v5604
      %v5756 = vunpack.c.l.b16 %v5605
      %v5757 = vunpack.c.l.b16 %v5606
      %v5758 = vunpack.c.l.b16 %v5607
      %v5759 = vunpack.c.l.b16 %v5608
      %v5760 = vunpack.c.l.b16 %v5609
      %v5761 = vunpack.c.l.b16 %v5610
      %v5762 = vunpack.c.l.b16 %v5611
      %v5763 = vunpack.c.l.b16 %v5612
      %v5764 = vunpack.c.l.b16 %v5613
      %v5765 = vunpack.c.l.b16 %v5614
      %v5766 = vunpack.c.l.b16 %v5615
      %v5767 = vunpack.c.l.b16 %v5616
      %v5768 = vunpack.c.l.b16 %v5617
      %v5769 = vunpack.c.l.b16 %v5618
      %v5770 = vunpack.c.l.b16 %v5619
      %v5771 = vunpack.c.l.b16 %v5620
      %v5772 = vunpack.c.l.b16 %v5621
      %v5773 = vunpack.c.l.b16 %v5622
      %v5774 = vunpack.c.l.b16 %v5623
      %v5775 = vunpack.c.l.b16 %v5624
      %v5776 = vunpack.c.l.b16 %v5625
      %v5777 = vunpack.c.l.b16 %v5626
      %v5778 = vunpack.c.l.b16 %v5627
      %v5779 = vunpack.c.l.b16 %v5628
      %v5780 = vunpack.c.l.b16 %v5629
      %v5781 = vunpack.c.l.b16 %v5630
      %v5782 = vunpack.c.l.b16 %v5631
      %v5783 = vunpack.c.l.b16 %v5632
      %v5784 = vunpack.c.l.b16 %v5633
      %v5785 = vunpack.c.l.b16 %v5634
      %v5786 = vunpack.c.l.b16 %v5635
      %v5787 = vunpack.c.l.b16 %v5636
      %v5788 = vunpack.c.l.b16 %v5637
      %v5789 = vunpack.c.l.b16 %v5638
      %v5790 = vunpack.c.l.b16 %v5639
      %v5791 = vunpack.c.l.b16 %v5640
      %v5792 = vunpack.c.l.b16 %v5641
      %v5793 = vunpack.c.l.b16 %v5642
      %v5794 = vunpack.c.l.b16 %v5643
      %v5795 = vunpack.c.l.b16 %v5644
      %v5796 = vunpack.c.l.b16 %v5645
      %v5797 = vunpack.c.l.b16 %v5646
      %v5798 = vunpack.c.l.b16 %v5647
      %v5799 = vunpack.c.l.b16 %v5648
      %v5800 = vunpack.c.l.b16 %v5649
      %v5801 = vunpack.c.l.b16 %v5650
      %v5802 = vunpack.c.l.b16 %v5651
      %v5803 = vunpack.c.l.b16 %v5652
      %v5804 = vunpack.c.l.b16 %v5653
      %v5805 = vunpack.c.l.b16 %v5654
      %v5806 = vunpack.c.l.b16 %v5655
      %v5807 = vunpack.c.l.b16 %v5656
      %v5808 = vpack.c.b16 %v5737, %v5736
      %v5809 = vpack.c.b16 %v5739, %v5738
      %v5810 = vpack.c.b16 %v5741, %v5740
      %v5811 = vpack.c.b16 %v5743, %v5742
      %v5812 = vpack.c.b16 %v5745, %v5744
      %v5813 = vpack.c.b16 %v5747, %v5746
      %v5814 = vpack.c.b16 %v5749, %v5748
      %v5815 = vpack.c.b16 %v5751, %v5750
      %v5816 = vpack.c.b16 %v5753, %v5752
      %v5817 = vpack.c.b16 %v5755, %v5754
      %v5818 = vpack.c.b16 %v5757, %v5756
      %v5819 = vpack.c.b16 %v5759, %v5758
      %v5820 = vpack.c.b16 %v5761, %v5760
      %v5821 = vpack.c.b16 %v5763, %v5762
      %v5822 = vpack.c.b16 %v5765, %v5764
      %v5823 = vpack.c.b16 %v5767, %v5766
      %v5824 = vpack.c.b16 %v5769, %v5768
      %v5825 = vpack.c.b16 %v5771, %v5770
      %v5826 = vpack.c.b16 %v5773, %v5772
      %v5827 = vpack.c.b16 %v5775, %v5774
      %v5828 = vpack.c.b16 %v5777, %v5776
      %v5829 = vpack.c.b16 %v5779, %v5778
      %v5830 = vpack.c.b16 %v5781, %v5780
      %v5831 = vpack.c.b16 %v5783, %v5782
      %v5832 = vpack.c.b16 %v5785, %v5784
      %v5833 = vpack.c.b16 %v5787, %v5786
      %v5834 = vpack.c.b16 %v5789, %v5788
      %v5835 = vpack.c.b16 %v5791, %v5790
      %v5836 = vpack.c.b16 %v5793, %v5792
      %v5837 = vpack.c.b16 %v5795, %v5794
      %v5838 = vpack.c.b16 %v5797, %v5796
      %v5839 = vpack.c.b16 %v5799, %v5798
      %v5840 = vpack.c.b16 %v5801, %v5800
      %v5841 = vpack.c.b16 %v5803, %v5802
      %v5842 = vpack.c.b16 %v5805, %v5804
      %v5843 = vpack.c.b16 %v5807, %v5806
      %v5881 = vsel %vm397, %v5499, 0
      %v5884 = vsel %vm397, %v5504, 0
      %v5887 = vsel %vm397, %v5509, 0
      %v5890 = vsel %vm397, %v5514, 0
      %v5893 = vsel %vm397, %v5519, 0
      %v5896 = vsel %vm397, %v5524, 0
      %v5899 = vsel %vm397, %v5529, 0
      %v5902 = vsel %vm397, %v5534, 0
      %v5905 = vsel %vm397, %v5539, 0
      %v5908 = vsel %vm397, %v5544, 0
      %v5911 = vsel %vm397, %v5549, 0
      %v5914 = vsel %vm397, %v5554, 0
      %v5917 = vsel %vm397, %v5559, 0
      %v5920 = vsel %vm397, %v5564, 0
      %v5923 = vsel %vm397, %v5569, 0
      %v5926 = vsel %vm397, %v5574, 0
      %v5929 = vsel %vm397, %v5579, 0
      %v5932 = vsel %vm397, %v5584, 0
      %5934 = vmatprep.subr.bf16.mxu0 0
      %5935 = vmatpush1.bf16.msra.mxu0 %v5808
      %5936 = vmatprep.subr.bf16.mxu0 0
      %5937 = vmatpush1.bf16.msra.mxu0 %v5809
      %5938 = vmatprep.subr.bf16.mxu0 0
      %5939 = vmatpush1.bf16.msra.mxu0 %v5810
      %5940 = vmatprep.subr.bf16.mxu0 0
      %5941 = vmatpush1.bf16.msra.mxu0 %v5811
      %5942 = vmatprep.subr.bf16.mxu0 0
      %5943 = vmatpush1.bf16.msra.mxu0 %v5812
      %5944 = vmatprep.subr.bf16.mxu0 0
      %5945 = vmatpush1.bf16.msra.mxu0 %v5813
      %5946 = vmatprep.subr.bf16.mxu0 0
      %5947 = vmatpush1.bf16.msra.mxu0 %v5814
      %5948 = vmatprep.subr.bf16.mxu0 0
      %5949 = vmatpush1.bf16.msra.mxu0 %v5815
      %5950 = vmatprep.subr.bf16.mxu0 0
      %5951 = vmatpush1.bf16.msra.mxu0 %v5816
      %5952 = vmatprep.subr.bf16.mxu0 0
      %5953 = vmatpush1.bf16.msra.mxu0 %v5817
      %5954 = vmatprep.subr.bf16.mxu0 0
      %5955 = vmatpush1.bf16.msra.mxu0 %v5818
      %5956 = vmatprep.subr.bf16.mxu0 0
      %5957 = vmatpush1.bf16.msra.mxu0 %v5819
      %5958 = vmatprep.subr.bf16.mxu0 0
      %5959 = vmatpush1.bf16.msra.mxu0 %v5820
      %5960 = vmatprep.subr.bf16.mxu0 0
      %5961 = vmatpush1.bf16.msra.mxu0 %v5821
      %5962 = vmatprep.subr.bf16.mxu0 0
      %5963 = vmatpush1.bf16.msra.mxu0 %v5822
      %5964 = vmatprep.subr.bf16.mxu0 0
      %5965 = vmatpush1.bf16.msra.mxu0 %v5823
      %5966 = vmatprep.mubr.bf16.mxu0 %v5496
      %5967 = vmatmul.mubr.bf16.gmra.mrb[0].mxu0 %v5495
      %v5968 = vpop.f32.mrb[0].mxu0
      %v5969 = vadd.f32 %v5662, %v5968
      %v5970 = vpop.f32.mrb[0].mxu0
      %v5971 = vpop.f32.mrb[0].mxu0
      %v5972 = vadd.f32 %v5662, %v5971
      %v5973 = vpop.f32.mrb[0].mxu0
      %5974 = vmatprep.mubr.bf16.mxu0 %v5501
      %5975 = vmatmul.mubr.bf16.gmra.mrb[0].mxu0 %v5500
      %v5976 = vpop.f32.mrb[0].mxu0
      %v5977 = vadd.f32 %v5662, %v5976
      %v5978 = vpop.f32.mrb[0].mxu0
      %v5979 = vpop.f32.mrb[0].mxu0
      %v5980 = vadd.f32 %v5662, %v5979
      %v5981 = vpop.f32.mrb[0].mxu0
      %5982 = vmatprep.mubr.bf16.mxu0 %v5506
      %5983 = vmatmul.mubr.bf16.gmra.mrb[0].mxu0 %v5505
      %v5984 = vpop.f32.mrb[0].mxu0
      %v5985 = vadd.f32 %v5662, %v5984
      %v5986 = vpop.f32.mrb[0].mxu0
      %v5987 = vpop.f32.mrb[0].mxu0
      %v5988 = vadd.f32 %v5662, %v5987
      %v5989 = vpop.f32.mrb[0].mxu0
      %5990 = vmatprep.mubr.bf16.mxu0 %v5511
      %5991 = vmatmul.mubr.bf16.gmra.mrb[0].mxu0 %v5510
      %v5992 = vpop.f32.mrb[0].mxu0
      %v5993 = vadd.f32 %v5662, %v5992
      %v5994 = vpop.f32.mrb[0].mxu0
      %v5995 = vpop.f32.mrb[0].mxu0
      %v5996 = vadd.f32 %v5662, %v5995
      %v5997 = vpop.f32.mrb[0].mxu0
      %5998 = vmatprep.mubr.bf16.mxu0 %v5516
      %5999 = vmatmul.mubr.bf16.gmra.mrb[0].mxu0 %v5515
      %v6000 = vpop.f32.mrb[0].mxu0
      %v6001 = vadd.f32 %v5662, %v6000
      %v6002 = vpop.f32.mrb[0].mxu0
      %v6003 = vpop.f32.mrb[0].mxu0
      %v6004 = vadd.f32 %v5662, %v6003
      %v6005 = vpop.f32.mrb[0].mxu0
      %6006 = vmatprep.mubr.bf16.mxu0 %v5521
      %6007 = vmatmul.mubr.bf16.gmra.mrb[0].mxu0 %v5520
      %v6008 = vpop.f32.mrb[0].mxu0
      %v6009 = vadd.f32 %v5662, %v6008
      %v6010 = vpop.f32.mrb[0].mxu0
      %v6011 = vpop.f32.mrb[0].mxu0
      %v6012 = vadd.f32 %v5662, %v6011
      %v6013 = vpop.f32.mrb[0].mxu0
      %6014 = vmatprep.mubr.bf16.mxu0 %v5526
      %6015 = vmatmul.mubr.bf16.gmra.mrb[0].mxu0 %v5525
      %v6016 = vpop.f32.mrb[0].mxu0
      %v6017 = vadd.f32 %v5662, %v6016
      %v6018 = vpop.f32.mrb[0].mxu0
      %v6019 = vpop.f32.mrb[0].mxu0
      %v6020 = vadd.f32 %v5662, %v6019
      %v6021 = vpop.f32.mrb[0].mxu0
      %6022 = vmatprep.mubr.bf16.mxu0 %v5531
      %6023 = vmatmul.mubr.bf16.gmra.mrb[0].mxu0 %v5530
      %v6024 = vpop.f32.mrb[0].mxu0
      %v6025 = vadd.f32 %v5662, %v6024
      %v6026 = vpop.f32.mrb[0].mxu0
      %v6027 = vpop.f32.mrb[0].mxu0
      %v6028 = vadd.f32 %v5662, %v6027
      %v6029 = vpop.f32.mrb[0].mxu0
      %6030 = vmatprep.mubr.bf16.mxu0 %v5536
      %6031 = vmatmul.mubr.bf16.gmra.mrb[0].mxu0 %v5535
      %v6032 = vpop.f32.mrb[0].mxu0
      %v6033 = vadd.f32 %v5662, %v6032
      %v6034 = vpop.f32.mrb[0].mxu0
      %v6035 = vpop.f32.mrb[0].mxu0
      %v6036 = vadd.f32 %v5662, %v6035
      %v6037 = vpop.f32.mrb[0].mxu0
      %6038 = vmatprep.mubr.bf16.mxu0 %v5541
      %6039 = vmatmul.mubr.bf16.gmra.mrb[0].mxu0 %v5540
      %v6040 = vpop.f32.mrb[0].mxu0
      %v6041 = vadd.f32 %v5662, %v6040
      %v6042 = vpop.f32.mrb[0].mxu0
      %v6043 = vpop.f32.mrb[0].mxu0
      %v6044 = vadd.f32 %v5662, %v6043
      %v6045 = vpop.f32.mrb[0].mxu0
      %6046 = vmatprep.mubr.bf16.mxu0 %v5546
      %6047 = vmatmul.mubr.bf16.gmra.mrb[0].mxu0 %v5545
      %v6048 = vpop.f32.mrb[0].mxu0
      %v6049 = vadd.f32 %v5662, %v6048
      %v6050 = vpop.f32.mrb[0].mxu0
      %v6051 = vpop.f32.mrb[0].mxu0
      %v6052 = vadd.f32 %v5662, %v6051
      %v6053 = vpop.f32.mrb[0].mxu0
      %6054 = vmatprep.mubr.bf16.mxu0 %v5551
      %6055 = vmatmul.mubr.bf16.gmra.mrb[0].mxu0 %v5550
      %v6056 = vpop.f32.mrb[0].mxu0
      %v6057 = vadd.f32 %v5662, %v6056
      %v6058 = vpop.f32.mrb[0].mxu0
      %v6059 = vpop.f32.mrb[0].mxu0
      %v6060 = vadd.f32 %v5662, %v6059
      %v6061 = vpop.f32.mrb[0].mxu0
      %6062 = vmatprep.mubr.bf16.mxu0 %v5556
      %6063 = vmatmul.mubr.bf16.gmra.mrb[0].mxu0 %v5555
      %v6064 = vpop.f32.mrb[0].mxu0
      %v6065 = vadd.f32 %v5662, %v6064
      %v6066 = vpop.f32.mrb[0].mxu0
      %v6067 = vpop.f32.mrb[0].mxu0
      %v6068 = vadd.f32 %v5662, %v6067
      %v6069 = vpop.f32.mrb[0].mxu0
      %6070 = vmatprep.mubr.bf16.mxu0 %v5561
      %6071 = vmatmul.mubr.bf16.gmra.mrb[0].mxu0 %v5560
      %v6072 = vpop.f32.mrb[0].mxu0
      %v6073 = vadd.f32 %v5662, %v6072
      %v6074 = vpop.f32.mrb[0].mxu0
      %v6075 = vpop.f32.mrb[0].mxu0
      %v6076 = vadd.f32 %v5662, %v6075
      %v6077 = vpop.f32.mrb[0].mxu0
      %6078 = vmatprep.mubr.bf16.mxu0 %v5566
      %6079 = vmatmul.mubr.bf16.gmra.mrb[0].mxu0 %v5565
      %v6080 = vpop.f32.mrb[0].mxu0
      %v6081 = vadd.f32 %v5662, %v6080
      %v6082 = vpop.f32.mrb[0].mxu0
      %v6083 = vpop.f32.mrb[0].mxu0
      %v6084 = vadd.f32 %v5662, %v6083
      %v6085 = vpop.f32.mrb[0].mxu0
      %6086 = vmatprep.mubr.bf16.mxu0 %v5571
      %6087 = vmatmul.mubr.bf16.gmra.mrb[0].mxu0 %v5570
      %v6088 = vpop.f32.mrb[0].mxu0
      %v6089 = vadd.f32 %v5662, %v6088
      %v6090 = vpop.f32.mrb[0].mxu0
      %v6091 = vpop.f32.mrb[0].mxu0
      %v6092 = vadd.f32 %v5662, %v6091
      %v6093 = vpop.f32.mrb[0].mxu0
      %6094 = vmatprep.mubr.bf16.mxu0 %v5576
      %6095 = vmatmul.mubr.bf16.gmra.mrb[0].mxu0 %v5575
      %v6096 = vpop.f32.mrb[0].mxu0
      %v6097 = vadd.f32 %v5662, %v6096
      %v6098 = vpop.f32.mrb[0].mxu0
      %v6099 = vpop.f32.mrb[0].mxu0
      %v6100 = vadd.f32 %v5662, %v6099
      %v6101 = vpop.f32.mrb[0].mxu0
      %6102 = vmatprep.mubr.bf16.mxu0 %v5581
      %6103 = vmatmul.mubr.bf16.gmra.mrb[0].mxu0 %v5580
      %v6104 = vpop.f32.mrb[0].mxu0
      %v6105 = vadd.f32 %v5662, %v6104
      %v6106 = vpop.f32.mrb[0].mxu0
      %v6107 = vpop.f32.mrb[0].mxu0
      %v6108 = vadd.f32 %v5662, %v6107
      %v6109 = vpop.f32.mrb[0].mxu0
      %6110 = vdwg.mxu0
      %6111 = vmatprep.subr.bf16.mxu0 0
      %6112 = vmatpush1.bf16.msra.mxu0 %v5824
      %6113 = vmatprep.subr.bf16.mxu0 0
      %6114 = vmatpush1.bf16.msra.mxu0 %v5825
      %6115 = vmatprep.subr.bf16.mxu0 0
      %6116 = vmatpush1.bf16.msra.mxu0 %v5826
      %6117 = vmatprep.subr.bf16.mxu0 0
      %6118 = vmatpush1.bf16.msra.mxu0 %v5827
      %6119 = vmatprep.subr.bf16.mxu0 0
      %6120 = vmatpush1.bf16.msra.mxu0 %v5828
      %6121 = vmatprep.subr.bf16.mxu0 0
      %6122 = vmatpush1.bf16.msra.mxu0 %v5829
      %6123 = vmatprep.subr.bf16.mxu0 0
      %6124 = vmatpush1.bf16.msra.mxu0 %v5830
      %6125 = vmatprep.subr.bf16.mxu0 0
      %6126 = vmatpush1.bf16.msra.mxu0 %v5831
      %6127 = vmatprep.subr.bf16.mxu0 0
      %6128 = vmatpush1.bf16.msra.mxu0 %v5832
      %6129 = vmatprep.subr.bf16.mxu0 0
      %6130 = vmatpush1.bf16.msra.mxu0 %v5833
      %6131 = vmatprep.subr.bf16.mxu0 0
      %6132 = vmatpush1.bf16.msra.mxu0 %v5834
      %6133 = vmatprep.subr.bf16.mxu0 0
      %6134 = vmatpush1.bf16.msra.mxu0 %v5835
      %6135 = vmatprep.subr.bf16.mxu0 0
      %6136 = vmatpush1.bf16.msra.mxu0 %v5836
      %6137 = vmatprep.subr.bf16.mxu0 0
      %6138 = vmatpush1.bf16.msra.mxu0 %v5837
      %6139 = vmatprep.subr.bf16.mxu0 0
      %6140 = vmatpush1.bf16.msra.mxu0 %v5838
      %6141 = vmatprep.subr.bf16.mxu0 0
      %6142 = vmatpush1.bf16.msra.mxu0 %v5839
      %6143 = vmatprep.mubr.bf16.mxu0 %v5498
      %6144 = vmatmul.mubr.bf16.gmra.mrb[0].mxu0 %v5497
      %v6145 = vpop.f32.mrb[0].mxu0
      %v6146 = vadd.f32 %v5969, %v6145
      %v6147 = vpop.f32.mrb[0].mxu0
      %v6148 = vpop.f32.mrb[0].mxu0
      %v6149 = vadd.f32 %v5972, %v6148
      %v6150 = vpop.f32.mrb[0].mxu0
      %6151 = vmatprep.mubr.bf16.mxu0 %v5503
      %6152 = vmatmul.mubr.bf16.gmra.mrb[0].mxu0 %v5502
      %v6153 = vpop.f32.mrb[0].mxu0
      %v6154 = vadd.f32 %v5977, %v6153
      %v6155 = vpop.f32.mrb[0].mxu0
      %v6156 = vpop.f32.mrb[0].mxu0
      %v6157 = vadd.f32 %v5980, %v6156
      %v6158 = vpop.f32.mrb[0].mxu0
      %6159 = vmatprep.mubr.bf16.mxu0 %v5508
      %6160 = vmatmul.mubr.bf16.gmra.mrb[0].mxu0 %v5507
      %v6161 = vpop.f32.mrb[0].mxu0
      %v6162 = vadd.f32 %v5985, %v6161
      %v6163 = vpop.f32.mrb[0].mxu0
      %v6164 = vpop.f32.mrb[0].mxu0
      %v6165 = vadd.f32 %v5988, %v6164
      %v6166 = vpop.f32.mrb[0].mxu0
      %6167 = vmatprep.mubr.bf16.mxu0 %v5513
      %6168 = vmatmul.mubr.bf16.gmra.mrb[0].mxu0 %v5512
      %v6169 = vpop.f32.mrb[0].mxu0
      %v6170 = vadd.f32 %v5993, %v6169
      %v6171 = vpop.f32.mrb[0].mxu0
      %v6172 = vpop.f32.mrb[0].mxu0
      %v6173 = vadd.f32 %v5996, %v6172
      %v6174 = vpop.f32.mrb[0].mxu0
      %6175 = vmatprep.mubr.bf16.mxu0 %v5518
      %6176 = vmatmul.mubr.bf16.gmra.mrb[0].mxu0 %v5517
      %v6177 = vpop.f32.mrb[0].mxu0
      %v6178 = vadd.f32 %v6001, %v6177
      %v6179 = vpop.f32.mrb[0].mxu0
      %v6180 = vpop.f32.mrb[0].mxu0
      %v6181 = vadd.f32 %v6004, %v6180
      %v6182 = vpop.f32.mrb[0].mxu0
      %6183 = vmatprep.mubr.bf16.mxu0 %v5523
      %6184 = vmatmul.mubr.bf16.gmra.mrb[0].mxu0 %v5522
      %v6185 = vpop.f32.mrb[0].mxu0
      %v6186 = vadd.f32 %v6009, %v6185
      %v6187 = vpop.f32.mrb[0].mxu0
      %v6188 = vpop.f32.mrb[0].mxu0
      %v6189 = vadd.f32 %v6012, %v6188
      %v6190 = vpop.f32.mrb[0].mxu0
      %6191 = vmatprep.mubr.bf16.mxu0 %v5528
      %6192 = vmatmul.mubr.bf16.gmra.mrb[0].mxu0 %v5527
      %v6193 = vpop.f32.mrb[0].mxu0
      %v6194 = vadd.f32 %v6017, %v6193
      %v6195 = vpop.f32.mrb[0].mxu0
      %v6196 = vpop.f32.mrb[0].mxu0
      %v6197 = vadd.f32 %v6020, %v6196
      %v6198 = vpop.f32.mrb[0].mxu0
      %6199 = vmatprep.mubr.bf16.mxu0 %v5533
      %6200 = vmatmul.mubr.bf16.gmra.mrb[0].mxu0 %v5532
      %v6201 = vpop.f32.mrb[0].mxu0
      %v6202 = vadd.f32 %v6025, %v6201
      %v6203 = vpop.f32.mrb[0].mxu0
      %v6204 = vpop.f32.mrb[0].mxu0
      %v6205 = vadd.f32 %v6028, %v6204
      %v6206 = vpop.f32.mrb[0].mxu0
      %6207 = vmatprep.mubr.bf16.mxu0 %v5538
      %6208 = vmatmul.mubr.bf16.gmra.mrb[0].mxu0 %v5537
      %v6209 = vpop.f32.mrb[0].mxu0
      %v6210 = vadd.f32 %v6033, %v6209
      %v6211 = vpop.f32.mrb[0].mxu0
      %v6212 = vpop.f32.mrb[0].mxu0
      %v6213 = vadd.f32 %v6036, %v6212
      %v6214 = vpop.f32.mrb[0].mxu0
      %6215 = vmatprep.mubr.bf16.mxu0 %v5543
      %6216 = vmatmul.mubr.bf16.gmra.mrb[0].mxu0 %v5542
      %v6217 = vpop.f32.mrb[0].mxu0
      %v6218 = vadd.f32 %v6041, %v6217
      %v6219 = vpop.f32.mrb[0].mxu0
      %v6220 = vpop.f32.mrb[0].mxu0
      %v6221 = vadd.f32 %v6044, %v6220
      %v6222 = vpop.f32.mrb[0].mxu0
      %6223 = vmatprep.mubr.bf16.mxu0 %v5548
      %6224 = vmatmul.mubr.bf16.gmra.mrb[0].mxu0 %v5547
      %v6225 = vpop.f32.mrb[0].mxu0
      %v6226 = vadd.f32 %v6049, %v6225
      %v6227 = vpop.f32.mrb[0].mxu0
      %v6228 = vpop.f32.mrb[0].mxu0
      %v6229 = vadd.f32 %v6052, %v6228
      %v6230 = vpop.f32.mrb[0].mxu0
      %6231 = vmatprep.mubr.bf16.mxu0 %v5553
      %6232 = vmatmul.mubr.bf16.gmra.mrb[0].mxu0 %v5552
      %v6233 = vpop.f32.mrb[0].mxu0
      %v6234 = vadd.f32 %v6057, %v6233
      %v6235 = vpop.f32.mrb[0].mxu0
      %v6236 = vpop.f32.mrb[0].mxu0
      %v6237 = vadd.f32 %v6060, %v6236
      %v6238 = vpop.f32.mrb[0].mxu0
      %6239 = vmatprep.mubr.bf16.mxu0 %v5558
      %6240 = vmatmul.mubr.bf16.gmra.mrb[0].mxu0 %v5557
      %v6241 = vpop.f32.mrb[0].mxu0
      %v6242 = vadd.f32 %v6065, %v6241
      %v6243 = vpop.f32.mrb[0].mxu0
      %v6244 = vpop.f32.mrb[0].mxu0
      %v6245 = vadd.f32 %v6068, %v6244
      %v6246 = vpop.f32.mrb[0].mxu0
      %6247 = vmatprep.mubr.bf16.mxu0 %v5563
      %6248 = vmatmul.mubr.bf16.gmra.mrb[0].mxu0 %v5562
      %v6249 = vpop.f32.mrb[0].mxu0
      %v6250 = vadd.f32 %v6073, %v6249
      %v6251 = vpop.f32.mrb[0].mxu0
      %v6252 = vpop.f32.mrb[0].mxu0
      %v6253 = vadd.f32 %v6076, %v6252
      %v6254 = vpop.f32.mrb[0].mxu0
      %6255 = vmatprep.mubr.bf16.mxu0 %v5568
      %6256 = vmatmul.mubr.bf16.gmra.mrb[0].mxu0 %v5567
      %v6257 = vpop.f32.mrb[0].mxu0
      %v6258 = vadd.f32 %v6081, %v6257
      %v6259 = vpop.f32.mrb[0].mxu0
      %v6260 = vpop.f32.mrb[0].mxu0
      %v6261 = vadd.f32 %v6084, %v6260
      %v6262 = vpop.f32.mrb[0].mxu0
      %6263 = vmatprep.mubr.bf16.mxu0 %v5573
      %6264 = vmatmul.mubr.bf16.gmra.mrb[0].mxu0 %v5572
      %v6265 = vpop.f32.mrb[0].mxu0
      %v6266 = vadd.f32 %v6089, %v6265
      %v6267 = vpop.f32.mrb[0].mxu0
      %v6268 = vpop.f32.mrb[0].mxu0
      %v6269 = vadd.f32 %v6092, %v6268
      %v6270 = vpop.f32.mrb[0].mxu0
      %6271 = vmatprep.mubr.bf16.mxu0 %v5578
      %6272 = vmatmul.mubr.bf16.gmra.mrb[0].mxu0 %v5577
      %v6273 = vpop.f32.mrb[0].mxu0
      %v6274 = vadd.f32 %v6097, %v6273
      %v6275 = vpop.f32.mrb[0].mxu0
      %v6276 = vpop.f32.mrb[0].mxu0
      %v6277 = vadd.f32 %v6100, %v6276
      %v6278 = vpop.f32.mrb[0].mxu0
      %6279 = vmatprep.mubr.bf16.mxu0 %v5583
      %6280 = vmatmul.mubr.bf16.gmra.mrb[0].mxu0 %v5582
      %v6281 = vpop.f32.mrb[0].mxu0
      %v6282 = vadd.f32 %v6105, %v6281
      %v6283 = vpop.f32.mrb[0].mxu0
      %v6284 = vpop.f32.mrb[0].mxu0
      %v6285 = vadd.f32 %v6108, %v6284
      %v6286 = vpop.f32.mrb[0].mxu0
      %6287 = vdwg.mxu0
      %6288 = vmatprep.subr.bf16.mxu0 0
      %6289 = vmatpush1.bf16.msra.mxu0 %v5840
      %6290 = vmatprep.subr.bf16.mxu0 0
      %6291 = vmatpush1.bf16.msra.mxu0 %v5841
      %6292 = vmatprep.subr.bf16.mxu0 0
      %6293 = vmatpush1.bf16.msra.mxu0 %v5842
      %6294 = vmatprep.subr.bf16.mxu0 0
      %6295 = vmatpush1.bf16.msra.mxu0 %v5843
      %6296 = vmatprep.subr.bf16.mxu0 0
      %6297 = vmatpush1.bf16.msra.mxu0 0
      %6298 = vmatprep.subr.bf16.mxu0 0
      %6299 = vmatpush1.bf16.msra.mxu0 0
      %6300 = vmatprep.subr.bf16.mxu0 0
      %6301 = vmatpush1.bf16.msra.mxu0 0
      %6302 = vmatprep.subr.bf16.mxu0 0
      %6303 = vmatpush1.bf16.msra.mxu0 0
      %6304 = vmatprep.subr.bf16.mxu0 0
      %6305 = vmatpush1.bf16.msra.mxu0 0
      %6306 = vmatprep.subr.bf16.mxu0 0
      %6307 = vmatpush1.bf16.msra.mxu0 0
      %6308 = vmatprep.subr.bf16.mxu0 0
      %6309 = vmatpush1.bf16.msra.mxu0 0
      %6310 = vmatprep.subr.bf16.mxu0 0
      %6311 = vmatpush1.bf16.msra.mxu0 0
      %6312 = vmatprep.subr.bf16.mxu0 0
      %6313 = vmatpush1.bf16.msra.mxu0 0
      %6314 = vmatprep.subr.bf16.mxu0 0
      %6315 = vmatpush1.bf16.msra.mxu0 0
      %6316 = vmatprep.subr.bf16.mxu0 0
      %6317 = vmatpush1.bf16.msra.mxu0 0
      %6318 = vmatprep.subr.bf16.mxu0 0
      %6319 = vmatpush1.bf16.msra.mxu0 0
      %6320 = vmatprep.mubr.bf16.mxu0 0
      %6321 = vmatmul.mubr.bf16.gmra.mrb[0].mxu0 %v5881
      %v6322 = vpop.f32.mrb[0].mxu0
      %v6323 = vadd.f32 %v6146, %v6322
      %v6324 = vpop.f32.mrb[0].mxu0
      %v6325 = vpop.f32.mrb[0].mxu0
      %v6326 = vadd.f32 %v6149, %v6325
      %v6327 = vpop.f32.mrb[0].mxu0
      %6328 = vmatprep.mubr.bf16.mxu0 0
      %6329 = vmatmul.mubr.bf16.gmra.mrb[0].mxu0 %v5884
      %v6330 = vpop.f32.mrb[0].mxu0
      %v6331 = vadd.f32 %v6154, %v6330
      %v6332 = vpop.f32.mrb[0].mxu0
      %v6333 = vpop.f32.mrb[0].mxu0
      %v6334 = vadd.f32 %v6157, %v6333
      %v6335 = vpop.f32.mrb[0].mxu0
      %6336 = vmatprep.mubr.bf16.mxu0 0
      %6337 = vmatmul.mubr.bf16.gmra.mrb[0].mxu0 %v5887
      %v6338 = vpop.f32.mrb[0].mxu0
      %v6339 = vadd.f32 %v6162, %v6338
      %v6340 = vpop.f32.mrb[0].mxu0
      %v6341 = vpop.f32.mrb[0].mxu0
      %v6342 = vadd.f32 %v6165, %v6341
      %v6343 = vpop.f32.mrb[0].mxu0
      %6344 = vmatprep.mubr.bf16.mxu0 0
      %6345 = vmatmul.mubr.bf16.gmra.mrb[0].mxu0 %v5890
      %v6346 = vpop.f32.mrb[0].mxu0
      %v6347 = vadd.f32 %v6170, %v6346
      %v6348 = vpop.f32.mrb[0].mxu0
      %v6349 = vpop.f32.mrb[0].mxu0
      %v6350 = vadd.f32 %v6173, %v6349
      %v6351 = vpop.f32.mrb[0].mxu0
      %6352 = vmatprep.mubr.bf16.mxu0 0
      %6353 = vmatmul.mubr.bf16.gmra.mrb[0].mxu0 %v5893
      %v6354 = vpop.f32.mrb[0].mxu0
      %v6355 = vadd.f32 %v6178, %v6354
      %v6356 = vpop.f32.mrb[0].mxu0
      %v6357 = vpop.f32.mrb[0].mxu0
      %v6358 = vadd.f32 %v6181, %v6357
      %v6359 = vpop.f32.mrb[0].mxu0
      %6360 = vmatprep.mubr.bf16.mxu0 0
      %6361 = vmatmul.mubr.bf16.gmra.mrb[0].mxu0 %v5896
      %v6362 = vpop.f32.mrb[0].mxu0
      %v6363 = vadd.f32 %v6186, %v6362
      %v6364 = vpop.f32.mrb[0].mxu0
      %v6365 = vpop.f32.mrb[0].mxu0
      %v6366 = vadd.f32 %v6189, %v6365
      %v6367 = vpop.f32.mrb[0].mxu0
      %6368 = vmatprep.mubr.bf16.mxu0 0
      %6369 = vmatmul.mubr.bf16.gmra.mrb[0].mxu0 %v5899
      %v6370 = vpop.f32.mrb[0].mxu0
      %v6371 = vadd.f32 %v6194, %v6370
      %v6372 = vpop.f32.mrb[0].mxu0
      %v6373 = vpop.f32.mrb[0].mxu0
      %v6374 = vadd.f32 %v6197, %v6373
      %v6375 = vpop.f32.mrb[0].mxu0
      %6376 = vmatprep.mubr.bf16.mxu0 0
      %6377 = vmatmul.mubr.bf16.gmra.mrb[0].mxu0 %v5902
      %v6378 = vpop.f32.mrb[0].mxu0
      %v6379 = vadd.f32 %v6202, %v6378
      %v6380 = vpop.f32.mrb[0].mxu0
      %v6381 = vpop.f32.mrb[0].mxu0
      %v6382 = vadd.f32 %v6205, %v6381
      %v6383 = vpop.f32.mrb[0].mxu0
      %6384 = vmatprep.mubr.bf16.mxu0 0
      %6385 = vmatmul.mubr.bf16.gmra.mrb[0].mxu0 %v5905
      %v6386 = vpop.f32.mrb[0].mxu0
      %v6387 = vadd.f32 %v6210, %v6386
      %v6388 = vpop.f32.mrb[0].mxu0
      %v6389 = vpop.f32.mrb[0].mxu0
      %v6390 = vadd.f32 %v6213, %v6389
      %v6391 = vpop.f32.mrb[0].mxu0
      %6392 = vmatprep.mubr.bf16.mxu0 0
      %6393 = vmatmul.mubr.bf16.gmra.mrb[0].mxu0 %v5908
      %v6394 = vpop.f32.mrb[0].mxu0
      %v6395 = vadd.f32 %v6218, %v6394
      %v6396 = vpop.f32.mrb[0].mxu0
      %v6397 = vpop.f32.mrb[0].mxu0
      %v6398 = vadd.f32 %v6221, %v6397
      %v6399 = vpop.f32.mrb[0].mxu0
      %6400 = vmatprep.mubr.bf16.mxu0 0
      %6401 = vmatmul.mubr.bf16.gmra.mrb[0].mxu0 %v5911
      %v6402 = vpop.f32.mrb[0].mxu0
      %v6403 = vadd.f32 %v6226, %v6402
      %v6404 = vpop.f32.mrb[0].mxu0
      %v6405 = vpop.f32.mrb[0].mxu0
      %v6406 = vadd.f32 %v6229, %v6405
      %v6407 = vpop.f32.mrb[0].mxu0
      %6408 = vmatprep.mubr.bf16.mxu0 0
      %6409 = vmatmul.mubr.bf16.gmra.mrb[0].mxu0 %v5914
      %v6410 = vpop.f32.mrb[0].mxu0
      %v6411 = vadd.f32 %v6234, %v6410
      %v6412 = vpop.f32.mrb[0].mxu0
      %v6413 = vpop.f32.mrb[0].mxu0
      %v6414 = vadd.f32 %v6237, %v6413
      %v6415 = vpop.f32.mrb[0].mxu0
      %6416 = vmatprep.mubr.bf16.mxu0 0
      %6417 = vmatmul.mubr.bf16.gmra.mrb[0].mxu0 %v5917
      %v6418 = vpop.f32.mrb[0].mxu0
      %v6419 = vadd.f32 %v6242, %v6418
      %v6420 = vpop.f32.mrb[0].mxu0
      %v6421 = vpop.f32.mrb[0].mxu0
      %v6422 = vadd.f32 %v6245, %v6421
      %v6423 = vpop.f32.mrb[0].mxu0
      %6424 = vmatprep.mubr.bf16.mxu0 0
      %6425 = vmatmul.mubr.bf16.gmra.mrb[0].mxu0 %v5920
      %v6426 = vpop.f32.mrb[0].mxu0
      %v6427 = vadd.f32 %v6250, %v6426
      %v6428 = vpop.f32.mrb[0].mxu0
      %v6429 = vpop.f32.mrb[0].mxu0
      %v6430 = vadd.f32 %v6253, %v6429
      %v6431 = vpop.f32.mrb[0].mxu0
      %6432 = vmatprep.mubr.bf16.mxu0 0
      %6433 = vmatmul.mubr.bf16.gmra.mrb[0].mxu0 %v5923
      %v6434 = vpop.f32.mrb[0].mxu0
      %v6435 = vadd.f32 %v6258, %v6434
      %v6436 = vpop.f32.mrb[0].mxu0
      %v6437 = vpop.f32.mrb[0].mxu0
      %v6438 = vadd.f32 %v6261, %v6437
      %v6439 = vpop.f32.mrb[0].mxu0
      %6440 = vmatprep.mubr.bf16.mxu0 0
      %6441 = vmatmul.mubr.bf16.gmra.mrb[0].mxu0 %v5926
      %v6442 = vpop.f32.mrb[0].mxu0
      %v6443 = vadd.f32 %v6266, %v6442
      %v6444 = vpop.f32.mrb[0].mxu0
      %v6445 = vpop.f32.mrb[0].mxu0
      %v6446 = vadd.f32 %v6269, %v6445
      %v6447 = vpop.f32.mrb[0].mxu0
      %6448 = vmatprep.mubr.bf16.mxu0 0
      %6449 = vmatmul.mubr.bf16.gmra.mrb[0].mxu0 %v5929
      %v6450 = vpop.f32.mrb[0].mxu0
      %v6451 = vadd.f32 %v6274, %v6450
      %v6452 = vpop.f32.mrb[0].mxu0
      %v6453 = vpop.f32.mrb[0].mxu0
      %v6454 = vadd.f32 %v6277, %v6453
      %v6455 = vpop.f32.mrb[0].mxu0
      %6456 = vmatprep.mubr.bf16.mxu0 0
      %6457 = vmatmul.mubr.bf16.gmra.mrb[0].mxu0 %v5932
      %v6458 = vpop.f32.mrb[0].mxu0
      %v6459 = vadd.f32 %v6282, %v6458
      %v6460 = vpop.f32.mrb[0].mxu0
      %v6461 = vpop.f32.mrb[0].mxu0
      %v6462 = vadd.f32 %v6285, %v6461
      %v6463 = vpop.f32.mrb[0].mxu0
      %6464 = vdwg.mxu0
      %v6465 = vmax.f32 %v6323, 0.0
      %v6466 = vmax.f32 %v6326, 0.0
      %v6467 = vmax.f32 %v6331, 0.0
      %v6468 = vmax.f32 %v6334, 0.0
      %v6469 = vmax.f32 %v6339, 0.0
      %v6470 = vmax.f32 %v6342, 0.0
      %v6471 = vmax.f32 %v6347, 0.0
      %v6472 = vmax.f32 %v6350, 0.0
      %v6473 = vmax.f32 %v6355, 0.0
      %v6474 = vmax.f32 %v6358, 0.0
      %v6475 = vmax.f32 %v6363, 0.0
      %v6476 = vmax.f32 %v6366, 0.0
      %v6477 = vmax.f32 %v6371, 0.0
      %v6478 = vmax.f32 %v6374, 0.0
      %v6479 = vmax.f32 %v6379, 0.0
      %v6480 = vmax.f32 %v6382, 0.0
      %v6481 = vmax.f32 %v6387, 0.0
      %v6482 = vmax.f32 %v6390, 0.0
      %v6483 = vmax.f32 %v6395, 0.0
      %v6484 = vmax.f32 %v6398, 0.0
      %v6485 = vmax.f32 %v6403, 0.0
      %v6486 = vmax.f32 %v6406, 0.0
      %v6487 = vmax.f32 %v6411, 0.0
      %v6488 = vmax.f32 %v6414, 0.0
      %v6489 = vmax.f32 %v6419, 0.0
      %v6490 = vmax.f32 %v6422, 0.0
      %v6491 = vmax.f32 %v6427, 0.0
      %v6492 = vmax.f32 %v6430, 0.0
      %v6493 = vmax.f32 %v6435, 0.0
      %v6494 = vmax.f32 %v6438, 0.0
      %v6495 = vmax.f32 %v6443, 0.0
      %v6496 = vmax.f32 %v6446, 0.0
      %v6497 = vmax.f32 %v6451, 0.0
      %v6498 = vmax.f32 %v6454, 0.0
      %v6499 = vmax.f32 %v6459, 0.0
      %v6500 = vmax.f32 %v6462, 0.0
      %v6501 = vmul.f32 %v6465, %v833
      %v6502 = vmul.f32 %v6466, %v838
      %v6503 = vmul.f32 %v6467, %v843
      %v6504 = vmul.f32 %v6468, %v848
      %v6505 = vmul.f32 %v6469, %v853
      %v6506 = vmul.f32 %v6470, %v858
      %v6507 = vmul.f32 %v6471, %v863
      %v6508 = vmul.f32 %v6472, %v868
      %v6509 = vmul.f32 %v6473, %v873
      %v6510 = vmul.f32 %v6474, %v878
      %v6511 = vmul.f32 %v6475, %v883
      %v6512 = vmul.f32 %v6476, %v888
      %v6513 = vmul.f32 %v6477, %v893
      %v6514 = vmul.f32 %v6478, %v898
      %v6515 = vmul.f32 %v6479, %v903
      %v6516 = vmul.f32 %v6480, %v908
      %v6517 = vmul.f32 %v6481, %v913
      %v6518 = vmul.f32 %v6482, %v918
      %v6519 = vmul.f32 %v6483, %v923
      %v6520 = vmul.f32 %v6484, %v928
      %v6521 = vmul.f32 %v6485, %v933
      %v6522 = vmul.f32 %v6486, %v938
      %v6523 = vmul.f32 %v6487, %v943
      %v6524 = vmul.f32 %v6488, %v948
      %v6525 = vmul.f32 %v6489, %v953
      %v6526 = vmul.f32 %v6490, %v958
      %v6527 = vmul.f32 %v6491, %v963
      %v6528 = vmul.f32 %v6492, %v968
      %v6529 = vmul.f32 %v6493, %v973
      %v6530 = vmul.f32 %v6494, %v978
      %v6531 = vmul.f32 %v6495, %v983
      %v6532 = vmul.f32 %v6496, %v988
      %v6533 = vmul.f32 %v6497, %v993
      %v6534 = vmul.f32 %v6498, %v998
      %v6535 = vmul.f32 %v6499, %v1003
      %v6536 = vmul.f32 %v6500, %v1008
      %v6537 = vpack.c.bf16 %v6502, %v6501
      %v6538 = vpack.c.bf16 %v6504, %v6503
      %v6539 = vpack.c.bf16 %v6506, %v6505
      %v6540 = vpack.c.bf16 %v6508, %v6507
      %v6541 = vpack.c.bf16 %v6510, %v6509
      %v6542 = vpack.c.bf16 %v6512, %v6511
      %v6543 = vpack.c.bf16 %v6514, %v6513
      %v6544 = vpack.c.bf16 %v6516, %v6515
      %v6545 = vpack.c.bf16 %v6518, %v6517
      %v6546 = vpack.c.bf16 %v6520, %v6519
      %v6547 = vpack.c.bf16 %v6522, %v6521
      %v6548 = vpack.c.bf16 %v6524, %v6523
      %v6549 = vpack.c.bf16 %v6526, %v6525
      %v6550 = vpack.c.bf16 %v6528, %v6527
      %v6551 = vpack.c.bf16 %v6530, %v6529
      %v6552 = vpack.c.bf16 %v6532, %v6531
      %v6553 = vpack.c.bf16 %v6534, %v6533
      %v6554 = vpack.c.bf16 %v6536, %v6535
      %6555 = vst.msk [vmem:[#allocation3 + $0x10] sm:$0xff] %vm402, %v6537
      %6556 = vst.msk [vmem:[#allocation3 + $0x18] sm:$0xff] %vm402, %v6538
      %6557 = vst.msk [vmem:[#allocation3 + $0x20] sm:$0xff] %vm402, %v6539
      %6558 = vst.msk [vmem:[#allocation3 + $0x28] sm:$0xff] %vm402, %v6540
      %6559 = vst.msk [vmem:[#allocation3 + $0x30] sm:$0xff] %vm402, %v6541
      %6560 = vst.msk [vmem:[#allocation3 + $0x38] sm:$0xff] %vm402, %v6542
      %6561 = vst.msk [vmem:[#allocation3 + $0x40] sm:$0xff] %vm402, %v6543
      %6562 = vst.msk [vmem:[#allocation3 + $0x48] sm:$0xff] %vm402, %v6544
      %6563 = vst.msk [vmem:[#allocation3 + $0x50] sm:$0xff] %vm402, %v6545
      %6564 = vst.msk [vmem:[#allocation3 + $0x58] sm:$0xff] %vm402, %v6546
      %6565 = vst.msk [vmem:[#allocation3 + $0x60] sm:$0xff] %vm402, %v6547
      %6566 = vst.msk [vmem:[#allocation3 + $0x68] sm:$0xff] %vm402, %v6548
      %6567 = vst.msk [vmem:[#allocation3 + $0x70] sm:$0xff] %vm402, %v6549
      %6568 = vst.msk [vmem:[#allocation3 + $0x78] sm:$0xff] %vm402, %v6550
      %6569 = vst.msk [vmem:[#allocation3 + $0x80] sm:$0xff] %vm402, %v6551
      %6570 = vst.msk [vmem:[#allocation3 + $0x88] sm:$0xff] %vm402, %v6552
      %6571 = vst.msk [vmem:[#allocation3 + $0x90] sm:$0xff] %vm402, %v6553
      %6572 = vst.msk [vmem:[#allocation3 + $0x98] sm:$0xff] %vm402, %v6554
      %v6573 = vld [vmem:[#allocation3] sm:$0xc0]
      %v6574 = vld [vmem:[#allocation3 + $0x8] sm:$0xff]
      %v6575 = vld [vmem:[#allocation3 + $0x10] sm:$0xff]
      %v6576 = vld [vmem:[#allocation3 + $0x18] sm:$0xff]
      %v6577 = vld [vmem:[#allocation3 + $0x20] sm:$0xff]
      %v6578 = vld [vmem:[#allocation3 + $0x28] sm:$0xff]
      %v6579 = vld [vmem:[#allocation3 + $0x30] sm:$0xff]
      %v6580 = vld [vmem:[#allocation3 + $0x38] sm:$0xff]
      %v6581 = vld [vmem:[#allocation3 + $0x40] sm:$0xff]
      %v6582 = vld [vmem:[#allocation3 + $0x48] sm:$0xff]
      %v6583 = vld [vmem:[#allocation3 + $0x50] sm:$0xff]
      %v6584 = vld [vmem:[#allocation3 + $0x58] sm:$0xff]
      %v6585 = vld [vmem:[#allocation3 + $0x60] sm:$0xff]
      %v6586 = vld [vmem:[#allocation3 + $0x68] sm:$0xff]
      %v6587 = vld [vmem:[#allocation3 + $0x70] sm:$0xff]
      %v6588 = vld [vmem:[#allocation3 + $0x78] sm:$0xff]
      %v6589 = vld [vmem:[#allocation3 + $0x80] sm:$0xff]
      %v6590 = vld [vmem:[#allocation3 + $0x88] sm:$0xff]
      %v6591 = vld [vmem:[#allocation3 + $0x90] sm:$0x7f]
      %v6593 = vshrl.u32 %v6573, 16
      %v6595 = vrot.slane %v6593, 6
      %v6596 = vshll.u32 %v6573, 16
      %v6598 = vrot.slane %v6596, 7
      %v6599 = vor.u32 %v6595, %v6598
      %v6601 = vshrl.u32 %v6574, 16
      %v6603 = vrot.slane %v6601, 6
      %v6604 = vshll.u32 %v6574, 16
      %v6606 = vrot.slane %v6604, 7
      %v6607 = vor.u32 %v6603, %v6606
      %v6608 = vsel %vm1101, %v6599, %v6607
      %v6610 = vshrl.u32 %v6575, 16
      %v6612 = vrot.slane %v6610, 6
      %v6613 = vshll.u32 %v6575, 16
      %v6615 = vrot.slane %v6613, 7
      %v6616 = vor.u32 %v6612, %v6615
      %v6617 = vsel %vm1101, %v6607, %v6616
      %v6619 = vshrl.u32 %v6576, 16
      %v6621 = vrot.slane %v6619, 6
      %v6622 = vshll.u32 %v6576, 16
      %v6624 = vrot.slane %v6622, 7
      %v6625 = vor.u32 %v6621, %v6624
      %v6626 = vsel %vm1101, %v6616, %v6625
      %v6628 = vshrl.u32 %v6577, 16
      %v6630 = vrot.slane %v6628, 6
      %v6631 = vshll.u32 %v6577, 16
      %v6633 = vrot.slane %v6631, 7
      %v6634 = vor.u32 %v6630, %v6633
      %v6635 = vsel %vm1101, %v6625, %v6634
      %v6637 = vshrl.u32 %v6578, 16
      %v6639 = vrot.slane %v6637, 6
      %v6640 = vshll.u32 %v6578, 16
      %v6642 = vrot.slane %v6640, 7
      %v6643 = vor.u32 %v6639, %v6642
      %v6644 = vsel %vm1101, %v6634, %v6643
      %v6646 = vshrl.u32 %v6579, 16
      %v6648 = vrot.slane %v6646, 6
      %v6649 = vshll.u32 %v6579, 16
      %v6651 = vrot.slane %v6649, 7
      %v6652 = vor.u32 %v6648, %v6651
      %v6653 = vsel %vm1101, %v6643, %v6652
      %v6655 = vshrl.u32 %v6580, 16
      %v6657 = vrot.slane %v6655, 6
      %v6658 = vshll.u32 %v6580, 16
      %v6660 = vrot.slane %v6658, 7
      %v6661 = vor.u32 %v6657, %v6660
      %v6662 = vsel %vm1101, %v6652, %v6661
      %v6664 = vshrl.u32 %v6581, 16
      %v6666 = vrot.slane %v6664, 6
      %v6667 = vshll.u32 %v6581, 16
      %v6669 = vrot.slane %v6667, 7
      %v6670 = vor.u32 %v6666, %v6669
      %v6671 = vsel %vm1101, %v6661, %v6670
      %v6673 = vshrl.u32 %v6582, 16
      %v6675 = vrot.slane %v6673, 6
      %v6676 = vshll.u32 %v6582, 16
      %v6678 = vrot.slane %v6676, 7
      %v6679 = vor.u32 %v6675, %v6678
      %v6680 = vsel %vm1101, %v6670, %v6679
      %v6682 = vshrl.u32 %v6583, 16
      %v6684 = vrot.slane %v6682, 6
      %v6685 = vshll.u32 %v6583, 16
      %v6687 = vrot.slane %v6685, 7
      %v6688 = vor.u32 %v6684, %v6687
      %v6689 = vsel %vm1101, %v6679, %v6688
      %v6691 = vshrl.u32 %v6584, 16
      %v6693 = vrot.slane %v6691, 6
      %v6694 = vshll.u32 %v6584, 16
      %v6696 = vrot.slane %v6694, 7
      %v6697 = vor.u32 %v6693, %v6696
      %v6698 = vsel %vm1101, %v6688, %v6697
      %v6700 = vshrl.u32 %v6585, 16
      %v6702 = vrot.slane %v6700, 6
      %v6703 = vshll.u32 %v6585, 16
      %v6705 = vrot.slane %v6703, 7
      %v6706 = vor.u32 %v6702, %v6705
      %v6707 = vsel %vm1101, %v6697, %v6706
      %v6709 = vshrl.u32 %v6586, 16
      %v6711 = vrot.slane %v6709, 6
      %v6712 = vshll.u32 %v6586, 16
      %v6714 = vrot.slane %v6712, 7
      %v6715 = vor.u32 %v6711, %v6714
      %v6716 = vsel %vm1101, %v6706, %v6715
      %v6718 = vshrl.u32 %v6587, 16
      %v6720 = vrot.slane %v6718, 6
      %v6721 = vshll.u32 %v6587, 16
      %v6723 = vrot.slane %v6721, 7
      %v6724 = vor.u32 %v6720, %v6723
      %v6725 = vsel %vm1101, %v6715, %v6724
      %v6727 = vshrl.u32 %v6588, 16
      %v6729 = vrot.slane %v6727, 6
      %v6730 = vshll.u32 %v6588, 16
      %v6732 = vrot.slane %v6730, 7
      %v6733 = vor.u32 %v6729, %v6732
      %v6734 = vsel %vm1101, %v6724, %v6733
      %v6736 = vshrl.u32 %v6589, 16
      %v6738 = vrot.slane %v6736, 6
      %v6739 = vshll.u32 %v6589, 16
      %v6741 = vrot.slane %v6739, 7
      %v6742 = vor.u32 %v6738, %v6741
      %v6743 = vsel %vm1101, %v6733, %v6742
      %v6745 = vshrl.u32 %v6590, 16
      %v6747 = vrot.slane %v6745, 6
      %v6748 = vshll.u32 %v6590, 16
      %v6750 = vrot.slane %v6748, 7
      %v6751 = vor.u32 %v6747, %v6750
      %v6752 = vsel %vm1101, %v6742, %v6751
      %v6754 = vshrl.u32 %v6591, 16
      %v6756 = vrot.slane %v6754, 6
      %v6757 = vshll.u32 %v6591, 16
      %v6759 = vrot.slane %v6757, 7
      %v6760 = vor.u32 %v6756, %v6759
      %v6761 = vsel %vm1101, %v6751, %v6760
      %6780 = vst.msk [vmem:[#allocation4] sm:$0xff] %vm402, %v6608
      %6781 = vst.msk [vmem:[#allocation4 + $0x28] sm:$0xff] %vm402, %v6617
      %6782 = vst.msk [vmem:[#allocation4 + $0x50] sm:$0xff] %vm402, %v6626
      %6783 = vst.msk [vmem:[#allocation4 + $0x78] sm:$0xff] %vm402, %v6635
      %6784 = vst.msk [vmem:[#allocation4 + $0xa0] sm:$0xff] %vm402, %v6644
      %6785 = vst.msk [vmem:[#allocation4 + $0xc8] sm:$0xff] %vm402, %v6653
      %6786 = vst.msk [vmem:[#allocation4 + $0xf0] sm:$0xff] %vm402, %v6662
      %6787 = vst.msk [vmem:[#allocation4 + $0x118] sm:$0xff] %vm402, %v6671
      %6788 = vst.msk [vmem:[#allocation4 + $0x140] sm:$0xff] %vm402, %v6680
      %6789 = vst.msk [vmem:[#allocation4 + $0x168] sm:$0xff] %vm402, %v6689
      %6790 = vst.msk [vmem:[#allocation4 + $0x190] sm:$0xff] %vm402, %v6698
      %6791 = vst.msk [vmem:[#allocation4 + $0x1b8] sm:$0xff] %vm402, %v6707
      %6792 = vst.msk [vmem:[#allocation4 + $0x1e0] sm:$0xff] %vm402, %v6716
      %6793 = vst.msk [vmem:[#allocation4 + $0x208] sm:$0xff] %vm402, %v6725
      %6794 = vst.msk [vmem:[#allocation4 + $0x230] sm:$0xff] %vm402, %v6734
      %6795 = vst.msk [vmem:[#allocation4 + $0x258] sm:$0xff] %vm402, %v6743
      %6796 = vst.msk [vmem:[#allocation4 + $0x280] sm:$0xff] %vm402, %v6752
      %6797 = vst.msk [vmem:[#allocation4 + $0x2a8] sm:$0xff] %vm402, %v6761
      %v6798 = vld [vmem:[#allocation3] sm:$0x80]
      %v6799 = vld [vmem:[#allocation3 + $0x8] sm:$0xff]
      %v6800 = vld [vmem:[#allocation3 + $0x10] sm:$0xff]
      %v6801 = vld [vmem:[#allocation3 + $0x18] sm:$0xff]
      %v6802 = vld [vmem:[#allocation3 + $0x20] sm:$0xff]
      %v6803 = vld [vmem:[#allocation3 + $0x28] sm:$0xff]
      %v6804 = vld [vmem:[#allocation3 + $0x30] sm:$0xff]
      %v6805 = vld [vmem:[#allocation3 + $0x38] sm:$0xff]
      %v6806 = vld [vmem:[#allocation3 + $0x40] sm:$0xff]
      %v6807 = vld [vmem:[#allocation3 + $0x48] sm:$0xff]
      %v6808 = vld [vmem:[#allocation3 + $0x50] sm:$0xff]
      %v6809 = vld [vmem:[#allocation3 + $0x58] sm:$0xff]
      %v6810 = vld [vmem:[#allocation3 + $0x60] sm:$0xff]
      %v6811 = vld [vmem:[#allocation3 + $0x68] sm:$0xff]
      %v6812 = vld [vmem:[#allocation3 + $0x70] sm:$0xff]
      %v6813 = vld [vmem:[#allocation3 + $0x78] sm:$0xff]
      %v6814 = vld [vmem:[#allocation3 + $0x80] sm:$0xff]
      %v6815 = vld [vmem:[#allocation3 + $0x88] sm:$0xff]
      %v6816 = vld [vmem:[#allocation3 + $0x90] sm:$0x7f]
      %v6836 = vrot.slane %v6798, 7
      %v6837 = vrot.slane %v6799, 7
      %v6838 = vsel %vm1346, %v6836, %v6837
      %v6839 = vrot.slane %v6800, 7
      %v6840 = vsel %vm1346, %v6837, %v6839
      %v6841 = vrot.slane %v6801, 7
      %v6842 = vsel %vm1346, %v6839, %v6841
      %v6843 = vrot.slane %v6802, 7
      %v6844 = vsel %vm1346, %v6841, %v6843
      %v6845 = vrot.slane %v6803, 7
      %v6846 = vsel %vm1346, %v6843, %v6845
      %v6847 = vrot.slane %v6804, 7
      %v6848 = vsel %vm1346, %v6845, %v6847
      %v6849 = vrot.slane %v6805, 7
      %v6850 = vsel %vm1346, %v6847, %v6849
      %v6851 = vrot.slane %v6806, 7
      %v6852 = vsel %vm1346, %v6849, %v6851
      %v6853 = vrot.slane %v6807, 7
      %v6854 = vsel %vm1346, %v6851, %v6853
      %v6855 = vrot.slane %v6808, 7
      %v6856 = vsel %vm1346, %v6853, %v6855
      %v6857 = vrot.slane %v6809, 7
      %v6858 = vsel %vm1346, %v6855, %v6857
      %v6859 = vrot.slane %v6810, 7
      %v6860 = vsel %vm1346, %v6857, %v6859
      %v6861 = vrot.slane %v6811, 7
      %v6862 = vsel %vm1346, %v6859, %v6861
      %v6863 = vrot.slane %v6812, 7
      %v6864 = vsel %vm1346, %v6861, %v6863
      %v6865 = vrot.slane %v6813, 7
      %v6866 = vsel %vm1346, %v6863, %v6865
      %v6867 = vrot.slane %v6814, 7
      %v6868 = vsel %vm1346, %v6865, %v6867
      %v6869 = vrot.slane %v6815, 7
      %v6870 = vsel %vm1346, %v6867, %v6869
      %v6871 = vrot.slane %v6816, 7
      %v6872 = vsel %vm1346, %v6869, %v6871
      %6873 = vrot.lane.b32.xlu0 %v6838, 32
      %v6874 = vpop.permute.xlu0 %6873
      %6875 = vrot.lane.b32.xlu0 %v6840, 32
      %v6876 = vpop.permute.xlu0 %6875
      %6877 = vrot.lane.b32.xlu0 %v6842, 32
      %v6878 = vpop.permute.xlu0 %6877
      %6879 = vrot.lane.b32.xlu0 %v6844, 32
      %v6880 = vpop.permute.xlu0 %6879
      %6881 = vrot.lane.b32.xlu0 %v6846, 32
      %v6882 = vpop.permute.xlu0 %6881
      %6883 = vrot.lane.b32.xlu0 %v6848, 32
      %v6884 = vpop.permute.xlu0 %6883
      %6885 = vrot.lane.b32.xlu0 %v6850, 32
      %v6886 = vpop.permute.xlu0 %6885
      %6887 = vrot.lane.b32.xlu0 %v6852, 32
      %v6888 = vpop.permute.xlu0 %6887
      %6889 = vrot.lane.b32.xlu0 %v6854, 32
      %v6890 = vpop.permute.xlu0 %6889
      %6891 = vrot.lane.b32.xlu0 %v6856, 32
      %v6892 = vpop.permute.xlu0 %6891
      %6893 = vrot.lane.b32.xlu0 %v6858, 32
      %v6894 = vpop.permute.xlu0 %6893
      %6895 = vrot.lane.b32.xlu0 %v6860, 32
      %v6896 = vpop.permute.xlu0 %6895
      %6897 = vrot.lane.b32.xlu0 %v6862, 32
      %v6898 = vpop.permute.xlu0 %6897
      %6899 = vrot.lane.b32.xlu0 %v6864, 32
      %v6900 = vpop.permute.xlu0 %6899
      %6901 = vrot.lane.b32.xlu0 %v6866, 32
      %v6902 = vpop.permute.xlu0 %6901
      %6903 = vrot.lane.b32.xlu0 %v6868, 32
      %v6904 = vpop.permute.xlu0 %6903
      %6905 = vrot.lane.b32.xlu0 %v6870, 32
      %v6906 = vpop.permute.xlu0 %6905
      %6907 = vrot.lane.b32.xlu0 %v6872, 32
      %v6908 = vpop.permute.xlu0 %6907
      %vm6927 = vcmask 523520
      %6928 = vst.msk [vmem:[#allocation4] sm:$0xff] %vm6927, %v6874
      %6929 = vst.msk [vmem:[#allocation4 + $0x28] sm:$0xff] %vm6927, %v6876
      %6930 = vst.msk [vmem:[#allocation4 + $0x50] sm:$0xff] %vm6927, %v6878
      %6931 = vst.msk [vmem:[#allocation4 + $0x78] sm:$0xff] %vm6927, %v6880
      %6932 = vst.msk [vmem:[#allocation4 + $0xa0] sm:$0xff] %vm6927, %v6882
      %6933 = vst.msk [vmem:[#allocation4 + $0xc8] sm:$0xff] %vm6927, %v6884
      %6934 = vst.msk [vmem:[#allocation4 + $0xf0] sm:$0xff] %vm6927, %v6886
      %6935 = vst.msk [vmem:[#allocation4 + $0x118] sm:$0xff] %vm6927, %v6888
      %6936 = vst.msk [vmem:[#allocation4 + $0x140] sm:$0xff] %vm6927, %v6890
      %6937 = vst.msk [vmem:[#allocation4 + $0x168] sm:$0xff] %vm6927, %v6892
      %6938 = vst.msk [vmem:[#allocation4 + $0x190] sm:$0xff] %vm6927, %v6894
      %6939 = vst.msk [vmem:[#allocation4 + $0x1b8] sm:$0xff] %vm6927, %v6896
      %6940 = vst.msk [vmem:[#allocation4 + $0x1e0] sm:$0xff] %vm6927, %v6898
      %6941 = vst.msk [vmem:[#allocation4 + $0x208] sm:$0xff] %vm6927, %v6900
      %6942 = vst.msk [vmem:[#allocation4 + $0x230] sm:$0xff] %vm6927, %v6902
      %6943 = vst.msk [vmem:[#allocation4 + $0x258] sm:$0xff] %vm6927, %v6904
      %6944 = vst.msk [vmem:[#allocation4 + $0x280] sm:$0xff] %vm6927, %v6906
      %6945 = vst.msk [vmem:[#allocation4 + $0x2a8] sm:$0xff] %vm6927, %v6908
      %v6946 = vld [vmem:[#allocation3] sm:$0x80]
      %v6947 = vld [vmem:[#allocation3 + $0x8] sm:$0xff]
      %v6948 = vld [vmem:[#allocation3 + $0x10] sm:$0xff]
      %v6949 = vld [vmem:[#allocation3 + $0x18] sm:$0xff]
      %v6950 = vld [vmem:[#allocation3 + $0x20] sm:$0xff]
      %v6951 = vld [vmem:[#allocation3 + $0x28] sm:$0xff]
      %v6952 = vld [vmem:[#allocation3 + $0x30] sm:$0xff]
      %v6953 = vld [vmem:[#allocation3 + $0x38] sm:$0xff]
      %v6954 = vld [vmem:[#allocation3 + $0x40] sm:$0xff]
      %v6955 = vld [vmem:[#allocation3 + $0x48] sm:$0xff]
      %v6956 = vld [vmem:[#allocation3 + $0x50] sm:$0xff]
      %v6957 = vld [vmem:[#allocation3 + $0x58] sm:$0xff]
      %v6958 = vld [vmem:[#allocation3 + $0x60] sm:$0xff]
      %v6959 = vld [vmem:[#allocation3 + $0x68] sm:$0xff]
      %v6960 = vld [vmem:[#allocation3 + $0x70] sm:$0xff]
      %v6961 = vld [vmem:[#allocation3 + $0x78] sm:$0xff]
      %v6962 = vld [vmem:[#allocation3 + $0x80] sm:$0xff]
      %v6963 = vld [vmem:[#allocation3 + $0x88] sm:$0xff]
      %v6964 = vld [vmem:[#allocation3 + $0x90] sm:$0xff]
      %v6966 = vshrl.u32 %v6946, 16
      %v6968 = vrot.slane %v6966, 7
      %v6970 = vshrl.u32 %v6947, 16
      %v6972 = vrot.slane %v6970, 7
      %v6973 = vshll.u32 %v6947, 16
      %v6975 = vor.u32 %v6972, %v6973
      %v6976 = vsel %vm1476, %v6968, %v6975
      %v6978 = vshrl.u32 %v6948, 16
      %v6980 = vrot.slane %v6978, 7
      %v6981 = vshll.u32 %v6948, 16
      %v6983 = vor.u32 %v6980, %v6981
      %v6984 = vsel %vm1476, %v6972, %v6983
      %v6986 = vshrl.u32 %v6949, 16
      %v6988 = vrot.slane %v6986, 7
      %v6989 = vshll.u32 %v6949, 16
      %v6991 = vor.u32 %v6988, %v6989
      %v6992 = vsel %vm1476, %v6980, %v6991
      %v6994 = vshrl.u32 %v6950, 16
      %v6996 = vrot.slane %v6994, 7
      %v6997 = vshll.u32 %v6950, 16
      %v6999 = vor.u32 %v6996, %v6997
      %v7000 = vsel %vm1476, %v6988, %v6999
      %v7002 = vshrl.u32 %v6951, 16
      %v7004 = vrot.slane %v7002, 7
      %v7005 = vshll.u32 %v6951, 16
      %v7007 = vor.u32 %v7004, %v7005
      %v7008 = vsel %vm1476, %v6996, %v7007
      %v7010 = vshrl.u32 %v6952, 16
      %v7012 = vrot.slane %v7010, 7
      %v7013 = vshll.u32 %v6952, 16
      %v7015 = vor.u32 %v7012, %v7013
      %v7016 = vsel %vm1476, %v7004, %v7015
      %v7018 = vshrl.u32 %v6953, 16
      %v7020 = vrot.slane %v7018, 7
      %v7021 = vshll.u32 %v6953, 16
      %v7023 = vor.u32 %v7020, %v7021
      %v7024 = vsel %vm1476, %v7012, %v7023
      %v7026 = vshrl.u32 %v6954, 16
      %v7028 = vrot.slane %v7026, 7
      %v7029 = vshll.u32 %v6954, 16
      %v7031 = vor.u32 %v7028, %v7029
      %v7032 = vsel %vm1476, %v7020, %v7031
      %v7034 = vshrl.u32 %v6955, 16
      %v7036 = vrot.slane %v7034, 7
      %v7037 = vshll.u32 %v6955, 16
      %v7039 = vor.u32 %v7036, %v7037
      %v7040 = vsel %vm1476, %v7028, %v7039
      %v7042 = vshrl.u32 %v6956, 16
      %v7044 = vrot.slane %v7042, 7
      %v7045 = vshll.u32 %v6956, 16
      %v7047 = vor.u32 %v7044, %v7045
      %v7048 = vsel %vm1476, %v7036, %v7047
      %v7050 = vshrl.u32 %v6957, 16
      %v7052 = vrot.slane %v7050, 7
      %v7053 = vshll.u32 %v6957, 16
      %v7055 = vor.u32 %v7052, %v7053
      %v7056 = vsel %vm1476, %v7044, %v7055
      %v7058 = vshrl.u32 %v6958, 16
      %v7060 = vrot.slane %v7058, 7
      %v7061 = vshll.u32 %v6958, 16
      %v7063 = vor.u32 %v7060, %v7061
      %v7064 = vsel %vm1476, %v7052, %v7063
      %v7066 = vshrl.u32 %v6959, 16
      %v7068 = vrot.slane %v7066, 7
      %v7069 = vshll.u32 %v6959, 16
      %v7071 = vor.u32 %v7068, %v7069
      %v7072 = vsel %vm1476, %v7060, %v7071
      %v7074 = vshrl.u32 %v6960, 16
      %v7076 = vrot.slane %v7074, 7
      %v7077 = vshll.u32 %v6960, 16
      %v7079 = vor.u32 %v7076, %v7077
      %v7080 = vsel %vm1476, %v7068, %v7079
      %v7082 = vshrl.u32 %v6961, 16
      %v7084 = vrot.slane %v7082, 7
      %v7085 = vshll.u32 %v6961, 16
      %v7087 = vor.u32 %v7084, %v7085
      %v7088 = vsel %vm1476, %v7076, %v7087
      %v7090 = vshrl.u32 %v6962, 16
      %v7092 = vrot.slane %v7090, 7
      %v7093 = vshll.u32 %v6962, 16
      %v7095 = vor.u32 %v7092, %v7093
      %v7096 = vsel %vm1476, %v7084, %v7095
      %v7098 = vshrl.u32 %v6963, 16
      %v7100 = vrot.slane %v7098, 7
      %v7101 = vshll.u32 %v6963, 16
      %v7103 = vor.u32 %v7100, %v7101
      %v7104 = vsel %vm1476, %v7092, %v7103
      %v7106 = vshrl.u32 %v6964, 16
      %v7108 = vrot.slane %v7106, 7
      %v7109 = vshll.u32 %v6964, 16
      %v7111 = vor.u32 %v7108, %v7109
      %v7112 = vsel %vm1476, %v7100, %v7111
      %7113 = vrot.lane.b32.xlu0 %v6976, 64
      %v7114 = vpop.permute.xlu0 %7113
      %7115 = vrot.lane.b32.xlu0 %v6984, 64
      %v7116 = vpop.permute.xlu0 %7115
      %7117 = vrot.lane.b32.xlu0 %v6992, 64
      %v7118 = vpop.permute.xlu0 %7117
      %7119 = vrot.lane.b32.xlu0 %v7000, 64
      %v7120 = vpop.permute.xlu0 %7119
      %7121 = vrot.lane.b32.xlu0 %v7008, 64
      %v7122 = vpop.permute.xlu0 %7121
      %7123 = vrot.lane.b32.xlu0 %v7016, 64
      %v7124 = vpop.permute.xlu0 %7123
      %7125 = vrot.lane.b32.xlu0 %v7024, 64
      %v7126 = vpop.permute.xlu0 %7125
      %7127 = vrot.lane.b32.xlu0 %v7032, 64
      %v7128 = vpop.permute.xlu0 %7127
      %7129 = vrot.lane.b32.xlu0 %v7040, 64
      %v7130 = vpop.permute.xlu0 %7129
      %7131 = vrot.lane.b32.xlu0 %v7048, 64
      %v7132 = vpop.permute.xlu0 %7131
      %7133 = vrot.lane.b32.xlu0 %v7056, 64
      %v7134 = vpop.permute.xlu0 %7133
      %7135 = vrot.lane.b32.xlu0 %v7064, 64
      %v7136 = vpop.permute.xlu0 %7135
      %7137 = vrot.lane.b32.xlu0 %v7072, 64
      %v7138 = vpop.permute.xlu0 %7137
      %7139 = vrot.lane.b32.xlu0 %v7080, 64
      %v7140 = vpop.permute.xlu0 %7139
      %7141 = vrot.lane.b32.xlu0 %v7088, 64
      %v7142 = vpop.permute.xlu0 %7141
      %7143 = vrot.lane.b32.xlu0 %v7096, 64
      %v7144 = vpop.permute.xlu0 %7143
      %7145 = vrot.lane.b32.xlu0 %v7104, 64
      %v7146 = vpop.permute.xlu0 %7145
      %7147 = vrot.lane.b32.xlu0 %v7112, 64
      %v7148 = vpop.permute.xlu0 %7147
      %vm7167 = vcmask 785920
      %7168 = vst.msk [vmem:[#allocation4] sm:$0xff] %vm7167, %v7114
      %7169 = vst.msk [vmem:[#allocation4 + $0x28] sm:$0xff] %vm7167, %v7116
      %7170 = vst.msk [vmem:[#allocation4 + $0x50] sm:$0xff] %vm7167, %v7118
      %7171 = vst.msk [vmem:[#allocation4 + $0x78] sm:$0xff] %vm7167, %v7120
      %7172 = vst.msk [vmem:[#allocation4 + $0xa0] sm:$0xff] %vm7167, %v7122
      %7173 = vst.msk [vmem:[#allocation4 + $0xc8] sm:$0xff] %vm7167, %v7124
      %7174 = vst.msk [vmem:[#allocation4 + $0xf0] sm:$0xff] %vm7167, %v7126
      %7175 = vst.msk [vmem:[#allocation4 + $0x118] sm:$0xff] %vm7167, %v7128
      %7176 = vst.msk [vmem:[#allocation4 + $0x140] sm:$0xff] %vm7167, %v7130
      %7177 = vst.msk [vmem:[#allocation4 + $0x168] sm:$0xff] %vm7167, %v7132
      %7178 = vst.msk [vmem:[#allocation4 + $0x190] sm:$0xff] %vm7167, %v7134
      %7179 = vst.msk [vmem:[#allocation4 + $0x1b8] sm:$0xff] %vm7167, %v7136
      %7180 = vst.msk [vmem:[#allocation4 + $0x1e0] sm:$0xff] %vm7167, %v7138
      %7181 = vst.msk [vmem:[#allocation4 + $0x208] sm:$0xff] %vm7167, %v7140
      %7182 = vst.msk [vmem:[#allocation4 + $0x230] sm:$0xff] %vm7167, %v7142
      %7183 = vst.msk [vmem:[#allocation4 + $0x258] sm:$0xff] %vm7167, %v7144
      %7184 = vst.msk [vmem:[#allocation4 + $0x280] sm:$0xff] %vm7167, %v7146
      %7185 = vst.msk [vmem:[#allocation4 + $0x2a8] sm:$0xff] %vm7167, %v7148
      %v7186 = vld [vmem:[#allocation3 + $0x8] sm:$0x80]
      %v7187 = vld [vmem:[#allocation3 + $0x10] sm:$0xff]
      %v7188 = vld [vmem:[#allocation3 + $0x18] sm:$0xff]
      %v7189 = vld [vmem:[#allocation3 + $0x20] sm:$0xff]
      %v7190 = vld [vmem:[#allocation3 + $0x28] sm:$0xff]
      %v7191 = vld [vmem:[#allocation3 + $0x30] sm:$0xff]
      %v7192 = vld [vmem:[#allocation3 + $0x38] sm:$0xff]
      %v7193 = vld [vmem:[#allocation3 + $0x40] sm:$0xff]
      %v7194 = vld [vmem:[#allocation3 + $0x48] sm:$0xff]
      %v7195 = vld [vmem:[#allocation3 + $0x50] sm:$0xff]
      %v7196 = vld [vmem:[#allocation3 + $0x58] sm:$0xff]
      %v7197 = vld [vmem:[#allocation3 + $0x60] sm:$0xff]
      %v7198 = vld [vmem:[#allocation3 + $0x68] sm:$0xff]
      %v7199 = vld [vmem:[#allocation3 + $0x70] sm:$0xff]
      %v7200 = vld [vmem:[#allocation3 + $0x78] sm:$0xff]
      %v7201 = vld [vmem:[#allocation3 + $0x80] sm:$0xff]
      %v7202 = vld [vmem:[#allocation3 + $0x88] sm:$0xff]
      %v7203 = vld [vmem:[#allocation3 + $0x90] sm:$0xff]
      %v7204 = vld [vmem:[#allocation3 + $0x98] sm:$0xff]
      %v7206 = vshrl.u32 %v7186, 16
      %v7208 = vrot.slane %v7206, 7
      %v7210 = vshrl.u32 %v7187, 16
      %v7212 = vrot.slane %v7210, 7
      %v7213 = vshll.u32 %v7187, 16
      %v7215 = vor.u32 %v7212, %v7213
      %v7216 = vsel %vm1476, %v7208, %v7215
      %v7218 = vshrl.u32 %v7188, 16
      %v7220 = vrot.slane %v7218, 7
      %v7221 = vshll.u32 %v7188, 16
      %v7223 = vor.u32 %v7220, %v7221
      %v7224 = vsel %vm1476, %v7212, %v7223
      %v7226 = vshrl.u32 %v7189, 16
      %v7228 = vrot.slane %v7226, 7
      %v7229 = vshll.u32 %v7189, 16
      %v7231 = vor.u32 %v7228, %v7229
      %v7232 = vsel %vm1476, %v7220, %v7231
      %v7234 = vshrl.u32 %v7190, 16
      %v7236 = vrot.slane %v7234, 7
      %v7237 = vshll.u32 %v7190, 16
      %v7239 = vor.u32 %v7236, %v7237
      %v7240 = vsel %vm1476, %v7228, %v7239
      %v7242 = vshrl.u32 %v7191, 16
      %v7244 = vrot.slane %v7242, 7
      %v7245 = vshll.u32 %v7191, 16
      %v7247 = vor.u32 %v7244, %v7245
      %v7248 = vsel %vm1476, %v7236, %v7247
      %v7250 = vshrl.u32 %v7192, 16
      %v7252 = vrot.slane %v7250, 7
      %v7253 = vshll.u32 %v7192, 16
      %v7255 = vor.u32 %v7252, %v7253
      %v7256 = vsel %vm1476, %v7244, %v7255
      %v7258 = vshrl.u32 %v7193, 16
      %v7260 = vrot.slane %v7258, 7
      %v7261 = vshll.u32 %v7193, 16
      %v7263 = vor.u32 %v7260, %v7261
      %v7264 = vsel %vm1476, %v7252, %v7263
      %v7266 = vshrl.u32 %v7194, 16
      %v7268 = vrot.slane %v7266, 7
      %v7269 = vshll.u32 %v7194, 16
      %v7271 = vor.u32 %v7268, %v7269
      %v7272 = vsel %vm1476, %v7260, %v7271
      %v7274 = vshrl.u32 %v7195, 16
      %v7276 = vrot.slane %v7274, 7
      %v7277 = vshll.u32 %v7195, 16
      %v7279 = vor.u32 %v7276, %v7277
      %v7280 = vsel %vm1476, %v7268, %v7279
      %v7282 = vshrl.u32 %v7196, 16
      %v7284 = vrot.slane %v7282, 7
      %v7285 = vshll.u32 %v7196, 16
      %v7287 = vor.u32 %v7284, %v7285
      %v7288 = vsel %vm1476, %v7276, %v7287
      %v7290 = vshrl.u32 %v7197, 16
      %v7292 = vrot.slane %v7290, 7
      %v7293 = vshll.u32 %v7197, 16
      %v7295 = vor.u32 %v7292, %v7293
      %v7296 = vsel %vm1476, %v7284, %v7295
      %v7298 = vshrl.u32 %v7198, 16
      %v7300 = vrot.slane %v7298, 7
      %v7301 = vshll.u32 %v7198, 16
      %v7303 = vor.u32 %v7300, %v7301
      %v7304 = vsel %vm1476, %v7292, %v7303
      %v7306 = vshrl.u32 %v7199, 16
      %v7308 = vrot.slane %v7306, 7
      %v7309 = vshll.u32 %v7199, 16
      %v7311 = vor.u32 %v7308, %v7309
      %v7312 = vsel %vm1476, %v7300, %v7311
      %v7314 = vshrl.u32 %v7200, 16
      %v7316 = vrot.slane %v7314, 7
      %v7317 = vshll.u32 %v7200, 16
      %v7319 = vor.u32 %v7316, %v7317
      %v7320 = vsel %vm1476, %v7308, %v7319
      %v7322 = vshrl.u32 %v7201, 16
      %v7324 = vrot.slane %v7322, 7
      %v7325 = vshll.u32 %v7201, 16
      %v7327 = vor.u32 %v7324, %v7325
      %v7328 = vsel %vm1476, %v7316, %v7327
      %v7330 = vshrl.u32 %v7202, 16
      %v7332 = vrot.slane %v7330, 7
      %v7333 = vshll.u32 %v7202, 16
      %v7335 = vor.u32 %v7332, %v7333
      %v7336 = vsel %vm1476, %v7324, %v7335
      %v7338 = vshrl.u32 %v7203, 16
      %v7340 = vrot.slane %v7338, 7
      %v7341 = vshll.u32 %v7203, 16
      %v7343 = vor.u32 %v7340, %v7341
      %v7344 = vsel %vm1476, %v7332, %v7343
      %v7346 = vshrl.u32 %v7204, 16
      %v7348 = vrot.slane %v7346, 7
      %v7349 = vshll.u32 %v7204, 16
      %v7351 = vor.u32 %v7348, %v7349
      %v7352 = vsel %vm1476, %v7340, %v7351
      %7353 = vrot.lane.b32.xlu0 %v7216, 96
      %v7354 = vpop.permute.xlu0 %7353
      %7355 = vrot.lane.b32.xlu0 %v7224, 96
      %v7356 = vpop.permute.xlu0 %7355
      %7357 = vrot.lane.b32.xlu0 %v7232, 96
      %v7358 = vpop.permute.xlu0 %7357
      %7359 = vrot.lane.b32.xlu0 %v7240, 96
      %v7360 = vpop.permute.xlu0 %7359
      %7361 = vrot.lane.b32.xlu0 %v7248, 96
      %v7362 = vpop.permute.xlu0 %7361
      %7363 = vrot.lane.b32.xlu0 %v7256, 96
      %v7364 = vpop.permute.xlu0 %7363
      %7365 = vrot.lane.b32.xlu0 %v7264, 96
      %v7366 = vpop.permute.xlu0 %7365
      %7367 = vrot.lane.b32.xlu0 %v7272, 96
      %v7368 = vpop.permute.xlu0 %7367
      %7369 = vrot.lane.b32.xlu0 %v7280, 96
      %v7370 = vpop.permute.xlu0 %7369
      %7371 = vrot.lane.b32.xlu0 %v7288, 96
      %v7372 = vpop.permute.xlu0 %7371
      %7373 = vrot.lane.b32.xlu0 %v7296, 96
      %v7374 = vpop.permute.xlu0 %7373
      %7375 = vrot.lane.b32.xlu0 %v7304, 96
      %v7376 = vpop.permute.xlu0 %7375
      %7377 = vrot.lane.b32.xlu0 %v7312, 96
      %v7378 = vpop.permute.xlu0 %7377
      %7379 = vrot.lane.b32.xlu0 %v7320, 96
      %v7380 = vpop.permute.xlu0 %7379
      %7381 = vrot.lane.b32.xlu0 %v7328, 96
      %v7382 = vpop.permute.xlu0 %7381
      %7383 = vrot.lane.b32.xlu0 %v7336, 96
      %v7384 = vpop.permute.xlu0 %7383
      %7385 = vrot.lane.b32.xlu0 %v7344, 96
      %v7386 = vpop.permute.xlu0 %7385
      %7387 = vrot.lane.b32.xlu0 %v7352, 96
      %v7388 = vpop.permute.xlu0 %7387
      %vm7407 = vcmask 1048320
      %7408 = vst.msk [vmem:[#allocation4] sm:$0xff] %vm7407, %v7354
      %7409 = vst.msk [vmem:[#allocation4 + $0x28] sm:$0xff] %vm7407, %v7356
      %7410 = vst.msk [vmem:[#allocation4 + $0x50] sm:$0xff] %vm7407, %v7358
      %7411 = vst.msk [vmem:[#allocation4 + $0x78] sm:$0xff] %vm7407, %v7360
      %7412 = vst.msk [vmem:[#allocation4 + $0xa0] sm:$0xff] %vm7407, %v7362
      %7413 = vst.msk [vmem:[#allocation4 + $0xc8] sm:$0xff] %vm7407, %v7364
      %7414 = vst.msk [vmem:[#allocation4 + $0xf0] sm:$0xff] %vm7407, %v7366
      %7415 = vst.msk [vmem:[#allocation4 + $0x118] sm:$0xff] %vm7407, %v7368
      %7416 = vst.msk [vmem:[#allocation4 + $0x140] sm:$0xff] %vm7407, %v7370
      %7417 = vst.msk [vmem:[#allocation4 + $0x168] sm:$0xff] %vm7407, %v7372
      %7418 = vst.msk [vmem:[#allocation4 + $0x190] sm:$0xff] %vm7407, %v7374
      %7419 = vst.msk [vmem:[#allocation4 + $0x1b8] sm:$0xff] %vm7407, %v7376
      %7420 = vst.msk [vmem:[#allocation4 + $0x1e0] sm:$0xff] %vm7407, %v7378
      %7421 = vst.msk [vmem:[#allocation4 + $0x208] sm:$0xff] %vm7407, %v7380
      %7422 = vst.msk [vmem:[#allocation4 + $0x230] sm:$0xff] %vm7407, %v7382
      %7423 = vst.msk [vmem:[#allocation4 + $0x258] sm:$0xff] %vm7407, %v7384
      %7424 = vst.msk [vmem:[#allocation4 + $0x280] sm:$0xff] %vm7407, %v7386
      %7425 = vst.msk [vmem:[#allocation4 + $0x2a8] sm:$0xff] %vm7407, %v7388
      %v7426 = vld [vmem:[#allocation3 + $0x10] sm:$0xff]
      %v7427 = vld [vmem:[#allocation3 + $0x18] sm:$0xff]
      %v7428 = vld [vmem:[#allocation3 + $0x20] sm:$0xff]
      %v7429 = vld [vmem:[#allocation3 + $0x28] sm:$0xff]
      %v7430 = vld [vmem:[#allocation3 + $0x30] sm:$0xff]
      %v7431 = vld [vmem:[#allocation3 + $0x38] sm:$0xff]
      %v7432 = vld [vmem:[#allocation3 + $0x40] sm:$0xff]
      %v7433 = vld [vmem:[#allocation3 + $0x48] sm:$0xff]
      %v7434 = vld [vmem:[#allocation3 + $0x50] sm:$0xff]
      %v7435 = vld [vmem:[#allocation3 + $0x58] sm:$0xff]
      %v7436 = vld [vmem:[#allocation3 + $0x60] sm:$0xff]
      %v7437 = vld [vmem:[#allocation3 + $0x68] sm:$0xff]
      %v7438 = vld [vmem:[#allocation3 + $0x70] sm:$0xff]
      %v7439 = vld [vmem:[#allocation3 + $0x78] sm:$0xff]
      %v7440 = vld [vmem:[#allocation3 + $0x80] sm:$0xff]
      %v7441 = vld [vmem:[#allocation3 + $0x88] sm:$0xff]
      %v7442 = vld [vmem:[#allocation3 + $0x90] sm:$0xff]
      %v7443 = vld [vmem:[#allocation3 + $0x98] sm:$0xff]
      %7444 = vst.msk [vmem:[#allocation4 + $0x8] sm:$0xff] %vm402, %v7426
      %7445 = vst.msk [vmem:[#allocation4 + $0x30] sm:$0xff] %vm402, %v7427
      %7446 = vst.msk [vmem:[#allocation4 + $0x58] sm:$0xff] %vm402, %v7428
      %7447 = vst.msk [vmem:[#allocation4 + $0x80] sm:$0xff] %vm402, %v7429
      %7448 = vst.msk [vmem:[#allocation4 + $0xa8] sm:$0xff] %vm402, %v7430
      %7449 = vst.msk [vmem:[#allocation4 + $0xd0] sm:$0xff] %vm402, %v7431
      %7450 = vst.msk [vmem:[#allocation4 + $0xf8] sm:$0xff] %vm402, %v7432
      %7451 = vst.msk [vmem:[#allocation4 + $0x120] sm:$0xff] %vm402, %v7433
      %7452 = vst.msk [vmem:[#allocation4 + $0x148] sm:$0xff] %vm402, %v7434
      %7453 = vst.msk [vmem:[#allocation4 + $0x170] sm:$0xff] %vm402, %v7435
      %7454 = vst.msk [vmem:[#allocation4 + $0x198] sm:$0xff] %vm402, %v7436
      %7455 = vst.msk [vmem:[#allocation4 + $0x1c0] sm:$0xff] %vm402, %v7437
      %7456 = vst.msk [vmem:[#allocation4 + $0x1e8] sm:$0xff] %vm402, %v7438
      %7457 = vst.msk [vmem:[#allocation4 + $0x210] sm:$0xff] %vm402, %v7439
      %7458 = vst.msk [vmem:[#allocation4 + $0x238] sm:$0xff] %vm402, %v7440
      %7459 = vst.msk [vmem:[#allocation4 + $0x260] sm:$0xff] %vm402, %v7441
      %7460 = vst.msk [vmem:[#allocation4 + $0x288] sm:$0xff] %vm402, %v7442
      %7461 = vst.msk [vmem:[#allocation4 + $0x2b0] sm:$0xff] %vm402, %v7443
      %v7462 = vld [vmem:[#allocation3 + $0x10] sm:$0xff]
      %v7463 = vld [vmem:[#allocation3 + $0x18] sm:$0xff]
      %v7464 = vld [vmem:[#allocation3 + $0x20] sm:$0xff]
      %v7465 = vld [vmem:[#allocation3 + $0x28] sm:$0xff]
      %v7466 = vld [vmem:[#allocation3 + $0x30] sm:$0xff]
      %v7467 = vld [vmem:[#allocation3 + $0x38] sm:$0xff]
      %v7468 = vld [vmem:[#allocation3 + $0x40] sm:$0xff]
      %v7469 = vld [vmem:[#allocation3 + $0x48] sm:$0xff]
      %v7470 = vld [vmem:[#allocation3 + $0x50] sm:$0xff]
      %v7471 = vld [vmem:[#allocation3 + $0x58] sm:$0xff]
      %v7472 = vld [vmem:[#allocation3 + $0x60] sm:$0xff]
      %v7473 = vld [vmem:[#allocation3 + $0x68] sm:$0xff]
      %v7474 = vld [vmem:[#allocation3 + $0x70] sm:$0xff]
      %v7475 = vld [vmem:[#allocation3 + $0x78] sm:$0xff]
      %v7476 = vld [vmem:[#allocation3 + $0x80] sm:$0xff]
      %v7477 = vld [vmem:[#allocation3 + $0x88] sm:$0xff]
      %v7478 = vld [vmem:[#allocation3 + $0x90] sm:$0xff]
      %v7479 = vld [vmem:[#allocation3 + $0x98] sm:$0xff]
      %v7480 = vld [vmem:[#allocation3 + $0xa0] sm:$0x1]
      %v7482 = vshrl.u32 %v7462, 16
      %v7484 = vshll.u32 %v7462, 16
      %v7486 = vrot.slane %v7484, 1
      %v7487 = vor.u32 %v7482, %v7486
      %v7489 = vshll.u32 %v7463, 16
      %v7491 = vrot.slane %v7489, 1
      %v7492 = vsel %vm1955, %v7487, %v7491
      %v7493 = vshrl.u32 %v7463, 16
      %v7495 = vor.u32 %v7493, %v7491
      %v7497 = vshll.u32 %v7464, 16
      %v7499 = vrot.slane %v7497, 1
      %v7500 = vsel %vm1955, %v7495, %v7499
      %v7501 = vshrl.u32 %v7464, 16
      %v7503 = vor.u32 %v7501, %v7499
      %v7505 = vshll.u32 %v7465, 16
      %v7507 = vrot.slane %v7505, 1
      %v7508 = vsel %vm1955, %v7503, %v7507
      %v7509 = vshrl.u32 %v7465, 16
      %v7511 = vor.u32 %v7509, %v7507
      %v7513 = vshll.u32 %v7466, 16
      %v7515 = vrot.slane %v7513, 1
      %v7516 = vsel %vm1955, %v7511, %v7515
      %v7517 = vshrl.u32 %v7466, 16
      %v7519 = vor.u32 %v7517, %v7515
      %v7521 = vshll.u32 %v7467, 16
      %v7523 = vrot.slane %v7521, 1
      %v7524 = vsel %vm1955, %v7519, %v7523
      %v7525 = vshrl.u32 %v7467, 16
      %v7527 = vor.u32 %v7525, %v7523
      %v7529 = vshll.u32 %v7468, 16
      %v7531 = vrot.slane %v7529, 1
      %v7532 = vsel %vm1955, %v7527, %v7531
      %v7533 = vshrl.u32 %v7468, 16
      %v7535 = vor.u32 %v7533, %v7531
      %v7537 = vshll.u32 %v7469, 16
      %v7539 = vrot.slane %v7537, 1
      %v7540 = vsel %vm1955, %v7535, %v7539
      %v7541 = vshrl.u32 %v7469, 16
      %v7543 = vor.u32 %v7541, %v7539
      %v7545 = vshll.u32 %v7470, 16
      %v7547 = vrot.slane %v7545, 1
      %v7548 = vsel %vm1955, %v7543, %v7547
      %v7549 = vshrl.u32 %v7470, 16
      %v7551 = vor.u32 %v7549, %v7547
      %v7553 = vshll.u32 %v7471, 16
      %v7555 = vrot.slane %v7553, 1
      %v7556 = vsel %vm1955, %v7551, %v7555
      %v7557 = vshrl.u32 %v7471, 16
      %v7559 = vor.u32 %v7557, %v7555
      %v7561 = vshll.u32 %v7472, 16
      %v7563 = vrot.slane %v7561, 1
      %v7564 = vsel %vm1955, %v7559, %v7563
      %v7565 = vshrl.u32 %v7472, 16
      %v7567 = vor.u32 %v7565, %v7563
      %v7569 = vshll.u32 %v7473, 16
      %v7571 = vrot.slane %v7569, 1
      %v7572 = vsel %vm1955, %v7567, %v7571
      %v7573 = vshrl.u32 %v7473, 16
      %v7575 = vor.u32 %v7573, %v7571
      %v7577 = vshll.u32 %v7474, 16
      %v7579 = vrot.slane %v7577, 1
      %v7580 = vsel %vm1955, %v7575, %v7579
      %v7581 = vshrl.u32 %v7474, 16
      %v7583 = vor.u32 %v7581, %v7579
      %v7585 = vshll.u32 %v7475, 16
      %v7587 = vrot.slane %v7585, 1
      %v7588 = vsel %vm1955, %v7583, %v7587
      %v7589 = vshrl.u32 %v7475, 16
      %v7591 = vor.u32 %v7589, %v7587
      %v7593 = vshll.u32 %v7476, 16
      %v7595 = vrot.slane %v7593, 1
      %v7596 = vsel %vm1955, %v7591, %v7595
      %v7597 = vshrl.u32 %v7476, 16
      %v7599 = vor.u32 %v7597, %v7595
      %v7601 = vshll.u32 %v7477, 16
      %v7603 = vrot.slane %v7601, 1
      %v7604 = vsel %vm1955, %v7599, %v7603
      %v7605 = vshrl.u32 %v7477, 16
      %v7607 = vor.u32 %v7605, %v7603
      %v7609 = vshll.u32 %v7478, 16
      %v7611 = vrot.slane %v7609, 1
      %v7612 = vsel %vm1955, %v7607, %v7611
      %v7613 = vshrl.u32 %v7478, 16
      %v7615 = vor.u32 %v7613, %v7611
      %v7617 = vshll.u32 %v7479, 16
      %v7619 = vrot.slane %v7617, 1
      %v7620 = vsel %vm1955, %v7615, %v7619
      %v7621 = vshrl.u32 %v7479, 16
      %v7623 = vor.u32 %v7621, %v7619
      %v7625 = vshll.u32 %v7480, 16
      %v7627 = vrot.slane %v7625, 1
      %v7628 = vsel %vm1955, %v7623, %v7627
      %7629 = vrot.lane.b32.xlu0 %v7492, 32
      %v7630 = vpop.permute.xlu0 %7629
      %7631 = vrot.lane.b32.xlu0 %v7500, 32
      %v7632 = vpop.permute.xlu0 %7631
      %7633 = vrot.lane.b32.xlu0 %v7508, 32
      %v7634 = vpop.permute.xlu0 %7633
      %7635 = vrot.lane.b32.xlu0 %v7516, 32
      %v7636 = vpop.permute.xlu0 %7635
      %7637 = vrot.lane.b32.xlu0 %v7524, 32
      %v7638 = vpop.permute.xlu0 %7637
      %7639 = vrot.lane.b32.xlu0 %v7532, 32
      %v7640 = vpop.permute.xlu0 %7639
      %7641 = vrot.lane.b32.xlu0 %v7540, 32
      %v7642 = vpop.permute.xlu0 %7641
      %7643 = vrot.lane.b32.xlu0 %v7548, 32
      %v7644 = vpop.permute.xlu0 %7643
      %7645 = vrot.lane.b32.xlu0 %v7556, 32
      %v7646 = vpop.permute.xlu0 %7645
      %7647 = vrot.lane.b32.xlu0 %v7564, 32
      %v7648 = vpop.permute.xlu0 %7647
      %7649 = vrot.lane.b32.xlu0 %v7572, 32
      %v7650 = vpop.permute.xlu0 %7649
      %7651 = vrot.lane.b32.xlu0 %v7580, 32
      %v7652 = vpop.permute.xlu0 %7651
      %7653 = vrot.lane.b32.xlu0 %v7588, 32
      %v7654 = vpop.permute.xlu0 %7653
      %7655 = vrot.lane.b32.xlu0 %v7596, 32
      %v7656 = vpop.permute.xlu0 %7655
      %7657 = vrot.lane.b32.xlu0 %v7604, 32
      %v7658 = vpop.permute.xlu0 %7657
      %7659 = vrot.lane.b32.xlu0 %v7612, 32
      %v7660 = vpop.permute.xlu0 %7659
      %7661 = vrot.lane.b32.xlu0 %v7620, 32
      %v7662 = vpop.permute.xlu0 %7661
      %7663 = vrot.lane.b32.xlu0 %v7628, 32
      %v7664 = vpop.permute.xlu0 %7663
      %7683 = vst.msk [vmem:[#allocation4 + $0x8] sm:$0xff] %vm6927, %v7630
      %7684 = vst.msk [vmem:[#allocation4 + $0x30] sm:$0xff] %vm6927, %v7632
      %7685 = vst.msk [vmem:[#allocation4 + $0x58] sm:$0xff] %vm6927, %v7634
      %7686 = vst.msk [vmem:[#allocation4 + $0x80] sm:$0xff] %vm6927, %v7636
      %7687 = vst.msk [vmem:[#allocation4 + $0xa8] sm:$0xff] %vm6927, %v7638
      %7688 = vst.msk [vmem:[#allocation4 + $0xd0] sm:$0xff] %vm6927, %v7640
      %7689 = vst.msk [vmem:[#allocation4 + $0xf8] sm:$0xff] %vm6927, %v7642
      %7690 = vst.msk [vmem:[#allocation4 + $0x120] sm:$0xff] %vm6927, %v7644
      %7691 = vst.msk [vmem:[#allocation4 + $0x148] sm:$0xff] %vm6927, %v7646
      %7692 = vst.msk [vmem:[#allocation4 + $0x170] sm:$0xff] %vm6927, %v7648
      %7693 = vst.msk [vmem:[#allocation4 + $0x198] sm:$0xff] %vm6927, %v7650
      %7694 = vst.msk [vmem:[#allocation4 + $0x1c0] sm:$0xff] %vm6927, %v7652
      %7695 = vst.msk [vmem:[#allocation4 + $0x1e8] sm:$0xff] %vm6927, %v7654
      %7696 = vst.msk [vmem:[#allocation4 + $0x210] sm:$0xff] %vm6927, %v7656
      %7697 = vst.msk [vmem:[#allocation4 + $0x238] sm:$0xff] %vm6927, %v7658
      %7698 = vst.msk [vmem:[#allocation4 + $0x260] sm:$0xff] %vm6927, %v7660
      %7699 = vst.msk [vmem:[#allocation4 + $0x288] sm:$0xff] %vm6927, %v7662
      %7700 = vst.msk [vmem:[#allocation4 + $0x2b0] sm:$0xff] %vm6927, %v7664
      %v7701 = vld [vmem:[#allocation3 + $0x18] sm:$0xff]
      %v7702 = vld [vmem:[#allocation3 + $0x20] sm:$0xff]
      %v7703 = vld [vmem:[#allocation3 + $0x28] sm:$0xff]
      %v7704 = vld [vmem:[#allocation3 + $0x30] sm:$0xff]
      %v7705 = vld [vmem:[#allocation3 + $0x38] sm:$0xff]
      %v7706 = vld [vmem:[#allocation3 + $0x40] sm:$0xff]
      %v7707 = vld [vmem:[#allocation3 + $0x48] sm:$0xff]
      %v7708 = vld [vmem:[#allocation3 + $0x50] sm:$0xff]
      %v7709 = vld [vmem:[#allocation3 + $0x58] sm:$0xff]
      %v7710 = vld [vmem:[#allocation3 + $0x60] sm:$0xff]
      %v7711 = vld [vmem:[#allocation3 + $0x68] sm:$0xff]
      %v7712 = vld [vmem:[#allocation3 + $0x70] sm:$0xff]
      %v7713 = vld [vmem:[#allocation3 + $0x78] sm:$0xff]
      %v7714 = vld [vmem:[#allocation3 + $0x80] sm:$0xff]
      %v7715 = vld [vmem:[#allocation3 + $0x88] sm:$0xff]
      %v7716 = vld [vmem:[#allocation3 + $0x90] sm:$0xff]
      %v7717 = vld [vmem:[#allocation3 + $0x98] sm:$0xff]
      %v7718 = vld [vmem:[#allocation3 + $0xa0] sm:$0xff]
      %v7719 = vld [vmem:[#allocation3 + $0xa8] sm:$0x1]
      %v7721 = vshrl.u32 %v7701, 16
      %v7723 = vshll.u32 %v7701, 16
      %v7725 = vrot.slane %v7723, 1
      %v7726 = vor.u32 %v7721, %v7725
      %v7728 = vshll.u32 %v7702, 16
      %v7730 = vrot.slane %v7728, 1
      %v7731 = vsel %vm1955, %v7726, %v7730
      %v7732 = vshrl.u32 %v7702, 16
      %v7734 = vor.u32 %v7732, %v7730
      %v7736 = vshll.u32 %v7703, 16
      %v7738 = vrot.slane %v7736, 1
      %v7739 = vsel %vm1955, %v7734, %v7738
      %v7740 = vshrl.u32 %v7703, 16
      %v7742 = vor.u32 %v7740, %v7738
      %v7744 = vshll.u32 %v7704, 16
      %v7746 = vrot.slane %v7744, 1
      %v7747 = vsel %vm1955, %v7742, %v7746
      %v7748 = vshrl.u32 %v7704, 16
      %v7750 = vor.u32 %v7748, %v7746
      %v7752 = vshll.u32 %v7705, 16
      %v7754 = vrot.slane %v7752, 1
      %v7755 = vsel %vm1955, %v7750, %v7754
      %v7756 = vshrl.u32 %v7705, 16
      %v7758 = vor.u32 %v7756, %v7754
      %v7760 = vshll.u32 %v7706, 16
      %v7762 = vrot.slane %v7760, 1
      %v7763 = vsel %vm1955, %v7758, %v7762
      %v7764 = vshrl.u32 %v7706, 16
      %v7766 = vor.u32 %v7764, %v7762
      %v7768 = vshll.u32 %v7707, 16
      %v7770 = vrot.slane %v7768, 1
      %v7771 = vsel %vm1955, %v7766, %v7770
      %v7772 = vshrl.u32 %v7707, 16
      %v7774 = vor.u32 %v7772, %v7770
      %v7776 = vshll.u32 %v7708, 16
      %v7778 = vrot.slane %v7776, 1
      %v7779 = vsel %vm1955, %v7774, %v7778
      %v7780 = vshrl.u32 %v7708, 16
      %v7782 = vor.u32 %v7780, %v7778
      %v7784 = vshll.u32 %v7709, 16
      %v7786 = vrot.slane %v7784, 1
      %v7787 = vsel %vm1955, %v7782, %v7786
      %v7788 = vshrl.u32 %v7709, 16
      %v7790 = vor.u32 %v7788, %v7786
      %v7792 = vshll.u32 %v7710, 16
      %v7794 = vrot.slane %v7792, 1
      %v7795 = vsel %vm1955, %v7790, %v7794
      %v7796 = vshrl.u32 %v7710, 16
      %v7798 = vor.u32 %v7796, %v7794
      %v7800 = vshll.u32 %v7711, 16
      %v7802 = vrot.slane %v7800, 1
      %v7803 = vsel %vm1955, %v7798, %v7802
      %v7804 = vshrl.u32 %v7711, 16
      %v7806 = vor.u32 %v7804, %v7802
      %v7808 = vshll.u32 %v7712, 16
      %v7810 = vrot.slane %v7808, 1
      %v7811 = vsel %vm1955, %v7806, %v7810
      %v7812 = vshrl.u32 %v7712, 16
      %v7814 = vor.u32 %v7812, %v7810
      %v7816 = vshll.u32 %v7713, 16
      %v7818 = vrot.slane %v7816, 1
      %v7819 = vsel %vm1955, %v7814, %v7818
      %v7820 = vshrl.u32 %v7713, 16
      %v7822 = vor.u32 %v7820, %v7818
      %v7824 = vshll.u32 %v7714, 16
      %v7826 = vrot.slane %v7824, 1
      %v7827 = vsel %vm1955, %v7822, %v7826
      %v7828 = vshrl.u32 %v7714, 16
      %v7830 = vor.u32 %v7828, %v7826
      %v7832 = vshll.u32 %v7715, 16
      %v7834 = vrot.slane %v7832, 1
      %v7835 = vsel %vm1955, %v7830, %v7834
      %v7836 = vshrl.u32 %v7715, 16
      %v7838 = vor.u32 %v7836, %v7834
      %v7840 = vshll.u32 %v7716, 16
      %v7842 = vrot.slane %v7840, 1
      %v7843 = vsel %vm1955, %v7838, %v7842
      %v7844 = vshrl.u32 %v7716, 16
      %v7846 = vor.u32 %v7844, %v7842
      %v7848 = vshll.u32 %v7717, 16
      %v7850 = vrot.slane %v7848, 1
      %v7851 = vsel %vm1955, %v7846, %v7850
      %v7852 = vshrl.u32 %v7717, 16
      %v7854 = vor.u32 %v7852, %v7850
      %v7856 = vshll.u32 %v7718, 16
      %v7858 = vrot.slane %v7856, 1
      %v7859 = vsel %vm1955, %v7854, %v7858
      %v7860 = vshrl.u32 %v7718, 16
      %v7862 = vor.u32 %v7860, %v7858
      %v7864 = vshll.u32 %v7719, 16
      %v7866 = vrot.slane %v7864, 1
      %v7867 = vsel %vm1955, %v7862, %v7866
      %7868 = vrot.lane.b32.xlu0 %v7731, 64
      %v7869 = vpop.permute.xlu0 %7868
      %7870 = vrot.lane.b32.xlu0 %v7739, 64
      %v7871 = vpop.permute.xlu0 %7870
      %7872 = vrot.lane.b32.xlu0 %v7747, 64
      %v7873 = vpop.permute.xlu0 %7872
      %7874 = vrot.lane.b32.xlu0 %v7755, 64
      %v7875 = vpop.permute.xlu0 %7874
      %7876 = vrot.lane.b32.xlu0 %v7763, 64
      %v7877 = vpop.permute.xlu0 %7876
      %7878 = vrot.lane.b32.xlu0 %v7771, 64
      %v7879 = vpop.permute.xlu0 %7878
      %7880 = vrot.lane.b32.xlu0 %v7779, 64
      %v7881 = vpop.permute.xlu0 %7880
      %7882 = vrot.lane.b32.xlu0 %v7787, 64
      %v7883 = vpop.permute.xlu0 %7882
      %7884 = vrot.lane.b32.xlu0 %v7795, 64
      %v7885 = vpop.permute.xlu0 %7884
      %7886 = vrot.lane.b32.xlu0 %v7803, 64
      %v7887 = vpop.permute.xlu0 %7886
      %7888 = vrot.lane.b32.xlu0 %v7811, 64
      %v7889 = vpop.permute.xlu0 %7888
      %7890 = vrot.lane.b32.xlu0 %v7819, 64
      %v7891 = vpop.permute.xlu0 %7890
      %7892 = vrot.lane.b32.xlu0 %v7827, 64
      %v7893 = vpop.permute.xlu0 %7892
      %7894 = vrot.lane.b32.xlu0 %v7835, 64
      %v7895 = vpop.permute.xlu0 %7894
      %7896 = vrot.lane.b32.xlu0 %v7843, 64
      %v7897 = vpop.permute.xlu0 %7896
      %7898 = vrot.lane.b32.xlu0 %v7851, 64
      %v7899 = vpop.permute.xlu0 %7898
      %7900 = vrot.lane.b32.xlu0 %v7859, 64
      %v7901 = vpop.permute.xlu0 %7900
      %7902 = vrot.lane.b32.xlu0 %v7867, 64
      %v7903 = vpop.permute.xlu0 %7902
      %7922 = vst.msk [vmem:[#allocation4 + $0x8] sm:$0xff] %vm7167, %v7869
      %7923 = vst.msk [vmem:[#allocation4 + $0x30] sm:$0xff] %vm7167, %v7871
      %7924 = vst.msk [vmem:[#allocation4 + $0x58] sm:$0xff] %vm7167, %v7873
      %7925 = vst.msk [vmem:[#allocation4 + $0x80] sm:$0xff] %vm7167, %v7875
      %7926 = vst.msk [vmem:[#allocation4 + $0xa8] sm:$0xff] %vm7167, %v7877
      %7927 = vst.msk [vmem:[#allocation4 + $0xd0] sm:$0xff] %vm7167, %v7879
      %7928 = vst.msk [vmem:[#allocation4 + $0xf8] sm:$0xff] %vm7167, %v7881
      %7929 = vst.msk [vmem:[#allocation4 + $0x120] sm:$0xff] %vm7167, %v7883
      %7930 = vst.msk [vmem:[#allocation4 + $0x148] sm:$0xff] %vm7167, %v7885
      %7931 = vst.msk [vmem:[#allocation4 + $0x170] sm:$0xff] %vm7167, %v7887
      %7932 = vst.msk [vmem:[#allocation4 + $0x198] sm:$0xff] %vm7167, %v7889
      %7933 = vst.msk [vmem:[#allocation4 + $0x1c0] sm:$0xff] %vm7167, %v7891
      %7934 = vst.msk [vmem:[#allocation4 + $0x1e8] sm:$0xff] %vm7167, %v7893
      %7935 = vst.msk [vmem:[#allocation4 + $0x210] sm:$0xff] %vm7167, %v7895
      %7936 = vst.msk [vmem:[#allocation4 + $0x238] sm:$0xff] %vm7167, %v7897
      %7937 = vst.msk [vmem:[#allocation4 + $0x260] sm:$0xff] %vm7167, %v7899
      %7938 = vst.msk [vmem:[#allocation4 + $0x288] sm:$0xff] %vm7167, %v7901
      %7939 = vst.msk [vmem:[#allocation4 + $0x2b0] sm:$0xff] %vm7167, %v7903
      %v7940 = vld [vmem:[#allocation3 + $0x18] sm:$0xfe]
      %v7941 = vld [vmem:[#allocation3 + $0x20] sm:$0xff]
      %v7942 = vld [vmem:[#allocation3 + $0x28] sm:$0xff]
      %v7943 = vld [vmem:[#allocation3 + $0x30] sm:$0xff]
      %v7944 = vld [vmem:[#allocation3 + $0x38] sm:$0xff]
      %v7945 = vld [vmem:[#allocation3 + $0x40] sm:$0xff]
      %v7946 = vld [vmem:[#allocation3 + $0x48] sm:$0xff]
      %v7947 = vld [vmem:[#allocation3 + $0x50] sm:$0xff]
      %v7948 = vld [vmem:[#allocation3 + $0x58] sm:$0xff]
      %v7949 = vld [vmem:[#allocation3 + $0x60] sm:$0xff]
      %v7950 = vld [vmem:[#allocation3 + $0x68] sm:$0xff]
      %v7951 = vld [vmem:[#allocation3 + $0x70] sm:$0xff]
      %v7952 = vld [vmem:[#allocation3 + $0x78] sm:$0xff]
      %v7953 = vld [vmem:[#allocation3 + $0x80] sm:$0xff]
      %v7954 = vld [vmem:[#allocation3 + $0x88] sm:$0xff]
      %v7955 = vld [vmem:[#allocation3 + $0x90] sm:$0xff]
      %v7956 = vld [vmem:[#allocation3 + $0x98] sm:$0xff]
      %v7957 = vld [vmem:[#allocation3 + $0xa0] sm:$0xff]
      %v7958 = vld [vmem:[#allocation3 + $0xa8] sm:$0x1]
      %v7978 = vrot.slane %v7940, 1
      %v7979 = vrot.slane %v7941, 1
      %v7980 = vsel %vm2417, %v7978, %v7979
      %v7981 = vrot.slane %v7942, 1
      %v7982 = vsel %vm2417, %v7979, %v7981
      %v7983 = vrot.slane %v7943, 1
      %v7984 = vsel %vm2417, %v7981, %v7983
      %v7985 = vrot.slane %v7944, 1
      %v7986 = vsel %vm2417, %v7983, %v7985
      %v7987 = vrot.slane %v7945, 1
      %v7988 = vsel %vm2417, %v7985, %v7987
      %v7989 = vrot.slane %v7946, 1
      %v7990 = vsel %vm2417, %v7987, %v7989
      %v7991 = vrot.slane %v7947, 1
      %v7992 = vsel %vm2417, %v7989, %v7991
      %v7993 = vrot.slane %v7948, 1
      %v7994 = vsel %vm2417, %v7991, %v7993
      %v7995 = vrot.slane %v7949, 1
      %v7996 = vsel %vm2417, %v7993, %v7995
      %v7997 = vrot.slane %v7950, 1
      %v7998 = vsel %vm2417, %v7995, %v7997
      %v7999 = vrot.slane %v7951, 1
      %v8000 = vsel %vm2417, %v7997, %v7999
      %v8001 = vrot.slane %v7952, 1
      %v8002 = vsel %vm2417, %v7999, %v8001
      %v8003 = vrot.slane %v7953, 1
      %v8004 = vsel %vm2417, %v8001, %v8003
      %v8005 = vrot.slane %v7954, 1
      %v8006 = vsel %vm2417, %v8003, %v8005
      %v8007 = vrot.slane %v7955, 1
      %v8008 = vsel %vm2417, %v8005, %v8007
      %v8009 = vrot.slane %v7956, 1
      %v8010 = vsel %vm2417, %v8007, %v8009
      %v8011 = vrot.slane %v7957, 1
      %v8012 = vsel %vm2417, %v8009, %v8011
      %v8013 = vrot.slane %v7958, 1
      %v8014 = vsel %vm2417, %v8011, %v8013
      %8015 = vrot.lane.b32.xlu0 %v7980, 96
      %v8016 = vpop.permute.xlu0 %8015
      %8017 = vrot.lane.b32.xlu0 %v7982, 96
      %v8018 = vpop.permute.xlu0 %8017
      %8019 = vrot.lane.b32.xlu0 %v7984, 96
      %v8020 = vpop.permute.xlu0 %8019
      %8021 = vrot.lane.b32.xlu0 %v7986, 96
      %v8022 = vpop.permute.xlu0 %8021
      %8023 = vrot.lane.b32.xlu0 %v7988, 96
      %v8024 = vpop.permute.xlu0 %8023
      %8025 = vrot.lane.b32.xlu0 %v7990, 96
      %v8026 = vpop.permute.xlu0 %8025
      %8027 = vrot.lane.b32.xlu0 %v7992, 96
      %v8028 = vpop.permute.xlu0 %8027
      %8029 = vrot.lane.b32.xlu0 %v7994, 96
      %v8030 = vpop.permute.xlu0 %8029
      %8031 = vrot.lane.b32.xlu0 %v7996, 96
      %v8032 = vpop.permute.xlu0 %8031
      %8033 = vrot.lane.b32.xlu0 %v7998, 96
      %v8034 = vpop.permute.xlu0 %8033
      %8035 = vrot.lane.b32.xlu0 %v8000, 96
      %v8036 = vpop.permute.xlu0 %8035
      %8037 = vrot.lane.b32.xlu0 %v8002, 96
      %v8038 = vpop.permute.xlu0 %8037
      %8039 = vrot.lane.b32.xlu0 %v8004, 96
      %v8040 = vpop.permute.xlu0 %8039
      %8041 = vrot.lane.b32.xlu0 %v8006, 96
      %v8042 = vpop.permute.xlu0 %8041
      %8043 = vrot.lane.b32.xlu0 %v8008, 96
      %v8044 = vpop.permute.xlu0 %8043
      %8045 = vrot.lane.b32.xlu0 %v8010, 96
      %v8046 = vpop.permute.xlu0 %8045
      %8047 = vrot.lane.b32.xlu0 %v8012, 96
      %v8048 = vpop.permute.xlu0 %8047
      %8049 = vrot.lane.b32.xlu0 %v8014, 96
      %v8050 = vpop.permute.xlu0 %8049
      %8069 = vst.msk [vmem:[#allocation4 + $0x8] sm:$0xff] %vm7407, %v8016
      %8070 = vst.msk [vmem:[#allocation4 + $0x30] sm:$0xff] %vm7407, %v8018
      %8071 = vst.msk [vmem:[#allocation4 + $0x58] sm:$0xff] %vm7407, %v8020
      %8072 = vst.msk [vmem:[#allocation4 + $0x80] sm:$0xff] %vm7407, %v8022
      %8073 = vst.msk [vmem:[#allocation4 + $0xa8] sm:$0xff] %vm7407, %v8024
      %8074 = vst.msk [vmem:[#allocation4 + $0xd0] sm:$0xff] %vm7407, %v8026
      %8075 = vst.msk [vmem:[#allocation4 + $0xf8] sm:$0xff] %vm7407, %v8028
      %8076 = vst.msk [vmem:[#allocation4 + $0x120] sm:$0xff] %vm7407, %v8030
      %8077 = vst.msk [vmem:[#allocation4 + $0x148] sm:$0xff] %vm7407, %v8032
      %8078 = vst.msk [vmem:[#allocation4 + $0x170] sm:$0xff] %vm7407, %v8034
      %8079 = vst.msk [vmem:[#allocation4 + $0x198] sm:$0xff] %vm7407, %v8036
      %8080 = vst.msk [vmem:[#allocation4 + $0x1c0] sm:$0xff] %vm7407, %v8038
      %8081 = vst.msk [vmem:[#allocation4 + $0x1e8] sm:$0xff] %vm7407, %v8040
      %8082 = vst.msk [vmem:[#allocation4 + $0x210] sm:$0xff] %vm7407, %v8042
      %8083 = vst.msk [vmem:[#allocation4 + $0x238] sm:$0xff] %vm7407, %v8044
      %8084 = vst.msk [vmem:[#allocation4 + $0x260] sm:$0xff] %vm7407, %v8046
      %8085 = vst.msk [vmem:[#allocation4 + $0x288] sm:$0xff] %vm7407, %v8048
      %8086 = vst.msk [vmem:[#allocation4 + $0x2b0] sm:$0xff] %vm7407, %v8050
      %v8087 = vld [vmem:[#allocation3 + $0x18] sm:$0xfe]
      %v8088 = vld [vmem:[#allocation3 + $0x20] sm:$0xff]
      %v8089 = vld [vmem:[#allocation3 + $0x28] sm:$0xff]
      %v8090 = vld [vmem:[#allocation3 + $0x30] sm:$0xff]
      %v8091 = vld [vmem:[#allocation3 + $0x38] sm:$0xff]
      %v8092 = vld [vmem:[#allocation3 + $0x40] sm:$0xff]
      %v8093 = vld [vmem:[#allocation3 + $0x48] sm:$0xff]
      %v8094 = vld [vmem:[#allocation3 + $0x50] sm:$0xff]
      %v8095 = vld [vmem:[#allocation3 + $0x58] sm:$0xff]
      %v8096 = vld [vmem:[#allocation3 + $0x60] sm:$0xff]
      %v8097 = vld [vmem:[#allocation3 + $0x68] sm:$0xff]
      %v8098 = vld [vmem:[#allocation3 + $0x70] sm:$0xff]
      %v8099 = vld [vmem:[#allocation3 + $0x78] sm:$0xff]
      %v8100 = vld [vmem:[#allocation3 + $0x80] sm:$0xff]
      %v8101 = vld [vmem:[#allocation3 + $0x88] sm:$0xff]
      %v8102 = vld [vmem:[#allocation3 + $0x90] sm:$0xff]
      %v8103 = vld [vmem:[#allocation3 + $0x98] sm:$0xff]
      %v8104 = vld [vmem:[#allocation3 + $0xa0] sm:$0xff]
      %v8105 = vld [vmem:[#allocation3 + $0xa8] sm:$0x3]
      %v8107 = vshrl.u32 %v8087, 16
      %v8109 = vrot.slane %v8107, 1
      %v8110 = vshll.u32 %v8087, 16
      %v8112 = vrot.slane %v8110, 2
      %v8113 = vor.u32 %v8109, %v8112
      %v8115 = vshrl.u32 %v8088, 16
      %v8117 = vrot.slane %v8115, 1
      %v8118 = vshll.u32 %v8088, 16
      %v8120 = vrot.slane %v8118, 2
      %v8121 = vor.u32 %v8117, %v8120
      %v8122 = vsel %vm2546, %v8113, %v8121
      %v8124 = vshrl.u32 %v8089, 16
      %v8126 = vrot.slane %v8124, 1
      %v8127 = vshll.u32 %v8089, 16
      %v8129 = vrot.slane %v8127, 2
      %v8130 = vor.u32 %v8126, %v8129
      %v8131 = vsel %vm2546, %v8121, %v8130
      %v8133 = vshrl.u32 %v8090, 16
      %v8135 = vrot.slane %v8133, 1
      %v8136 = vshll.u32 %v8090, 16
      %v8138 = vrot.slane %v8136, 2
      %v8139 = vor.u32 %v8135, %v8138
      %v8140 = vsel %vm2546, %v8130, %v8139
      %v8142 = vshrl.u32 %v8091, 16
      %v8144 = vrot.slane %v8142, 1
      %v8145 = vshll.u32 %v8091, 16
      %v8147 = vrot.slane %v8145, 2
      %v8148 = vor.u32 %v8144, %v8147
      %v8149 = vsel %vm2546, %v8139, %v8148
      %v8151 = vshrl.u32 %v8092, 16
      %v8153 = vrot.slane %v8151, 1
      %v8154 = vshll.u32 %v8092, 16
      %v8156 = vrot.slane %v8154, 2
      %v8157 = vor.u32 %v8153, %v8156
      %v8158 = vsel %vm2546, %v8148, %v8157
      %v8160 = vshrl.u32 %v8093, 16
      %v8162 = vrot.slane %v8160, 1
      %v8163 = vshll.u32 %v8093, 16
      %v8165 = vrot.slane %v8163, 2
      %v8166 = vor.u32 %v8162, %v8165
      %v8167 = vsel %vm2546, %v8157, %v8166
      %v8169 = vshrl.u32 %v8094, 16
      %v8171 = vrot.slane %v8169, 1
      %v8172 = vshll.u32 %v8094, 16
      %v8174 = vrot.slane %v8172, 2
      %v8175 = vor.u32 %v8171, %v8174
      %v8176 = vsel %vm2546, %v8166, %v8175
      %v8178 = vshrl.u32 %v8095, 16
      %v8180 = vrot.slane %v8178, 1
      %v8181 = vshll.u32 %v8095, 16
      %v8183 = vrot.slane %v8181, 2
      %v8184 = vor.u32 %v8180, %v8183
      %v8185 = vsel %vm2546, %v8175, %v8184
      %v8187 = vshrl.u32 %v8096, 16
      %v8189 = vrot.slane %v8187, 1
      %v8190 = vshll.u32 %v8096, 16
      %v8192 = vrot.slane %v8190, 2
      %v8193 = vor.u32 %v8189, %v8192
      %v8194 = vsel %vm2546, %v8184, %v8193
      %v8196 = vshrl.u32 %v8097, 16
      %v8198 = vrot.slane %v8196, 1
      %v8199 = vshll.u32 %v8097, 16
      %v8201 = vrot.slane %v8199, 2
      %v8202 = vor.u32 %v8198, %v8201
      %v8203 = vsel %vm2546, %v8193, %v8202
      %v8205 = vshrl.u32 %v8098, 16
      %v8207 = vrot.slane %v8205, 1
      %v8208 = vshll.u32 %v8098, 16
      %v8210 = vrot.slane %v8208, 2
      %v8211 = vor.u32 %v8207, %v8210
      %v8212 = vsel %vm2546, %v8202, %v8211
      %v8214 = vshrl.u32 %v8099, 16
      %v8216 = vrot.slane %v8214, 1
      %v8217 = vshll.u32 %v8099, 16
      %v8219 = vrot.slane %v8217, 2
      %v8220 = vor.u32 %v8216, %v8219
      %v8221 = vsel %vm2546, %v8211, %v8220
      %v8223 = vshrl.u32 %v8100, 16
      %v8225 = vrot.slane %v8223, 1
      %v8226 = vshll.u32 %v8100, 16
      %v8228 = vrot.slane %v8226, 2
      %v8229 = vor.u32 %v8225, %v8228
      %v8230 = vsel %vm2546, %v8220, %v8229
      %v8232 = vshrl.u32 %v8101, 16
      %v8234 = vrot.slane %v8232, 1
      %v8235 = vshll.u32 %v8101, 16
      %v8237 = vrot.slane %v8235, 2
      %v8238 = vor.u32 %v8234, %v8237
      %v8239 = vsel %vm2546, %v8229, %v8238
      %v8241 = vshrl.u32 %v8102, 16
      %v8243 = vrot.slane %v8241, 1
      %v8244 = vshll.u32 %v8102, 16
      %v8246 = vrot.slane %v8244, 2
      %v8247 = vor.u32 %v8243, %v8246
      %v8248 = vsel %vm2546, %v8238, %v8247
      %v8250 = vshrl.u32 %v8103, 16
      %v8252 = vrot.slane %v8250, 1
      %v8253 = vshll.u32 %v8103, 16
      %v8255 = vrot.slane %v8253, 2
      %v8256 = vor.u32 %v8252, %v8255
      %v8257 = vsel %vm2546, %v8247, %v8256
      %v8259 = vshrl.u32 %v8104, 16
      %v8261 = vrot.slane %v8259, 1
      %v8262 = vshll.u32 %v8104, 16
      %v8264 = vrot.slane %v8262, 2
      %v8265 = vor.u32 %v8261, %v8264
      %v8266 = vsel %vm2546, %v8256, %v8265
      %v8268 = vshrl.u32 %v8105, 16
      %v8270 = vrot.slane %v8268, 1
      %v8271 = vshll.u32 %v8105, 16
      %v8273 = vrot.slane %v8271, 2
      %v8274 = vor.u32 %v8270, %v8273
      %v8275 = vsel %vm2546, %v8265, %v8274
      %8294 = vst.msk [vmem:[#allocation4 + $0x10] sm:$0xff] %vm402, %v8122
      %8295 = vst.msk [vmem:[#allocation4 + $0x38] sm:$0xff] %vm402, %v8131
      %8296 = vst.msk [vmem:[#allocation4 + $0x60] sm:$0xff] %vm402, %v8140
      %8297 = vst.msk [vmem:[#allocation4 + $0x88] sm:$0xff] %vm402, %v8149
      %8298 = vst.msk [vmem:[#allocation4 + $0xb0] sm:$0xff] %vm402, %v8158
      %8299 = vst.msk [vmem:[#allocation4 + $0xd8] sm:$0xff] %vm402, %v8167
      %8300 = vst.msk [vmem:[#allocation4 + $0x100] sm:$0xff] %vm402, %v8176
      %8301 = vst.msk [vmem:[#allocation4 + $0x128] sm:$0xff] %vm402, %v8185
      %8302 = vst.msk [vmem:[#allocation4 + $0x150] sm:$0xff] %vm402, %v8194
      %8303 = vst.msk [vmem:[#allocation4 + $0x178] sm:$0xff] %vm402, %v8203
      %8304 = vst.msk [vmem:[#allocation4 + $0x1a0] sm:$0xff] %vm402, %v8212
      %8305 = vst.msk [vmem:[#allocation4 + $0x1c8] sm:$0xff] %vm402, %v8221
      %8306 = vst.msk [vmem:[#allocation4 + $0x1f0] sm:$0xff] %vm402, %v8230
      %8307 = vst.msk [vmem:[#allocation4 + $0x218] sm:$0xff] %vm402, %v8239
      %8308 = vst.msk [vmem:[#allocation4 + $0x240] sm:$0xff] %vm402, %v8248
      %8309 = vst.msk [vmem:[#allocation4 + $0x268] sm:$0xff] %vm402, %v8257
      %8310 = vst.msk [vmem:[#allocation4 + $0x290] sm:$0xff] %vm402, %v8266
      %8311 = vst.msk [vmem:[#allocation4 + $0x2b8] sm:$0xff] %vm402, %v8275
      %v8312 = vld [vmem:[#allocation4] sm:$0xff]
      %v8313 = vld [vmem:[#allocation4 + $0x8] sm:$0xff]
      %v8314 = vld [vmem:[#allocation4 + $0x10] sm:$0xff]
      %v8315 = vld [vmem:[#allocation4 + $0x28] sm:$0xff]
      %v8316 = vld [vmem:[#allocation4 + $0x30] sm:$0xff]
      %v8317 = vld [vmem:[#allocation4 + $0x38] sm:$0xff]
      %v8318 = vld [vmem:[#allocation4 + $0x50] sm:$0xff]
      %v8319 = vld [vmem:[#allocation4 + $0x58] sm:$0xff]
      %v8320 = vld [vmem:[#allocation4 + $0x60] sm:$0xff]
      %v8321 = vld [vmem:[#allocation4 + $0x78] sm:$0xff]
      %v8322 = vld [vmem:[#allocation4 + $0x80] sm:$0xff]
      %v8323 = vld [vmem:[#allocation4 + $0x88] sm:$0xff]
      %v8324 = vld [vmem:[#allocation4 + $0xa0] sm:$0xff]
      %v8325 = vld [vmem:[#allocation4 + $0xa8] sm:$0xff]
      %v8326 = vld [vmem:[#allocation4 + $0xb0] sm:$0xff]
      %v8327 = vld [vmem:[#allocation4 + $0xc8] sm:$0xff]
      %v8328 = vld [vmem:[#allocation4 + $0xd0] sm:$0xff]
      %v8329 = vld [vmem:[#allocation4 + $0xd8] sm:$0xff]
      %v8330 = vld [vmem:[#allocation4 + $0xf0] sm:$0xff]
      %v8331 = vld [vmem:[#allocation4 + $0xf8] sm:$0xff]
      %v8332 = vld [vmem:[#allocation4 + $0x100] sm:$0xff]
      %v8333 = vld [vmem:[#allocation4 + $0x118] sm:$0xff]
      %v8334 = vld [vmem:[#allocation4 + $0x120] sm:$0xff]
      %v8335 = vld [vmem:[#allocation4 + $0x128] sm:$0xff]
      %v8336 = vld [vmem:[#allocation4 + $0x140] sm:$0xff]
      %v8337 = vld [vmem:[#allocation4 + $0x148] sm:$0xff]
      %v8338 = vld [vmem:[#allocation4 + $0x150] sm:$0xff]
      %v8339 = vld [vmem:[#allocation4 + $0x168] sm:$0xff]
      %v8340 = vld [vmem:[#allocation4 + $0x170] sm:$0xff]
      %v8341 = vld [vmem:[#allocation4 + $0x178] sm:$0xff]
      %v8342 = vld [vmem:[#allocation4 + $0x190] sm:$0xff]
      %v8343 = vld [vmem:[#allocation4 + $0x198] sm:$0xff]
      %v8344 = vld [vmem:[#allocation4 + $0x1a0] sm:$0xff]
      %v8345 = vld [vmem:[#allocation4 + $0x1b8] sm:$0xff]
      %v8346 = vld [vmem:[#allocation4 + $0x1c0] sm:$0xff]
      %v8347 = vld [vmem:[#allocation4 + $0x1c8] sm:$0xff]
      %v8348 = vld [vmem:[#allocation4 + $0x1e0] sm:$0xff]
      %v8349 = vld [vmem:[#allocation4 + $0x1e8] sm:$0xff]
      %v8350 = vld [vmem:[#allocation4 + $0x1f0] sm:$0xff]
      %v8351 = vld [vmem:[#allocation4 + $0x208] sm:$0xff]
      %v8352 = vld [vmem:[#allocation4 + $0x210] sm:$0xff]
      %v8353 = vld [vmem:[#allocation4 + $0x218] sm:$0xff]
      %v8354 = vld [vmem:[#allocation4 + $0x230] sm:$0xff]
      %v8355 = vld [vmem:[#allocation4 + $0x238] sm:$0xff]
      %v8356 = vld [vmem:[#allocation4 + $0x240] sm:$0xff]
      %v8357 = vld [vmem:[#allocation4 + $0x258] sm:$0xff]
      %v8358 = vld [vmem:[#allocation4 + $0x260] sm:$0xff]
      %v8359 = vld [vmem:[#allocation4 + $0x268] sm:$0xff]
      %v8360 = vld [vmem:[#allocation4 + $0x280] sm:$0xff]
      %v8361 = vld [vmem:[#allocation4 + $0x288] sm:$0xff]
      %v8362 = vld [vmem:[#allocation4 + $0x290] sm:$0xff]
      %v8363 = vld [vmem:[#allocation4 + $0x2a8] sm:$0xff]
      %v8364 = vld [vmem:[#allocation4 + $0x2b0] sm:$0xff]
      %v8365 = vld [vmem:[#allocation4 + $0x2b8] sm:$0xff]
      %v8366 = vld [vmem:[%s8] sm:$0xf]
      %v8367 = vld [vmem:[%s8 + $0x4] sm:$0xf]
      %v8368 = vld [vmem:[%s8 + $0x8] sm:$0xf]
      %v8369 = vld [vmem:[%s8 + $0xc] sm:$0xf]
      %v8370 = vld [vmem:[%s8 + $0x10] sm:$0xf]
      %v8371 = vld [vmem:[%s8 + $0x14] sm:$0xf]
      %v8372 = vld [vmem:[%s8 + $0x18] sm:$0xf]
      %v8373 = vld [vmem:[%s8 + $0x1c] sm:$0xf]
      %v8374 = vld [vmem:[%s8 + $0x20] sm:$0xf]
      %v8375 = vld [vmem:[%s8 + $0x24] sm:$0xf]
      %v8376 = vld [vmem:[%s8 + $0x28] sm:$0xf]
      %v8377 = vld [vmem:[%s8 + $0x2c] sm:$0xf]
      %v8378 = vld [vmem:[%s8 + $0x30] sm:$0xf]
      %v8379 = vld [vmem:[%s8 + $0x34] sm:$0xf]
      %v8380 = vld [vmem:[%s8 + $0x38] sm:$0xf]
      %v8381 = vld [vmem:[%s8 + $0x3c] sm:$0xf]
      %v8382 = vld [vmem:[%s8 + $0x40] sm:$0xf]
      %v8383 = vld [vmem:[%s8 + $0x44] sm:$0xf]
      %v8384 = vld [vmem:[%s8 + $0x48] sm:$0xf]
      %v8385 = vld [vmem:[%s8 + $0x4c] sm:$0xf]
      %v8386 = vld [vmem:[%s8 + $0x50] sm:$0xf]
      %v8387 = vld [vmem:[%s8 + $0x54] sm:$0xf]
      %v8388 = vld [vmem:[%s8 + $0x58] sm:$0xf]
      %v8389 = vld [vmem:[%s8 + $0x5c] sm:$0xf]
      %v8390 = vld [vmem:[%s8 + $0x60] sm:$0xf]
      %v8391 = vld [vmem:[%s8 + $0x64] sm:$0xf]
      %v8392 = vld [vmem:[%s8 + $0x68] sm:$0xf]
      %v8393 = vld [vmem:[%s8 + $0x6c] sm:$0xf]
      %v8394 = vld [vmem:[%s8 + $0x70] sm:$0xf]
      %v8395 = vld [vmem:[%s8 + $0x74] sm:$0xf]
      %v8396 = vld [vmem:[%s8 + $0x78] sm:$0xf]
      %v8397 = vld [vmem:[%s8 + $0x7c] sm:$0xf]
      %v8398 = vld [vmem:[%s8 + $0x80] sm:$0xf]
      %v8399 = vld [vmem:[%s8 + $0x84] sm:$0xf]
      %v8400 = vld [vmem:[%s8 + $0x88] sm:$0xf]
      %v8401 = vld [vmem:[%s8 + $0x8c] sm:$0xf]
      %v8402 = vld [vmem:[%s9] sm:$0x1]
      %v8404 = vlaneseq
      %v8405 = vshrl.u32 %v8404, 7
      %v8406 = vsub.s32 0, %v8405
      %v8407 = vrot.slane %v8402, %v8406
      %v8445 = vunpack.c.l.b16 %v8366
      %v8446 = vunpack.c.l.b16 %v8367
      %v8447 = vunpack.c.l.b16 %v8368
      %v8448 = vunpack.c.l.b16 %v8369
      %v8449 = vunpack.c.l.b16 %v8370
      %v8450 = vunpack.c.l.b16 %v8371
      %v8451 = vunpack.c.l.b16 %v8372
      %v8452 = vunpack.c.l.b16 %v8373
      %v8453 = vunpack.c.l.b16 %v8374
      %v8454 = vunpack.c.l.b16 %v8375
      %v8455 = vunpack.c.l.b16 %v8376
      %v8456 = vunpack.c.l.b16 %v8377
      %v8457 = vunpack.c.l.b16 %v8378
      %v8458 = vunpack.c.l.b16 %v8379
      %v8459 = vunpack.c.l.b16 %v8380
      %v8460 = vunpack.c.l.b16 %v8381
      %v8461 = vunpack.c.l.b16 %v8382
      %v8462 = vunpack.c.l.b16 %v8383
      %v8463 = vunpack.c.l.b16 %v8384
      %v8464 = vunpack.c.l.b16 %v8385
      %v8465 = vunpack.c.l.b16 %v8386
      %v8466 = vunpack.c.l.b16 %v8387
      %v8467 = vunpack.c.l.b16 %v8388
      %v8468 = vunpack.c.l.b16 %v8389
      %v8469 = vunpack.c.l.b16 %v8390
      %v8470 = vunpack.c.l.b16 %v8391
      %v8471 = vunpack.c.l.b16 %v8392
      %v8472 = vunpack.c.l.b16 %v8393
      %v8473 = vunpack.c.l.b16 %v8394
      %v8474 = vunpack.c.l.b16 %v8395
      %v8475 = vunpack.c.l.b16 %v8396
      %v8476 = vunpack.c.l.b16 %v8397
      %v8477 = vunpack.c.l.b16 %v8398
      %v8478 = vunpack.c.l.b16 %v8399
      %v8479 = vunpack.c.l.b16 %v8400
      %v8480 = vunpack.c.l.b16 %v8401
      %v8481 = vpack.c.b16 %v8446, %v8445
      %v8482 = vpack.c.b16 %v8448, %v8447
      %v8483 = vpack.c.b16 %v8450, %v8449
      %v8484 = vpack.c.b16 %v8452, %v8451
      %v8485 = vpack.c.b16 %v8454, %v8453
      %v8486 = vpack.c.b16 %v8456, %v8455
      %v8487 = vpack.c.b16 %v8458, %v8457
      %v8488 = vpack.c.b16 %v8460, %v8459
      %v8489 = vpack.c.b16 %v8462, %v8461
      %v8490 = vpack.c.b16 %v8464, %v8463
      %v8491 = vpack.c.b16 %v8466, %v8465
      %v8492 = vpack.c.b16 %v8468, %v8467
      %v8493 = vpack.c.b16 %v8470, %v8469
      %v8494 = vpack.c.b16 %v8472, %v8471
      %v8495 = vpack.c.b16 %v8474, %v8473
      %v8496 = vpack.c.b16 %v8476, %v8475
      %v8497 = vpack.c.b16 %v8478, %v8477
      %v8498 = vpack.c.b16 %v8480, %v8479
      %v8518 = vsel %vm402, %v8314, 0
      %v8521 = vsel %vm402, %v8317, 0
      %v8524 = vsel %vm402, %v8320, 0
      %v8527 = vsel %vm402, %v8323, 0
      %v8530 = vsel %vm402, %v8326, 0
      %v8533 = vsel %vm402, %v8329, 0
      %v8536 = vsel %vm402, %v8332, 0
      %v8539 = vsel %vm402, %v8335, 0
      %v8542 = vsel %vm402, %v8338, 0
      %v8545 = vsel %vm402, %v8341, 0
      %v8548 = vsel %vm402, %v8344, 0
      %v8551 = vsel %vm402, %v8347, 0
      %v8554 = vsel %vm402, %v8350, 0
      %v8557 = vsel %vm402, %v8353, 0
      %v8560 = vsel %vm402, %v8356, 0
      %v8563 = vsel %vm402, %v8359, 0
      %v8566 = vsel %vm402, %v8362, 0
      %v8569 = vsel %vm402, %v8365, 0
      %8571 = vmatprep.subr.bf16.mxu0 0
      %8572 = vmatpush1.bf16.msra.mxu0 %v8481
      %8573 = vmatprep.subr.bf16.mxu0 0
      %8574 = vmatpush1.bf16.msra.mxu0 %v8482
      %8575 = vmatprep.subr.bf16.mxu0 0
      %8576 = vmatpush1.bf16.msra.mxu0 %v8483
      %8577 = vmatprep.subr.bf16.mxu0 0
      %8578 = vmatpush1.bf16.msra.mxu0 %v8484
      %8579 = vmatprep.subr.bf16.mxu0 0
      %8580 = vmatpush1.bf16.msra.mxu0 %v8485
      %8581 = vmatprep.subr.bf16.mxu0 0
      %8582 = vmatpush1.bf16.msra.mxu0 %v8486
      %8583 = vmatprep.subr.bf16.mxu0 0
      %8584 = vmatpush1.bf16.msra.mxu0 %v8487
      %8585 = vmatprep.subr.bf16.mxu0 0
      %8586 = vmatpush1.bf16.msra.mxu0 %v8488
      %8587 = vmatprep.subr.bf16.mxu0 0
      %8588 = vmatpush1.bf16.msra.mxu0 %v8489
      %8589 = vmatprep.subr.bf16.mxu0 0
      %8590 = vmatpush1.bf16.msra.mxu0 %v8490
      %8591 = vmatprep.subr.bf16.mxu0 0
      %8592 = vmatpush1.bf16.msra.mxu0 %v8491
      %8593 = vmatprep.subr.bf16.mxu0 0
      %8594 = vmatpush1.bf16.msra.mxu0 %v8492
      %8595 = vmatprep.subr.bf16.mxu0 0
      %8596 = vmatpush1.bf16.msra.mxu0 %v8493
      %8597 = vmatprep.subr.bf16.mxu0 0
      %8598 = vmatpush1.bf16.msra.mxu0 %v8494
      %8599 = vmatprep.subr.bf16.mxu0 0
      %8600 = vmatpush1.bf16.msra.mxu0 %v8495
      %8601 = vmatprep.subr.bf16.mxu0 0
      %8602 = vmatpush1.bf16.msra.mxu0 %v8496
      %8603 = vmatprep.mubr.bf16.mxu0 %v8313
      %8604 = vmatmul.mubr.bf16.gmra.mrb[0].mxu0 %v8312
      %v8605 = vpop.f32.mrb[0].mxu0
      %v8606 = vadd.f32 %v8407, %v8605
      %v8607 = vpop.f32.mrb[0].mxu0
      %v8608 = vpop.f32.mrb[0].mxu0
      %v8609 = vadd.f32 %v8407, %v8608
      %v8610 = vpop.f32.mrb[0].mxu0
      %8611 = vmatprep.mubr.bf16.mxu0 %v8316
      %8612 = vmatmul.mubr.bf16.gmra.mrb[0].mxu0 %v8315
      %v8613 = vpop.f32.mrb[0].mxu0
      %v8614 = vadd.f32 %v8407, %v8613
      %v8615 = vpop.f32.mrb[0].mxu0
      %v8616 = vpop.f32.mrb[0].mxu0
      %v8617 = vadd.f32 %v8407, %v8616
      %v8618 = vpop.f32.mrb[0].mxu0
      %8619 = vmatprep.mubr.bf16.mxu0 %v8319
      %8620 = vmatmul.mubr.bf16.gmra.mrb[0].mxu0 %v8318
      %v8621 = vpop.f32.mrb[0].mxu0
      %v8622 = vadd.f32 %v8407, %v8621
      %v8623 = vpop.f32.mrb[0].mxu0
      %v8624 = vpop.f32.mrb[0].mxu0
      %v8625 = vadd.f32 %v8407, %v8624
      %v8626 = vpop.f32.mrb[0].mxu0
      %8627 = vmatprep.mubr.bf16.mxu0 %v8322
      %8628 = vmatmul.mubr.bf16.gmra.mrb[0].mxu0 %v8321
      %v8629 = vpop.f32.mrb[0].mxu0
      %v8630 = vadd.f32 %v8407, %v8629
      %v8631 = vpop.f32.mrb[0].mxu0
      %v8632 = vpop.f32.mrb[0].mxu0
      %v8633 = vadd.f32 %v8407, %v8632
      %v8634 = vpop.f32.mrb[0].mxu0
      %8635 = vmatprep.mubr.bf16.mxu0 %v8325
      %8636 = vmatmul.mubr.bf16.gmra.mrb[0].mxu0 %v8324
      %v8637 = vpop.f32.mrb[0].mxu0
      %v8638 = vadd.f32 %v8407, %v8637
      %v8639 = vpop.f32.mrb[0].mxu0
      %v8640 = vpop.f32.mrb[0].mxu0
      %v8641 = vadd.f32 %v8407, %v8640
      %v8642 = vpop.f32.mrb[0].mxu0
      %8643 = vmatprep.mubr.bf16.mxu0 %v8328
      %8644 = vmatmul.mubr.bf16.gmra.mrb[0].mxu0 %v8327
      %v8645 = vpop.f32.mrb[0].mxu0
      %v8646 = vadd.f32 %v8407, %v8645
      %v8647 = vpop.f32.mrb[0].mxu0
      %v8648 = vpop.f32.mrb[0].mxu0
      %v8649 = vadd.f32 %v8407, %v8648
      %v8650 = vpop.f32.mrb[0].mxu0
      %8651 = vmatprep.mubr.bf16.mxu0 %v8331
      %8652 = vmatmul.mubr.bf16.gmra.mrb[0].mxu0 %v8330
      %v8653 = vpop.f32.mrb[0].mxu0
      %v8654 = vadd.f32 %v8407, %v8653
      %v8655 = vpop.f32.mrb[0].mxu0
      %v8656 = vpop.f32.mrb[0].mxu0
      %v8657 = vadd.f32 %v8407, %v8656
      %v8658 = vpop.f32.mrb[0].mxu0
      %8659 = vmatprep.mubr.bf16.mxu0 %v8334
      %8660 = vmatmul.mubr.bf16.gmra.mrb[0].mxu0 %v8333
      %v8661 = vpop.f32.mrb[0].mxu0
      %v8662 = vadd.f32 %v8407, %v8661
      %v8663 = vpop.f32.mrb[0].mxu0
      %v8664 = vpop.f32.mrb[0].mxu0
      %v8665 = vadd.f32 %v8407, %v8664
      %v8666 = vpop.f32.mrb[0].mxu0
      %8667 = vmatprep.mubr.bf16.mxu0 %v8337
      %8668 = vmatmul.mubr.bf16.gmra.mrb[0].mxu0 %v8336
      %v8669 = vpop.f32.mrb[0].mxu0
      %v8670 = vadd.f32 %v8407, %v8669
      %v8671 = vpop.f32.mrb[0].mxu0
      %v8672 = vpop.f32.mrb[0].mxu0
      %v8673 = vadd.f32 %v8407, %v8672
      %v8674 = vpop.f32.mrb[0].mxu0
      %8675 = vmatprep.mubr.bf16.mxu0 %v8340
      %8676 = vmatmul.mubr.bf16.gmra.mrb[0].mxu0 %v8339
      %v8677 = vpop.f32.mrb[0].mxu0
      %v8678 = vadd.f32 %v8407, %v8677
      %v8679 = vpop.f32.mrb[0].mxu0
      %v8680 = vpop.f32.mrb[0].mxu0
      %v8681 = vadd.f32 %v8407, %v8680
      %v8682 = vpop.f32.mrb[0].mxu0
      %8683 = vmatprep.mubr.bf16.mxu0 %v8343
      %8684 = vmatmul.mubr.bf16.gmra.mrb[0].mxu0 %v8342
      %v8685 = vpop.f32.mrb[0].mxu0
      %v8686 = vadd.f32 %v8407, %v8685
      %v8687 = vpop.f32.mrb[0].mxu0
      %v8688 = vpop.f32.mrb[0].mxu0
      %v8689 = vadd.f32 %v8407, %v8688
      %v8690 = vpop.f32.mrb[0].mxu0
      %8691 = vmatprep.mubr.bf16.mxu0 %v8346
      %8692 = vmatmul.mubr.bf16.gmra.mrb[0].mxu0 %v8345
      %v8693 = vpop.f32.mrb[0].mxu0
      %v8694 = vadd.f32 %v8407, %v8693
      %v8695 = vpop.f32.mrb[0].mxu0
      %v8696 = vpop.f32.mrb[0].mxu0
      %v8697 = vadd.f32 %v8407, %v8696
      %v8698 = vpop.f32.mrb[0].mxu0
      %8699 = vmatprep.mubr.bf16.mxu0 %v8349
      %8700 = vmatmul.mubr.bf16.gmra.mrb[0].mxu0 %v8348
      %v8701 = vpop.f32.mrb[0].mxu0
      %v8702 = vadd.f32 %v8407, %v8701
      %v8703 = vpop.f32.mrb[0].mxu0
      %v8704 = vpop.f32.mrb[0].mxu0
      %v8705 = vadd.f32 %v8407, %v8704
      %v8706 = vpop.f32.mrb[0].mxu0
      %8707 = vmatprep.mubr.bf16.mxu0 %v8352
      %8708 = vmatmul.mubr.bf16.gmra.mrb[0].mxu0 %v8351
      %v8709 = vpop.f32.mrb[0].mxu0
      %v8710 = vadd.f32 %v8407, %v8709
      %v8711 = vpop.f32.mrb[0].mxu0
      %v8712 = vpop.f32.mrb[0].mxu0
      %v8713 = vadd.f32 %v8407, %v8712
      %v8714 = vpop.f32.mrb[0].mxu0
      %8715 = vmatprep.mubr.bf16.mxu0 %v8355
      %8716 = vmatmul.mubr.bf16.gmra.mrb[0].mxu0 %v8354
      %v8717 = vpop.f32.mrb[0].mxu0
      %v8718 = vadd.f32 %v8407, %v8717
      %v8719 = vpop.f32.mrb[0].mxu0
      %v8720 = vpop.f32.mrb[0].mxu0
      %v8721 = vadd.f32 %v8407, %v8720
      %v8722 = vpop.f32.mrb[0].mxu0
      %8723 = vmatprep.mubr.bf16.mxu0 %v8358
      %8724 = vmatmul.mubr.bf16.gmra.mrb[0].mxu0 %v8357
      %v8725 = vpop.f32.mrb[0].mxu0
      %v8726 = vadd.f32 %v8407, %v8725
      %v8727 = vpop.f32.mrb[0].mxu0
      %v8728 = vpop.f32.mrb[0].mxu0
      %v8729 = vadd.f32 %v8407, %v8728
      %v8730 = vpop.f32.mrb[0].mxu0
      %8731 = vmatprep.mubr.bf16.mxu0 %v8361
      %8732 = vmatmul.mubr.bf16.gmra.mrb[0].mxu0 %v8360
      %v8733 = vpop.f32.mrb[0].mxu0
      %v8734 = vadd.f32 %v8407, %v8733
      %v8735 = vpop.f32.mrb[0].mxu0
      %v8736 = vpop.f32.mrb[0].mxu0
      %v8737 = vadd.f32 %v8407, %v8736
      %v8738 = vpop.f32.mrb[0].mxu0
      %8739 = vmatprep.mubr.bf16.mxu0 %v8364
      %8740 = vmatmul.mubr.bf16.gmra.mrb[0].mxu0 %v8363
      %v8741 = vpop.f32.mrb[0].mxu0
      %v8742 = vadd.f32 %v8407, %v8741
      %v8743 = vpop.f32.mrb[0].mxu0
      %v8744 = vpop.f32.mrb[0].mxu0
      %v8745 = vadd.f32 %v8407, %v8744
      %v8746 = vpop.f32.mrb[0].mxu0
      %8747 = vdwg.mxu0
      %8748 = vmatprep.subr.bf16.mxu0 0
      %8749 = vmatpush1.bf16.msra.mxu0 %v8497
      %8750 = vmatprep.subr.bf16.mxu0 0
      %8751 = vmatpush1.bf16.msra.mxu0 %v8498
      %8752 = vmatprep.subr.bf16.mxu0 0
      %8753 = vmatpush1.bf16.msra.mxu0 0
      %8754 = vmatprep.subr.bf16.mxu0 0
      %8755 = vmatpush1.bf16.msra.mxu0 0
      %8756 = vmatprep.subr.bf16.mxu0 0
      %8757 = vmatpush1.bf16.msra.mxu0 0
      %8758 = vmatprep.subr.bf16.mxu0 0
      %8759 = vmatpush1.bf16.msra.mxu0 0
      %8760 = vmatprep.subr.bf16.mxu0 0
      %8761 = vmatpush1.bf16.msra.mxu0 0
      %8762 = vmatprep.subr.bf16.mxu0 0
      %8763 = vmatpush1.bf16.msra.mxu0 0
      %8764 = vmatprep.subr.bf16.mxu0 0
      %8765 = vmatpush1.bf16.msra.mxu0 0
      %8766 = vmatprep.subr.bf16.mxu0 0
      %8767 = vmatpush1.bf16.msra.mxu0 0
      %8768 = vmatprep.subr.bf16.mxu0 0
      %8769 = vmatpush1.bf16.msra.mxu0 0
      %8770 = vmatprep.subr.bf16.mxu0 0
      %8771 = vmatpush1.bf16.msra.mxu0 0
      %8772 = vmatprep.subr.bf16.mxu0 0
      %8773 = vmatpush1.bf16.msra.mxu0 0
      %8774 = vmatprep.subr.bf16.mxu0 0
      %8775 = vmatpush1.bf16.msra.mxu0 0
      %8776 = vmatprep.subr.bf16.mxu0 0
      %8777 = vmatpush1.bf16.msra.mxu0 0
      %8778 = vmatprep.subr.bf16.mxu0 0
      %8779 = vmatpush1.bf16.msra.mxu0 0
      %8780 = vmatprep.mubr.bf16.mxu0 0
      %8781 = vmatmul.mubr.bf16.gmra.mrb[0].mxu0 %v8518
      %v8782 = vpop.f32.mrb[0].mxu0
      %v8783 = vadd.f32 %v8606, %v8782
      %v8784 = vpop.f32.mrb[0].mxu0
      %v8785 = vpop.f32.mrb[0].mxu0
      %v8786 = vadd.f32 %v8609, %v8785
      %v8787 = vpop.f32.mrb[0].mxu0
      %8788 = vmatprep.mubr.bf16.mxu0 0
      %8789 = vmatmul.mubr.bf16.gmra.mrb[0].mxu0 %v8521
      %v8790 = vpop.f32.mrb[0].mxu0
      %v8791 = vadd.f32 %v8614, %v8790
      %v8792 = vpop.f32.mrb[0].mxu0
      %v8793 = vpop.f32.mrb[0].mxu0
      %v8794 = vadd.f32 %v8617, %v8793
      %v8795 = vpop.f32.mrb[0].mxu0
      %8796 = vmatprep.mubr.bf16.mxu0 0
      %8797 = vmatmul.mubr.bf16.gmra.mrb[0].mxu0 %v8524
      %v8798 = vpop.f32.mrb[0].mxu0
      %v8799 = vadd.f32 %v8622, %v8798
      %v8800 = vpop.f32.mrb[0].mxu0
      %v8801 = vpop.f32.mrb[0].mxu0
      %v8802 = vadd.f32 %v8625, %v8801
      %v8803 = vpop.f32.mrb[0].mxu0
      %8804 = vmatprep.mubr.bf16.mxu0 0
      %8805 = vmatmul.mubr.bf16.gmra.mrb[0].mxu0 %v8527
      %v8806 = vpop.f32.mrb[0].mxu0
      %v8807 = vadd.f32 %v8630, %v8806
      %v8808 = vpop.f32.mrb[0].mxu0
      %v8809 = vpop.f32.mrb[0].mxu0
      %v8810 = vadd.f32 %v8633, %v8809
      %v8811 = vpop.f32.mrb[0].mxu0
      %8812 = vmatprep.mubr.bf16.mxu0 0
      %8813 = vmatmul.mubr.bf16.gmra.mrb[0].mxu0 %v8530
      %v8814 = vpop.f32.mrb[0].mxu0
      %v8815 = vadd.f32 %v8638, %v8814
      %v8816 = vpop.f32.mrb[0].mxu0
      %v8817 = vpop.f32.mrb[0].mxu0
      %v8818 = vadd.f32 %v8641, %v8817
      %v8819 = vpop.f32.mrb[0].mxu0
      %8820 = vmatprep.mubr.bf16.mxu0 0
      %8821 = vmatmul.mubr.bf16.gmra.mrb[0].mxu0 %v8533
      %v8822 = vpop.f32.mrb[0].mxu0
      %v8823 = vadd.f32 %v8646, %v8822
      %v8824 = vpop.f32.mrb[0].mxu0
      %v8825 = vpop.f32.mrb[0].mxu0
      %v8826 = vadd.f32 %v8649, %v8825
      %v8827 = vpop.f32.mrb[0].mxu0
      %8828 = vmatprep.mubr.bf16.mxu0 0
      %8829 = vmatmul.mubr.bf16.gmra.mrb[0].mxu0 %v8536
      %v8830 = vpop.f32.mrb[0].mxu0
      %v8831 = vadd.f32 %v8654, %v8830
      %v8832 = vpop.f32.mrb[0].mxu0
      %v8833 = vpop.f32.mrb[0].mxu0
      %v8834 = vadd.f32 %v8657, %v8833
      %v8835 = vpop.f32.mrb[0].mxu0
      %8836 = vmatprep.mubr.bf16.mxu0 0
      %8837 = vmatmul.mubr.bf16.gmra.mrb[0].mxu0 %v8539
      %v8838 = vpop.f32.mrb[0].mxu0
      %v8839 = vadd.f32 %v8662, %v8838
      %v8840 = vpop.f32.mrb[0].mxu0
      %v8841 = vpop.f32.mrb[0].mxu0
      %v8842 = vadd.f32 %v8665, %v8841
      %v8843 = vpop.f32.mrb[0].mxu0
      %8844 = vmatprep.mubr.bf16.mxu0 0
      %8845 = vmatmul.mubr.bf16.gmra.mrb[0].mxu0 %v8542
      %v8846 = vpop.f32.mrb[0].mxu0
      %v8847 = vadd.f32 %v8670, %v8846
      %v8848 = vpop.f32.mrb[0].mxu0
      %v8849 = vpop.f32.mrb[0].mxu0
      %v8850 = vadd.f32 %v8673, %v8849
      %v8851 = vpop.f32.mrb[0].mxu0
      %8852 = vmatprep.mubr.bf16.mxu0 0
      %8853 = vmatmul.mubr.bf16.gmra.mrb[0].mxu0 %v8545
      %v8854 = vpop.f32.mrb[0].mxu0
      %v8855 = vadd.f32 %v8678, %v8854
      %v8856 = vpop.f32.mrb[0].mxu0
      %v8857 = vpop.f32.mrb[0].mxu0
      %v8858 = vadd.f32 %v8681, %v8857
      %v8859 = vpop.f32.mrb[0].mxu0
      %8860 = vmatprep.mubr.bf16.mxu0 0
      %8861 = vmatmul.mubr.bf16.gmra.mrb[0].mxu0 %v8548
      %v8862 = vpop.f32.mrb[0].mxu0
      %v8863 = vadd.f32 %v8686, %v8862
      %v8864 = vpop.f32.mrb[0].mxu0
      %v8865 = vpop.f32.mrb[0].mxu0
      %v8866 = vadd.f32 %v8689, %v8865
      %v8867 = vpop.f32.mrb[0].mxu0
      %8868 = vmatprep.mubr.bf16.mxu0 0
      %8869 = vmatmul.mubr.bf16.gmra.mrb[0].mxu0 %v8551
      %v8870 = vpop.f32.mrb[0].mxu0
      %v8871 = vadd.f32 %v8694, %v8870
      %v8872 = vpop.f32.mrb[0].mxu0
      %v8873 = vpop.f32.mrb[0].mxu0
      %v8874 = vadd.f32 %v8697, %v8873
      %v8875 = vpop.f32.mrb[0].mxu0
      %8876 = vmatprep.mubr.bf16.mxu0 0
      %8877 = vmatmul.mubr.bf16.gmra.mrb[0].mxu0 %v8554
      %v8878 = vpop.f32.mrb[0].mxu0
      %v8879 = vadd.f32 %v8702, %v8878
      %v8880 = vpop.f32.mrb[0].mxu0
      %v8881 = vpop.f32.mrb[0].mxu0
      %v8882 = vadd.f32 %v8705, %v8881
      %v8883 = vpop.f32.mrb[0].mxu0
      %8884 = vmatprep.mubr.bf16.mxu0 0
      %8885 = vmatmul.mubr.bf16.gmra.mrb[0].mxu0 %v8557
      %v8886 = vpop.f32.mrb[0].mxu0
      %v8887 = vadd.f32 %v8710, %v8886
      %v8888 = vpop.f32.mrb[0].mxu0
      %v8889 = vpop.f32.mrb[0].mxu0
      %v8890 = vadd.f32 %v8713, %v8889
      %v8891 = vpop.f32.mrb[0].mxu0
      %8892 = vmatprep.mubr.bf16.mxu0 0
      %8893 = vmatmul.mubr.bf16.gmra.mrb[0].mxu0 %v8560
      %v8894 = vpop.f32.mrb[0].mxu0
      %v8895 = vadd.f32 %v8718, %v8894
      %v8896 = vpop.f32.mrb[0].mxu0
      %v8897 = vpop.f32.mrb[0].mxu0
      %v8898 = vadd.f32 %v8721, %v8897
      %v8899 = vpop.f32.mrb[0].mxu0
      %8900 = vmatprep.mubr.bf16.mxu0 0
      %8901 = vmatmul.mubr.bf16.gmra.mrb[0].mxu0 %v8563
      %v8902 = vpop.f32.mrb[0].mxu0
      %v8903 = vadd.f32 %v8726, %v8902
      %v8904 = vpop.f32.mrb[0].mxu0
      %v8905 = vpop.f32.mrb[0].mxu0
      %v8906 = vadd.f32 %v8729, %v8905
      %v8907 = vpop.f32.mrb[0].mxu0
      %8908 = vmatprep.mubr.bf16.mxu0 0
      %8909 = vmatmul.mubr.bf16.gmra.mrb[0].mxu0 %v8566
      %v8910 = vpop.f32.mrb[0].mxu0
      %v8911 = vadd.f32 %v8734, %v8910
      %v8912 = vpop.f32.mrb[0].mxu0
      %v8913 = vpop.f32.mrb[0].mxu0
      %v8914 = vadd.f32 %v8737, %v8913
      %v8915 = vpop.f32.mrb[0].mxu0
      %8916 = vmatprep.mubr.bf16.mxu0 0
      %8917 = vmatmul.mubr.bf16.gmra.mrb[0].mxu0 %v8569
      %v8918 = vpop.f32.mrb[0].mxu0
      %v8919 = vadd.f32 %v8742, %v8918
      %v8920 = vpop.f32.mrb[0].mxu0
      %v8921 = vpop.f32.mrb[0].mxu0
      %v8922 = vadd.f32 %v8745, %v8921
      %v8923 = vpop.f32.mrb[0].mxu0
      %8924 = vdwg.mxu0
      %v8925 = vpack.c.bf16 %v8786, %v8783
      %v8926 = vpack.c.bf16 %v8794, %v8791
      %v8927 = vpack.c.bf16 %v8802, %v8799
      %v8928 = vpack.c.bf16 %v8810, %v8807
      %v8929 = vpack.c.bf16 %v8818, %v8815
      %v8930 = vpack.c.bf16 %v8826, %v8823
      %v8931 = vpack.c.bf16 %v8834, %v8831
      %v8932 = vpack.c.bf16 %v8842, %v8839
      %v8933 = vpack.c.bf16 %v8850, %v8847
      %v8934 = vpack.c.bf16 %v8858, %v8855
      %v8935 = vpack.c.bf16 %v8866, %v8863
      %v8936 = vpack.c.bf16 %v8874, %v8871
      %v8937 = vpack.c.bf16 %v8882, %v8879
      %v8938 = vpack.c.bf16 %v8890, %v8887
      %v8939 = vpack.c.bf16 %v8898, %v8895
      %v8940 = vpack.c.bf16 %v8906, %v8903
      %v8941 = vpack.c.bf16 %v8914, %v8911
      %v8942 = vpack.c.bf16 %v8922, %v8919
      %v8961 = vunpack.c.l.b16 %v8925
      %v8962 = vunpack.c.h.b16 %v8925
      %v8963 = vunpack.c.l.b16 %v8926
      %v8964 = vunpack.c.h.b16 %v8926
      %v8965 = vunpack.c.l.b16 %v8927
      %v8966 = vunpack.c.h.b16 %v8927
      %v8967 = vunpack.c.l.b16 %v8928
      %v8968 = vunpack.c.h.b16 %v8928
      %v8969 = vunpack.c.l.b16 %v8929
      %v8970 = vunpack.c.h.b16 %v8929
      %v8971 = vunpack.c.l.b16 %v8930
      %v8972 = vunpack.c.h.b16 %v8930
      %v8973 = vunpack.c.l.b16 %v8931
      %v8974 = vunpack.c.h.b16 %v8931
      %v8975 = vunpack.c.l.b16 %v8932
      %v8976 = vunpack.c.h.b16 %v8932
      %v8977 = vunpack.c.l.b16 %v8933
      %v8978 = vunpack.c.h.b16 %v8933
      %v8979 = vunpack.c.l.b16 %v8934
      %v8980 = vunpack.c.h.b16 %v8934
      %v8981 = vunpack.c.l.b16 %v8935
      %v8982 = vunpack.c.h.b16 %v8935
      %v8983 = vunpack.c.l.b16 %v8936
      %v8984 = vunpack.c.h.b16 %v8936
      %v8985 = vunpack.c.l.b16 %v8937
      %v8986 = vunpack.c.h.b16 %v8937
      %v8987 = vunpack.c.l.b16 %v8938
      %v8988 = vunpack.c.h.b16 %v8938
      %v8989 = vunpack.c.l.b16 %v8939
      %v8990 = vunpack.c.h.b16 %v8939
      %v8991 = vunpack.c.l.b16 %v8940
      %v8992 = vunpack.c.h.b16 %v8940
      %v8993 = vunpack.c.l.b16 %v8941
      %v8994 = vunpack.c.h.b16 %v8941
      %v8995 = vunpack.c.l.b16 %v8942
      %v8996 = vunpack.c.h.b16 %v8942
      %v8997 = vpack.c.b16 %v8961, %v8961
      %v8998 = vpack.c.b16 %v8962, %v8962
      %v8999 = vpack.c.b16 %v8963, %v8963
      %v9000 = vpack.c.b16 %v8964, %v8964
      %v9001 = vpack.c.b16 %v8965, %v8965
      %v9002 = vpack.c.b16 %v8966, %v8966
      %v9003 = vpack.c.b16 %v8967, %v8967
      %v9004 = vpack.c.b16 %v8968, %v8968
      %v9005 = vpack.c.b16 %v8969, %v8969
      %v9006 = vpack.c.b16 %v8970, %v8970
      %v9007 = vpack.c.b16 %v8971, %v8971
      %v9008 = vpack.c.b16 %v8972, %v8972
      %v9009 = vpack.c.b16 %v8973, %v8973
      %v9010 = vpack.c.b16 %v8974, %v8974
      %v9011 = vpack.c.b16 %v8975, %v8975
      %v9012 = vpack.c.b16 %v8976, %v8976
      %v9013 = vpack.c.b16 %v8977, %v8977
      %v9014 = vpack.c.b16 %v8978, %v8978
      %v9015 = vpack.c.b16 %v8979, %v8979
      %v9016 = vpack.c.b16 %v8980, %v8980
      %v9017 = vpack.c.b16 %v8981, %v8981
      %v9018 = vpack.c.b16 %v8982, %v8982
      %v9019 = vpack.c.b16 %v8983, %v8983
      %v9020 = vpack.c.b16 %v8984, %v8984
      %v9021 = vpack.c.b16 %v8985, %v8985
      %v9022 = vpack.c.b16 %v8986, %v8986
      %v9023 = vpack.c.b16 %v8987, %v8987
      %v9024 = vpack.c.b16 %v8988, %v8988
      %v9025 = vpack.c.b16 %v8989, %v8989
      %v9026 = vpack.c.b16 %v8990, %v8990
      %v9027 = vpack.c.b16 %v8991, %v8991
      %v9028 = vpack.c.b16 %v8992, %v8992
      %v9029 = vpack.c.b16 %v8993, %v8993
      %v9030 = vpack.c.b16 %v8994, %v8994
      %v9031 = vpack.c.b16 %v8995, %v8995
      %v9032 = vpack.c.b16 %v8996, %v8996
      %vm9069 = vcmask 68608
      %9070 = vst.msk [vmem:[%s359] sm:$0xf] %vm9069, %v8997
      %9071 = vst.msk [vmem:[%s359 + $0x4] sm:$0xf] %vm9069, %v8998
      %9072 = vst.msk [vmem:[%s359 + $0x8] sm:$0xf] %vm9069, %v8999
      %9073 = vst.msk [vmem:[%s359 + $0xc] sm:$0xf] %vm9069, %v9000
      %9074 = vst.msk [vmem:[%s359 + $0x10] sm:$0xf] %vm9069, %v9001
      %9075 = vst.msk [vmem:[%s359 + $0x14] sm:$0xf] %vm9069, %v9002
      %9076 = vst.msk [vmem:[%s359 + $0x18] sm:$0xf] %vm9069, %v9003
      %9077 = vst.msk [vmem:[%s359 + $0x1c] sm:$0xf] %vm9069, %v9004
      %9078 = vst.msk [vmem:[%s359 + $0x20] sm:$0xf] %vm9069, %v9005
      %9079 = vst.msk [vmem:[%s359 + $0x24] sm:$0xf] %vm9069, %v9006
      %9080 = vst.msk [vmem:[%s359 + $0x28] sm:$0xf] %vm9069, %v9007
      %9081 = vst.msk [vmem:[%s359 + $0x2c] sm:$0xf] %vm9069, %v9008
      %9082 = vst.msk [vmem:[%s359 + $0x30] sm:$0xf] %vm9069, %v9009
      %9083 = vst.msk [vmem:[%s359 + $0x34] sm:$0xf] %vm9069, %v9010
      %9084 = vst.msk [vmem:[%s359 + $0x38] sm:$0xf] %vm9069, %v9011
      %9085 = vst.msk [vmem:[%s359 + $0x3c] sm:$0xf] %vm9069, %v9012
      %9086 = vst.msk [vmem:[%s359 + $0x40] sm:$0xf] %vm9069, %v9013
      %9087 = vst.msk [vmem:[%s359 + $0x44] sm:$0xf] %vm9069, %v9014
      %9088 = vst.msk [vmem:[%s359 + $0x48] sm:$0xf] %vm9069, %v9015
      %9089 = vst.msk [vmem:[%s359 + $0x4c] sm:$0xf] %vm9069, %v9016
      %9090 = vst.msk [vmem:[%s359 + $0x50] sm:$0xf] %vm9069, %v9017
      %9091 = vst.msk [vmem:[%s359 + $0x54] sm:$0xf] %vm9069, %v9018
      %9092 = vst.msk [vmem:[%s359 + $0x58] sm:$0xf] %vm9069, %v9019
      %9093 = vst.msk [vmem:[%s359 + $0x5c] sm:$0xf] %vm9069, %v9020
      %9094 = vst.msk [vmem:[%s359 + $0x60] sm:$0xf] %vm9069, %v9021
      %9095 = vst.msk [vmem:[%s359 + $0x64] sm:$0xf] %vm9069, %v9022
      %9096 = vst.msk [vmem:[%s359 + $0x68] sm:$0xf] %vm9069, %v9023
      %9097 = vst.msk [vmem:[%s359 + $0x6c] sm:$0xf] %vm9069, %v9024
      %9098 = vst.msk [vmem:[%s359 + $0x70] sm:$0xf] %vm9069, %v9025
      %9099 = vst.msk [vmem:[%s359 + $0x74] sm:$0xf] %vm9069, %v9026
      %9100 = vst.msk [vmem:[%s359 + $0x78] sm:$0xf] %vm9069, %v9027
      %9101 = vst.msk [vmem:[%s359 + $0x7c] sm:$0xf] %vm9069, %v9028
      %9102 = vst.msk [vmem:[%s359 + $0x80] sm:$0xf] %vm9069, %v9029
      %9103 = vst.msk [vmem:[%s359 + $0x84] sm:$0xf] %vm9069, %v9030
      %9104 = vst.msk [vmem:[%s359 + $0x88] sm:$0xf] %vm9069, %v9031
      %9105 = vst.msk [vmem:[%s359 + $0x8c] sm:$0xf] %vm9069, %v9032
      %p9106 = scmp.lt.s32.totalorder %s21, 1
      %s9107 = scalar_select %p9106, %s21, 1
      %s9108 = smul.addr %s9107, 36
      %s9109 = smul.addr %s9108, 4
      %s9110 = scalar_lea.vmem %s10, %s9109
      // Predicated region
      $region61: #{superres_forward.1} parent=59 // pred_check
        %p9111 = pneg %p254
      $region62: #{superres_forward.1} parent=59 // pred_check_branch
        %9113 = sbr.rel (%p9111) target = $region64
      $region63: #{superres_forward.1} parent=59 // pred_region
        _
      $region64: #{superres_forward.1} parent=59 // pred_fallthru
        _
    $region60: #{superres_forward.1} parent=5 // pred_fallthru
      _
    %p9114 = scmp.le.s32.totalorder 2, %s16
    // Predicated region
    $region65: #{superres_forward.1} parent=5 // pred_check
      %p9115 = pneg %p9114
    $region66: #{superres_forward.1} parent=5 // pred_check_branch
      %9117 = sbr.rel (%p9115) target = $region68
    $region67: #{superres_forward.1} parent=5 // pred_region
      %s9118 = ssub.s32 %s16, 2
      // Predicated region
      $region69: #{superres_forward.1} parent=67 // pred_check
        %p9119 = pneg %p260
      $region70: #{superres_forward.1} parent=67 // pred_check_branch
        %9121 = sbr.rel (%p9119) target = $region72
      $region71: #{superres_forward.1} parent=67 // pred_region
        %p9122 = scmp.lt.s32.totalorder %s22, 1
        %s9123 = scalar_select %p9122, %s22, 1
        %s9124 = smul.addr %s9123, 36
        %s9125 = smul.addr %s9124, 4
        %s9126 = scalar_lea.vmem %s10, %s9125
      $region72: #{superres_forward.1} parent=67 // pred_fallthru
        _
    $region68: #{superres_forward.1} parent=5 // pred_fallthru
      _
  $region6: #{superres_forward.1} parent=0 // loop_footer
    %s20 = sadd.s32 1, %s16
  $region7: #{superres_forward.1} parent=0 // loop_footer_branch
    %15 = sbr.rel target = $region3
  $region8: #{superres_forward.1} parent=0 // loop_exit
    _

</llo_original>
